<compile_context>
chip_gen: v7x
topology: tpu7x:2x2x1
jax: 0.10.0
libtpu: 0.0.40
codegen_flags: <defaults>
</compile_context>

<pallas_src>
import math
from functools import partial

import numpy as np
import jax
import jax.numpy as jnp
from jax.experimental import pallas as pl
from jax.experimental.pallas import tpu as pltpu

NUM_HEADS = 16  # CrossAttention(embed_dim=64, num_heads=16)


# ----------------------------- Pallas kernels ------------------------------

def _conv_kernel(w_ref, cols_ref, b_ref, o_ref, *, relu):
    # (Cout, K) @ (K, Mt) + bias  ->  lane-dense (Cout, Mt)
    acc = jnp.dot(w_ref[...], cols_ref[...], preferred_element_type=jnp.float32)
    acc = acc + b_ref[...]
    if relu:
        acc = jnp.maximum(acc, 0.0)
    o_ref[...] = acc


def _conv_res_kernel(w_ref, cols_ref, b_ref, res_ref, o_ref):
    # TemporalBlock tail: relu(conv2 + bias), then relu(+ residual) — fused.
    acc = jnp.dot(w_ref[...], cols_ref[...], preferred_element_type=jnp.float32)
    acc = jnp.maximum(acc + b_ref[...], 0.0)
    o_ref[...] = jnp.maximum(acc + res_ref[...], 0.0)


def _mha_fc_kernel(q_ref, kv_ref, wq_ref, wk_ref, wv_ref, bq_ref, bk_ref, bv_ref,
                   wo_ref, bo_ref, fcw_ref, fcb_ref, maskb_ref, sel_ref, selt_ref,
                   logits_ref, out_ref, attnw_ref, *, num_heads, scale):
    # One batch element per grid step.  Heads are handled with a static
    # block-diagonal mask (nH*L, E) + selector matmuls so every in-kernel op
    # is a plain 2-D matmul / elementwise op with E=64 or S=576 on lanes.
    mask_big = maskb_ref[...]            # (nH*L, E)
    sel = sel_ref[...]                   # (L, nH*L)
    selt = selt_ref[...]                 # (nH*L, L)

    q = jnp.dot(q_ref[...], wq_ref[...], preferred_element_type=jnp.float32) + bq_ref[...]
    k = jnp.dot(kv_ref[...], wk_ref[...], preferred_element_type=jnp.float32) + bk_ref[...]
    v = jnp.dot(kv_ref[...], wv_ref[...], preferred_element_type=jnp.float32) + bv_ref[...]

    # per-(head, query) rows with out-of-head features zeroed
    qh = jnp.dot(selt, q, preferred_element_type=jnp.float32) * mask_big        # (nH*L, E)
    s = jax.lax.dot_general(qh, k, (((1,), (1,)), ((), ())),
                            preferred_element_type=jnp.float32) * scale         # (nH*L, S)
    s = s - jnp.max(s, axis=-1, keepdims=True)
    p = jnp.exp(s)
    p = p * pl.reciprocal(jnp.sum(p, axis=-1, keepdims=True), approx=False)

    # head-averaged attention weights (L, S) computed in-kernel
    attnw_ref[...] = jnp.dot(sel, p, preferred_element_type=jnp.float32) * (1.0 / num_heads)

    o_full = jnp.dot(p, v, preferred_element_type=jnp.float32)                  # (nH*L, E)
    o = jnp.dot(sel, o_full * mask_big, preferred_element_type=jnp.float32)     # (L, E)
    o = jnp.dot(o, wo_ref[...], preferred_element_type=jnp.float32) + bo_ref[...]
    out_ref[...] = o

    om = jnp.mean(o, axis=0, keepdims=True)                                     # (1, E)
    logits_ref[...] = (jnp.dot(om, fcw_ref[...], preferred_element_type=jnp.float32)
                       + fcb_ref[...])


# ----------------------------- Pallas wrappers ------------------------------

def matmul_bias_cm(w_r, cols, bias_col, relu=False, res=None, m_tile=512):
    """(Cout, K) @ (K, M) + bias with optional fused ReLU / residual+ReLU.

    Output is (Cout, M): the big dim M sits on the lane axis.  When M divides
    evenly, it is tiled over a "parallel" grid so the largest GEMMs pipeline
    their DMAs and can split across TensorCores (v7x megacore)."""
    Cout, K = w_r.shape
    M = cols.shape[1]
    if M % m_tile == 0 and M // m_tile >= 2:
        grid = (M // m_tile,)
        mt = m_tile
    else:
        grid = (1,)
        mt = M
    w_spec = pl.BlockSpec((Cout, K), lambda m: (0, 0))
    c_spec = pl.BlockSpec((K, mt), lambda m: (0, m))
    b_spec = pl.BlockSpec((Cout, 1), lambda m: (0, 0))
    o_spec = pl.BlockSpec((Cout, mt), lambda m: (0, m))
    if res is None:
        kernel = partial(_conv_kernel, relu=relu)
        in_specs = [w_spec, c_spec, b_spec]
        operands = (w_r, cols, bias_col)
    else:
        kernel = _conv_res_kernel
        in_specs = [w_spec, c_spec, b_spec, pl.BlockSpec((Cout, mt), lambda m: (0, m))]
        operands = (w_r, cols, bias_col, res)
    return pl.pallas_call(
        kernel,
        grid=grid,
        in_specs=in_specs,
        out_specs=o_spec,
        out_shape=jax.ShapeDtypeStruct((Cout, M), jnp.float32),
        compiler_params=pltpu.CompilerParams(dimension_semantics=("parallel",)),
    )(*operands)


def mha_mean_fc_pallas(p_mha, fc_w, fc_b, q_ble, kv_bse, num_heads):
    """Fused MultiheadAttention + head-mean weights + temporal mean + fc_out."""
    B, L, E = q_ble.shape
    S = kv_bse.shape[1]
    NC = fc_w.shape[1]
    d = E // num_heads
    nhl = num_heads * L

    in_w, in_b = p_mha['in_w'], p_mha['in_b']
    wq_t, wk_t, wv_t = in_w[:E].T, in_w[E:2 * E].T, in_w[2 * E:].T
    bq, bk, bv = in_b[:E][None, :], in_b[E:2 * E][None, :], in_b[2 * E:][None, :]
    wo_t, bo = p_mha['out_w'].T, p_mha['out_b'][None, :]

    # static head-bookkeeping matrices (keep every in-kernel op 2-D)
    j_idx = jnp.arange(nhl)
    sel = (j_idx[None, :] % L == jnp.arange(L)[:, None]).astype(jnp.float32)   # (L, nH*L)
    selt = sel.T                                                               # (nH*L, L)
    mask_big = ((j_idx[:, None] // L) ==
                (jnp.arange(E)[None, :] // d)).astype(jnp.float32)             # (nH*L, E)

    def full(shape):
        n = len(shape)
        return pl.BlockSpec(shape, lambda b, _n=n: (0,) * _n)

    logits3, out_ble, attn_w = pl.pallas_call(
        partial(_mha_fc_kernel, num_heads=num_heads, scale=1.0 / math.sqrt(d)),
        grid=(B,),
        in_specs=[
            pl.BlockSpec((None, L, E), lambda b: (b, 0, 0)),   # query (per batch)
            pl.BlockSpec((None, S, E), lambda b: (b, 0, 0)),   # key/value source
            full((E, E)), full((E, E)), full((E, E)),
            full((1, E)), full((1, E)), full((1, E)),
            full((E, E)), full((1, E)),
            full((E, NC)), full((1, NC)),
            full((nhl, E)), full((L, nhl)), full((nhl, L)),
        ],
        out_specs=[
            pl.BlockSpec((None, 1, NC), lambda b: (b, 0, 0)),
            pl.BlockSpec((None, L, E), lambda b: (b, 0, 0)),
            pl.BlockSpec((None, L, S), lambda b: (b, 0, 0)),
        ],
        out_shape=[
            jax.ShapeDtypeStruct((B, 1, NC), jnp.float32),
            jax.ShapeDtypeStruct((B, L, E), jnp.float32),
            jax.ShapeDtypeStruct((B, L, S), jnp.float32),
        ],
        compiler_params=pltpu.CompilerParams(dimension_semantics=("parallel",)),
    )(q_ble, kv_bse, wq_t, wk_t, wv_t, bq, bk, bv, wo_t, bo, fc_w, fc_b,
      mask_big, sel, selt)
    return logits3[:, 0, :], out_ble, attn_w


# ----------------------------- Conv glue (im2col, channels-leading) ---------

def conv2d_cf(x, w, b, stride, pad, relu=False, res=None):
    """Conv2d on channels-leading activations.  x: (Cin, N, H, W)."""
    Cin, N, H, W = x.shape
    Cout, _, kh, kw = w.shape
    Ho = (H + 2 * pad - kh) // stride + 1
    Wo = (W + 2 * pad - kw) // stride + 1
    xp = jnp.pad(x, ((0, 0), (0, 0), (pad, pad), (pad, pad)))
    patches = [xp[:, :, di:di + stride * (Ho - 1) + 1:stride,
                  dj:dj + stride * (Wo - 1) + 1:stride]
               for di in range(kh) for dj in range(kw)]
    cols = jnp.stack(patches, axis=0).reshape(kh * kw * Cin, N * Ho * Wo)
    w_r = jnp.transpose(w, (0, 2, 3, 1)).reshape(Cout, kh * kw * Cin)
    out = matmul_bias_cm(w_r, cols, b.reshape(Cout, 1), relu=relu, res=res)
    return out.reshape(Cout, N, Ho, Wo)


def downsample_cf(x, w, b):
    """1x1 stride-2 conv; returns flat (Cout, N*Hd*Wd) for residual fusion."""
    Cin, N, H, W = x.shape
    Cout = w.shape[0]
    xs = x[:, :, ::2, ::2]
    Hd, Wd = xs.shape[2], xs.shape[3]
    cols = xs.reshape(Cin, N * Hd * Wd)
    return matmul_bias_cm(w.reshape(Cout, Cin), cols, b.reshape(Cout, 1))


def temporal_block_cf(p, x):
    # reference net: conv1 -> relu -> dropout(id) -> conv2 -> relu -> dropout(id),
    # then relu(out + downsample(x)).  Chomp2d modules are unused in the reference.
    # TODO(synk): Dropout2d(0.2) is treated as identity (eval-mode semantics).
    out1 = conv2d_cf(x, p['w1'], p['b1'], stride=2, pad=1, relu=True)
    res = downsample_cf(x, p['wd'], p['bd'])   # same spatial extent as conv2 output
    return conv2d_cf(out1, p['w2'], p['b2'], stride=1, pad=1, relu=True, res=res)


def _pool_matrix(in_size, out_size):
    m = np.zeros((out_size, in_size), np.float32)
    for i in range(out_size):
        s = (i * in_size) // out_size
        e = -(-((i + 1) * in_size) // out_size)
        m[i, s:e] = 1.0 / (e - s)
    return jnp.asarray(m)


# ----------------------------- Model forward --------------------------------

def sinusoidal_pe(seq_len, emb_dim):
    position = jnp.arange(seq_len, dtype=jnp.float32)[:, None]
    div_term = jnp.exp(jnp.arange(0, emb_dim, 2, dtype=jnp.float32)
                       * -(math.log(10000.0) / emb_dim))
    pe = jnp.zeros((seq_len, emb_dim), jnp.float32)
    pe = pe.at[:, 0::2].set(jnp.sin(position * div_term))
    pe = pe.at[:, 1::2].set(jnp.cos(position * div_term))
    return pe


def mustafa_forward(params, x, l3_labels, l2_labels):
    del l3_labels  # unused by the reference forward
    B, T, C, H, W = x.shape
    # channels-leading layout keeps the big batch*spatial dim on the lane axis
    xf = x.reshape(B * T, C, H, W).transpose(1, 0, 2, 3)        # (C, B*T, H, W)
    for blk in params['tcn']:
        xf = temporal_block_cf(blk, xf)

    # AdaptiveAvgPool2d((9, 16)) as one einsum with static pooling matrices
    E, N, Hf, Wf = xf.shape
    ph = _pool_matrix(Hf, 9)
    pw = _pool_matrix(Wf, 16)
    pooled = jnp.einsum('ih,cnhw,jw->cnij', ph, xf, pw)         # (E, B*T, 9, 16)
    HW = 9 * 16

    # key/value: (B, S=T*HW, E); positional encoding added over the channel dim
    kv = pooled.reshape(E, B, T, HW).transpose(1, 2, 3, 0)      # (B, T, HW, E)
    kv = kv + params['pos_img'][None, :, None, :]
    kv = kv.reshape(B, T * HW, E)

    # query: (B, T, E)
    q = params['l3_embed'][l2_labels] + params['pos_l3'][None, :, :]

    logits, out_ble, attn_w = mha_mean_fc_pallas(
        params['mha'], params['fc_w'], params['fc_b'], q, kv, NUM_HEADS)
    visualize = out_ble.transpose(1, 0, 2)                      # (T, B, E)
    return logits, visualize, attn_w


def init_params(key, num_classes=48, l3_feature_dim=64, window_size=4, num_l3_classes=48):
    E = l3_feature_dim
    keys = iter(jax.random.split(key, 40))
    chans = [16, 32, 64]
    tcn = []
    ins = 3
    for outc in chans:
        blk = {
            'w1': 0.01 * jax.random.normal(next(keys), (outc, ins, 3, 3), jnp.float32),
            'b1': 0.01 * jax.random.normal(next(keys), (outc,), jnp.float32),
            'w2': 0.01 * jax.random.normal(next(keys), (outc, outc, 3, 3), jnp.float32),
            'b2': 0.01 * jax.random.normal(next(keys), (outc,), jnp.float32),
            'wd': 0.01 * jax.random.normal(next(keys), (outc, ins, 1, 1), jnp.float32),
            'bd': 0.01 * jax.random.normal(next(keys), (outc,), jnp.float32),
        }
        tcn.append(blk)
        ins = outc
    params = {
        'tcn': tcn,
        'l3_embed': jax.random.normal(next(keys), (num_l3_classes, E), jnp.float32),
        'pos_img': sinusoidal_pe(window_size, E),
        'pos_l3': sinusoidal_pe(window_size, E),
        'mha': {
            'in_w': 0.05 * jax.random.normal(next(keys), (3 * E, E), jnp.float32),
            'in_b': 0.01 * jax.random.normal(next(keys), (3 * E,), jnp.float32),
            'out_w': 0.05 * jax.random.normal(next(keys), (E, E), jnp.float32),
            'out_b': jnp.zeros((E,), jnp.float32),
        },
        'fc_w': (0.05 * jax.random.normal(next(keys), (num_classes, E), jnp.float32)).T,
        'fc_b': 0.01 * jax.random.normal(next(keys), (1, num_classes), jnp.float32),
    }
    return params


if __name__ == "__main__":
    B, T, C, H, W = 2, 4, 3, 32, 32   # T must equal window_size=4
    key = jax.random.PRNGKey(0)
    kx, kl3, kl2 = jax.random.split(key, 3)
    x = jax.random.normal(kx, (B, T, C, H, W), jnp.float32)
    l3_labels = jax.random.randint(kl3, (B, T), 0, 48)
    l2_labels = jax.random.randint(kl2, (B, T), 0, 48)

    params = init_params(jax.random.PRNGKey(42))

    fwd = jax.jit(mustafa_forward)
    logits, visualize, attn_weights = fwd(params, x, l3_labels, l2_labels)
    jax.block_until_ready((logits, visualize, attn_weights))

    assert logits.shape == (B, 48)
    assert visualize.shape == (T, B, 64)
    assert attn_weights.shape == (B, T, 4 * 9 * 16)
    print("KERNEL_OK")
</pallas_src>

<mosaic_0001>
module attributes {stable_mosaic.version = 11 : i64} {
  func.func @_conv_kernel(%arg0: i32, %arg1: memref<16x27xf32, #tpu.memory_space<vmem>>, %arg2: memref<27x512xf32, #tpu.memory_space<vmem>>, %arg3: memref<16x1xf32, #tpu.memory_space<vmem>>, %arg4: memref<16x512xf32, #tpu.memory_space<vmem>>) attributes {dimension_semantics = [#tpu.dimension_semantics<parallel>], iteration_bounds = array<i64: 4>, scalar_prefetch = 0 : i64, scratch_operands = 0 : i64, tpu.core_type = #tpu.core_type<tc>, window_params = [{pipeline_mode = #tpu.pipeline_mode<synchronous>, transform_indices = @transform_0, window_bounds = array<i64: 16, 27>}, {transform_indices = @transform_1, window_bounds = array<i64: 27, 512>}, {pipeline_mode = #tpu.pipeline_mode<synchronous>, transform_indices = @transform_2, window_bounds = array<i64: 16, 1>}, {transform_indices = @transform_3, window_bounds = array<i64: 16, 512>}]} {
    %c0 = arith.constant 0 : index
    %c0_0 = arith.constant 0 : index
    %0 = vector.load %arg1[%c0, %c0_0] : memref<16x27xf32, #tpu.memory_space<vmem>>, vector<16x27xf32>
    %c0_1 = arith.constant 0 : index
    %c0_2 = arith.constant 0 : index
    %1 = vector.load %arg2[%c0_1, %c0_2] : memref<27x512xf32, #tpu.memory_space<vmem>>, vector<27x512xf32>
    %cst = arith.constant dense<0.000000e+00> : vector<16x512xf32>
    %2 = tpu.matmul %0, %1, %cst {dimension_numbers = #tpu.dot_dimension_numbers<[1], [0], [0], [1], [0, 0, 1, 1], [], []>} : vector<16x27xf32>, vector<27x512xf32>, vector<16x512xf32> -> vector<16x512xf32>
    %c0_3 = arith.constant 0 : index
    %c0_4 = arith.constant 0 : index
    %3 = vector.load %arg3[%c0_3, %c0_4] : memref<16x1xf32, #tpu.memory_space<vmem>>, vector<16x1xf32>
    %4 = vector.broadcast %3 : vector<16x1xf32> to vector<16x512xf32>
    %5 = arith.addf %2, %4 : vector<16x512xf32>
    %cst_5 = arith.constant 0.000000e+00 : f32
    %6 = vector.broadcast %cst_5 : f32 to vector<16x512xf32>
    %7 = arith.maximumf %5, %6 : vector<16x512xf32>
    %c0_6 = arith.constant 0 : index
    %c0_7 = arith.constant 0 : index
    %8 = vector.load %arg4[%c0_6, %c0_7] : memref<16x512xf32, #tpu.memory_space<vmem>>, vector<16x512xf32>
    tpu.vector_store %arg4[%c0_6, %c0_7], %7 {strides = array<i32>} : memref<16x512xf32, #tpu.memory_space<vmem>>, vector<16x512xf32>,
    return
  }
  func.func @transform_0(%arg0: i32) -> (i32, i32) {
    %c0_i32 = arith.constant 0 : i32
    %c0_i32_0 = arith.constant 0 : i32
    %c0_i32_1 = arith.constant 0 : i32
    return %c0_i32, %c0_i32_0 : i32, i32
  }
  func.func @transform_1(%arg0: i32) -> (i32, i32) {
    %c0_i32 = arith.constant 0 : i32
    %c0_i32_0 = arith.constant 0 : i32
    return %c0_i32, %arg0 : i32, i32
  }
  func.func @transform_2(%arg0: i32) -> (i32, i32) {
    %c0_i32 = arith.constant 0 : i32
    %c0_i32_0 = arith.constant 0 : i32
    %c0_i32_1 = arith.constant 0 : i32
    return %c0_i32, %c0_i32_0 : i32, i32
  }
  func.func @transform_3(%arg0: i32) -> (i32, i32) {
    %c0_i32 = arith.constant 0 : i32
    %c0_i32_0 = arith.constant 0 : i32
    return %c0_i32, %arg0 : i32, i32
  }
}

module attributes {stable_mosaic.version = 11 : i64} {
  func.func @_conv_kernel(%arg0: i32, %arg1: memref<16x3xf32, #tpu.memory_space<vmem>>, %arg2: memref<3x512xf32, #tpu.memory_space<vmem>>, %arg3: memref<16x1xf32, #tpu.memory_space<vmem>>, %arg4: memref<16x512xf32, #tpu.memory_space<vmem>>) attributes {dimension_semantics = [#tpu.dimension_semantics<parallel>], iteration_bounds = array<i64: 4>, scalar_prefetch = 0 : i64, scratch_operands = 0 : i64, tpu.core_type = #tpu.core_type<tc>, window_params = [{pipeline_mode = #tpu.pipeline_mode<synchronous>, transform_indices = @transform_0, window_bounds = array<i64: 16, 3>}, {transform_indices = @transform_1, window_bounds = array<i64: 3, 512>}, {pipeline_mode = #tpu.pipeline_mode<synchronous>, transform_indices = @transform_2, window_bounds = array<i64: 16, 1>}, {transform_indices = @transform_3, window_bounds = array<i64: 16, 512>}]} {
    %c0 = arith.constant 0 : index
    %c0_0 = arith.constant 0 : index
    %0 = vector.load %arg1[%c0, %c0_0] : memref<16x3xf32, #tpu.memory_space<vmem>>, vector<16x3xf32>
    %c0_1 = arith.constant 0 : index
    %c0_2 = arith.constant 0 : index
    %1 = vector.load %arg2[%c0_1, %c0_2] : memref<3x512xf32, #tpu.memory_space<vmem>>, vector<3x512xf32>
    %cst = arith.constant dense<0.000000e+00> : vector<16x512xf32>
    %2 = tpu.matmul %0, %1, %cst {dimension_numbers = #tpu.dot_dimension_numbers<[1], [0], [0], [1], [0, 0, 1, 1], [], []>} : vector<16x3xf32>, vector<3x512xf32>, vector<16x512xf32> -> vector<16x512xf32>
    %c0_3 = arith.constant 0 : index
    %c0_4 = arith.constant 0 : index
    %3 = vector.load %arg3[%c0_3, %c0_4] : memref<16x1xf32, #tpu.memory_space<vmem>>, vector<16x1xf32>
    %4 = vector.broadcast %3 : vector<16x1xf32> to vector<16x512xf32>
    %5 = arith.addf %2, %4 : vector<16x512xf32>
    %c0_5 = arith.constant 0 : index
    %c0_6 = arith.constant 0 : index
    %6 = vector.load %arg4[%c0_5, %c0_6] : memref<16x512xf32, #tpu.memory_space<vmem>>, vector<16x512xf32>
    tpu.vector_store %arg4[%c0_5, %c0_6], %5 {strides = array<i32>} : memref<16x512xf32, #tpu.memory_space<vmem>>, vector<16x512xf32>,
    return
  }
  func.func @transform_0(%arg0: i32) -> (i32, i32) {
    %c0_i32 = arith.constant 0 : i32
    %c0_i32_0 = arith.constant 0 : i32
    %c0_i32_1 = arith.constant 0 : i32
    return %c0_i32, %c0_i32_0 : i32, i32
  }
  func.func @transform_1(%arg0: i32) -> (i32, i32) {
    %c0_i32 = arith.constant 0 : i32
    %c0_i32_0 = arith.constant 0 : i32
    return %c0_i32, %arg0 : i32, i32
  }
  func.func @transform_2(%arg0: i32) -> (i32, i32) {
    %c0_i32 = arith.constant 0 : i32
    %c0_i32_0 = arith.constant 0 : i32
    %c0_i32_1 = arith.constant 0 : i32
    return %c0_i32, %c0_i32_0 : i32, i32
  }
  func.func @transform_3(%arg0: i32) -> (i32, i32) {
    %c0_i32 = arith.constant 0 : i32
    %c0_i32_0 = arith.constant 0 : i32
    return %c0_i32, %arg0 : i32, i32
  }
}

module attributes {stable_mosaic.version = 11 : i64} {
  func.func @_conv_res_kernel(%arg0: i32, %arg1: memref<16x144xf32, #tpu.memory_space<vmem>>, %arg2: memref<144x512xf32, #tpu.memory_space<vmem>>, %arg3: memref<16x1xf32, #tpu.memory_space<vmem>>, %arg4: memref<16x512xf32, #tpu.memory_space<vmem>>, %arg5: memref<16x512xf32, #tpu.memory_space<vmem>>) attributes {dimension_semantics = [#tpu.dimension_semantics<parallel>], iteration_bounds = array<i64: 4>, scalar_prefetch = 0 : i64, scratch_operands = 0 : i64, tpu.core_type = #tpu.core_type<tc>, window_params = [{pipeline_mode = #tpu.pipeline_mode<synchronous>, transform_indices = @transform_0, window_bounds = array<i64: 16, 144>}, {transform_indices = @transform_1, window_bounds = array<i64: 144, 512>}, {pipeline_mode = #tpu.pipeline_mode<synchronous>, transform_indices = @transform_2, window_bounds = array<i64: 16, 1>}, {transform_indices = @transform_3, window_bounds = array<i64: 16, 512>}, {transform_indices = @transform_4, window_bounds = array<i64: 16, 512>}]} {
    %c0 = arith.constant 0 : index
    %c0_0 = arith.constant 0 : index
    %0 = vector.load %arg1[%c0, %c0_0] : memref<16x144xf32, #tpu.memory_space<vmem>>, vector<16x144xf32>
    %c0_1 = arith.constant 0 : index
    %c0_2 = arith.constant 0 : index
    %1 = vector.load %arg2[%c0_1, %c0_2] : memref<144x512xf32, #tpu.memory_space<vmem>>, vector<144x512xf32>
    %cst = arith.constant dense<0.000000e+00> : vector<16x512xf32>
    %2 = tpu.matmul %0, %1, %cst {dimension_numbers = #tpu.dot_dimension_numbers<[1], [0], [0], [1], [0, 0, 1, 1], [], []>} : vector<16x144xf32>, vector<144x512xf32>, vector<16x512xf32> -> vector<16x512xf32>
    %c0_3 = arith.constant 0 : index
    %c0_4 = arith.constant 0 : index
    %3 = vector.load %arg3[%c0_3, %c0_4] : memref<16x1xf32, #tpu.memory_space<vmem>>, vector<16x1xf32>
    %4 = vector.broadcast %3 : vector<16x1xf32> to vector<16x512xf32>
    %5 = arith.addf %2, %4 : vector<16x512xf32>
    %cst_5 = arith.constant 0.000000e+00 : f32
    %6 = vector.broadcast %cst_5 : f32 to vector<16x512xf32>
    %7 = arith.maximumf %5, %6 : vector<16x512xf32>
    %c0_6 = arith.constant 0 : index
    %c0_7 = arith.constant 0 : index
    %8 = vector.load %arg4[%c0_6, %c0_7] : memref<16x512xf32, #tpu.memory_space<vmem>>, vector<16x512xf32>
    %9 = arith.addf %7, %8 : vector<16x512xf32>
    %cst_8 = arith.constant 0.000000e+00 : f32
    %10 = vector.broadcast %cst_8 : f32 to vector<16x512xf32>
    %11 = arith.maximumf %9, %10 : vector<16x512xf32>
    %c0_9 = arith.constant 0 : index
    %c0_10 = arith.constant 0 : index
    %12 = vector.load %arg5[%c0_9, %c0_10] : memref<16x512xf32, #tpu.memory_space<vmem>>, vector<16x512xf32>
    tpu.vector_store %arg5[%c0_9, %c0_10], %11 {strides = array<i32>} : memref<16x512xf32, #tpu.memory_space<vmem>>, vector<16x512xf32>,
    return
  }
  func.func @transform_0(%arg0: i32) -> (i32, i32) {
    %c0_i32 = arith.constant 0 : i32
    %c0_i32_0 = arith.constant 0 : i32
    %c0_i32_1 = arith.constant 0 : i32
    return %c0_i32, %c0_i32_0 : i32, i32
  }
  func.func @transform_1(%arg0: i32) -> (i32, i32) {
    %c0_i32 = arith.constant 0 : i32
    %c0_i32_0 = arith.constant 0 : i32
    return %c0_i32, %arg0 : i32, i32
  }
  func.func @transform_2(%arg0: i32) -> (i32, i32) {
    %c0_i32 = arith.constant 0 : i32
    %c0_i32_0 = arith.constant 0 : i32
    %c0_i32_1 = arith.constant 0 : i32
    return %c0_i32, %c0_i32_0 : i32, i32
  }
  func.func @transform_3(%arg0: i32) -> (i32, i32) {
    %c0_i32 = arith.constant 0 : i32
    %c0_i32_0 = arith.constant 0 : i32
    return %c0_i32, %arg0 : i32, i32
  }
  func.func @transform_4(%arg0: i32) -> (i32, i32) {
    %c0_i32 = arith.constant 0 : i32
    %c0_i32_0 = arith.constant 0 : i32
    return %c0_i32, %arg0 : i32, i32
  }
}

module attributes {stable_mosaic.version = 11 : i64} {
  func.func @_conv_kernel(%arg0: i32, %arg1: memref<32x144xf32, #tpu.memory_space<vmem>>, %arg2: memref<144x512xf32, #tpu.memory_space<vmem>>, %arg3: memref<32x1xf32, #tpu.memory_space<vmem>>, %arg4: memref<32x512xf32, #tpu.memory_space<vmem>>) attributes {dimension_semantics = [#tpu.dimension_semantics<parallel>], iteration_bounds = array<i64: 1>, scalar_prefetch = 0 : i64, scratch_operands = 0 : i64, tpu.core_type = #tpu.core_type<tc>, window_params = [{pipeline_mode = #tpu.pipeline_mode<synchronous>, transform_indices = @transform_0, window_bounds = array<i64: 32, 144>}, {transform_indices = @transform_1, window_bounds = array<i64: 144, 512>}, {pipeline_mode = #tpu.pipeline_mode<synchronous>, transform_indices = @transform_2, window_bounds = array<i64: 32, 1>}, {transform_indices = @transform_3, window_bounds = array<i64: 32, 512>}]} {
    %c0 = arith.constant 0 : index
    %c0_0 = arith.constant 0 : index
    %0 = vector.load %arg1[%c0, %c0_0] : memref<32x144xf32, #tpu.memory_space<vmem>>, vector<32x144xf32>
    %c0_1 = arith.constant 0 : index
    %c0_2 = arith.constant 0 : index
    %1 = vector.load %arg2[%c0_1, %c0_2] : memref<144x512xf32, #tpu.memory_space<vmem>>, vector<144x512xf32>
    %cst = arith.constant dense<0.000000e+00> : vector<32x512xf32>
    %2 = tpu.matmul %0, %1, %cst {dimension_numbers = #tpu.dot_dimension_numbers<[1], [0], [0], [1], [0, 0, 1, 1], [], []>} : vector<32x144xf32>, vector<144x512xf32>, vector<32x512xf32> -> vector<32x512xf32>
    %c0_3 = arith.constant 0 : index
    %c0_4 = arith.constant 0 : index
    %3 = vector.load %arg3[%c0_3, %c0_4] : memref<32x1xf32, #tpu.memory_space<vmem>>, vector<32x1xf32>
    %4 = vector.broadcast %3 : vector<32x1xf32> to vector<32x512xf32>
    %5 = arith.addf %2, %4 : vector<32x512xf32>
    %cst_5 = arith.constant 0.000000e+00 : f32
    %6 = vector.broadcast %cst_5 : f32 to vector<32x512xf32>
    %7 = arith.maximumf %5, %6 : vector<32x512xf32>
    %c0_6 = arith.constant 0 : index
    %c0_7 = arith.constant 0 : index
    %8 = vector.load %arg4[%c0_6, %c0_7] : memref<32x512xf32, #tpu.memory_space<vmem>>, vector<32x512xf32>
    tpu.vector_store %arg4[%c0_6, %c0_7], %7 {strides = array<i32>} : memref<32x512xf32, #tpu.memory_space<vmem>>, vector<32x512xf32>,
    return
  }
  func.func @transform_0(%arg0: i32) -> (i32, i32) {
    %c0_i32 = arith.constant 0 : i32
    %c0_i32_0 = arith.constant 0 : i32
    %c0_i32_1 = arith.constant 0 : i32
    return %c0_i32, %c0_i32_0 : i32, i32
  }
  func.func @transform_1(%arg0: i32) -> (i32, i32) {
    %c0_i32 = arith.constant 0 : i32
    %c0_i32_0 = arith.constant 0 : i32
    return %c0_i32, %arg0 : i32, i32
  }
  func.func @transform_2(%arg0: i32) -> (i32, i32) {
    %c0_i32 = arith.constant 0 : i32
    %c0_i32_0 = arith.constant 0 : i32
    %c0_i32_1 = arith.constant 0 : i32
    return %c0_i32, %c0_i32_0 : i32, i32
  }
  func.func @transform_3(%arg0: i32) -> (i32, i32) {
    %c0_i32 = arith.constant 0 : i32
    %c0_i32_0 = arith.constant 0 : i32
    return %c0_i32, %arg0 : i32, i32
  }
}

module attributes {stable_mosaic.version = 11 : i64} {
  func.func @_conv_kernel(%arg0: i32, %arg1: memref<32x16xf32, #tpu.memory_space<vmem>>, %arg2: memref<16x512xf32, #tpu.memory_space<vmem>>, %arg3: memref<32x1xf32, #tpu.memory_space<vmem>>, %arg4: memref<32x512xf32, #tpu.memory_space<vmem>>) attributes {dimension_semantics = [#tpu.dimension_semantics<parallel>], iteration_bounds = array<i64: 1>, scalar_prefetch = 0 : i64, scratch_operands = 0 : i64, tpu.core_type = #tpu.core_type<tc>, window_params = [{pipeline_mode = #tpu.pipeline_mode<synchronous>, transform_indices = @transform_0, window_bounds = array<i64: 32, 16>}, {transform_indices = @transform_1, window_bounds = array<i64: 16, 512>}, {pipeline_mode = #tpu.pipeline_mode<synchronous>, transform_indices = @transform_2, window_bounds = array<i64: 32, 1>}, {transform_indices = @transform_3, window_bounds = array<i64: 32, 512>}]} {
    %c0 = arith.constant 0 : index
    %c0_0 = arith.constant 0 : index
    %0 = vector.load %arg1[%c0, %c0_0] : memref<32x16xf32, #tpu.memory_space<vmem>>, vector<32x16xf32>
    %c0_1 = arith.constant 0 : index
    %c0_2 = arith.constant 0 : index
    %1 = vector.load %arg2[%c0_1, %c0_2] : memref<16x512xf32, #tpu.memory_space<vmem>>, vector<16x512xf32>
    %cst = arith.constant dense<0.000000e+00> : vector<32x512xf32>
    %2 = tpu.matmul %0, %1, %cst {dimension_numbers = #tpu.dot_dimension_numbers<[1], [0], [0], [1], [0, 0, 1, 1], [], []>} : vector<32x16xf32>, vector<16x512xf32>, vector<32x512xf32> -> vector<32x512xf32>
    %c0_3 = arith.constant 0 : index
    %c0_4 = arith.constant 0 : index
    %3 = vector.load %arg3[%c0_3, %c0_4] : memref<32x1xf32, #tpu.memory_space<vmem>>, vector<32x1xf32>
    %4 = vector.broadcast %3 : vector<32x1xf32> to vector<32x512xf32>
    %5 = arith.addf %2, %4 : vector<32x512xf32>
    %c0_5 = arith.constant 0 : index
    %c0_6 = arith.constant 0 : index
    %6 = vector.load %arg4[%c0_5, %c0_6] : memref<32x512xf32, #tpu.memory_space<vmem>>, vector<32x512xf32>
    tpu.vector_store %arg4[%c0_5, %c0_6], %5 {strides = array<i32>} : memref<32x512xf32, #tpu.memory_space<vmem>>, vector<32x512xf32>,
    return
  }
  func.func @transform_0(%arg0: i32) -> (i32, i32) {
    %c0_i32 = arith.constant 0 : i32
    %c0_i32_0 = arith.constant 0 : i32
    %c0_i32_1 = arith.constant 0 : i32
    return %c0_i32, %c0_i32_0 : i32, i32
  }
  func.func @transform_1(%arg0: i32) -> (i32, i32) {
    %c0_i32 = arith.constant 0 : i32
    %c0_i32_0 = arith.constant 0 : i32
    return %c0_i32, %arg0 : i32, i32
  }
  func.func @transform_2(%arg0: i32) -> (i32, i32) {
    %c0_i32 = arith.constant 0 : i32
    %c0_i32_0 = arith.constant 0 : i32
    %c0_i32_1 = arith.constant 0 : i32
    return %c0_i32, %c0_i32_0 : i32, i32
  }
  func.func @transform_3(%arg0: i32) -> (i32, i32) {
    %c0_i32 = arith.constant 0 : i32
    %c0_i32_0 = arith.constant 0 : i32
    return %c0_i32, %arg0 : i32, i32
  }
}

module attributes {stable_mosaic.version = 11 : i64} {
  func.func @_conv_res_kernel(%arg0: i32, %arg1: memref<32x288xf32, #tpu.memory_space<vmem>>, %arg2: memref<288x512xf32, #tpu.memory_space<vmem>>, %arg3: memref<32x1xf32, #tpu.memory_space<vmem>>, %arg4: memref<32x512xf32, #tpu.memory_space<vmem>>, %arg5: memref<32x512xf32, #tpu.memory_space<vmem>>) attributes {dimension_semantics = [#tpu.dimension_semantics<parallel>], iteration_bounds = array<i64: 1>, scalar_prefetch = 0 : i64, scratch_operands = 0 : i64, tpu.core_type = #tpu.core_type<tc>, window_params = [{pipeline_mode = #tpu.pipeline_mode<synchronous>, transform_indices = @transform_0, window_bounds = array<i64: 32, 288>}, {transform_indices = @transform_1, window_bounds = array<i64: 288, 512>}, {pipeline_mode = #tpu.pipeline_mode<synchronous>, transform_indices = @transform_2, window_bounds = array<i64: 32, 1>}, {transform_indices = @transform_3, window_bounds = array<i64: 32, 512>}, {transform_indices = @transform_4, window_bounds = array<i64: 32, 512>}]} {
    %c0 = arith.constant 0 : index
    %c0_0 = arith.constant 0 : index
    %0 = vector.load %arg1[%c0, %c0_0] : memref<32x288xf32, #tpu.memory_space<vmem>>, vector<32x288xf32>
    %c0_1 = arith.constant 0 : index
    %c0_2 = arith.constant 0 : index
    %1 = vector.load %arg2[%c0_1, %c0_2] : memref<288x512xf32, #tpu.memory_space<vmem>>, vector<288x512xf32>
    %cst = arith.constant dense<0.000000e+00> : vector<32x512xf32>
    %2 = tpu.matmul %0, %1, %cst {dimension_numbers = #tpu.dot_dimension_numbers<[1], [0], [0], [1], [0, 0, 1, 1], [], []>} : vector<32x288xf32>, vector<288x512xf32>, vector<32x512xf32> -> vector<32x512xf32>
    %c0_3 = arith.constant 0 : index
    %c0_4 = arith.constant 0 : index
    %3 = vector.load %arg3[%c0_3, %c0_4] : memref<32x1xf32, #tpu.memory_space<vmem>>, vector<32x1xf32>
    %4 = vector.broadcast %3 : vector<32x1xf32> to vector<32x512xf32>
    %5 = arith.addf %2, %4 : vector<32x512xf32>
    %cst_5 = arith.constant 0.000000e+00 : f32
    %6 = vector.broadcast %cst_5 : f32 to vector<32x512xf32>
    %7 = arith.maximumf %5, %6 : vector<32x512xf32>
    %c0_6 = arith.constant 0 : index
    %c0_7 = arith.constant 0 : index
    %8 = vector.load %arg4[%c0_6, %c0_7] : memref<32x512xf32, #tpu.memory_space<vmem>>, vector<32x512xf32>
    %9 = arith.addf %7, %8 : vector<32x512xf32>
    %cst_8 = arith.constant 0.000000e+00 : f32
    %10 = vector.broadcast %cst_8 : f32 to vector<32x512xf32>
    %11 = arith.maximumf %9, %10 : vector<32x512xf32>
    %c0_9 = arith.constant 0 : index
    %c0_10 = arith.constant 0 : index
    %12 = vector.load %arg5[%c0_9, %c0_10] : memref<32x512xf32, #tpu.memory_space<vmem>>, vector<32x512xf32>
    tpu.vector_store %arg5[%c0_9, %c0_10], %11 {strides = array<i32>} : memref<32x512xf32, #tpu.memory_space<vmem>>, vector<32x512xf32>,
    return
  }
  func.func @transform_0(%arg0: i32) -> (i32, i32) {
    %c0_i32 = arith.constant 0 : i32
    %c0_i32_0 = arith.constant 0 : i32
    %c0_i32_1 = arith.constant 0 : i32
    return %c0_i32, %c0_i32_0 : i32, i32
  }
  func.func @transform_1(%arg0: i32) -> (i32, i32) {
    %c0_i32 = arith.constant 0 : i32
    %c0_i32_0 = arith.constant 0 : i32
    return %c0_i32, %arg0 : i32, i32
  }
  func.func @transform_2(%arg0: i32) -> (i32, i32) {
    %c0_i32 = arith.constant 0 : i32
    %c0_i32_0 = arith.constant 0 : i32
    %c0_i32_1 = arith.constant 0 : i32
    return %c0_i32, %c0_i32_0 : i32, i32
  }
  func.func @transform_3(%arg0: i32) -> (i32, i32) {
    %c0_i32 = arith.constant 0 : i32
    %c0_i32_0 = arith.constant 0 : i32
    return %c0_i32, %arg0 : i32, i32
  }
  func.func @transform_4(%arg0: i32) -> (i32, i32) {
    %c0_i32 = arith.constant 0 : i32
    %c0_i32_0 = arith.constant 0 : i32
    return %c0_i32, %arg0 : i32, i32
  }
}

module attributes {stable_mosaic.version = 11 : i64} {
  func.func @_conv_kernel(%arg0: i32, %arg1: memref<64x288xf32, #tpu.memory_space<vmem>>, %arg2: memref<288x128xf32, #tpu.memory_space<vmem>>, %arg3: memref<64x1xf32, #tpu.memory_space<vmem>>, %arg4: memref<64x128xf32, #tpu.memory_space<vmem>>) attributes {dimension_semantics = [#tpu.dimension_semantics<parallel>], iteration_bounds = array<i64: 1>, scalar_prefetch = 0 : i64, scratch_operands = 0 : i64, tpu.core_type = #tpu.core_type<tc>, window_params = [{pipeline_mode = #tpu.pipeline_mode<synchronous>, transform_indices = @transform_0, window_bounds = array<i64: 64, 288>}, {transform_indices = @transform_1, window_bounds = array<i64: 288, 128>}, {pipeline_mode = #tpu.pipeline_mode<synchronous>, transform_indices = @transform_2, window_bounds = array<i64: 64, 1>}, {transform_indices = @transform_3, window_bounds = array<i64: 64, 128>}]} {
    %c0 = arith.constant 0 : index
    %c0_0 = arith.constant 0 : index
    %0 = vector.load %arg1[%c0, %c0_0] : memref<64x288xf32, #tpu.memory_space<vmem>>, vector<64x288xf32>
    %c0_1 = arith.constant 0 : index
    %c0_2 = arith.constant 0 : index
    %1 = vector.load %arg2[%c0_1, %c0_2] : memref<288x128xf32, #tpu.memory_space<vmem>>, vector<288x128xf32>
    %cst = arith.constant dense<0.000000e+00> : vector<64x128xf32>
    %2 = tpu.matmul %0, %1, %cst {dimension_numbers = #tpu.dot_dimension_numbers<[1], [0], [0], [1], [0, 0, 1, 1], [], []>} : vector<64x288xf32>, vector<288x128xf32>, vector<64x128xf32> -> vector<64x128xf32>
    %c0_3 = arith.constant 0 : index
    %c0_4 = arith.constant 0 : index
    %3 = vector.load %arg3[%c0_3, %c0_4] : memref<64x1xf32, #tpu.memory_space<vmem>>, vector<64x1xf32>
    %4 = vector.broadcast %3 : vector<64x1xf32> to vector<64x128xf32>
    %5 = arith.addf %2, %4 : vector<64x128xf32>
    %cst_5 = arith.constant 0.000000e+00 : f32
    %6 = vector.broadcast %cst_5 : f32 to vector<64x128xf32>
    %7 = arith.maximumf %5, %6 : vector<64x128xf32>
    %c0_6 = arith.constant 0 : index
    %c0_7 = arith.constant 0 : index
    %8 = vector.load %arg4[%c0_6, %c0_7] : memref<64x128xf32, #tpu.memory_space<vmem>>, vector<64x128xf32>
    tpu.vector_store %arg4[%c0_6, %c0_7], %7 {strides = array<i32>} : memref<64x128xf32, #tpu.memory_space<vmem>>, vector<64x128xf32>,
    return
  }
  func.func @transform_0(%arg0: i32) -> (i32, i32) {
    %c0_i32 = arith.constant 0 : i32
    %c0_i32_0 = arith.constant 0 : i32
    %c0_i32_1 = arith.constant 0 : i32
    return %c0_i32, %c0_i32_0 : i32, i32
  }
  func.func @transform_1(%arg0: i32) -> (i32, i32) {
    %c0_i32 = arith.constant 0 : i32
    %c0_i32_0 = arith.constant 0 : i32
    return %c0_i32, %arg0 : i32, i32
  }
  func.func @transform_2(%arg0: i32) -> (i32, i32) {
    %c0_i32 = arith.constant 0 : i32
    %c0_i32_0 = arith.constant 0 : i32
    %c0_i32_1 = arith.constant 0 : i32
    return %c0_i32, %c0_i32_0 : i32, i32
  }
  func.func @transform_3(%arg0: i32) -> (i32, i32) {
    %c0_i32 = arith.constant 0 : i32
    %c0_i32_0 = arith.constant 0 : i32
    return %c0_i32, %arg0 : i32, i32
  }
}

module attributes {stable_mosaic.version = 11 : i64} {
  func.func @_conv_kernel(%arg0: i32, %arg1: memref<64x32xf32, #tpu.memory_space<vmem>>, %arg2: memref<32x128xf32, #tpu.memory_space<vmem>>, %arg3: memref<64x1xf32, #tpu.memory_space<vmem>>, %arg4: memref<64x128xf32, #tpu.memory_space<vmem>>) attributes {dimension_semantics = [#tpu.dimension_semantics<parallel>], iteration_bounds = array<i64: 1>, scalar_prefetch = 0 : i64, scratch_operands = 0 : i64, tpu.core_type = #tpu.core_type<tc>, window_params = [{pipeline_mode = #tpu.pipeline_mode<synchronous>, transform_indices = @transform_0, window_bounds = array<i64: 64, 32>}, {transform_indices = @transform_1, window_bounds = array<i64: 32, 128>}, {pipeline_mode = #tpu.pipeline_mode<synchronous>, transform_indices = @transform_2, window_bounds = array<i64: 64, 1>}, {transform_indices = @transform_3, window_bounds = array<i64: 64, 128>}]} {
    %c0 = arith.constant 0 : index
    %c0_0 = arith.constant 0 : index
    %0 = vector.load %arg1[%c0, %c0_0] : memref<64x32xf32, #tpu.memory_space<vmem>>, vector<64x32xf32>
    %c0_1 = arith.constant 0 : index
    %c0_2 = arith.constant 0 : index
    %1 = vector.load %arg2[%c0_1, %c0_2] : memref<32x128xf32, #tpu.memory_space<vmem>>, vector<32x128xf32>
    %cst = arith.constant dense<0.000000e+00> : vector<64x128xf32>
    %2 = tpu.matmul %0, %1, %cst {dimension_numbers = #tpu.dot_dimension_numbers<[1], [0], [0], [1], [0, 0, 1, 1], [], []>} : vector<64x32xf32>, vector<32x128xf32>, vector<64x128xf32> -> vector<64x128xf32>
    %c0_3 = arith.constant 0 : index
    %c0_4 = arith.constant 0 : index
    %3 = vector.load %arg3[%c0_3, %c0_4] : memref<64x1xf32, #tpu.memory_space<vmem>>, vector<64x1xf32>
    %4 = vector.broadcast %3 : vector<64x1xf32> to vector<64x128xf32>
    %5 = arith.addf %2, %4 : vector<64x128xf32>
    %c0_5 = arith.constant 0 : index
    %c0_6 = arith.constant 0 : index
    %6 = vector.load %arg4[%c0_5, %c0_6] : memref<64x128xf32, #tpu.memory_space<vmem>>, vector<64x128xf32>
    tpu.vector_store %arg4[%c0_5, %c0_6], %5 {strides = array<i32>} : memref<64x128xf32, #tpu.memory_space<vmem>>, vector<64x128xf32>,
    return
  }
  func.func @transform_0(%arg0: i32) -> (i32, i32) {
    %c0_i32 = arith.constant 0 : i32
    %c0_i32_0 = arith.constant 0 : i32
    %c0_i32_1 = arith.constant 0 : i32
    return %c0_i32, %c0_i32_0 : i32, i32
  }
  func.func @transform_1(%arg0: i32) -> (i32, i32) {
    %c0_i32 = arith.constant 0 : i32
    %c0_i32_0 = arith.constant 0 : i32
    return %c0_i32, %arg0 : i32, i32
  }
  func.func @transform_2(%arg0: i32) -> (i32, i32) {
    %c0_i32 = arith.constant 0 : i32
    %c0_i32_0 = arith.constant 0 : i32
    %c0_i32_1 = arith.constant 0 : i32
    return %c0_i32, %c0_i32_0 : i32, i32
  }
  func.func @transform_3(%arg0: i32) -> (i32, i32) {
    %c0_i32 = arith.constant 0 : i32
    %c0_i32_0 = arith.constant 0 : i32
    return %c0_i32, %arg0 : i32, i32
  }
}

module attributes {stable_mosaic.version = 11 : i64} {
  func.func @_conv_res_kernel(%arg0: i32, %arg1: memref<64x576xf32, #tpu.memory_space<vmem>>, %arg2: memref<576x128xf32, #tpu.memory_space<vmem>>, %arg3: memref<64x1xf32, #tpu.memory_space<vmem>>, %arg4: memref<64x128xf32, #tpu.memory_space<vmem>>, %arg5: memref<64x128xf32, #tpu.memory_space<vmem>>) attributes {dimension_semantics = [#tpu.dimension_semantics<parallel>], iteration_bounds = array<i64: 1>, scalar_prefetch = 0 : i64, scratch_operands = 0 : i64, tpu.core_type = #tpu.core_type<tc>, window_params = [{pipeline_mode = #tpu.pipeline_mode<synchronous>, transform_indices = @transform_0, window_bounds = array<i64: 64, 576>}, {transform_indices = @transform_1, window_bounds = array<i64: 576, 128>}, {pipeline_mode = #tpu.pipeline_mode<synchronous>, transform_indices = @transform_2, window_bounds = array<i64: 64, 1>}, {transform_indices = @transform_3, window_bounds = array<i64: 64, 128>}, {transform_indices = @transform_4, window_bounds = array<i64: 64, 128>}]} {
    %c0 = arith.constant 0 : index
    %c0_0 = arith.constant 0 : index
    %0 = vector.load %arg1[%c0, %c0_0] : memref<64x576xf32, #tpu.memory_space<vmem>>, vector<64x576xf32>
    %c0_1 = arith.constant 0 : index
    %c0_2 = arith.constant 0 : index
    %1 = vector.load %arg2[%c0_1, %c0_2] : memref<576x128xf32, #tpu.memory_space<vmem>>, vector<576x128xf32>
    %cst = arith.constant dense<0.000000e+00> : vector<64x128xf32>
    %2 = tpu.matmul %0, %1, %cst {dimension_numbers = #tpu.dot_dimension_numbers<[1], [0], [0], [1], [0, 0, 1, 1], [], []>} : vector<64x576xf32>, vector<576x128xf32>, vector<64x128xf32> -> vector<64x128xf32>
    %c0_3 = arith.constant 0 : index
    %c0_4 = arith.constant 0 : index
    %3 = vector.load %arg3[%c0_3, %c0_4] : memref<64x1xf32, #tpu.memory_space<vmem>>, vector<64x1xf32>
    %4 = vector.broadcast %3 : vector<64x1xf32> to vector<64x128xf32>
    %5 = arith.addf %2, %4 : vector<64x128xf32>
    %cst_5 = arith.constant 0.000000e+00 : f32
    %6 = vector.broadcast %cst_5 : f32 to vector<64x128xf32>
    %7 = arith.maximumf %5, %6 : vector<64x128xf32>
    %c0_6 = arith.constant 0 : index
    %c0_7 = arith.constant 0 : index
    %8 = vector.load %arg4[%c0_6, %c0_7] : memref<64x128xf32, #tpu.memory_space<vmem>>, vector<64x128xf32>
    %9 = arith.addf %7, %8 : vector<64x128xf32>
    %cst_8 = arith.constant 0.000000e+00 : f32
    %10 = vector.broadcast %cst_8 : f32 to vector<64x128xf32>
    %11 = arith.maximumf %9, %10 : vector<64x128xf32>
    %c0_9 = arith.constant 0 : index
    %c0_10 = arith.constant 0 : index
    %12 = vector.load %arg5[%c0_9, %c0_10] : memref<64x128xf32, #tpu.memory_space<vmem>>, vector<64x128xf32>
    tpu.vector_store %arg5[%c0_9, %c0_10], %11 {strides = array<i32>} : memref<64x128xf32, #tpu.memory_space<vmem>>, vector<64x128xf32>,
    return
  }
  func.func @transform_0(%arg0: i32) -> (i32, i32) {
    %c0_i32 = arith.constant 0 : i32
    %c0_i32_0 = arith.constant 0 : i32
    %c0_i32_1 = arith.constant 0 : i32
    return %c0_i32, %c0_i32_0 : i32, i32
  }
  func.func @transform_1(%arg0: i32) -> (i32, i32) {
    %c0_i32 = arith.constant 0 : i32
    %c0_i32_0 = arith.constant 0 : i32
    return %c0_i32, %arg0 : i32, i32
  }
  func.func @transform_2(%arg0: i32) -> (i32, i32) {
    %c0_i32 = arith.constant 0 : i32
    %c0_i32_0 = arith.constant 0 : i32
    %c0_i32_1 = arith.constant 0 : i32
    return %c0_i32, %c0_i32_0 : i32, i32
  }
  func.func @transform_3(%arg0: i32) -> (i32, i32) {
    %c0_i32 = arith.constant 0 : i32
    %c0_i32_0 = arith.constant 0 : i32
    return %c0_i32, %arg0 : i32, i32
  }
  func.func @transform_4(%arg0: i32) -> (i32, i32) {
    %c0_i32 = arith.constant 0 : i32
    %c0_i32_0 = arith.constant 0 : i32
    return %c0_i32, %arg0 : i32, i32
  }
}

module attributes {stable_mosaic.version = 11 : i64} {
  func.func @_mha_fc_kernel(%arg0: i32, %arg1: memref<1x4x64xf32, #tpu.memory_space<vmem>>, %arg2: memref<1x576x64xf32, #tpu.memory_space<vmem>>, %arg3: memref<64x64xf32, #tpu.memory_space<vmem>>, %arg4: memref<64x64xf32, #tpu.memory_space<vmem>>, %arg5: memref<64x64xf32, #tpu.memory_space<vmem>>, %arg6: memref<1x64xf32, #tpu.memory_space<vmem>>, %arg7: memref<1x64xf32, #tpu.memory_space<vmem>>, %arg8: memref<1x64xf32, #tpu.memory_space<vmem>>, %arg9: memref<64x64xf32, #tpu.memory_space<vmem>>, %arg10: memref<1x64xf32, #tpu.memory_space<vmem>>, %arg11: memref<64x48xf32, #tpu.memory_space<vmem>>, %arg12: memref<1x48xf32, #tpu.memory_space<vmem>>, %arg13: memref<64x64xf32, #tpu.memory_space<vmem>>, %arg14: memref<4x64xf32, #tpu.memory_space<vmem>>, %arg15: memref<64x4xf32, #tpu.memory_space<vmem>>, %arg16: memref<1x1x48xf32, #tpu.memory_space<vmem>>, %arg17: memref<1x4x64xf32, #tpu.memory_space<vmem>>, %arg18: memref<1x4x576xf32, #tpu.memory_space<vmem>>) attributes {dimension_semantics = [#tpu.dimension_semantics<parallel>], iteration_bounds = array<i64: 2>, scalar_prefetch = 0 : i64, scratch_operands = 0 : i64, tpu.core_type = #tpu.core_type<tc>, window_params = [{transform_indices = @transform_0, window_bounds = array<i64: 1, 4, 64>}, {transform_indices = @transform_1, window_bounds = array<i64: 1, 576, 64>}, {pipeline_mode = #tpu.pipeline_mode<synchronous>, transform_indices = @transform_2, window_bounds = array<i64: 64, 64>}, {pipeline_mode = #tpu.pipeline_mode<synchronous>, transform_indices = @transform_3, window_bounds = array<i64: 64, 64>}, {pipeline_mode = #tpu.pipeline_mode<synchronous>, transform_indices = @transform_4, window_bounds = array<i64: 64, 64>}, {pipeline_mode = #tpu.pipeline_mode<synchronous>, transform_indices = @transform_5, window_bounds = array<i64: 1, 64>}, {pipeline_mode = #tpu.pipeline_mode<synchronous>, transform_indices = @transform_6, window_bounds = array<i64: 1, 64>}, {pipeline_mode = #tpu.pipeline_mode<synchronous>, transform_indices = @transform_7, window_bounds = array<i64: 1, 64>}, {pipeline_mode = #tpu.pipeline_mode<synchronous>, transform_indices = @transform_8, window_bounds = array<i64: 64, 64>}, {pipeline_mode = #tpu.pipeline_mode<synchronous>, transform_indices = @transform_9, window_bounds = array<i64: 1, 64>}, {pipeline_mode = #tpu.pipeline_mode<synchronous>, transform_indices = @transform_10, window_bounds = array<i64: 64, 48>}, {pipeline_mode = #tpu.pipeline_mode<synchronous>, transform_indices = @transform_11, window_bounds = array<i64: 1, 48>}, {pipeline_mode = #tpu.pipeline_mode<synchronous>, transform_indices = @transform_12, window_bounds = array<i64: 64, 64>}, {pipeline_mode = #tpu.pipeline_mode<synchronous>, transform_indices = @transform_13, window_bounds = array<i64: 4, 64>}, {pipeline_mode = #tpu.pipeline_mode<synchronous>, transform_indices = @transform_14, window_bounds = array<i64: 64, 4>}, {transform_indices = @transform_15, window_bounds = array<i64: 1, 1, 48>}, {transform_indices = @transform_16, window_bounds = array<i64: 1, 4, 64>}, {transform_indices = @transform_17, window_bounds = array<i64: 1, 4, 576>}]} {
    %c0 = arith.constant 0 : index
    %c0_0 = arith.constant 0 : index
    %0 = vector.load %arg13[%c0, %c0_0] : memref<64x64xf32, #tpu.memory_space<vmem>>, vector<64x64xf32>
    %c0_1 = arith.constant 0 : index
    %c0_2 = arith.constant 0 : index
    %1 = vector.load %arg14[%c0_1, %c0_2] : memref<4x64xf32, #tpu.memory_space<vmem>>, vector<4x64xf32>
    %c0_3 = arith.constant 0 : index
    %c0_4 = arith.constant 0 : index
    %2 = vector.load %arg15[%c0_3, %c0_4] : memref<64x4xf32, #tpu.memory_space<vmem>>, vector<64x4xf32>
    %c0_5 = arith.constant 0 : index
    %c0_6 = arith.constant 0 : index
    %c0_7 = arith.constant 0 : index
    %3 = vector.load %arg1[%c0_5, %c0_6, %c0_7] : memref<1x4x64xf32, #tpu.memory_space<vmem>>, vector<1x4x64xf32>
    %4 = vector.shape_cast %3 : vector<1x4x64xf32> to vector<4x64xf32>
    %c0_8 = arith.constant 0 : index
    %c0_9 = arith.constant 0 : index
    %5 = vector.load %arg3[%c0_8, %c0_9] : memref<64x64xf32, #tpu.memory_space<vmem>>, vector<64x64xf32>
    %cst = arith.constant dense<0.000000e+00> : vector<4x64xf32>
    %6 = tpu.matmul %4, %5, %cst {dimension_numbers = #tpu.dot_dimension_numbers<[1], [0], [0], [1], [0, 0, 1, 1], [], []>} : vector<4x64xf32>, vector<64x64xf32>, vector<4x64xf32> -> vector<4x64xf32>
    %c0_10 = arith.constant 0 : index
    %c0_11 = arith.constant 0 : index
    %7 = vector.load %arg6[%c0_10, %c0_11] : memref<1x64xf32, #tpu.memory_space<vmem>>, vector<1x64xf32>
    %8 = vector.broadcast %7 : vector<1x64xf32> to vector<4x64xf32>
    %9 = arith.addf %6, %8 : vector<4x64xf32>
    %c0_12 = arith.constant 0 : index
    %c0_13 = arith.constant 0 : index
    %c0_14 = arith.constant 0 : index
    %10 = vector.load %arg2[%c0_12, %c0_13, %c0_14] : memref<1x576x64xf32, #tpu.memory_space<vmem>>, vector<1x576x64xf32>
    %11 = vector.shape_cast %10 : vector<1x576x64xf32> to vector<576x64xf32>
    %c0_15 = arith.constant 0 : index
    %c0_16 = arith.constant 0 : index
    %12 = vector.load %arg4[%c0_15, %c0_16] : memref<64x64xf32, #tpu.memory_space<vmem>>, vector<64x64xf32>
    %cst_17 = arith.constant dense<0.000000e+00> : vector<576x64xf32>
    %13 = tpu.matmul %11, %12, %cst_17 {dimension_numbers = #tpu.dot_dimension_numbers<[1], [0], [0], [1], [0, 0, 1, 1], [], []>} : vector<576x64xf32>, vector<64x64xf32>, vector<576x64xf32> -> vector<576x64xf32>
    %c0_18 = arith.constant 0 : index
    %c0_19 = arith.constant 0 : index
    %14 = vector.load %arg7[%c0_18, %c0_19] : memref<1x64xf32, #tpu.memory_space<vmem>>, vector<1x64xf32>
    %15 = vector.broadcast %14 : vector<1x64xf32> to vector<576x64xf32>
    %16 = arith.addf %13, %15 : vector<576x64xf32>
    %c0_20 = arith.constant 0 : index
    %c0_21 = arith.constant 0 : index
    %c0_22 = arith.constant 0 : index
    %17 = vector.load %arg2[%c0_20, %c0_21, %c0_22] : memref<1x576x64xf32, #tpu.memory_space<vmem>>, vector<1x576x64xf32>
    %18 = vector.shape_cast %17 : vector<1x576x64xf32> to vector<576x64xf32>
    %c0_23 = arith.constant 0 : index
    %c0_24 = arith.constant 0 : index
    %19 = vector.load %arg5[%c0_23, %c0_24] : memref<64x64xf32, #tpu.memory_space<vmem>>, vector<64x64xf32>
    %cst_25 = arith.constant dense<0.000000e+00> : vector<576x64xf32>
    %20 = tpu.matmul %18, %19, %cst_25 {dimension_numbers = #tpu.dot_dimension_numbers<[1], [0], [0], [1], [0, 0, 1, 1], [], []>} : vector<576x64xf32>, vector<64x64xf32>, vector<576x64xf32> -> vector<576x64xf32>
    %c0_26 = arith.constant 0 : index
    %c0_27 = arith.constant 0 : index
    %21 = vector.load %arg8[%c0_26, %c0_27] : memref<1x64xf32, #tpu.memory_space<vmem>>, vector<1x64xf32>
    %22 = vector.broadcast %21 : vector<1x64xf32> to vector<576x64xf32>
    %23 = arith.addf %20, %22 : vector<576x64xf32>
    %cst_28 = arith.constant dense<0.000000e+00> : vector<64x64xf32>
    %24 = tpu.matmul %2, %9, %cst_28 {dimension_numbers = #tpu.dot_dimension_numbers<[1], [0], [0], [1], [0, 0, 1, 1], [], []>} : vector<64x4xf32>, vector<4x64xf32>, vector<64x64xf32> -> vector<64x64xf32>
    %25 = arith.mulf %24, %0 : vector<64x64xf32>
    %cst_29 = arith.constant dense<0.000000e+00> : vector<64x576xf32>
    %26 = tpu.matmul %25, %16, %cst_29 {dimension_numbers = #tpu.dot_dimension_numbers<[1], [1], [0], [0], [0, 0, 1, 0], [], []>} : vector<64x64xf32>, vector<576x64xf32>, vector<64x576xf32> -> vector<64x576xf32>
    %cst_30 = arith.constant 5.000000e-01 : f32
    %27 = vector.broadcast %cst_30 : f32 to vector<64x576xf32>
    %28 = arith.mulf %26, %27 : vector<64x576xf32>
    %cst_31 = arith.constant dense<0xFF800000> : vector<64xf32>
    %29 = vector.multi_reduction <maximumf>, %28, %cst_31 [1] : vector<64x576xf32> to vector<64xf32>
    %30 = vector.shape_cast %29 : vector<64xf32> to vector<64x1xf32>
    %31 = vector.broadcast %30 : vector<64x1xf32> to vector<64x576xf32>
    %32 = arith.subf %28, %31 : vector<64x576xf32>
    %33 = math.exp %32 : vector<64x576xf32>
    %cst_32 = arith.constant dense<0.000000e+00> : vector<64xf32>
    %34 = vector.multi_reduction <add>, %33, %cst_32 [1] : vector<64x576xf32> to vector<64xf32>
    %35 = vector.shape_cast %34 : vector<64xf32> to vector<64x1xf32>
    %36 = tpu.reciprocal %35 : vector<64x1xf32> -> vector<64x1xf32>
    %37 = vector.broadcast %36 : vector<64x1xf32> to vector<64x576xf32>
    %38 = arith.mulf %33, %37 : vector<64x576xf32>
    %cst_33 = arith.constant dense<0.000000e+00> : vector<4x576xf32>
    %39 = tpu.matmul %1, %38, %cst_33 {dimension_numbers = #tpu.dot_dimension_numbers<[1], [0], [0], [1], [0, 0, 1, 1], [], []>} : vector<4x64xf32>, vector<64x576xf32>, vector<4x576xf32> -> vector<4x576xf32>
    %cst_34 = arith.constant 6.250000e-02 : f32
    %40 = vector.broadcast %cst_34 : f32 to vector<4x576xf32>
    %41 = arith.mulf %39, %40 : vector<4x576xf32>
    %c0_35 = arith.constant 0 : index
    %c0_36 = arith.constant 0 : index
    %c0_37 = arith.constant 0 : index
    %42 = vector.load %arg18[%c0_35, %c0_36, %c0_37] : memref<1x4x576xf32, #tpu.memory_space<vmem>>, vector<1x4x576xf32>
    %43 = vector.shape_cast %42 : vector<1x4x576xf32> to vector<4x576xf32>
    %44 = vector.shape_cast %41 : vector<4x576xf32> to vector<1x4x576xf32>
    tpu.vector_store %arg18[%c0_35, %c0_36, %c0_37], %44 {strides = array<i32>} : memref<1x4x576xf32, #tpu.memory_space<vmem>>, vector<1x4x576xf32>,
    %cst_38 = arith.constant dense<0.000000e+00> : vector<64x64xf32>
    %45 = tpu.matmul %38, %23, %cst_38 {dimension_numbers = #tpu.dot_dimension_numbers<[1], [0], [0], [1], [0, 0, 1, 1], [], []>} : vector<64x576xf32>, vector<576x64xf32>, vector<64x64xf32> -> vector<64x64xf32>
    %46 = arith.mulf %45, %0 : vector<64x64xf32>
    %cst_39 = arith.constant dense<0.000000e+00> : vector<4x64xf32>
    %47 = tpu.matmul %1, %46, %cst_39 {dimension_numbers = #tpu.dot_dimension_numbers<[1], [0], [0], [1], [0, 0, 1, 1], [], []>} : vector<4x64xf32>, vector<64x64xf32>, vector<4x64xf32> -> vector<4x64xf32>
    %c0_40 = arith.constant 0 : index
    %c0_41 = arith.constant 0 : index
    %48 = vector.load %arg9[%c0_40, %c0_41] : memref<64x64xf32, #tpu.memory_space<vmem>>, vector<64x64xf32>
    %cst_42 = arith.constant dense<0.000000e+00> : vector<4x64xf32>
    %49 = tpu.matmul %47, %48, %cst_42 {dimension_numbers = #tpu.dot_dimension_numbers<[1], [0], [0], [1], [0, 0, 1, 1], [], []>} : vector<4x64xf32>, vector<64x64xf32>, vector<4x64xf32> -> vector<4x64xf32>
    %c0_43 = arith.constant 0 : index
    %c0_44 = arith.constant 0 : index
    %50 = vector.load %arg10[%c0_43, %c0_44] : memref<1x64xf32, #tpu.memory_space<vmem>>, vector<1x64xf32>
    %51 = vector.broadcast %50 : vector<1x64xf32> to vector<4x64xf32>
    %52 = arith.addf %49, %51 : vector<4x64xf32>
    %c0_45 = arith.constant 0 : index
    %c0_46 = arith.constant 0 : index
    %c0_47 = arith.constant 0 : index
    %53 = vector.load %arg17[%c0_45, %c0_46, %c0_47] : memref<1x4x64xf32, #tpu.memory_space<vmem>>, vector<1x4x64xf32>
    %54 = vector.shape_cast %53 : vector<1x4x64xf32> to vector<4x64xf32>
    %55 = vector.shape_cast %52 : vector<4x64xf32> to vector<1x4x64xf32>
    tpu.vector_store %arg17[%c0_45, %c0_46, %c0_47], %55 {strides = array<i32>} : memref<1x4x64xf32, #tpu.memory_space<vmem>>, vector<1x4x64xf32>,
    %cst_48 = arith.constant dense<0.000000e+00> : vector<64xf32>
    %56 = vector.multi_reduction <add>, %52, %cst_48 [0] : vector<4x64xf32> to vector<64xf32>
    %57 = vector.shape_cast %56 : vector<64xf32> to vector<1x64xf32>
    %cst_49 = arith.constant 4.000000e+00 : f32
    %58 = vector.broadcast %cst_49 : f32 to vector<1x64xf32>
    %59 = arith.divf %57, %58 : vector<1x64xf32>
    %c0_50 = arith.constant 0 : index
    %c0_51 = arith.constant 0 : index
    %60 = vector.load %arg11[%c0_50, %c0_51] : memref<64x48xf32, #tpu.memory_space<vmem>>, vector<64x48xf32>
    %cst_52 = arith.constant dense<0.000000e+00> : vector<1x48xf32>
    %61 = tpu.matmul %59, %60, %cst_52 {dimension_numbers = #tpu.dot_dimension_numbers<[1], [0], [0], [1], [0, 0, 1, 1], [], []>} : vector<1x64xf32>, vector<64x48xf32>, vector<1x48xf32> -> vector<1x48xf32>
    %c0_53 = arith.constant 0 : index
    %c0_54 = arith.constant 0 : index
    %62 = vector.load %arg12[%c0_53, %c0_54] : memref<1x48xf32, #tpu.memory_space<vmem>>, vector<1x48xf32>
    %63 = arith.addf %61, %62 : vector<1x48xf32>
    %c0_55 = arith.constant 0 : index
    %c0_56 = arith.constant 0 : index
    %c0_57 = arith.constant 0 : index
    %64 = vector.load %arg16[%c0_55, %c0_56, %c0_57] : memref<1x1x48xf32, #tpu.memory_space<vmem>>, vector<1x1x48xf32>
    %65 = vector.shape_cast %64 : vector<1x1x48xf32> to vector<1x48xf32>
    %66 = vector.shape_cast %63 : vector<1x48xf32> to vector<1x1x48xf32>
    tpu.vector_store %arg16[%c0_55, %c0_56, %c0_57], %66 {strides = array<i32>} : memref<1x1x48xf32, #tpu.memory_space<vmem>>, vector<1x1x48xf32>,
    return
  }
  func.func @transform_0(%arg0: i32) -> (i32, i32, i32) {
    %c0_i32 = arith.constant 0 : i32
    %c0_i32_0 = arith.constant 0 : i32
    %c0_i32_1 = arith.constant 0 : i32
    return %arg0, %c0_i32, %c0_i32_0 : i32, i32, i32
  }
  func.func @transform_1(%arg0: i32) -> (i32, i32, i32) {
    %c0_i32 = arith.constant 0 : i32
    %c0_i32_0 = arith.constant 0 : i32
    %c0_i32_1 = arith.constant 0 : i32
    return %arg0, %c0_i32, %c0_i32_0 : i32, i32, i32
  }
  func.func @transform_2(%arg0: i32) -> (i32, i32) {
    %c0_i32 = arith.constant 0 : i32
    %c0_i32_0 = arith.constant 0 : i32
    %c0_i32_1 = arith.constant 0 : i32
    return %c0_i32, %c0_i32_0 : i32, i32
  }
  func.func @transform_3(%arg0: i32) -> (i32, i32) {
    %c0_i32 = arith.constant 0 : i32
    %c0_i32_0 = arith.constant 0 : i32
    %c0_i32_1 = arith.constant 0 : i32
    return %c0_i32, %c0_i32_0 : i32, i32
  }
  func.func @transform_4(%arg0: i32) -> (i32, i32) {
    %c0_i32 = arith.constant 0 : i32
    %c0_i32_0 = arith.constant 0 : i32
    %c0_i32_1 = arith.constant 0 : i32
    return %c0_i32, %c0_i32_0 : i32, i32
  }
  func.func @transform_5(%arg0: i32) -> (i32, i32) {
    %c0_i32 = arith.constant 0 : i32
    %c0_i32_0 = arith.constant 0 : i32
    %c0_i32_1 = arith.constant 0 : i32
    return %c0_i32, %c0_i32_0 : i32, i32
  }
  func.func @transform_6(%arg0: i32) -> (i32, i32) {
    %c0_i32 = arith.constant 0 : i32
    %c0_i32_0 = arith.constant 0 : i32
    %c0_i32_1 = arith.constant 0 : i32
    return %c0_i32, %c0_i32_0 : i32, i32
  }
  func.func @transform_7(%arg0: i32) -> (i32, i32) {
    %c0_i32 = arith.constant 0 : i32
    %c0_i32_0 = arith.constant 0 : i32
    %c0_i32_1 = arith.constant 0 : i32
    return %c0_i32, %c0_i32_0 : i32, i32
  }
  func.func @transform_8(%arg0: i32) -> (i32, i32) {
    %c0_i32 = arith.constant 0 : i32
    %c0_i32_0 = arith.constant 0 : i32
    %c0_i32_1 = arith.constant 0 : i32
    return %c0_i32, %c0_i32_0 : i32, i32
  }
  func.func @transform_9(%arg0: i32) -> (i32, i32) {
    %c0_i32 = arith.constant 0 : i32
    %c0_i32_0 = arith.constant 0 : i32
    %c0_i32_1 = arith.constant 0 : i32
    return %c0_i32, %c0_i32_0 : i32, i32
  }
  func.func @transform_10(%arg0: i32) -> (i32, i32) {
    %c0_i32 = arith.constant 0 : i32
    %c0_i32_0 = arith.constant 0 : i32
    %c0_i32_1 = arith.constant 0 : i32
    return %c0_i32, %c0_i32_0 : i32, i32
  }
  func.func @transform_11(%arg0: i32) -> (i32, i32) {
    %c0_i32 = arith.constant 0 : i32
    %c0_i32_0 = arith.constant 0 : i32
    %c0_i32_1 = arith.constant 0 : i32
    return %c0_i32, %c0_i32_0 : i32, i32
  }
  func.func @transform_12(%arg0: i32) -> (i32, i32) {
    %c0_i32 = arith.constant 0 : i32
    %c0_i32_0 = arith.constant 0 : i32
    %c0_i32_1 = arith.constant 0 : i32
    return %c0_i32, %c0_i32_0 : i32, i32
  }
  func.func @transform_13(%arg0: i32) -> (i32, i32) {
    %c0_i32 = arith.constant 0 : i32
    %c0_i32_0 = arith.constant 0 : i32
    %c0_i32_1 = arith.constant 0 : i32
    return %c0_i32, %c0_i32_0 : i32, i32
  }
  func.func @transform_14(%arg0: i32) -> (i32, i32) {
    %c0_i32 = arith.constant 0 : i32
    %c0_i32_0 = arith.constant 0 : i32
    %c0_i32_1 = arith.constant 0 : i32
    return %c0_i32, %c0_i32_0 : i32, i32
  }
  func.func @transform_15(%arg0: i32) -> (i32, i32, i32) {
    %c0_i32 = arith.constant 0 : i32
    %c0_i32_0 = arith.constant 0 : i32
    %c0_i32_1 = arith.constant 0 : i32
    return %arg0, %c0_i32, %c0_i32_0 : i32, i32, i32
  }
  func.func @transform_16(%arg0: i32) -> (i32, i32, i32) {
    %c0_i32 = arith.constant 0 : i32
    %c0_i32_0 = arith.constant 0 : i32
    %c0_i32_1 = arith.constant 0 : i32
    return %arg0, %c0_i32, %c0_i32_0 : i32, i32, i32
  }
  func.func @transform_17(%arg0: i32) -> (i32, i32, i32) {
    %c0_i32 = arith.constant 0 : i32
    %c0_i32_0 = arith.constant 0 : i32
    %c0_i32_1 = arith.constant 0 : i32
    return %arg0, %c0_i32, %c0_i32_0 : i32, i32, i32
  }
}

</mosaic_0001>

<llo_original>
// kernel: mustafa_forward.10
$region0: #{mustafa_forward.10}
  #allocation0 [shape = 'u32[]', space=smem, size = 0x4, offset = 0x4, fixed_abs, tag = 'smem constant byte address 0x4 - core index']
  #allocation1 [shape = 'u32[144,128]{1,0:T(1,128)}', space=vmem, size = 0x12000, scoped, tag = 'internal scratch']
  %s0 = inlined_call_operand.vmem [shape: f32[16,27], index: 0, kind: input, shape index: {}]
  %s1 = inlined_call_operand.vmem [shape: f32[27,2048], index: 1, kind: input, shape index: {}]
  %s2 = inlined_call_operand.vmem [shape: f32[16,1], index: 2, kind: input, shape index: {}]
  %s3 = inlined_call_operand.vmem [shape: f32[16,2048], index: 3, kind: output, shape index: {}]
  %s4 = sld [smem:[#allocation0]]
  $region87: #{mustafa_forward.10} parent=0
    _
  %s6 = ssub.s32 1, %s4
  %s7 = scalar_select 0, %s6, %s4
  $region1: #{mustafa_forward.10} parent=0
    #allocation2 [shape = 'u8[131072]{0}', space=vmem, size = 0x20000, scoped, tag = 'input window, operand 1']
    #allocation3 [shape = 'u8[65536]{0}', space=vmem, size = 0x10000, scoped, tag = 'output window, operand 0']
    loop: start=0, step=1, limit=6
    $region2: #{mustafa_forward.10} parent=1 // loop_pre_header
      _
    $region3: #{mustafa_forward.10} parent=1 // loop_header
      %s9 = sphi 0, %s13
      %p10 = scmp.ge.s32.totalorder %s9, 6
      %s17 = sphi 0, %s17
      %s19 = sphi 0, %s17
      %s20 = sphi 0, %s19
      %s34 = sphi 0, %s20
      %s40 = sphi 0, %s42
      %s43 = sphi 0, %s40
      %s44 = sphi 0, %s43
      %s60 = sphi 0, %s44
      %s64 = sphi 0, %s64
      %s66 = sphi 0, %s64
      %s67 = sphi 0, %s66
      %s81 = sphi 0, %s67
      %s87 = sphi 0, %s89
      %s90 = sphi 0, %s87
      %s91 = sphi 0, %s90
      %s107 = sphi 0, %s91
    $region4: #{mustafa_forward.10} parent=1 // loop_header_branch
      %12 = sbr.rel (%p10) target = $region8
    $region5: #{mustafa_forward.10} parent=1 // loop_body
      %s14 = ssub.s32 %s9, 1
      %s15 = ssub.s32 %s9, 2
      %s16 = sadd.s32 %s9, 1
      %s18 = sadd.s32 %s17, 1
      %p21 = scmp.eq.s32.totalorder %s9, 3
      %p22 = scmp.ne.s32.totalorder %s17, %s19
      %p23 = scmp.eq.s32.totalorder %s9, 0
      %p24 = por %p22, %p23
      %p25 = scmp.ne.s32.totalorder %s17, %s19
      %p26 = scmp.eq.s32.totalorder %s14, 3
      %p27 = por %p25, %p26
      %p28 = scmp.ne.s32.totalorder %s19, %s20
      %p29 = scmp.eq.s32.totalorder %s14, 0
      %p30 = por %p28, %p29
      %p31 = scmp.ne.s32.totalorder %s19, %s20
      %p32 = scmp.eq.s32.totalorder %s15, 3
      %p33 = por %p31, %p32
      %p35 = scmp.ne.s32.totalorder %s20, %s34
      %p36 = scmp.eq.s32.totalorder %s15, 0
      %p37 = por %p35, %p36
      %s38 = ssub.s32 %s9, %s16
      %p39 = scmp.eq.s32.totalorder %s38, 0
      %s41 = sadd.s32 %s40, 1
      %s42 = scalar_select %p39, %s40, %s41
      %p45 = pneg %p39
      %p46 = scmp.eq.s32.totalorder %s9, 3
      %p47 = por %p45, %p46
      %p48 = scmp.ne.s32.totalorder %s40, %s43
      %p49 = scmp.eq.s32.totalorder %s9, 0
      %p50 = por %p48, %p49
      %p51 = scmp.ne.s32.totalorder %s40, %s43
      %p52 = scmp.eq.s32.totalorder %s14, 3
      %p53 = por %p51, %p52
      %p54 = scmp.ne.s32.totalorder %s43, %s44
      %p55 = scmp.eq.s32.totalorder %s14, 0
      %p56 = por %p54, %p55
      %p57 = scmp.ne.s32.totalorder %s43, %s44
      %p58 = scmp.eq.s32.totalorder %s15, 3
      %p59 = por %p57, %p58
      %p61 = scmp.ne.s32.totalorder %s44, %s60
      %p62 = scmp.eq.s32.totalorder %s15, 0
      %p63 = por %p61, %p62
      %s65 = sadd.s32 %s64, 1
      %p68 = scmp.eq.s32.totalorder %s9, 3
      %p69 = scmp.ne.s32.totalorder %s64, %s66
      %p70 = scmp.eq.s32.totalorder %s9, 0
      %p71 = por %p69, %p70
      %p72 = scmp.ne.s32.totalorder %s64, %s66
      %p73 = scmp.eq.s32.totalorder %s14, 3
      %p74 = por %p72, %p73
      %p75 = scmp.ne.s32.totalorder %s66, %s67
      %p76 = scmp.eq.s32.totalorder %s14, 0
      %p77 = por %p75, %p76
      %p78 = scmp.ne.s32.totalorder %s66, %s67
      %p79 = scmp.eq.s32.totalorder %s15, 3
      %p80 = por %p78, %p79
      %p82 = scmp.ne.s32.totalorder %s67, %s81
      %p83 = scmp.eq.s32.totalorder %s15, 0
      %p84 = por %p82, %p83
      %s85 = ssub.s32 %s9, %s16
      %p86 = scmp.eq.s32.totalorder %s85, 0
      %s88 = sadd.s32 %s87, 1
      %s89 = scalar_select %p86, %s87, %s88
      %p92 = pneg %p86
      %p93 = scmp.eq.s32.totalorder %s9, 3
      %p94 = por %p92, %p93
      %p95 = scmp.ne.s32.totalorder %s87, %s90
      %p96 = scmp.eq.s32.totalorder %s9, 0
      %p97 = por %p95, %p96
      %p98 = scmp.ne.s32.totalorder %s87, %s90
      %p99 = scmp.eq.s32.totalorder %s14, 3
      %p100 = por %p98, %p99
      %p101 = scmp.ne.s32.totalorder %s90, %s91
      %p102 = scmp.eq.s32.totalorder %s14, 0
      %p103 = por %p101, %p102
      %p104 = scmp.ne.s32.totalorder %s90, %s91
      %p105 = scmp.eq.s32.totalorder %s15, 3
      %p106 = por %p104, %p105
      %p108 = scmp.ne.s32.totalorder %s91, %s107
      %p109 = scmp.eq.s32.totalorder %s15, 0
      %p110 = por %p108, %p109
      %p111 = scmp.le.s32.totalorder 1, %s9
      %p112 = scmp.lt.s32.totalorder %s9, 5
      %p113 = pnand %p111, %p112
      %p114 = pneg %p113
      // Predicated region
      $region9: #{mustafa_forward.10} parent=5 // pred_check
        _
      $region10: #{mustafa_forward.10} parent=5 // pred_check_branch
        %116 = sbr.rel (%p113) target = $region12
      $region11: #{mustafa_forward.10} parent=5 // pred_region
        %s117 = ssub.s32 %s9, 1
        // Predicated region
        $region13: #{mustafa_forward.10} parent=11 // pred_check
          %p118 = pneg %p30
        $region14: #{mustafa_forward.10} parent=11 // pred_check_branch
          %120 = sbr.rel (%p118) target = $region16
        $region15: #{mustafa_forward.10} parent=11 // pred_region
          _
        $region16: #{mustafa_forward.10} parent=11 // pred_fallthru
          _
        // Predicated region
        $region17: #{mustafa_forward.10} parent=11 // pred_check
          %p121 = pneg %p77
        $region18: #{mustafa_forward.10} parent=11 // pred_check_branch
          %123 = sbr.rel (%p121) target = $region20
        $region19: #{mustafa_forward.10} parent=11 // pred_region
          _
        $region20: #{mustafa_forward.10} parent=11 // pred_fallthru
          _
      $region12: #{mustafa_forward.10} parent=5 // pred_fallthru
        _
      %p124 = scmp.lt.s32.totalorder %s9, 4
      // Predicated region
      $region21: #{mustafa_forward.10} parent=5 // pred_check
        %p125 = pneg %p124
      $region22: #{mustafa_forward.10} parent=5 // pred_check_branch
        %127 = sbr.rel (%p125) target = $region24
      $region23: #{mustafa_forward.10} parent=5 // pred_region
        // Predicated region
        $region25: #{mustafa_forward.10} parent=23 // pred_check
          %p128 = pneg %p50
        $region26: #{mustafa_forward.10} parent=23 // pred_check_branch
          %130 = sbr.rel (%p128) target = $region28
        $region27: #{mustafa_forward.10} parent=23 // pred_region
          %s131 = sand.u32 %s40, 1
          %s132 = sand.u32 %s40, 1
          %s133 = smul.addr %s132, 128
          %s134 = scalar_lea.vmem [#allocation2], %s133
          %s135 = smul.u32 4, %s9
          %s136 = smul.addr %s135, 8
          %s137 = scalar_lea.vmem %s1, %s136
          // Predicated region
          $region29: #{mustafa_forward.10} parent=27 // pred_check
            _
          $region30: #{mustafa_forward.10} parent=27 // pred_check_branch
            %139 = sbr.rel (0) target = $region32
          $region31: #{mustafa_forward.10} parent=27 // pred_region
            // Predicated region
            $region33: #{mustafa_forward.10} parent=31 // pred_check
              _
            $region34: #{mustafa_forward.10} parent=31 // pred_check_branch
              %141 = sbr.rel (0) target = $region36
            $region35: #{mustafa_forward.10} parent=31 // pred_region
              loop: start=0, step=1, limit=1
              $region37: #{mustafa_forward.10} parent=35 // loop_pre_header
                _
              $region38: #{mustafa_forward.10} parent=35 // loop_header
                %s143 = sphi 0, %s147
                %p144 = scmp.ge.s32.totalorder %s143, 1
                %s148 = sphi %s137, %s137
                %s149 = sphi %s134, %s134
              $region39: #{mustafa_forward.10} parent=35 // loop_header_branch
                %146 = sbr.rel (%p144) target = $region43
              $region40: #{mustafa_forward.10} parent=35 // loop_body
                %v150 = vld [vmem:[%s148] sm:$0xff]
                %151 = vst [vmem:[%s149] sm:$0xff] %v150
                %v152 = vld [vmem:[%s148 + $0x8] sm:$0xff]
                %153 = vst [vmem:[%s149 + $0x8] sm:$0xff] %v152
                %v154 = vld [vmem:[%s148 + $0x10] sm:$0xff]
                %155 = vst [vmem:[%s149 + $0x10] sm:$0xff] %v154
                %v156 = vld [vmem:[%s148 + $0x18] sm:$0xff]
                %157 = vst [vmem:[%s149 + $0x18] sm:$0xff] %v156
                %v158 = vld [vmem:[%s148 + $0x80] sm:$0xff]
                %159 = vst [vmem:[%s149 + $0x20] sm:$0xff] %v158
                %v160 = vld [vmem:[%s148 + $0x88] sm:$0xff]
                %161 = vst [vmem:[%s149 + $0x28] sm:$0xff] %v160
                %v162 = vld [vmem:[%s148 + $0x90] sm:$0xff]
                %163 = vst [vmem:[%s149 + $0x30] sm:$0xff] %v162
                %v164 = vld [vmem:[%s148 + $0x98] sm:$0xff]
                %165 = vst [vmem:[%s149 + $0x38] sm:$0xff] %v164
                %v166 = vld [vmem:[%s148 + $0x100] sm:$0xff]
                %167 = vst [vmem:[%s149 + $0x40] sm:$0xff] %v166
                %v168 = vld [vmem:[%s148 + $0x108] sm:$0xff]
                %169 = vst [vmem:[%s149 + $0x48] sm:$0xff] %v168
                %v170 = vld [vmem:[%s148 + $0x110] sm:$0xff]
                %171 = vst [vmem:[%s149 + $0x50] sm:$0xff] %v170
                %v172 = vld [vmem:[%s148 + $0x118] sm:$0xff]
                %173 = vst [vmem:[%s149 + $0x58] sm:$0xff] %v172
                %v174 = vld [vmem:[%s148 + $0x180] sm:$0xff]
                %175 = vst [vmem:[%s149 + $0x60] sm:$0xff] %v174
                %v176 = vld [vmem:[%s148 + $0x188] sm:$0xff]
                %177 = vst [vmem:[%s149 + $0x68] sm:$0xff] %v176
                %v178 = vld [vmem:[%s148 + $0x190] sm:$0xff]
                %179 = vst [vmem:[%s149 + $0x70] sm:$0xff] %v178
                %v180 = vld [vmem:[%s148 + $0x198] sm:$0xff]
                %181 = vst [vmem:[%s149 + $0x78] sm:$0xff] %v180
              $region41: #{mustafa_forward.10} parent=35 // loop_footer
                %s147 = sadd.s32 1, %s143
              $region42: #{mustafa_forward.10} parent=35 // loop_footer_branch
                %142 = sbr.rel target = $region38
              $region43: #{mustafa_forward.10} parent=35 // loop_exit
                _
            $region36: #{mustafa_forward.10} parent=31 // pred_fallthru
              _
            // Predicated region
            $region44: #{mustafa_forward.10} parent=31 // pred_check
              _
            $region45: #{mustafa_forward.10} parent=31 // pred_check_branch
              %183 = sbr.rel target = $region47
            $region46: #{mustafa_forward.10} parent=31 // pred_region
              _
            $region47: #{mustafa_forward.10} parent=31 // pred_fallthru
              _
          $region32: #{mustafa_forward.10} parent=27 // pred_fallthru
            _
          %184 = vnop
        $region28: #{mustafa_forward.10} parent=23 // pred_fallthru
          _
      $region24: #{mustafa_forward.10} parent=5 // pred_fallthru
        _
      %p185 = scmp.le.s32.totalorder 1, %s9
      %p186 = scmp.lt.s32.totalorder %s9, 5
      %p187 = pnand %p185, %p186
      %p188 = pneg %p187
      // Predicated region
      $region48: #{mustafa_forward.10} parent=5 // pred_check
        _
      $region49: #{mustafa_forward.10} parent=5 // pred_check_branch
        %190 = sbr.rel (%p187) target = $region51
      $region50: #{mustafa_forward.10} parent=5 // pred_region
        %s191 = ssub.s32 %s9, 1
        %s192 = sand.u32 %s43, 1
        %s193 = sand.u32 %s43, 1
        %s194 = smul.addr %s193, 128
        %s195 = scalar_lea.vmem [#allocation2], %s194
        // Predicated region
        $region52: #{mustafa_forward.10} parent=50 // pred_check
          %p196 = pneg %p56
        $region53: #{mustafa_forward.10} parent=50 // pred_check_branch
          %198 = sbr.rel (%p196) target = $region55
        $region54: #{mustafa_forward.10} parent=50 // pred_region
          _
        $region55: #{mustafa_forward.10} parent=50 // pred_fallthru
          _
        %p199 = pneg %p30
        %p200 = pneg %p27
        %s201 = sand.u32 %s43, 1
        %s202 = sand.u32 %s43, 1
        %s203 = smul.addr %s202, 128
        %s204 = scalar_lea.vmem [#allocation2], %s203
        %p205 = pneg %p56
        %p206 = pneg %p53
        %p207 = pneg %p77
        %p208 = pneg %p74
        %p209 = pneg %p103
        %p210 = pneg %p100
        %s211 = sand.u32 %s90, 1
        %s212 = sand.u32 %s90, 1
        %s213 = smul.addr %s212, 64
        %s214 = scalar_lea.vmem [#allocation3], %s213
        %s215 = smul.u32 4, %s14
        %s216 = smul.u32 4, %s14
        %v217 = vld [vmem:[%s0] sm:$0xff]
        %v218 = vld [vmem:[%s0 + $0x8] sm:$0xff]
        %v219 = vld [vmem:[%s195] sm:$0xff]
        %v220 = vld [vmem:[%s195 + $0x8] sm:$0xff]
        %v221 = vld [vmem:[%s195 + $0x10] sm:$0xff]
        %v222 = vld [vmem:[%s195 + $0x18] sm:$0xff]
        %v223 = vld [vmem:[%s195 + $0x20] sm:$0xff]
        %v224 = vld [vmem:[%s195 + $0x28] sm:$0xff]
        %v225 = vld [vmem:[%s195 + $0x30] sm:$0xff]
        %v226 = vld [vmem:[%s195 + $0x38] sm:$0xff]
        %v227 = vld [vmem:[%s195 + $0x40] sm:$0xff]
        %v228 = vld [vmem:[%s195 + $0x48] sm:$0xff]
        %v229 = vld [vmem:[%s195 + $0x50] sm:$0xff]
        %v230 = vld [vmem:[%s195 + $0x58] sm:$0xff]
        %v231 = vld [vmem:[%s195 + $0x60] sm:$0x7]
        %v232 = vld [vmem:[%s195 + $0x68] sm:$0x7]
        %v233 = vld [vmem:[%s195 + $0x70] sm:$0x7]
        %v234 = vld [vmem:[%s195 + $0x78] sm:$0x7]
        %v235 = vld [vmem:[%s2] sm:$0xff]
        %v236 = vld [vmem:[%s2 + $0x8] sm:$0xff]
        %238 = vset.pattern.permute.xlu0 0
        %239 = vperm.xlu0 %238, %v235
        %v240 = vpop.permute.xlu0 %239
        %243 = vset.pattern.permute.xlu0 0
        %244 = vperm.xlu0 %243, %v236
        %v245 = vpop.permute.xlu0 %244
        %vm247 = vcmask 220160
        %v249 = vsel %vm247, %v217, 0
        %v252 = vsel %vm247, %v218, 0
        %vm254 = vcmask 1042432
        %v256 = vsel %vm254, %v231, 0
        %v259 = vsel %vm254, %v232, 0
        %v262 = vsel %vm254, %v233, 0
        %v265 = vsel %vm254, %v234, 0
        %267 = vmatprep.subr.mxu0 %v220
        %268 = vmatpush1.msra.mxu0 %v219
        %269 = vmatprep.subr.mxu0 %v224
        %270 = vmatpush1.msra.mxu0 %v223
        %271 = vmatprep.subr.mxu0 %v228
        %272 = vmatpush1.msra.mxu0 %v227
        %273 = vmatprep.subr.mxu0 %v259
        %274 = vmatpush1.msra.mxu0 %v256
        %275 = vmatprep.subr.mxu0 0.0
        %276 = vmatpush1.msra.mxu0 0.0
        %277 = vmatprep.subr.mxu0 0.0
        %278 = vmatpush1.msra.mxu0 0.0
        %279 = vmatprep.subr.mxu0 0.0
        %280 = vmatpush1.msra.mxu0 0.0
        %281 = vmatprep.subr.mxu0 0.0
        %282 = vmatpush1.msra.mxu0 0.0
        %283 = vmatprep.subr.mxu0 0.0
        %284 = vmatpush1.msra.mxu0 0.0
        %285 = vmatprep.subr.mxu0 0.0
        %286 = vmatpush1.msra.mxu0 0.0
        %287 = vmatprep.subr.mxu0 0.0
        %288 = vmatpush1.msra.mxu0 0.0
        %289 = vmatprep.subr.mxu0 0.0
        %290 = vmatpush1.msra.mxu0 0.0
        %291 = vmatprep.subr.mxu0 0.0
        %292 = vmatpush1.msra.mxu0 0.0
        %293 = vmatprep.subr.mxu0 0.0
        %294 = vmatpush1.msra.mxu0 0.0
        %295 = vmatprep.subr.mxu0 0.0
        %296 = vmatpush1.msra.mxu0 0.0
        %297 = vmatprep.subr.mxu0 0.0
        %298 = vmatpush1.msra.mxu0 0.0
        %299 = vmatprep.subr.mxu0 0.0
        %300 = vmatpush1.msra.mxu0 0.0
        %301 = vmatprep.subr.mxu0 0.0
        %302 = vmatpush1.msra.mxu0 0.0
        %303 = vmatprep.subr.mxu0 0.0
        %304 = vmatpush1.msra.mxu0 0.0
        %305 = vmatprep.subr.mxu0 0.0
        %306 = vmatpush1.msra.mxu0 0.0
        %307 = vmatprep.subr.mxu0 0.0
        %308 = vmatpush1.msra.mxu0 0.0
        %309 = vmatprep.subr.mxu0 0.0
        %310 = vmatpush1.msra.mxu0 0.0
        %311 = vmatprep.subr.mxu0 0.0
        %312 = vmatpush1.msra.mxu0 0.0
        %313 = vmatprep.subr.mxu0 0.0
        %314 = vmatpush1.msra.mxu0 0.0
        %315 = vmatprep.subr.mxu0 0.0
        %316 = vmatpush1.msra.mxu0 0.0
        %317 = vmatprep.subr.mxu0 0.0
        %318 = vmatpush1.msra.mxu0 0.0
        %319 = vmatprep.subr.mxu0 0.0
        %320 = vmatpush1.msra.mxu0 0.0
        %321 = vmatprep.subr.mxu0 0.0
        %322 = vmatpush1.msra.mxu0 0.0
        %323 = vmatprep.subr.mxu0 0.0
        %324 = vmatpush1.msra.mxu0 0.0
        %325 = vmatprep.subr.mxu0 0.0
        %326 = vmatpush1.msra.mxu0 0.0
        %327 = vmatprep.subr.mxu0 0.0
        %328 = vmatpush1.msra.mxu0 0.0
        %329 = vmatprep.subr.mxu0 0.0
        %330 = vmatpush1.msra.mxu0 0.0
        %331 = vmatprep.mubr.f32.mxu0 0.0
        %332 = vmatmul.mubr.f32.gmra.mrb[0].mxu0 %v249
        %v333 = vpop.f32.mrb[0].mxu0
        %v334 = vadd.f32 %v240, %v333
        %v335 = vpop.f32.mrb[0].mxu0
        %v336 = vadd.f32 %v240, %v335
        %337 = vmatprep.mubr.f32.mxu0 0.0
        %338 = vmatmul.mubr.f32.gmra.mrb[0].mxu0 %v252
        %v339 = vpop.f32.mrb[0].mxu0
        %v340 = vadd.f32 %v245, %v339
        %v341 = vpop.f32.mrb[0].mxu0
        %v342 = vadd.f32 %v245, %v341
        %343 = vdwg.mxu0
        %344 = vmatprep.subr.mxu0 %v222
        %345 = vmatpush1.msra.mxu0 %v221
        %346 = vmatprep.subr.mxu0 %v226
        %347 = vmatpush1.msra.mxu0 %v225
        %348 = vmatprep.subr.mxu0 %v230
        %349 = vmatpush1.msra.mxu0 %v229
        %350 = vmatprep.subr.mxu0 %v265
        %351 = vmatpush1.msra.mxu0 %v262
        %352 = vmatprep.subr.mxu0 0.0
        %353 = vmatpush1.msra.mxu0 0.0
        %354 = vmatprep.subr.mxu0 0.0
        %355 = vmatpush1.msra.mxu0 0.0
        %356 = vmatprep.subr.mxu0 0.0
        %357 = vmatpush1.msra.mxu0 0.0
        %358 = vmatprep.subr.mxu0 0.0
        %359 = vmatpush1.msra.mxu0 0.0
        %360 = vmatprep.subr.mxu0 0.0
        %361 = vmatpush1.msra.mxu0 0.0
        %362 = vmatprep.subr.mxu0 0.0
        %363 = vmatpush1.msra.mxu0 0.0
        %364 = vmatprep.subr.mxu0 0.0
        %365 = vmatpush1.msra.mxu0 0.0
        %366 = vmatprep.subr.mxu0 0.0
        %367 = vmatpush1.msra.mxu0 0.0
        %368 = vmatprep.subr.mxu0 0.0
        %369 = vmatpush1.msra.mxu0 0.0
        %370 = vmatprep.subr.mxu0 0.0
        %371 = vmatpush1.msra.mxu0 0.0
        %372 = vmatprep.subr.mxu0 0.0
        %373 = vmatpush1.msra.mxu0 0.0
        %374 = vmatprep.subr.mxu0 0.0
        %375 = vmatpush1.msra.mxu0 0.0
        %376 = vmatprep.subr.mxu0 0.0
        %377 = vmatpush1.msra.mxu0 0.0
        %378 = vmatprep.subr.mxu0 0.0
        %379 = vmatpush1.msra.mxu0 0.0
        %380 = vmatprep.subr.mxu0 0.0
        %381 = vmatpush1.msra.mxu0 0.0
        %382 = vmatprep.subr.mxu0 0.0
        %383 = vmatpush1.msra.mxu0 0.0
        %384 = vmatprep.subr.mxu0 0.0
        %385 = vmatpush1.msra.mxu0 0.0
        %386 = vmatprep.subr.mxu0 0.0
        %387 = vmatpush1.msra.mxu0 0.0
        %388 = vmatprep.subr.mxu0 0.0
        %389 = vmatpush1.msra.mxu0 0.0
        %390 = vmatprep.subr.mxu0 0.0
        %391 = vmatpush1.msra.mxu0 0.0
        %392 = vmatprep.subr.mxu0 0.0
        %393 = vmatpush1.msra.mxu0 0.0
        %394 = vmatprep.subr.mxu0 0.0
        %395 = vmatpush1.msra.mxu0 0.0
        %396 = vmatprep.subr.mxu0 0.0
        %397 = vmatpush1.msra.mxu0 0.0
        %398 = vmatprep.subr.mxu0 0.0
        %399 = vmatpush1.msra.mxu0 0.0
        %400 = vmatprep.subr.mxu0 0.0
        %401 = vmatpush1.msra.mxu0 0.0
        %402 = vmatprep.subr.mxu0 0.0
        %403 = vmatpush1.msra.mxu0 0.0
        %404 = vmatprep.subr.mxu0 0.0
        %405 = vmatpush1.msra.mxu0 0.0
        %406 = vmatprep.subr.mxu0 0.0
        %407 = vmatpush1.msra.mxu0 0.0
        %408 = vmatprep.mubr.f32.mxu0 0.0
        %409 = vmatmul.mubr.f32.gmra.mrb[0].mxu0 %v249
        %v410 = vpop.f32.mrb[0].mxu0
        %v411 = vadd.f32 %v240, %v410
        %v412 = vpop.f32.mrb[0].mxu0
        %v413 = vadd.f32 %v240, %v412
        %414 = vmatprep.mubr.f32.mxu0 0.0
        %415 = vmatmul.mubr.f32.gmra.mrb[0].mxu0 %v252
        %v416 = vpop.f32.mrb[0].mxu0
        %v417 = vadd.f32 %v245, %v416
        %v418 = vpop.f32.mrb[0].mxu0
        %v419 = vadd.f32 %v245, %v418
        %420 = vdwg.mxu0
        %v421 = vmax.f32 %v334, 0.0
        %v422 = vmax.f32 %v336, 0.0
        %v423 = vmax.f32 %v411, 0.0
        %v424 = vmax.f32 %v413, 0.0
        %v425 = vmax.f32 %v340, 0.0
        %v426 = vmax.f32 %v342, 0.0
        %v427 = vmax.f32 %v417, 0.0
        %v428 = vmax.f32 %v419, 0.0
        %429 = vst [vmem:[%s214] sm:$0xff] %v421
        %430 = vst [vmem:[%s214 + $0x8] sm:$0xff] %v422
        %431 = vst [vmem:[%s214 + $0x10] sm:$0xff] %v423
        %432 = vst [vmem:[%s214 + $0x18] sm:$0xff] %v424
        %433 = vst [vmem:[%s214 + $0x20] sm:$0xff] %v425
        %434 = vst [vmem:[%s214 + $0x28] sm:$0xff] %v426
        %435 = vst [vmem:[%s214 + $0x30] sm:$0xff] %v427
        %436 = vst [vmem:[%s214 + $0x38] sm:$0xff] %v428
        %s437 = sand.u32 %s90, 1
        %s438 = sand.u32 %s90, 1
        %s439 = smul.addr %s438, 64
        %s440 = scalar_lea.vmem [#allocation3], %s439
        // Predicated region
        $region56: #{mustafa_forward.10} parent=50 // pred_check
          %p441 = pneg %p100
        $region57: #{mustafa_forward.10} parent=50 // pred_check_branch
          %443 = sbr.rel (%p441) target = $region59
        $region58: #{mustafa_forward.10} parent=50 // pred_region
          %s444 = smul.u32 4, %s14
          %s445 = smul.addr %s444, 8
          %s446 = scalar_lea.vmem %s3, %s445
          // Predicated region
          $region60: #{mustafa_forward.10} parent=58 // pred_check
            _
          $region61: #{mustafa_forward.10} parent=58 // pred_check_branch
            %448 = sbr.rel (0) target = $region63
          $region62: #{mustafa_forward.10} parent=58 // pred_region
            // Predicated region
            $region64: #{mustafa_forward.10} parent=62 // pred_check
              _
            $region65: #{mustafa_forward.10} parent=62 // pred_check_branch
              %450 = sbr.rel (0) target = $region67
            $region66: #{mustafa_forward.10} parent=62 // pred_region
              loop: start=0, step=1, limit=1
              $region68: #{mustafa_forward.10} parent=66 // loop_pre_header
                _
              $region69: #{mustafa_forward.10} parent=66 // loop_header
                %s452 = sphi 0, %s456
                %p453 = scmp.ge.s32.totalorder %s452, 1
                %s457 = sphi %s440, %s440
                %s458 = sphi %s446, %s446
              $region70: #{mustafa_forward.10} parent=66 // loop_header_branch
                %455 = sbr.rel (%p453) target = $region74
              $region71: #{mustafa_forward.10} parent=66 // loop_body
                %v459 = vld [vmem:[%s457] sm:$0xff]
                %460 = vst [vmem:[%s458] sm:$0xff] %v459
                %v461 = vld [vmem:[%s457 + $0x8] sm:$0xff]
                %462 = vst [vmem:[%s458 + $0x8] sm:$0xff] %v461
                %v463 = vld [vmem:[%s457 + $0x10] sm:$0xff]
                %464 = vst [vmem:[%s458 + $0x10] sm:$0xff] %v463
                %v465 = vld [vmem:[%s457 + $0x18] sm:$0xff]
                %466 = vst [vmem:[%s458 + $0x18] sm:$0xff] %v465
                %v467 = vld [vmem:[%s457 + $0x20] sm:$0xff]
                %468 = vst [vmem:[%s458 + $0x80] sm:$0xff] %v467
                %v469 = vld [vmem:[%s457 + $0x28] sm:$0xff]
                %470 = vst [vmem:[%s458 + $0x88] sm:$0xff] %v469
                %v471 = vld [vmem:[%s457 + $0x30] sm:$0xff]
                %472 = vst [vmem:[%s458 + $0x90] sm:$0xff] %v471
                %v473 = vld [vmem:[%s457 + $0x38] sm:$0xff]
                %474 = vst [vmem:[%s458 + $0x98] sm:$0xff] %v473
              $region72: #{mustafa_forward.10} parent=66 // loop_footer
                %s456 = sadd.s32 1, %s452
              $region73: #{mustafa_forward.10} parent=66 // loop_footer_branch
                %451 = sbr.rel target = $region69
              $region74: #{mustafa_forward.10} parent=66 // loop_exit
                _
            $region67: #{mustafa_forward.10} parent=62 // pred_fallthru
              _
            // Predicated region
            $region75: #{mustafa_forward.10} parent=62 // pred_check
              _
            $region76: #{mustafa_forward.10} parent=62 // pred_check_branch
              %476 = sbr.rel target = $region78
            $region77: #{mustafa_forward.10} parent=62 // pred_region
              _
            $region78: #{mustafa_forward.10} parent=62 // pred_fallthru
              _
          $region63: #{mustafa_forward.10} parent=58 // pred_fallthru
            _
          %477 = vnop
        $region59: #{mustafa_forward.10} parent=50 // pred_fallthru
          _
      $region51: #{mustafa_forward.10} parent=5 // pred_fallthru
        _
      %p478 = scmp.le.s32.totalorder 2, %s9
      // Predicated region
      $region79: #{mustafa_forward.10} parent=5 // pred_check
        %p479 = pneg %p478
      $region80: #{mustafa_forward.10} parent=5 // pred_check_branch
        %481 = sbr.rel (%p479) target = $region82
      $region81: #{mustafa_forward.10} parent=5 // pred_region
        %s482 = ssub.s32 %s9, 2
        // Predicated region
        $region83: #{mustafa_forward.10} parent=81 // pred_check
          %p483 = pneg %p106
        $region84: #{mustafa_forward.10} parent=81 // pred_check_branch
          %485 = sbr.rel (%p483) target = $region86
        $region85: #{mustafa_forward.10} parent=81 // pred_region
          %s486 = sand.u32 %s91, 1
          %s487 = sand.u32 %s91, 1
          %s488 = smul.addr %s487, 64
          %s489 = scalar_lea.vmem [#allocation3], %s488
        $region86: #{mustafa_forward.10} parent=81 // pred_fallthru
          _
      $region82: #{mustafa_forward.10} parent=5 // pred_fallthru
        _
    $region6: #{mustafa_forward.10} parent=1 // loop_footer
      %s13 = sadd.s32 1, %s9
    $region7: #{mustafa_forward.10} parent=1 // loop_footer_branch
      %8 = sbr.rel target = $region3
    $region8: #{mustafa_forward.10} parent=1 // loop_exit
      _

// kernel: mustafa_forward.11
$region0: #{mustafa_forward.11}
  #allocation0 [shape = 'u32[]', space=smem, size = 0x4, offset = 0x4, fixed_abs, tag = 'smem constant byte address 0x4 - core index']
  #allocation1 [shape = 'u32[144,128]{1,0:T(1,128)}', space=vmem, size = 0x12000, scoped, tag = 'internal scratch']
  %s0 = inlined_call_operand.vmem [shape: f32[16,3], index: 0, kind: input, shape index: {}]
  %s1 = inlined_call_operand.vmem [shape: f32[3,2048], index: 1, kind: input, shape index: {}]
  %s2 = inlined_call_operand.vmem [shape: f32[16,1], index: 2, kind: input, shape index: {}]
  %s3 = inlined_call_operand.vmem [shape: f32[16,2048], index: 3, kind: output, shape index: {}]
  %s4 = sld [smem:[#allocation0]]
  $region64: #{mustafa_forward.11} parent=0
    _
  %s6 = ssub.s32 1, %s4
  %s7 = scalar_select 0, %s6, %s4
  $region1: #{mustafa_forward.11} parent=0
    #allocation2 [shape = 'u8[65536]{0}', space=vmem, size = 0x10000, scoped, tag = 'output window, operand 0']
    loop: start=0, step=1, limit=6
    $region2: #{mustafa_forward.11} parent=1 // loop_pre_header
      _
    $region3: #{mustafa_forward.11} parent=1 // loop_header
      %s9 = sphi 0, %s13
      %p10 = scmp.ge.s32.totalorder %s9, 6
      %s17 = sphi 0, %s17
      %s19 = sphi 0, %s17
      %s20 = sphi 0, %s19
      %s34 = sphi 0, %s20
      %s40 = sphi 0, %s42
      %s43 = sphi 0, %s40
      %s44 = sphi 0, %s43
      %s60 = sphi 0, %s44
      %s64 = sphi 0, %s64
      %s66 = sphi 0, %s64
      %s67 = sphi 0, %s66
      %s81 = sphi 0, %s67
      %s87 = sphi 0, %s89
      %s90 = sphi 0, %s87
      %s91 = sphi 0, %s90
      %s107 = sphi 0, %s91
    $region4: #{mustafa_forward.11} parent=1 // loop_header_branch
      %12 = sbr.rel (%p10) target = $region8
    $region5: #{mustafa_forward.11} parent=1 // loop_body
      %s14 = ssub.s32 %s9, 1
      %s15 = ssub.s32 %s9, 2
      %s16 = sadd.s32 %s9, 1
      %s18 = sadd.s32 %s17, 1
      %p21 = scmp.eq.s32.totalorder %s9, 3
      %p22 = scmp.ne.s32.totalorder %s17, %s19
      %p23 = scmp.eq.s32.totalorder %s9, 0
      %p24 = por %p22, %p23
      %p25 = scmp.ne.s32.totalorder %s17, %s19
      %p26 = scmp.eq.s32.totalorder %s14, 3
      %p27 = por %p25, %p26
      %p28 = scmp.ne.s32.totalorder %s19, %s20
      %p29 = scmp.eq.s32.totalorder %s14, 0
      %p30 = por %p28, %p29
      %p31 = scmp.ne.s32.totalorder %s19, %s20
      %p32 = scmp.eq.s32.totalorder %s15, 3
      %p33 = por %p31, %p32
      %p35 = scmp.ne.s32.totalorder %s20, %s34
      %p36 = scmp.eq.s32.totalorder %s15, 0
      %p37 = por %p35, %p36
      %s38 = ssub.s32 %s9, %s16
      %p39 = scmp.eq.s32.totalorder %s38, 0
      %s41 = sadd.s32 %s40, 1
      %s42 = scalar_select %p39, %s40, %s41
      %p45 = pneg %p39
      %p46 = scmp.eq.s32.totalorder %s9, 3
      %p47 = por %p45, %p46
      %p48 = scmp.ne.s32.totalorder %s40, %s43
      %p49 = scmp.eq.s32.totalorder %s9, 0
      %p50 = por %p48, %p49
      %p51 = scmp.ne.s32.totalorder %s40, %s43
      %p52 = scmp.eq.s32.totalorder %s14, 3
      %p53 = por %p51, %p52
      %p54 = scmp.ne.s32.totalorder %s43, %s44
      %p55 = scmp.eq.s32.totalorder %s14, 0
      %p56 = por %p54, %p55
      %p57 = scmp.ne.s32.totalorder %s43, %s44
      %p58 = scmp.eq.s32.totalorder %s15, 3
      %p59 = por %p57, %p58
      %p61 = scmp.ne.s32.totalorder %s44, %s60
      %p62 = scmp.eq.s32.totalorder %s15, 0
      %p63 = por %p61, %p62
      %s65 = sadd.s32 %s64, 1
      %p68 = scmp.eq.s32.totalorder %s9, 3
      %p69 = scmp.ne.s32.totalorder %s64, %s66
      %p70 = scmp.eq.s32.totalorder %s9, 0
      %p71 = por %p69, %p70
      %p72 = scmp.ne.s32.totalorder %s64, %s66
      %p73 = scmp.eq.s32.totalorder %s14, 3
      %p74 = por %p72, %p73
      %p75 = scmp.ne.s32.totalorder %s66, %s67
      %p76 = scmp.eq.s32.totalorder %s14, 0
      %p77 = por %p75, %p76
      %p78 = scmp.ne.s32.totalorder %s66, %s67
      %p79 = scmp.eq.s32.totalorder %s15, 3
      %p80 = por %p78, %p79
      %p82 = scmp.ne.s32.totalorder %s67, %s81
      %p83 = scmp.eq.s32.totalorder %s15, 0
      %p84 = por %p82, %p83
      %s85 = ssub.s32 %s9, %s16
      %p86 = scmp.eq.s32.totalorder %s85, 0
      %s88 = sadd.s32 %s87, 1
      %s89 = scalar_select %p86, %s87, %s88
      %p92 = pneg %p86
      %p93 = scmp.eq.s32.totalorder %s9, 3
      %p94 = por %p92, %p93
      %p95 = scmp.ne.s32.totalorder %s87, %s90
      %p96 = scmp.eq.s32.totalorder %s9, 0
      %p97 = por %p95, %p96
      %p98 = scmp.ne.s32.totalorder %s87, %s90
      %p99 = scmp.eq.s32.totalorder %s14, 3
      %p100 = por %p98, %p99
      %p101 = scmp.ne.s32.totalorder %s90, %s91
      %p102 = scmp.eq.s32.totalorder %s14, 0
      %p103 = por %p101, %p102
      %p104 = scmp.ne.s32.totalorder %s90, %s91
      %p105 = scmp.eq.s32.totalorder %s15, 3
      %p106 = por %p104, %p105
      %p108 = scmp.ne.s32.totalorder %s91, %s107
      %p109 = scmp.eq.s32.totalorder %s15, 0
      %p110 = por %p108, %p109
      %p111 = scmp.le.s32.totalorder 1, %s9
      %p112 = scmp.lt.s32.totalorder %s9, 5
      %p113 = pnand %p111, %p112
      %p114 = pneg %p113
      // Predicated region
      $region9: #{mustafa_forward.11} parent=5 // pred_check
        _
      $region10: #{mustafa_forward.11} parent=5 // pred_check_branch
        %116 = sbr.rel (%p113) target = $region12
      $region11: #{mustafa_forward.11} parent=5 // pred_region
        %s117 = ssub.s32 %s9, 1
        // Predicated region
        $region13: #{mustafa_forward.11} parent=11 // pred_check
          %p118 = pneg %p30
        $region14: #{mustafa_forward.11} parent=11 // pred_check_branch
          %120 = sbr.rel (%p118) target = $region16
        $region15: #{mustafa_forward.11} parent=11 // pred_region
          _
        $region16: #{mustafa_forward.11} parent=11 // pred_fallthru
          _
        // Predicated region
        $region17: #{mustafa_forward.11} parent=11 // pred_check
          %p121 = pneg %p77
        $region18: #{mustafa_forward.11} parent=11 // pred_check_branch
          %123 = sbr.rel (%p121) target = $region20
        $region19: #{mustafa_forward.11} parent=11 // pred_region
          _
        $region20: #{mustafa_forward.11} parent=11 // pred_fallthru
          _
      $region12: #{mustafa_forward.11} parent=5 // pred_fallthru
        _
      %p124 = scmp.lt.s32.totalorder %s9, 4
      // Predicated region
      $region21: #{mustafa_forward.11} parent=5 // pred_check
        %p125 = pneg %p124
      $region22: #{mustafa_forward.11} parent=5 // pred_check_branch
        %127 = sbr.rel (%p125) target = $region24
      $region23: #{mustafa_forward.11} parent=5 // pred_region
        // Predicated region
        $region25: #{mustafa_forward.11} parent=23 // pred_check
          %p128 = pneg %p50
        $region26: #{mustafa_forward.11} parent=23 // pred_check_branch
          %130 = sbr.rel (%p128) target = $region28
        $region27: #{mustafa_forward.11} parent=23 // pred_region
          %s131 = smul.u32 4, %s9
          %p132 = scmp.lt.s32.totalorder %s131, 15
          %s133 = scalar_select %p132, %s131, 15
          %s134 = smul.addr %s133, 4
          %s135 = scalar_lea.vmem %s1, %s134
          %s136 = smul.u32 4, %s9
        $region28: #{mustafa_forward.11} parent=23 // pred_fallthru
          _
      $region24: #{mustafa_forward.11} parent=5 // pred_fallthru
        _
      %p137 = scmp.le.s32.totalorder 1, %s9
      %p138 = scmp.lt.s32.totalorder %s9, 5
      %p139 = pnand %p137, %p138
      %p140 = pneg %p139
      // Predicated region
      $region29: #{mustafa_forward.11} parent=5 // pred_check
        _
      $region30: #{mustafa_forward.11} parent=5 // pred_check_branch
        %142 = sbr.rel (%p139) target = $region32
      $region31: #{mustafa_forward.11} parent=5 // pred_region
        %s143 = ssub.s32 %s9, 1
        %p144 = pneg %p30
        %p145 = pneg %p27
        %s146 = smul.u32 4, %s14
        %p147 = scmp.lt.s32.totalorder %s146, 15
        %s148 = scalar_select %p147, %s146, 15
        %s149 = smul.addr %s148, 4
        %s150 = scalar_lea.vmem %s1, %s149
        %p151 = pneg %p56
        %p152 = pneg %p53
        %p153 = pneg %p77
        %p154 = pneg %p74
        %p155 = pneg %p103
        %p156 = pneg %p100
        %s157 = sand.u32 %s90, 1
        %s158 = sand.u32 %s90, 1
        %s159 = smul.addr %s158, 64
        %s160 = scalar_lea.vmem [#allocation2], %s159
        %s161 = smul.u32 4, %s14
        %p162 = scmp.lt.s32.totalorder %s161, 15
        %s163 = scalar_select %p162, %s161, 15
        %s164 = smul.addr %s163, 4
        %s165 = scalar_lea.vmem %s1, %s164
        %s166 = smul.u32 4, %s14
        %s167 = smul.u32 4, %s14
        %v168 = vld [vmem:[%s0] sm:$0xff]
        %v169 = vld [vmem:[%s0 + $0x8] sm:$0xff]
        %v170 = vld [vmem:[%s165] sm:$0x77]
        %v171 = vld [vmem:[%s165 + $0x8] sm:$0x77]
        %v172 = vld [vmem:[%s2] sm:$0xff]
        %v173 = vld [vmem:[%s2 + $0x8] sm:$0xff]
        %175 = vset.pattern.permute.xlu0 0
        %176 = vperm.xlu0 %175, %v172
        %v177 = vpop.permute.xlu0 %176
        %180 = vset.pattern.permute.xlu0 0
        %181 = vperm.xlu0 %180, %v173
        %v182 = vpop.permute.xlu0 %181
        %v186 = vcombine.high %v170, %v170
        %v187 = vcombine.high %v171, %v171
        %vm188 = vcmask 23552
        %v190 = vsel %vm188, %v168, 0
        %v193 = vsel %vm188, %v169, 0
        %vm195 = vcmask 1042432
        %v196 = vsel %vm195, %v170, 0
        %v198 = vsel %vm195, %v186, 0
        %v200 = vsel %vm195, %v171, 0
        %v202 = vsel %vm195, %v187, 0
        %204 = vmatprep.subr.mxu0 %v198
        %205 = vmatpush1.msra.mxu0 %v196
        %206 = vmatprep.subr.mxu0 0.0
        %207 = vmatpush1.msra.mxu0 0.0
        %208 = vmatprep.subr.mxu0 0.0
        %209 = vmatpush1.msra.mxu0 0.0
        %210 = vmatprep.subr.mxu0 0.0
        %211 = vmatpush1.msra.mxu0 0.0
        %212 = vmatprep.subr.mxu0 0.0
        %213 = vmatpush1.msra.mxu0 0.0
        %214 = vmatprep.subr.mxu0 0.0
        %215 = vmatpush1.msra.mxu0 0.0
        %216 = vmatprep.subr.mxu0 0.0
        %217 = vmatpush1.msra.mxu0 0.0
        %218 = vmatprep.subr.mxu0 0.0
        %219 = vmatpush1.msra.mxu0 0.0
        %220 = vmatprep.subr.mxu0 0.0
        %221 = vmatpush1.msra.mxu0 0.0
        %222 = vmatprep.subr.mxu0 0.0
        %223 = vmatpush1.msra.mxu0 0.0
        %224 = vmatprep.subr.mxu0 0.0
        %225 = vmatpush1.msra.mxu0 0.0
        %226 = vmatprep.subr.mxu0 0.0
        %227 = vmatpush1.msra.mxu0 0.0
        %228 = vmatprep.subr.mxu0 0.0
        %229 = vmatpush1.msra.mxu0 0.0
        %230 = vmatprep.subr.mxu0 0.0
        %231 = vmatpush1.msra.mxu0 0.0
        %232 = vmatprep.subr.mxu0 0.0
        %233 = vmatpush1.msra.mxu0 0.0
        %234 = vmatprep.subr.mxu0 0.0
        %235 = vmatpush1.msra.mxu0 0.0
        %236 = vmatprep.subr.mxu0 0.0
        %237 = vmatpush1.msra.mxu0 0.0
        %238 = vmatprep.subr.mxu0 0.0
        %239 = vmatpush1.msra.mxu0 0.0
        %240 = vmatprep.subr.mxu0 0.0
        %241 = vmatpush1.msra.mxu0 0.0
        %242 = vmatprep.subr.mxu0 0.0
        %243 = vmatpush1.msra.mxu0 0.0
        %244 = vmatprep.subr.mxu0 0.0
        %245 = vmatpush1.msra.mxu0 0.0
        %246 = vmatprep.subr.mxu0 0.0
        %247 = vmatpush1.msra.mxu0 0.0
        %248 = vmatprep.subr.mxu0 0.0
        %249 = vmatpush1.msra.mxu0 0.0
        %250 = vmatprep.subr.mxu0 0.0
        %251 = vmatpush1.msra.mxu0 0.0
        %252 = vmatprep.subr.mxu0 0.0
        %253 = vmatpush1.msra.mxu0 0.0
        %254 = vmatprep.subr.mxu0 0.0
        %255 = vmatpush1.msra.mxu0 0.0
        %256 = vmatprep.subr.mxu0 0.0
        %257 = vmatpush1.msra.mxu0 0.0
        %258 = vmatprep.subr.mxu0 0.0
        %259 = vmatpush1.msra.mxu0 0.0
        %260 = vmatprep.subr.mxu0 0.0
        %261 = vmatpush1.msra.mxu0 0.0
        %262 = vmatprep.subr.mxu0 0.0
        %263 = vmatpush1.msra.mxu0 0.0
        %264 = vmatprep.subr.mxu0 0.0
        %265 = vmatpush1.msra.mxu0 0.0
        %266 = vmatprep.subr.mxu0 0.0
        %267 = vmatpush1.msra.mxu0 0.0
        %268 = vmatprep.mubr.f32.mxu0 0.0
        %269 = vmatmul.mubr.f32.gmra.mrb[0].mxu0 %v190
        %v270 = vpop.f32.mrb[0].mxu0
        %v271 = vadd.f32 %v177, %v270
        %v272 = vpop.f32.mrb[0].mxu0
        %v273 = vadd.f32 %v177, %v272
        %274 = vmatprep.mubr.f32.mxu0 0.0
        %275 = vmatmul.mubr.f32.gmra.mrb[0].mxu0 %v193
        %v276 = vpop.f32.mrb[0].mxu0
        %v277 = vadd.f32 %v182, %v276
        %v278 = vpop.f32.mrb[0].mxu0
        %v279 = vadd.f32 %v182, %v278
        %280 = vdwg.mxu0
        %281 = vmatprep.subr.mxu0 %v202
        %282 = vmatpush1.msra.mxu0 %v200
        %283 = vmatprep.subr.mxu0 0.0
        %284 = vmatpush1.msra.mxu0 0.0
        %285 = vmatprep.subr.mxu0 0.0
        %286 = vmatpush1.msra.mxu0 0.0
        %287 = vmatprep.subr.mxu0 0.0
        %288 = vmatpush1.msra.mxu0 0.0
        %289 = vmatprep.subr.mxu0 0.0
        %290 = vmatpush1.msra.mxu0 0.0
        %291 = vmatprep.subr.mxu0 0.0
        %292 = vmatpush1.msra.mxu0 0.0
        %293 = vmatprep.subr.mxu0 0.0
        %294 = vmatpush1.msra.mxu0 0.0
        %295 = vmatprep.subr.mxu0 0.0
        %296 = vmatpush1.msra.mxu0 0.0
        %297 = vmatprep.subr.mxu0 0.0
        %298 = vmatpush1.msra.mxu0 0.0
        %299 = vmatprep.subr.mxu0 0.0
        %300 = vmatpush1.msra.mxu0 0.0
        %301 = vmatprep.subr.mxu0 0.0
        %302 = vmatpush1.msra.mxu0 0.0
        %303 = vmatprep.subr.mxu0 0.0
        %304 = vmatpush1.msra.mxu0 0.0
        %305 = vmatprep.subr.mxu0 0.0
        %306 = vmatpush1.msra.mxu0 0.0
        %307 = vmatprep.subr.mxu0 0.0
        %308 = vmatpush1.msra.mxu0 0.0
        %309 = vmatprep.subr.mxu0 0.0
        %310 = vmatpush1.msra.mxu0 0.0
        %311 = vmatprep.subr.mxu0 0.0
        %312 = vmatpush1.msra.mxu0 0.0
        %313 = vmatprep.subr.mxu0 0.0
        %314 = vmatpush1.msra.mxu0 0.0
        %315 = vmatprep.subr.mxu0 0.0
        %316 = vmatpush1.msra.mxu0 0.0
        %317 = vmatprep.subr.mxu0 0.0
        %318 = vmatpush1.msra.mxu0 0.0
        %319 = vmatprep.subr.mxu0 0.0
        %320 = vmatpush1.msra.mxu0 0.0
        %321 = vmatprep.subr.mxu0 0.0
        %322 = vmatpush1.msra.mxu0 0.0
        %323 = vmatprep.subr.mxu0 0.0
        %324 = vmatpush1.msra.mxu0 0.0
        %325 = vmatprep.subr.mxu0 0.0
        %326 = vmatpush1.msra.mxu0 0.0
        %327 = vmatprep.subr.mxu0 0.0
        %328 = vmatpush1.msra.mxu0 0.0
        %329 = vmatprep.subr.mxu0 0.0
        %330 = vmatpush1.msra.mxu0 0.0
        %331 = vmatprep.subr.mxu0 0.0
        %332 = vmatpush1.msra.mxu0 0.0
        %333 = vmatprep.subr.mxu0 0.0
        %334 = vmatpush1.msra.mxu0 0.0
        %335 = vmatprep.subr.mxu0 0.0
        %336 = vmatpush1.msra.mxu0 0.0
        %337 = vmatprep.subr.mxu0 0.0
        %338 = vmatpush1.msra.mxu0 0.0
        %339 = vmatprep.subr.mxu0 0.0
        %340 = vmatpush1.msra.mxu0 0.0
        %341 = vmatprep.subr.mxu0 0.0
        %342 = vmatpush1.msra.mxu0 0.0
        %343 = vmatprep.subr.mxu0 0.0
        %344 = vmatpush1.msra.mxu0 0.0
        %345 = vmatprep.mubr.f32.mxu0 0.0
        %346 = vmatmul.mubr.f32.gmra.mrb[0].mxu0 %v190
        %v347 = vpop.f32.mrb[0].mxu0
        %v348 = vadd.f32 %v177, %v347
        %v349 = vpop.f32.mrb[0].mxu0
        %v350 = vadd.f32 %v177, %v349
        %351 = vmatprep.mubr.f32.mxu0 0.0
        %352 = vmatmul.mubr.f32.gmra.mrb[0].mxu0 %v193
        %v353 = vpop.f32.mrb[0].mxu0
        %v354 = vadd.f32 %v182, %v353
        %v355 = vpop.f32.mrb[0].mxu0
        %v356 = vadd.f32 %v182, %v355
        %357 = vdwg.mxu0
        %358 = vst [vmem:[%s160] sm:$0xff] %v271
        %359 = vst [vmem:[%s160 + $0x8] sm:$0xff] %v273
        %360 = vst [vmem:[%s160 + $0x10] sm:$0xff] %v348
        %361 = vst [vmem:[%s160 + $0x18] sm:$0xff] %v350
        %362 = vst [vmem:[%s160 + $0x20] sm:$0xff] %v277
        %363 = vst [vmem:[%s160 + $0x28] sm:$0xff] %v279
        %364 = vst [vmem:[%s160 + $0x30] sm:$0xff] %v354
        %365 = vst [vmem:[%s160 + $0x38] sm:$0xff] %v356
        %s366 = sand.u32 %s90, 1
        %s367 = sand.u32 %s90, 1
        %s368 = smul.addr %s367, 64
        %s369 = scalar_lea.vmem [#allocation2], %s368
        // Predicated region
        $region33: #{mustafa_forward.11} parent=31 // pred_check
          %p370 = pneg %p100
        $region34: #{mustafa_forward.11} parent=31 // pred_check_branch
          %372 = sbr.rel (%p370) target = $region36
        $region35: #{mustafa_forward.11} parent=31 // pred_region
          %s373 = smul.u32 4, %s14
          %s374 = smul.addr %s373, 8
          %s375 = scalar_lea.vmem %s3, %s374
          // Predicated region
          $region37: #{mustafa_forward.11} parent=35 // pred_check
            _
          $region38: #{mustafa_forward.11} parent=35 // pred_check_branch
            %377 = sbr.rel (0) target = $region40
          $region39: #{mustafa_forward.11} parent=35 // pred_region
            // Predicated region
            $region41: #{mustafa_forward.11} parent=39 // pred_check
              _
            $region42: #{mustafa_forward.11} parent=39 // pred_check_branch
              %379 = sbr.rel (0) target = $region44
            $region43: #{mustafa_forward.11} parent=39 // pred_region
              loop: start=0, step=1, limit=1
              $region45: #{mustafa_forward.11} parent=43 // loop_pre_header
                _
              $region46: #{mustafa_forward.11} parent=43 // loop_header
                %s381 = sphi 0, %s385
                %p382 = scmp.ge.s32.totalorder %s381, 1
                %s386 = sphi %s369, %s369
                %s387 = sphi %s375, %s375
              $region47: #{mustafa_forward.11} parent=43 // loop_header_branch
                %384 = sbr.rel (%p382) target = $region51
              $region48: #{mustafa_forward.11} parent=43 // loop_body
                %v388 = vld [vmem:[%s386] sm:$0xff]
                %389 = vst [vmem:[%s387] sm:$0xff] %v388
                %v390 = vld [vmem:[%s386 + $0x8] sm:$0xff]
                %391 = vst [vmem:[%s387 + $0x8] sm:$0xff] %v390
                %v392 = vld [vmem:[%s386 + $0x10] sm:$0xff]
                %393 = vst [vmem:[%s387 + $0x10] sm:$0xff] %v392
                %v394 = vld [vmem:[%s386 + $0x18] sm:$0xff]
                %395 = vst [vmem:[%s387 + $0x18] sm:$0xff] %v394
                %v396 = vld [vmem:[%s386 + $0x20] sm:$0xff]
                %397 = vst [vmem:[%s387 + $0x80] sm:$0xff] %v396
                %v398 = vld [vmem:[%s386 + $0x28] sm:$0xff]
                %399 = vst [vmem:[%s387 + $0x88] sm:$0xff] %v398
                %v400 = vld [vmem:[%s386 + $0x30] sm:$0xff]
                %401 = vst [vmem:[%s387 + $0x90] sm:$0xff] %v400
                %v402 = vld [vmem:[%s386 + $0x38] sm:$0xff]
                %403 = vst [vmem:[%s387 + $0x98] sm:$0xff] %v402
              $region49: #{mustafa_forward.11} parent=43 // loop_footer
                %s385 = sadd.s32 1, %s381
              $region50: #{mustafa_forward.11} parent=43 // loop_footer_branch
                %380 = sbr.rel target = $region46
              $region51: #{mustafa_forward.11} parent=43 // loop_exit
                _
            $region44: #{mustafa_forward.11} parent=39 // pred_fallthru
              _
            // Predicated region
            $region52: #{mustafa_forward.11} parent=39 // pred_check
              _
            $region53: #{mustafa_forward.11} parent=39 // pred_check_branch
              %405 = sbr.rel target = $region55
            $region54: #{mustafa_forward.11} parent=39 // pred_region
              _
            $region55: #{mustafa_forward.11} parent=39 // pred_fallthru
              _
          $region40: #{mustafa_forward.11} parent=35 // pred_fallthru
            _
          %406 = vnop
        $region36: #{mustafa_forward.11} parent=31 // pred_fallthru
          _
      $region32: #{mustafa_forward.11} parent=5 // pred_fallthru
        _
      %p407 = scmp.le.s32.totalorder 2, %s9
      // Predicated region
      $region56: #{mustafa_forward.11} parent=5 // pred_check
        %p408 = pneg %p407
      $region57: #{mustafa_forward.11} parent=5 // pred_check_branch
        %410 = sbr.rel (%p408) target = $region59
      $region58: #{mustafa_forward.11} parent=5 // pred_region
        %s411 = ssub.s32 %s9, 2
        // Predicated region
        $region60: #{mustafa_forward.11} parent=58 // pred_check
          %p412 = pneg %p106
        $region61: #{mustafa_forward.11} parent=58 // pred_check_branch
          %414 = sbr.rel (%p412) target = $region63
        $region62: #{mustafa_forward.11} parent=58 // pred_region
          %s415 = sand.u32 %s91, 1
          %s416 = sand.u32 %s91, 1
          %s417 = smul.addr %s416, 64
          %s418 = scalar_lea.vmem [#allocation2], %s417
        $region63: #{mustafa_forward.11} parent=58 // pred_fallthru
          _
      $region59: #{mustafa_forward.11} parent=5 // pred_fallthru
        _
    $region6: #{mustafa_forward.11} parent=1 // loop_footer
      %s13 = sadd.s32 1, %s9
    $region7: #{mustafa_forward.11} parent=1 // loop_footer_branch
      %8 = sbr.rel target = $region3
    $region8: #{mustafa_forward.11} parent=1 // loop_exit
      _

// kernel: mustafa_forward.12
$region0: #{mustafa_forward.12}
  #allocation0 [shape = 'u32[]', space=smem, size = 0x4, offset = 0x4, fixed_abs, tag = 'smem constant byte address 0x4 - core index']
  #allocation1 [shape = 'u32[144,128]{1,0:T(1,128)}', space=vmem, size = 0x12000, scoped, tag = 'internal scratch']
  %s0 = inlined_call_operand.vmem [shape: f32[16,144], index: 0, kind: input, shape index: {}]
  %s1 = inlined_call_operand.vmem [shape: f32[144,2048], index: 1, kind: input, shape index: {}]
  %s2 = inlined_call_operand.vmem [shape: f32[16,1], index: 2, kind: input, shape index: {}]
  %s3 = inlined_call_operand.vmem [shape: f32[16,2048], index: 3, kind: input, shape index: {}]
  %s4 = inlined_call_operand.vmem [shape: f32[16,2048], index: 4, kind: output, shape index: {}]
  %s5 = sld [smem:[#allocation0]]
  $region114: #{mustafa_forward.12} parent=0
    _
  %s7 = ssub.s32 1, %s5
  %s8 = scalar_select 0, %s7, %s5
  $region1: #{mustafa_forward.12} parent=0
    #allocation2 [shape = 'u8[589824]{0}', space=vmem, size = 0x90000, scoped, tag = 'input window, operand 1']
    #allocation3 [shape = 'u8[65536]{0}', space=vmem, size = 0x10000, scoped, tag = 'input window, operand 3']
    #allocation4 [shape = 'u8[65536]{0}', space=vmem, size = 0x10000, scoped, tag = 'output window, operand 0']
    loop: start=0, step=1, limit=6
    $region2: #{mustafa_forward.12} parent=1 // loop_pre_header
      _
    $region3: #{mustafa_forward.12} parent=1 // loop_header
      %s10 = sphi 0, %s14
      %p11 = scmp.ge.s32.totalorder %s10, 6
      %s18 = sphi 0, %s18
      %s20 = sphi 0, %s18
      %s21 = sphi 0, %s20
      %s35 = sphi 0, %s21
      %s41 = sphi 0, %s43
      %s44 = sphi 0, %s41
      %s45 = sphi 0, %s44
      %s61 = sphi 0, %s45
      %s65 = sphi 0, %s65
      %s67 = sphi 0, %s65
      %s68 = sphi 0, %s67
      %s82 = sphi 0, %s68
      %s88 = sphi 0, %s90
      %s91 = sphi 0, %s88
      %s92 = sphi 0, %s91
      %s108 = sphi 0, %s92
      %s114 = sphi 0, %s116
      %s117 = sphi 0, %s114
      %s118 = sphi 0, %s117
      %s134 = sphi 0, %s118
    $region4: #{mustafa_forward.12} parent=1 // loop_header_branch
      %13 = sbr.rel (%p11) target = $region8
    $region5: #{mustafa_forward.12} parent=1 // loop_body
      %s15 = ssub.s32 %s10, 1
      %s16 = ssub.s32 %s10, 2
      %s17 = sadd.s32 %s10, 1
      %s19 = sadd.s32 %s18, 1
      %p22 = scmp.eq.s32.totalorder %s10, 3
      %p23 = scmp.ne.s32.totalorder %s18, %s20
      %p24 = scmp.eq.s32.totalorder %s10, 0
      %p25 = por %p23, %p24
      %p26 = scmp.ne.s32.totalorder %s18, %s20
      %p27 = scmp.eq.s32.totalorder %s15, 3
      %p28 = por %p26, %p27
      %p29 = scmp.ne.s32.totalorder %s20, %s21
      %p30 = scmp.eq.s32.totalorder %s15, 0
      %p31 = por %p29, %p30
      %p32 = scmp.ne.s32.totalorder %s20, %s21
      %p33 = scmp.eq.s32.totalorder %s16, 3
      %p34 = por %p32, %p33
      %p36 = scmp.ne.s32.totalorder %s21, %s35
      %p37 = scmp.eq.s32.totalorder %s16, 0
      %p38 = por %p36, %p37
      %s39 = ssub.s32 %s10, %s17
      %p40 = scmp.eq.s32.totalorder %s39, 0
      %s42 = sadd.s32 %s41, 1
      %s43 = scalar_select %p40, %s41, %s42
      %p46 = pneg %p40
      %p47 = scmp.eq.s32.totalorder %s10, 3
      %p48 = por %p46, %p47
      %p49 = scmp.ne.s32.totalorder %s41, %s44
      %p50 = scmp.eq.s32.totalorder %s10, 0
      %p51 = por %p49, %p50
      %p52 = scmp.ne.s32.totalorder %s41, %s44
      %p53 = scmp.eq.s32.totalorder %s15, 3
      %p54 = por %p52, %p53
      %p55 = scmp.ne.s32.totalorder %s44, %s45
      %p56 = scmp.eq.s32.totalorder %s15, 0
      %p57 = por %p55, %p56
      %p58 = scmp.ne.s32.totalorder %s44, %s45
      %p59 = scmp.eq.s32.totalorder %s16, 3
      %p60 = por %p58, %p59
      %p62 = scmp.ne.s32.totalorder %s45, %s61
      %p63 = scmp.eq.s32.totalorder %s16, 0
      %p64 = por %p62, %p63
      %s66 = sadd.s32 %s65, 1
      %p69 = scmp.eq.s32.totalorder %s10, 3
      %p70 = scmp.ne.s32.totalorder %s65, %s67
      %p71 = scmp.eq.s32.totalorder %s10, 0
      %p72 = por %p70, %p71
      %p73 = scmp.ne.s32.totalorder %s65, %s67
      %p74 = scmp.eq.s32.totalorder %s15, 3
      %p75 = por %p73, %p74
      %p76 = scmp.ne.s32.totalorder %s67, %s68
      %p77 = scmp.eq.s32.totalorder %s15, 0
      %p78 = por %p76, %p77
      %p79 = scmp.ne.s32.totalorder %s67, %s68
      %p80 = scmp.eq.s32.totalorder %s16, 3
      %p81 = por %p79, %p80
      %p83 = scmp.ne.s32.totalorder %s68, %s82
      %p84 = scmp.eq.s32.totalorder %s16, 0
      %p85 = por %p83, %p84
      %s86 = ssub.s32 %s10, %s17
      %p87 = scmp.eq.s32.totalorder %s86, 0
      %s89 = sadd.s32 %s88, 1
      %s90 = scalar_select %p87, %s88, %s89
      %p93 = pneg %p87
      %p94 = scmp.eq.s32.totalorder %s10, 3
      %p95 = por %p93, %p94
      %p96 = scmp.ne.s32.totalorder %s88, %s91
      %p97 = scmp.eq.s32.totalorder %s10, 0
      %p98 = por %p96, %p97
      %p99 = scmp.ne.s32.totalorder %s88, %s91
      %p100 = scmp.eq.s32.totalorder %s15, 3
      %p101 = por %p99, %p100
      %p102 = scmp.ne.s32.totalorder %s91, %s92
      %p103 = scmp.eq.s32.totalorder %s15, 0
      %p104 = por %p102, %p103
      %p105 = scmp.ne.s32.totalorder %s91, %s92
      %p106 = scmp.eq.s32.totalorder %s16, 3
      %p107 = por %p105, %p106
      %p109 = scmp.ne.s32.totalorder %s92, %s108
      %p110 = scmp.eq.s32.totalorder %s16, 0
      %p111 = por %p109, %p110
      %s112 = ssub.s32 %s10, %s17
      %p113 = scmp.eq.s32.totalorder %s112, 0
      %s115 = sadd.s32 %s114, 1
      %s116 = scalar_select %p113, %s114, %s115
      %p119 = pneg %p113
      %p120 = scmp.eq.s32.totalorder %s10, 3
      %p121 = por %p119, %p120
      %p122 = scmp.ne.s32.totalorder %s114, %s117
      %p123 = scmp.eq.s32.totalorder %s10, 0
      %p124 = por %p122, %p123
      %p125 = scmp.ne.s32.totalorder %s114, %s117
      %p126 = scmp.eq.s32.totalorder %s15, 3
      %p127 = por %p125, %p126
      %p128 = scmp.ne.s32.totalorder %s117, %s118
      %p129 = scmp.eq.s32.totalorder %s15, 0
      %p130 = por %p128, %p129
      %p131 = scmp.ne.s32.totalorder %s117, %s118
      %p132 = scmp.eq.s32.totalorder %s16, 3
      %p133 = por %p131, %p132
      %p135 = scmp.ne.s32.totalorder %s118, %s134
      %p136 = scmp.eq.s32.totalorder %s16, 0
      %p137 = por %p135, %p136
      %p138 = scmp.le.s32.totalorder 1, %s10
      %p139 = scmp.lt.s32.totalorder %s10, 5
      %p140 = pnand %p138, %p139
      %p141 = pneg %p140
      // Predicated region
      $region9: #{mustafa_forward.12} parent=5 // pred_check
        _
      $region10: #{mustafa_forward.12} parent=5 // pred_check_branch
        %143 = sbr.rel (%p140) target = $region12
      $region11: #{mustafa_forward.12} parent=5 // pred_region
        %s144 = ssub.s32 %s10, 1
        // Predicated region
        $region13: #{mustafa_forward.12} parent=11 // pred_check
          %p145 = pneg %p31
        $region14: #{mustafa_forward.12} parent=11 // pred_check_branch
          %147 = sbr.rel (%p145) target = $region16
        $region15: #{mustafa_forward.12} parent=11 // pred_region
          _
        $region16: #{mustafa_forward.12} parent=11 // pred_fallthru
          _
        // Predicated region
        $region17: #{mustafa_forward.12} parent=11 // pred_check
          %p148 = pneg %p78
        $region18: #{mustafa_forward.12} parent=11 // pred_check_branch
          %150 = sbr.rel (%p148) target = $region20
        $region19: #{mustafa_forward.12} parent=11 // pred_region
          _
        $region20: #{mustafa_forward.12} parent=11 // pred_fallthru
          _
      $region12: #{mustafa_forward.12} parent=5 // pred_fallthru
        _
      %p151 = scmp.lt.s32.totalorder %s10, 4
      // Predicated region
      $region21: #{mustafa_forward.12} parent=5 // pred_check
        %p152 = pneg %p151
      $region22: #{mustafa_forward.12} parent=5 // pred_check_branch
        %154 = sbr.rel (%p152) target = $region24
      $region23: #{mustafa_forward.12} parent=5 // pred_region
        // Predicated region
        $region25: #{mustafa_forward.12} parent=23 // pred_check
          %p155 = pneg %p51
        $region26: #{mustafa_forward.12} parent=23 // pred_check_branch
          %157 = sbr.rel (%p155) target = $region28
        $region27: #{mustafa_forward.12} parent=23 // pred_region
          %s158 = sand.u32 %s41, 1
          %s159 = sand.u32 %s41, 1
          %s160 = smul.addr %s159, 576
          %s161 = scalar_lea.vmem [#allocation2], %s160
          %s162 = smul.u32 4, %s10
          %s163 = smul.addr %s162, 8
          %s164 = scalar_lea.vmem %s1, %s163
          // Predicated region
          $region29: #{mustafa_forward.12} parent=27 // pred_check
            _
          $region30: #{mustafa_forward.12} parent=27 // pred_check_branch
            %166 = sbr.rel (0) target = $region32
          $region31: #{mustafa_forward.12} parent=27 // pred_region
            // Predicated region
            $region33: #{mustafa_forward.12} parent=31 // pred_check
              _
            $region34: #{mustafa_forward.12} parent=31 // pred_check_branch
              %168 = sbr.rel (0) target = $region36
            $region35: #{mustafa_forward.12} parent=31 // pred_region
              loop: start=0, step=1, limit=1
              $region37: #{mustafa_forward.12} parent=35 // loop_pre_header
                _
              $region38: #{mustafa_forward.12} parent=35 // loop_header
                %s170 = sphi 0, %s174
                %p171 = scmp.ge.s32.totalorder %s170, 1
                %s175 = sphi %s164, %s164
                %s176 = sphi %s161, %s161
              $region39: #{mustafa_forward.12} parent=35 // loop_header_branch
                %173 = sbr.rel (%p171) target = $region43
              $region40: #{mustafa_forward.12} parent=35 // loop_body
                %v177 = vld [vmem:[%s175] sm:$0xff]
                %178 = vst [vmem:[%s176] sm:$0xff] %v177
                %v179 = vld [vmem:[%s175 + $0x8] sm:$0xff]
                %180 = vst [vmem:[%s176 + $0x8] sm:$0xff] %v179
                %v181 = vld [vmem:[%s175 + $0x10] sm:$0xff]
                %182 = vst [vmem:[%s176 + $0x10] sm:$0xff] %v181
                %v183 = vld [vmem:[%s175 + $0x18] sm:$0xff]
                %184 = vst [vmem:[%s176 + $0x18] sm:$0xff] %v183
                %v185 = vld [vmem:[%s175 + $0x80] sm:$0xff]
                %186 = vst [vmem:[%s176 + $0x20] sm:$0xff] %v185
                %v187 = vld [vmem:[%s175 + $0x88] sm:$0xff]
                %188 = vst [vmem:[%s176 + $0x28] sm:$0xff] %v187
                %v189 = vld [vmem:[%s175 + $0x90] sm:$0xff]
                %190 = vst [vmem:[%s176 + $0x30] sm:$0xff] %v189
                %v191 = vld [vmem:[%s175 + $0x98] sm:$0xff]
                %192 = vst [vmem:[%s176 + $0x38] sm:$0xff] %v191
                %v193 = vld [vmem:[%s175 + $0x100] sm:$0xff]
                %194 = vst [vmem:[%s176 + $0x40] sm:$0xff] %v193
                %v195 = vld [vmem:[%s175 + $0x108] sm:$0xff]
                %196 = vst [vmem:[%s176 + $0x48] sm:$0xff] %v195
                %v197 = vld [vmem:[%s175 + $0x110] sm:$0xff]
                %198 = vst [vmem:[%s176 + $0x50] sm:$0xff] %v197
                %v199 = vld [vmem:[%s175 + $0x118] sm:$0xff]
                %200 = vst [vmem:[%s176 + $0x58] sm:$0xff] %v199
                %v201 = vld [vmem:[%s175 + $0x180] sm:$0xff]
                %202 = vst [vmem:[%s176 + $0x60] sm:$0xff] %v201
                %v203 = vld [vmem:[%s175 + $0x188] sm:$0xff]
                %204 = vst [vmem:[%s176 + $0x68] sm:$0xff] %v203
                %v205 = vld [vmem:[%s175 + $0x190] sm:$0xff]
                %206 = vst [vmem:[%s176 + $0x70] sm:$0xff] %v205
                %v207 = vld [vmem:[%s175 + $0x198] sm:$0xff]
                %208 = vst [vmem:[%s176 + $0x78] sm:$0xff] %v207
                %v209 = vld [vmem:[%s175 + $0x200] sm:$0xff]
                %210 = vst [vmem:[%s176 + $0x80] sm:$0xff] %v209
                %v211 = vld [vmem:[%s175 + $0x208] sm:$0xff]
                %212 = vst [vmem:[%s176 + $0x88] sm:$0xff] %v211
                %v213 = vld [vmem:[%s175 + $0x210] sm:$0xff]
                %214 = vst [vmem:[%s176 + $0x90] sm:$0xff] %v213
                %v215 = vld [vmem:[%s175 + $0x218] sm:$0xff]
                %216 = vst [vmem:[%s176 + $0x98] sm:$0xff] %v215
                %v217 = vld [vmem:[%s175 + $0x280] sm:$0xff]
                %218 = vst [vmem:[%s176 + $0xa0] sm:$0xff] %v217
                %v219 = vld [vmem:[%s175 + $0x288] sm:$0xff]
                %220 = vst [vmem:[%s176 + $0xa8] sm:$0xff] %v219
                %v221 = vld [vmem:[%s175 + $0x290] sm:$0xff]
                %222 = vst [vmem:[%s176 + $0xb0] sm:$0xff] %v221
                %v223 = vld [vmem:[%s175 + $0x298] sm:$0xff]
                %224 = vst [vmem:[%s176 + $0xb8] sm:$0xff] %v223
                %v225 = vld [vmem:[%s175 + $0x300] sm:$0xff]
                %226 = vst [vmem:[%s176 + $0xc0] sm:$0xff] %v225
                %v227 = vld [vmem:[%s175 + $0x308] sm:$0xff]
                %228 = vst [vmem:[%s176 + $0xc8] sm:$0xff] %v227
                %v229 = vld [vmem:[%s175 + $0x310] sm:$0xff]
                %230 = vst [vmem:[%s176 + $0xd0] sm:$0xff] %v229
                %v231 = vld [vmem:[%s175 + $0x318] sm:$0xff]
                %232 = vst [vmem:[%s176 + $0xd8] sm:$0xff] %v231
                %v233 = vld [vmem:[%s175 + $0x380] sm:$0xff]
                %234 = vst [vmem:[%s176 + $0xe0] sm:$0xff] %v233
                %v235 = vld [vmem:[%s175 + $0x388] sm:$0xff]
                %236 = vst [vmem:[%s176 + $0xe8] sm:$0xff] %v235
                %v237 = vld [vmem:[%s175 + $0x390] sm:$0xff]
                %238 = vst [vmem:[%s176 + $0xf0] sm:$0xff] %v237
                %v239 = vld [vmem:[%s175 + $0x398] sm:$0xff]
                %240 = vst [vmem:[%s176 + $0xf8] sm:$0xff] %v239
                %v241 = vld [vmem:[%s175 + $0x400] sm:$0xff]
                %242 = vst [vmem:[%s176 + $0x100] sm:$0xff] %v241
                %v243 = vld [vmem:[%s175 + $0x408] sm:$0xff]
                %244 = vst [vmem:[%s176 + $0x108] sm:$0xff] %v243
                %v245 = vld [vmem:[%s175 + $0x410] sm:$0xff]
                %246 = vst [vmem:[%s176 + $0x110] sm:$0xff] %v245
                %v247 = vld [vmem:[%s175 + $0x418] sm:$0xff]
                %248 = vst [vmem:[%s176 + $0x118] sm:$0xff] %v247
                %v249 = vld [vmem:[%s175 + $0x480] sm:$0xff]
                %250 = vst [vmem:[%s176 + $0x120] sm:$0xff] %v249
                %v251 = vld [vmem:[%s175 + $0x488] sm:$0xff]
                %252 = vst [vmem:[%s176 + $0x128] sm:$0xff] %v251
                %v253 = vld [vmem:[%s175 + $0x490] sm:$0xff]
                %254 = vst [vmem:[%s176 + $0x130] sm:$0xff] %v253
                %v255 = vld [vmem:[%s175 + $0x498] sm:$0xff]
                %256 = vst [vmem:[%s176 + $0x138] sm:$0xff] %v255
                %v257 = vld [vmem:[%s175 + $0x500] sm:$0xff]
                %258 = vst [vmem:[%s176 + $0x140] sm:$0xff] %v257
                %v259 = vld [vmem:[%s175 + $0x508] sm:$0xff]
                %260 = vst [vmem:[%s176 + $0x148] sm:$0xff] %v259
                %v261 = vld [vmem:[%s175 + $0x510] sm:$0xff]
                %262 = vst [vmem:[%s176 + $0x150] sm:$0xff] %v261
                %v263 = vld [vmem:[%s175 + $0x518] sm:$0xff]
                %264 = vst [vmem:[%s176 + $0x158] sm:$0xff] %v263
                %v265 = vld [vmem:[%s175 + $0x580] sm:$0xff]
                %266 = vst [vmem:[%s176 + $0x160] sm:$0xff] %v265
                %v267 = vld [vmem:[%s175 + $0x588] sm:$0xff]
                %268 = vst [vmem:[%s176 + $0x168] sm:$0xff] %v267
                %v269 = vld [vmem:[%s175 + $0x590] sm:$0xff]
                %270 = vst [vmem:[%s176 + $0x170] sm:$0xff] %v269
                %v271 = vld [vmem:[%s175 + $0x598] sm:$0xff]
                %272 = vst [vmem:[%s176 + $0x178] sm:$0xff] %v271
                %v273 = vld [vmem:[%s175 + $0x600] sm:$0xff]
                %274 = vst [vmem:[%s176 + $0x180] sm:$0xff] %v273
                %v275 = vld [vmem:[%s175 + $0x608] sm:$0xff]
                %276 = vst [vmem:[%s176 + $0x188] sm:$0xff] %v275
                %v277 = vld [vmem:[%s175 + $0x610] sm:$0xff]
                %278 = vst [vmem:[%s176 + $0x190] sm:$0xff] %v277
                %v279 = vld [vmem:[%s175 + $0x618] sm:$0xff]
                %280 = vst [vmem:[%s176 + $0x198] sm:$0xff] %v279
                %v281 = vld [vmem:[%s175 + $0x680] sm:$0xff]
                %282 = vst [vmem:[%s176 + $0x1a0] sm:$0xff] %v281
                %v283 = vld [vmem:[%s175 + $0x688] sm:$0xff]
                %284 = vst [vmem:[%s176 + $0x1a8] sm:$0xff] %v283
                %v285 = vld [vmem:[%s175 + $0x690] sm:$0xff]
                %286 = vst [vmem:[%s176 + $0x1b0] sm:$0xff] %v285
                %v287 = vld [vmem:[%s175 + $0x698] sm:$0xff]
                %288 = vst [vmem:[%s176 + $0x1b8] sm:$0xff] %v287
                %v289 = vld [vmem:[%s175 + $0x700] sm:$0xff]
                %290 = vst [vmem:[%s176 + $0x1c0] sm:$0xff] %v289
                %v291 = vld [vmem:[%s175 + $0x708] sm:$0xff]
                %292 = vst [vmem:[%s176 + $0x1c8] sm:$0xff] %v291
                %v293 = vld [vmem:[%s175 + $0x710] sm:$0xff]
                %294 = vst [vmem:[%s176 + $0x1d0] sm:$0xff] %v293
                %v295 = vld [vmem:[%s175 + $0x718] sm:$0xff]
                %296 = vst [vmem:[%s176 + $0x1d8] sm:$0xff] %v295
                %v297 = vld [vmem:[%s175 + $0x780] sm:$0xff]
                %298 = vst [vmem:[%s176 + $0x1e0] sm:$0xff] %v297
                %v299 = vld [vmem:[%s175 + $0x788] sm:$0xff]
                %300 = vst [vmem:[%s176 + $0x1e8] sm:$0xff] %v299
                %v301 = vld [vmem:[%s175 + $0x790] sm:$0xff]
                %302 = vst [vmem:[%s176 + $0x1f0] sm:$0xff] %v301
                %v303 = vld [vmem:[%s175 + $0x798] sm:$0xff]
                %304 = vst [vmem:[%s176 + $0x1f8] sm:$0xff] %v303
                %v305 = vld [vmem:[%s175 + $0x800] sm:$0xff]
                %306 = vst [vmem:[%s176 + $0x200] sm:$0xff] %v305
                %v307 = vld [vmem:[%s175 + $0x808] sm:$0xff]
                %308 = vst [vmem:[%s176 + $0x208] sm:$0xff] %v307
                %v309 = vld [vmem:[%s175 + $0x810] sm:$0xff]
                %310 = vst [vmem:[%s176 + $0x210] sm:$0xff] %v309
                %v311 = vld [vmem:[%s175 + $0x818] sm:$0xff]
                %312 = vst [vmem:[%s176 + $0x218] sm:$0xff] %v311
                %v313 = vld [vmem:[%s175 + $0x880] sm:$0xff]
                %314 = vst [vmem:[%s176 + $0x220] sm:$0xff] %v313
                %v315 = vld [vmem:[%s175 + $0x888] sm:$0xff]
                %316 = vst [vmem:[%s176 + $0x228] sm:$0xff] %v315
                %v317 = vld [vmem:[%s175 + $0x890] sm:$0xff]
                %318 = vst [vmem:[%s176 + $0x230] sm:$0xff] %v317
                %v319 = vld [vmem:[%s175 + $0x898] sm:$0xff]
                %320 = vst [vmem:[%s176 + $0x238] sm:$0xff] %v319
              $region41: #{mustafa_forward.12} parent=35 // loop_footer
                %s174 = sadd.s32 1, %s170
              $region42: #{mustafa_forward.12} parent=35 // loop_footer_branch
                %169 = sbr.rel target = $region38
              $region43: #{mustafa_forward.12} parent=35 // loop_exit
                _
            $region36: #{mustafa_forward.12} parent=31 // pred_fallthru
              _
            // Predicated region
            $region44: #{mustafa_forward.12} parent=31 // pred_check
              _
            $region45: #{mustafa_forward.12} parent=31 // pred_check_branch
              %322 = sbr.rel target = $region47
            $region46: #{mustafa_forward.12} parent=31 // pred_region
              _
            $region47: #{mustafa_forward.12} parent=31 // pred_fallthru
              _
          $region32: #{mustafa_forward.12} parent=27 // pred_fallthru
            _
          %323 = vnop
        $region28: #{mustafa_forward.12} parent=23 // pred_fallthru
          _
        // Predicated region
        $region48: #{mustafa_forward.12} parent=23 // pred_check
          %p324 = pneg %p98
        $region49: #{mustafa_forward.12} parent=23 // pred_check_branch
          %326 = sbr.rel (%p324) target = $region51
        $region50: #{mustafa_forward.12} parent=23 // pred_region
          %s327 = sand.u32 %s88, 1
          %s328 = sand.u32 %s88, 1
          %s329 = smul.addr %s328, 64
          %s330 = scalar_lea.vmem [#allocation3], %s329
          %s331 = smul.u32 4, %s10
          %s332 = smul.addr %s331, 8
          %s333 = scalar_lea.vmem %s3, %s332
          // Predicated region
          $region52: #{mustafa_forward.12} parent=50 // pred_check
            _
          $region53: #{mustafa_forward.12} parent=50 // pred_check_branch
            %335 = sbr.rel (0) target = $region55
          $region54: #{mustafa_forward.12} parent=50 // pred_region
            // Predicated region
            $region56: #{mustafa_forward.12} parent=54 // pred_check
              _
            $region57: #{mustafa_forward.12} parent=54 // pred_check_branch
              %337 = sbr.rel (0) target = $region59
            $region58: #{mustafa_forward.12} parent=54 // pred_region
              loop: start=0, step=1, limit=1
              $region60: #{mustafa_forward.12} parent=58 // loop_pre_header
                _
              $region61: #{mustafa_forward.12} parent=58 // loop_header
                %s339 = sphi 0, %s343
                %p340 = scmp.ge.s32.totalorder %s339, 1
                %s344 = sphi %s333, %s333
                %s345 = sphi %s330, %s330
              $region62: #{mustafa_forward.12} parent=58 // loop_header_branch
                %342 = sbr.rel (%p340) target = $region66
              $region63: #{mustafa_forward.12} parent=58 // loop_body
                %v346 = vld [vmem:[%s344] sm:$0xff]
                %347 = vst [vmem:[%s345] sm:$0xff] %v346
                %v348 = vld [vmem:[%s344 + $0x8] sm:$0xff]
                %349 = vst [vmem:[%s345 + $0x8] sm:$0xff] %v348
                %v350 = vld [vmem:[%s344 + $0x10] sm:$0xff]
                %351 = vst [vmem:[%s345 + $0x10] sm:$0xff] %v350
                %v352 = vld [vmem:[%s344 + $0x18] sm:$0xff]
                %353 = vst [vmem:[%s345 + $0x18] sm:$0xff] %v352
                %v354 = vld [vmem:[%s344 + $0x80] sm:$0xff]
                %355 = vst [vmem:[%s345 + $0x20] sm:$0xff] %v354
                %v356 = vld [vmem:[%s344 + $0x88] sm:$0xff]
                %357 = vst [vmem:[%s345 + $0x28] sm:$0xff] %v356
                %v358 = vld [vmem:[%s344 + $0x90] sm:$0xff]
                %359 = vst [vmem:[%s345 + $0x30] sm:$0xff] %v358
                %v360 = vld [vmem:[%s344 + $0x98] sm:$0xff]
                %361 = vst [vmem:[%s345 + $0x38] sm:$0xff] %v360
              $region64: #{mustafa_forward.12} parent=58 // loop_footer
                %s343 = sadd.s32 1, %s339
              $region65: #{mustafa_forward.12} parent=58 // loop_footer_branch
                %338 = sbr.rel target = $region61
              $region66: #{mustafa_forward.12} parent=58 // loop_exit
                _
            $region59: #{mustafa_forward.12} parent=54 // pred_fallthru
              _
            // Predicated region
            $region67: #{mustafa_forward.12} parent=54 // pred_check
              _
            $region68: #{mustafa_forward.12} parent=54 // pred_check_branch
              %363 = sbr.rel target = $region70
            $region69: #{mustafa_forward.12} parent=54 // pred_region
              _
            $region70: #{mustafa_forward.12} parent=54 // pred_fallthru
              _
          $region55: #{mustafa_forward.12} parent=50 // pred_fallthru
            _
          %364 = vnop
        $region51: #{mustafa_forward.12} parent=23 // pred_fallthru
          _
      $region24: #{mustafa_forward.12} parent=5 // pred_fallthru
        _
      %p365 = scmp.le.s32.totalorder 1, %s10
      %p366 = scmp.lt.s32.totalorder %s10, 5
      %p367 = pnand %p365, %p366
      %p368 = pneg %p367
      // Predicated region
      $region71: #{mustafa_forward.12} parent=5 // pred_check
        _
      $region72: #{mustafa_forward.12} parent=5 // pred_check_branch
        %370 = sbr.rel (%p367) target = $region74
      $region73: #{mustafa_forward.12} parent=5 // pred_region
        %s371 = ssub.s32 %s10, 1
        %s372 = sand.u32 %s44, 1
        %s373 = sand.u32 %s44, 1
        %s374 = smul.addr %s373, 576
        %s375 = scalar_lea.vmem [#allocation2], %s374
        // Predicated region
        $region75: #{mustafa_forward.12} parent=73 // pred_check
          %p376 = pneg %p57
        $region76: #{mustafa_forward.12} parent=73 // pred_check_branch
          %378 = sbr.rel (%p376) target = $region78
        $region77: #{mustafa_forward.12} parent=73 // pred_region
          _
        $region78: #{mustafa_forward.12} parent=73 // pred_fallthru
          _
        %s379 = sand.u32 %s91, 1
        %s380 = sand.u32 %s91, 1
        %s381 = smul.addr %s380, 64
        %s382 = scalar_lea.vmem [#allocation3], %s381
        // Predicated region
        $region79: #{mustafa_forward.12} parent=73 // pred_check
          %p383 = pneg %p104
        $region80: #{mustafa_forward.12} parent=73 // pred_check_branch
          %385 = sbr.rel (%p383) target = $region82
        $region81: #{mustafa_forward.12} parent=73 // pred_region
          _
        $region82: #{mustafa_forward.12} parent=73 // pred_fallthru
          _
        %p386 = pneg %p31
        %p387 = pneg %p28
        %s388 = sand.u32 %s44, 1
        %s389 = sand.u32 %s44, 1
        %s390 = smul.addr %s389, 576
        %s391 = scalar_lea.vmem [#allocation2], %s390
        %p392 = pneg %p57
        %p393 = pneg %p54
        %p394 = pneg %p78
        %p395 = pneg %p75
        %s396 = sand.u32 %s91, 1
        %s397 = sand.u32 %s91, 1
        %s398 = smul.addr %s397, 64
        %s399 = scalar_lea.vmem [#allocation3], %s398
        %p400 = pneg %p104
        %p401 = pneg %p101
        %p402 = pneg %p130
        %p403 = pneg %p127
        %s404 = sand.u32 %s117, 1
        %s405 = sand.u32 %s117, 1
        %s406 = smul.addr %s405, 64
        %s407 = scalar_lea.vmem [#allocation4], %s406
        %s408 = smul.u32 4, %s15
        %s409 = smul.u32 4, %s15
        %s410 = smul.u32 4, %s15
        %v411 = vld [vmem:[%s0] sm:$0xff]
        %v412 = vld [vmem:[%s0 + $0x8] sm:$0xff]
        %v413 = vld [vmem:[%s0 + $0x10] sm:$0xff]
        %v414 = vld [vmem:[%s0 + $0x18] sm:$0xff]
        %v415 = vld [vmem:[%s375] sm:$0xff]
        %v416 = vld [vmem:[%s375 + $0x8] sm:$0xff]
        %v417 = vld [vmem:[%s375 + $0x10] sm:$0xff]
        %v418 = vld [vmem:[%s375 + $0x18] sm:$0xff]
        %v419 = vld [vmem:[%s375 + $0x20] sm:$0xff]
        %v420 = vld [vmem:[%s375 + $0x28] sm:$0xff]
        %v421 = vld [vmem:[%s375 + $0x30] sm:$0xff]
        %v422 = vld [vmem:[%s375 + $0x38] sm:$0xff]
        %v423 = vld [vmem:[%s375 + $0x40] sm:$0xff]
        %v424 = vld [vmem:[%s375 + $0x48] sm:$0xff]
        %v425 = vld [vmem:[%s375 + $0x50] sm:$0xff]
        %v426 = vld [vmem:[%s375 + $0x58] sm:$0xff]
        %v427 = vld [vmem:[%s375 + $0x60] sm:$0xff]
        %v428 = vld [vmem:[%s375 + $0x68] sm:$0xff]
        %v429 = vld [vmem:[%s375 + $0x70] sm:$0xff]
        %v430 = vld [vmem:[%s375 + $0x78] sm:$0xff]
        %v431 = vld [vmem:[%s375 + $0x80] sm:$0xff]
        %v432 = vld [vmem:[%s375 + $0x88] sm:$0xff]
        %v433 = vld [vmem:[%s375 + $0x90] sm:$0xff]
        %v434 = vld [vmem:[%s375 + $0x98] sm:$0xff]
        %v435 = vld [vmem:[%s375 + $0xa0] sm:$0xff]
        %v436 = vld [vmem:[%s375 + $0xa8] sm:$0xff]
        %v437 = vld [vmem:[%s375 + $0xb0] sm:$0xff]
        %v438 = vld [vmem:[%s375 + $0xb8] sm:$0xff]
        %v439 = vld [vmem:[%s375 + $0xc0] sm:$0xff]
        %v440 = vld [vmem:[%s375 + $0xc8] sm:$0xff]
        %v441 = vld [vmem:[%s375 + $0xd0] sm:$0xff]
        %v442 = vld [vmem:[%s375 + $0xd8] sm:$0xff]
        %v443 = vld [vmem:[%s375 + $0xe0] sm:$0xff]
        %v444 = vld [vmem:[%s375 + $0xe8] sm:$0xff]
        %v445 = vld [vmem:[%s375 + $0xf0] sm:$0xff]
        %v446 = vld [vmem:[%s375 + $0xf8] sm:$0xff]
        %v447 = vld [vmem:[%s375 + $0x100] sm:$0xff]
        %v448 = vld [vmem:[%s375 + $0x108] sm:$0xff]
        %v449 = vld [vmem:[%s375 + $0x110] sm:$0xff]
        %v450 = vld [vmem:[%s375 + $0x118] sm:$0xff]
        %v451 = vld [vmem:[%s375 + $0x120] sm:$0xff]
        %v452 = vld [vmem:[%s375 + $0x128] sm:$0xff]
        %v453 = vld [vmem:[%s375 + $0x130] sm:$0xff]
        %v454 = vld [vmem:[%s375 + $0x138] sm:$0xff]
        %v455 = vld [vmem:[%s375 + $0x140] sm:$0xff]
        %v456 = vld [vmem:[%s375 + $0x148] sm:$0xff]
        %v457 = vld [vmem:[%s375 + $0x150] sm:$0xff]
        %v458 = vld [vmem:[%s375 + $0x158] sm:$0xff]
        %v459 = vld [vmem:[%s375 + $0x160] sm:$0xff]
        %v460 = vld [vmem:[%s375 + $0x168] sm:$0xff]
        %v461 = vld [vmem:[%s375 + $0x170] sm:$0xff]
        %v462 = vld [vmem:[%s375 + $0x178] sm:$0xff]
        %v463 = vld [vmem:[%s375 + $0x180] sm:$0xff]
        %v464 = vld [vmem:[%s375 + $0x188] sm:$0xff]
        %v465 = vld [vmem:[%s375 + $0x190] sm:$0xff]
        %v466 = vld [vmem:[%s375 + $0x198] sm:$0xff]
        %v467 = vld [vmem:[%s375 + $0x1a0] sm:$0xff]
        %v468 = vld [vmem:[%s375 + $0x1a8] sm:$0xff]
        %v469 = vld [vmem:[%s375 + $0x1b0] sm:$0xff]
        %v470 = vld [vmem:[%s375 + $0x1b8] sm:$0xff]
        %v471 = vld [vmem:[%s375 + $0x1c0] sm:$0xff]
        %v472 = vld [vmem:[%s375 + $0x1c8] sm:$0xff]
        %v473 = vld [vmem:[%s375 + $0x1d0] sm:$0xff]
        %v474 = vld [vmem:[%s375 + $0x1d8] sm:$0xff]
        %v475 = vld [vmem:[%s375 + $0x1e0] sm:$0xff]
        %v476 = vld [vmem:[%s375 + $0x1e8] sm:$0xff]
        %v477 = vld [vmem:[%s375 + $0x1f0] sm:$0xff]
        %v478 = vld [vmem:[%s375 + $0x1f8] sm:$0xff]
        %v479 = vld [vmem:[%s375 + $0x200] sm:$0xff]
        %v480 = vld [vmem:[%s375 + $0x208] sm:$0xff]
        %v481 = vld [vmem:[%s375 + $0x210] sm:$0xff]
        %v482 = vld [vmem:[%s375 + $0x218] sm:$0xff]
        %v483 = vld [vmem:[%s375 + $0x220] sm:$0xff]
        %v484 = vld [vmem:[%s375 + $0x228] sm:$0xff]
        %v485 = vld [vmem:[%s375 + $0x230] sm:$0xff]
        %v486 = vld [vmem:[%s375 + $0x238] sm:$0xff]
        %v487 = vld [vmem:[%s2] sm:$0xff]
        %v488 = vld [vmem:[%s2 + $0x8] sm:$0xff]
        %490 = vset.pattern.permute.xlu0 0
        %491 = vperm.xlu0 %490, %v487
        %v492 = vpop.permute.xlu0 %491
        %495 = vset.pattern.permute.xlu0 0
        %496 = vperm.xlu0 %495, %v488
        %v497 = vpop.permute.xlu0 %496
        %vm499 = vcmask 130048
        %v501 = vsel %vm499, %v412, 0
        %v504 = vsel %vm499, %v414, 0
        %506 = vmatprep.subr.mxu0 %v416
        %507 = vmatpush1.msra.mxu0 %v415
        %508 = vmatprep.subr.mxu0 %v420
        %509 = vmatpush1.msra.mxu0 %v419
        %510 = vmatprep.subr.mxu0 %v424
        %511 = vmatpush1.msra.mxu0 %v423
        %512 = vmatprep.subr.mxu0 %v428
        %513 = vmatpush1.msra.mxu0 %v427
        %514 = vmatprep.subr.mxu0 %v432
        %515 = vmatpush1.msra.mxu0 %v431
        %516 = vmatprep.subr.mxu0 %v436
        %517 = vmatpush1.msra.mxu0 %v435
        %518 = vmatprep.subr.mxu0 %v440
        %519 = vmatpush1.msra.mxu0 %v439
        %520 = vmatprep.subr.mxu0 %v444
        %521 = vmatpush1.msra.mxu0 %v443
        %522 = vmatprep.subr.mxu0 %v448
        %523 = vmatpush1.msra.mxu0 %v447
        %524 = vmatprep.subr.mxu0 %v452
        %525 = vmatpush1.msra.mxu0 %v451
        %526 = vmatprep.subr.mxu0 %v456
        %527 = vmatpush1.msra.mxu0 %v455
        %528 = vmatprep.subr.mxu0 %v460
        %529 = vmatpush1.msra.mxu0 %v459
        %530 = vmatprep.subr.mxu0 %v464
        %531 = vmatpush1.msra.mxu0 %v463
        %532 = vmatprep.subr.mxu0 %v468
        %533 = vmatpush1.msra.mxu0 %v467
        %534 = vmatprep.subr.mxu0 %v472
        %535 = vmatpush1.msra.mxu0 %v471
        %536 = vmatprep.subr.mxu0 %v476
        %537 = vmatpush1.msra.mxu0 %v475
        %538 = vmatprep.subr.mxu0 %v480
        %539 = vmatpush1.msra.mxu0 %v479
        %540 = vmatprep.subr.mxu0 %v484
        %541 = vmatpush1.msra.mxu0 %v483
        %542 = vmatprep.subr.mxu0 0.0
        %543 = vmatpush1.msra.mxu0 0.0
        %544 = vmatprep.subr.mxu0 0.0
        %545 = vmatpush1.msra.mxu0 0.0
        %546 = vmatprep.subr.mxu0 0.0
        %547 = vmatpush1.msra.mxu0 0.0
        %548 = vmatprep.subr.mxu0 0.0
        %549 = vmatpush1.msra.mxu0 0.0
        %550 = vmatprep.subr.mxu0 0.0
        %551 = vmatpush1.msra.mxu0 0.0
        %552 = vmatprep.subr.mxu0 0.0
        %553 = vmatpush1.msra.mxu0 0.0
        %554 = vmatprep.subr.mxu0 0.0
        %555 = vmatpush1.msra.mxu0 0.0
        %556 = vmatprep.subr.mxu0 0.0
        %557 = vmatpush1.msra.mxu0 0.0
        %558 = vmatprep.subr.mxu0 0.0
        %559 = vmatpush1.msra.mxu0 0.0
        %560 = vmatprep.subr.mxu0 0.0
        %561 = vmatpush1.msra.mxu0 0.0
        %562 = vmatprep.subr.mxu0 0.0
        %563 = vmatpush1.msra.mxu0 0.0
        %564 = vmatprep.subr.mxu0 0.0
        %565 = vmatpush1.msra.mxu0 0.0
        %566 = vmatprep.subr.mxu0 0.0
        %567 = vmatpush1.msra.mxu0 0.0
        %568 = vmatprep.subr.mxu0 0.0
        %569 = vmatpush1.msra.mxu0 0.0
        %570 = vmatprep.mubr.f32.mxu0 %v501
        %571 = vmatmul.mubr.f32.gmra.mrb[0].mxu0 %v411
        %v572 = vpop.f32.mrb[0].mxu0
        %v573 = vadd.f32 %v492, %v572
        %v574 = vpop.f32.mrb[0].mxu0
        %v575 = vadd.f32 %v492, %v574
        %576 = vmatprep.mubr.f32.mxu0 %v504
        %577 = vmatmul.mubr.f32.gmra.mrb[0].mxu0 %v413
        %v578 = vpop.f32.mrb[0].mxu0
        %v579 = vadd.f32 %v497, %v578
        %v580 = vpop.f32.mrb[0].mxu0
        %v581 = vadd.f32 %v497, %v580
        %582 = vdwg.mxu0
        %583 = vmatprep.subr.mxu0 %v418
        %584 = vmatpush1.msra.mxu0 %v417
        %585 = vmatprep.subr.mxu0 %v422
        %586 = vmatpush1.msra.mxu0 %v421
        %587 = vmatprep.subr.mxu0 %v426
        %588 = vmatpush1.msra.mxu0 %v425
        %589 = vmatprep.subr.mxu0 %v430
        %590 = vmatpush1.msra.mxu0 %v429
        %591 = vmatprep.subr.mxu0 %v434
        %592 = vmatpush1.msra.mxu0 %v433
        %593 = vmatprep.subr.mxu0 %v438
        %594 = vmatpush1.msra.mxu0 %v437
        %595 = vmatprep.subr.mxu0 %v442
        %596 = vmatpush1.msra.mxu0 %v441
        %597 = vmatprep.subr.mxu0 %v446
        %598 = vmatpush1.msra.mxu0 %v445
        %599 = vmatprep.subr.mxu0 %v450
        %600 = vmatpush1.msra.mxu0 %v449
        %601 = vmatprep.subr.mxu0 %v454
        %602 = vmatpush1.msra.mxu0 %v453
        %603 = vmatprep.subr.mxu0 %v458
        %604 = vmatpush1.msra.mxu0 %v457
        %605 = vmatprep.subr.mxu0 %v462
        %606 = vmatpush1.msra.mxu0 %v461
        %607 = vmatprep.subr.mxu0 %v466
        %608 = vmatpush1.msra.mxu0 %v465
        %609 = vmatprep.subr.mxu0 %v470
        %610 = vmatpush1.msra.mxu0 %v469
        %611 = vmatprep.subr.mxu0 %v474
        %612 = vmatpush1.msra.mxu0 %v473
        %613 = vmatprep.subr.mxu0 %v478
        %614 = vmatpush1.msra.mxu0 %v477
        %615 = vmatprep.subr.mxu0 %v482
        %616 = vmatpush1.msra.mxu0 %v481
        %617 = vmatprep.subr.mxu0 %v486
        %618 = vmatpush1.msra.mxu0 %v485
        %619 = vmatprep.subr.mxu0 0.0
        %620 = vmatpush1.msra.mxu0 0.0
        %621 = vmatprep.subr.mxu0 0.0
        %622 = vmatpush1.msra.mxu0 0.0
        %623 = vmatprep.subr.mxu0 0.0
        %624 = vmatpush1.msra.mxu0 0.0
        %625 = vmatprep.subr.mxu0 0.0
        %626 = vmatpush1.msra.mxu0 0.0
        %627 = vmatprep.subr.mxu0 0.0
        %628 = vmatpush1.msra.mxu0 0.0
        %629 = vmatprep.subr.mxu0 0.0
        %630 = vmatpush1.msra.mxu0 0.0
        %631 = vmatprep.subr.mxu0 0.0
        %632 = vmatpush1.msra.mxu0 0.0
        %633 = vmatprep.subr.mxu0 0.0
        %634 = vmatpush1.msra.mxu0 0.0
        %635 = vmatprep.subr.mxu0 0.0
        %636 = vmatpush1.msra.mxu0 0.0
        %637 = vmatprep.subr.mxu0 0.0
        %638 = vmatpush1.msra.mxu0 0.0
        %639 = vmatprep.subr.mxu0 0.0
        %640 = vmatpush1.msra.mxu0 0.0
        %641 = vmatprep.subr.mxu0 0.0
        %642 = vmatpush1.msra.mxu0 0.0
        %643 = vmatprep.subr.mxu0 0.0
        %644 = vmatpush1.msra.mxu0 0.0
        %645 = vmatprep.subr.mxu0 0.0
        %646 = vmatpush1.msra.mxu0 0.0
        %647 = vmatprep.mubr.f32.mxu0 %v501
        %648 = vmatmul.mubr.f32.gmra.mrb[0].mxu0 %v411
        %v649 = vpop.f32.mrb[0].mxu0
        %v650 = vadd.f32 %v492, %v649
        %v651 = vpop.f32.mrb[0].mxu0
        %v652 = vadd.f32 %v492, %v651
        %653 = vmatprep.mubr.f32.mxu0 %v504
        %654 = vmatmul.mubr.f32.gmra.mrb[0].mxu0 %v413
        %v655 = vpop.f32.mrb[0].mxu0
        %v656 = vadd.f32 %v497, %v655
        %v657 = vpop.f32.mrb[0].mxu0
        %v658 = vadd.f32 %v497, %v657
        %659 = vdwg.mxu0
        %v660 = vmax.f32 %v573, 0.0
        %v661 = vmax.f32 %v575, 0.0
        %v662 = vmax.f32 %v650, 0.0
        %v663 = vmax.f32 %v652, 0.0
        %v664 = vmax.f32 %v579, 0.0
        %v665 = vmax.f32 %v581, 0.0
        %v666 = vmax.f32 %v656, 0.0
        %v667 = vmax.f32 %v658, 0.0
        %v668 = vld [vmem:[%s382] sm:$0xff]
        %v669 = vld [vmem:[%s382 + $0x8] sm:$0xff]
        %v670 = vld [vmem:[%s382 + $0x10] sm:$0xff]
        %v671 = vld [vmem:[%s382 + $0x18] sm:$0xff]
        %v672 = vld [vmem:[%s382 + $0x20] sm:$0xff]
        %v673 = vld [vmem:[%s382 + $0x28] sm:$0xff]
        %v674 = vld [vmem:[%s382 + $0x30] sm:$0xff]
        %v675 = vld [vmem:[%s382 + $0x38] sm:$0xff]
        %v676 = vadd.f32 %v660, %v668
        %v677 = vadd.f32 %v661, %v669
        %v678 = vadd.f32 %v662, %v670
        %v679 = vadd.f32 %v663, %v671
        %v680 = vadd.f32 %v664, %v672
        %v681 = vadd.f32 %v665, %v673
        %v682 = vadd.f32 %v666, %v674
        %v683 = vadd.f32 %v667, %v675
        %v684 = vmax.f32 %v676, 0.0
        %v685 = vmax.f32 %v677, 0.0
        %v686 = vmax.f32 %v678, 0.0
        %v687 = vmax.f32 %v679, 0.0
        %v688 = vmax.f32 %v680, 0.0
        %v689 = vmax.f32 %v681, 0.0
        %v690 = vmax.f32 %v682, 0.0
        %v691 = vmax.f32 %v683, 0.0
        %692 = vst [vmem:[%s407] sm:$0xff] %v684
        %693 = vst [vmem:[%s407 + $0x8] sm:$0xff] %v685
        %694 = vst [vmem:[%s407 + $0x10] sm:$0xff] %v686
        %695 = vst [vmem:[%s407 + $0x18] sm:$0xff] %v687
        %696 = vst [vmem:[%s407 + $0x20] sm:$0xff] %v688
        %697 = vst [vmem:[%s407 + $0x28] sm:$0xff] %v689
        %698 = vst [vmem:[%s407 + $0x30] sm:$0xff] %v690
        %699 = vst [vmem:[%s407 + $0x38] sm:$0xff] %v691
        %s700 = sand.u32 %s117, 1
        %s701 = sand.u32 %s117, 1
        %s702 = smul.addr %s701, 64
        %s703 = scalar_lea.vmem [#allocation4], %s702
        // Predicated region
        $region83: #{mustafa_forward.12} parent=73 // pred_check
          %p704 = pneg %p127
        $region84: #{mustafa_forward.12} parent=73 // pred_check_branch
          %706 = sbr.rel (%p704) target = $region86
        $region85: #{mustafa_forward.12} parent=73 // pred_region
          %s707 = smul.u32 4, %s15
          %s708 = smul.addr %s707, 8
          %s709 = scalar_lea.vmem %s4, %s708
          // Predicated region
          $region87: #{mustafa_forward.12} parent=85 // pred_check
            _
          $region88: #{mustafa_forward.12} parent=85 // pred_check_branch
            %711 = sbr.rel (0) target = $region90
          $region89: #{mustafa_forward.12} parent=85 // pred_region
            // Predicated region
            $region91: #{mustafa_forward.12} parent=89 // pred_check
              _
            $region92: #{mustafa_forward.12} parent=89 // pred_check_branch
              %713 = sbr.rel (0) target = $region94
            $region93: #{mustafa_forward.12} parent=89 // pred_region
              loop: start=0, step=1, limit=1
              $region95: #{mustafa_forward.12} parent=93 // loop_pre_header
                _
              $region96: #{mustafa_forward.12} parent=93 // loop_header
                %s715 = sphi 0, %s719
                %p716 = scmp.ge.s32.totalorder %s715, 1
                %s720 = sphi %s703, %s703
                %s721 = sphi %s709, %s709
              $region97: #{mustafa_forward.12} parent=93 // loop_header_branch
                %718 = sbr.rel (%p716) target = $region101
              $region98: #{mustafa_forward.12} parent=93 // loop_body
                %v722 = vld [vmem:[%s720] sm:$0xff]
                %723 = vst [vmem:[%s721] sm:$0xff] %v722
                %v724 = vld [vmem:[%s720 + $0x8] sm:$0xff]
                %725 = vst [vmem:[%s721 + $0x8] sm:$0xff] %v724
                %v726 = vld [vmem:[%s720 + $0x10] sm:$0xff]
                %727 = vst [vmem:[%s721 + $0x10] sm:$0xff] %v726
                %v728 = vld [vmem:[%s720 + $0x18] sm:$0xff]
                %729 = vst [vmem:[%s721 + $0x18] sm:$0xff] %v728
                %v730 = vld [vmem:[%s720 + $0x20] sm:$0xff]
                %731 = vst [vmem:[%s721 + $0x80] sm:$0xff] %v730
                %v732 = vld [vmem:[%s720 + $0x28] sm:$0xff]
                %733 = vst [vmem:[%s721 + $0x88] sm:$0xff] %v732
                %v734 = vld [vmem:[%s720 + $0x30] sm:$0xff]
                %735 = vst [vmem:[%s721 + $0x90] sm:$0xff] %v734
                %v736 = vld [vmem:[%s720 + $0x38] sm:$0xff]
                %737 = vst [vmem:[%s721 + $0x98] sm:$0xff] %v736
              $region99: #{mustafa_forward.12} parent=93 // loop_footer
                %s719 = sadd.s32 1, %s715
              $region100: #{mustafa_forward.12} parent=93 // loop_footer_branch
                %714 = sbr.rel target = $region96
              $region101: #{mustafa_forward.12} parent=93 // loop_exit
                _
            $region94: #{mustafa_forward.12} parent=89 // pred_fallthru
              _
            // Predicated region
            $region102: #{mustafa_forward.12} parent=89 // pred_check
              _
            $region103: #{mustafa_forward.12} parent=89 // pred_check_branch
              %739 = sbr.rel target = $region105
            $region104: #{mustafa_forward.12} parent=89 // pred_region
              _
            $region105: #{mustafa_forward.12} parent=89 // pred_fallthru
              _
          $region90: #{mustafa_forward.12} parent=85 // pred_fallthru
            _
          %740 = vnop
        $region86: #{mustafa_forward.12} parent=73 // pred_fallthru
          _
      $region74: #{mustafa_forward.12} parent=5 // pred_fallthru
        _
      %p741 = scmp.le.s32.totalorder 2, %s10
      // Predicated region
      $region106: #{mustafa_forward.12} parent=5 // pred_check
        %p742 = pneg %p741
      $region107: #{mustafa_forward.12} parent=5 // pred_check_branch
        %744 = sbr.rel (%p742) target = $region109
      $region108: #{mustafa_forward.12} parent=5 // pred_region
        %s745 = ssub.s32 %s10, 2
        // Predicated region
        $region110: #{mustafa_forward.12} parent=108 // pred_check
          %p746 = pneg %p133
        $region111: #{mustafa_forward.12} parent=108 // pred_check_branch
          %748 = sbr.rel (%p746) target = $region113
        $region112: #{mustafa_forward.12} parent=108 // pred_region
          %s749 = sand.u32 %s118, 1
          %s750 = sand.u32 %s118, 1
          %s751 = smul.addr %s750, 64
          %s752 = scalar_lea.vmem [#allocation4], %s751
        $region113: #{mustafa_forward.12} parent=108 // pred_fallthru
          _
      $region109: #{mustafa_forward.12} parent=5 // pred_fallthru
        _
    $region6: #{mustafa_forward.12} parent=1 // loop_footer
      %s14 = sadd.s32 1, %s10
    $region7: #{mustafa_forward.12} parent=1 // loop_footer_branch
      %9 = sbr.rel target = $region3
    $region8: #{mustafa_forward.12} parent=1 // loop_exit
      _

// kernel: mustafa_forward.13
$region0: #{mustafa_forward.13}
  #allocation0 [shape = 'u32[]', space=smem, size = 0x4, offset = 0x4, fixed_abs, tag = 'smem constant byte address 0x4 - core index']
  #allocation1 [shape = 'u32[144,128]{1,0:T(1,128)}', space=vmem, size = 0x12000, scoped, tag = 'internal scratch']
  %s0 = inlined_call_operand.vmem [shape: f32[32,144], index: 0, kind: input, shape index: {}]
  %s1 = inlined_call_operand.vmem [shape: f32[144,512], index: 1, kind: input, shape index: {}]
  %s2 = inlined_call_operand.vmem [shape: f32[32,1], index: 2, kind: input, shape index: {}]
  %s3 = inlined_call_operand.vmem [shape: f32[32,512], index: 3, kind: output, shape index: {}]
  %s4 = sld [smem:[#allocation0]]
  $region22: #{mustafa_forward.13} parent=0
    _
  %s6 = ssub.s32 1, %s4
  %s7 = scalar_select 0, %s6, %s4
  // Predicated region
  $region2: #{mustafa_forward.13} parent=0 // pred_check
    _
  $region3: #{mustafa_forward.13} parent=0 // pred_check_branch
    %9 = sbr.rel (0) target = $region5
  $region4: #{mustafa_forward.13} parent=0 // pred_region
    _
  $region5: #{mustafa_forward.13} parent=0 // pred_fallthru
    _
  // Predicated region
  $region6: #{mustafa_forward.13} parent=0 // pred_check
    _
  $region7: #{mustafa_forward.13} parent=0 // pred_check_branch
    %11 = sbr.rel (0) target = $region9
  $region8: #{mustafa_forward.13} parent=0 // pred_region
    _
  $region9: #{mustafa_forward.13} parent=0 // pred_fallthru
    _
  // Predicated region
  $region10: #{mustafa_forward.13} parent=0 // pred_check
    _
  $region11: #{mustafa_forward.13} parent=0 // pred_check_branch
    %13 = sbr.rel (0) target = $region13
  $region12: #{mustafa_forward.13} parent=0 // pred_region
    _
  $region13: #{mustafa_forward.13} parent=0 // pred_fallthru
    _
  %v14 = vld [vmem:[%s0] sm:$0xff]
  %v15 = vld [vmem:[%s0 + $0x8] sm:$0xff]
  %v16 = vld [vmem:[%s0 + $0x10] sm:$0xff]
  %v17 = vld [vmem:[%s0 + $0x18] sm:$0xff]
  %v18 = vld [vmem:[%s0 + $0x20] sm:$0xff]
  %v19 = vld [vmem:[%s0 + $0x28] sm:$0xff]
  %v20 = vld [vmem:[%s0 + $0x30] sm:$0xff]
  %v21 = vld [vmem:[%s0 + $0x38] sm:$0xff]
  %v22 = vld [vmem:[%s1] sm:$0xff]
  %v23 = vld [vmem:[%s1 + $0x8] sm:$0xff]
  %v24 = vld [vmem:[%s1 + $0x10] sm:$0xff]
  %v25 = vld [vmem:[%s1 + $0x18] sm:$0xff]
  %v26 = vld [vmem:[%s1 + $0x20] sm:$0xff]
  %v27 = vld [vmem:[%s1 + $0x28] sm:$0xff]
  %v28 = vld [vmem:[%s1 + $0x30] sm:$0xff]
  %v29 = vld [vmem:[%s1 + $0x38] sm:$0xff]
  %v30 = vld [vmem:[%s1 + $0x40] sm:$0xff]
  %v31 = vld [vmem:[%s1 + $0x48] sm:$0xff]
  %v32 = vld [vmem:[%s1 + $0x50] sm:$0xff]
  %v33 = vld [vmem:[%s1 + $0x58] sm:$0xff]
  %v34 = vld [vmem:[%s1 + $0x60] sm:$0xff]
  %v35 = vld [vmem:[%s1 + $0x68] sm:$0xff]
  %v36 = vld [vmem:[%s1 + $0x70] sm:$0xff]
  %v37 = vld [vmem:[%s1 + $0x78] sm:$0xff]
  %v38 = vld [vmem:[%s1 + $0x80] sm:$0xff]
  %v39 = vld [vmem:[%s1 + $0x88] sm:$0xff]
  %v40 = vld [vmem:[%s1 + $0x90] sm:$0xff]
  %v41 = vld [vmem:[%s1 + $0x98] sm:$0xff]
  %v42 = vld [vmem:[%s1 + $0xa0] sm:$0xff]
  %v43 = vld [vmem:[%s1 + $0xa8] sm:$0xff]
  %v44 = vld [vmem:[%s1 + $0xb0] sm:$0xff]
  %v45 = vld [vmem:[%s1 + $0xb8] sm:$0xff]
  %v46 = vld [vmem:[%s1 + $0xc0] sm:$0xff]
  %v47 = vld [vmem:[%s1 + $0xc8] sm:$0xff]
  %v48 = vld [vmem:[%s1 + $0xd0] sm:$0xff]
  %v49 = vld [vmem:[%s1 + $0xd8] sm:$0xff]
  %v50 = vld [vmem:[%s1 + $0xe0] sm:$0xff]
  %v51 = vld [vmem:[%s1 + $0xe8] sm:$0xff]
  %v52 = vld [vmem:[%s1 + $0xf0] sm:$0xff]
  %v53 = vld [vmem:[%s1 + $0xf8] sm:$0xff]
  %v54 = vld [vmem:[%s1 + $0x100] sm:$0xff]
  %v55 = vld [vmem:[%s1 + $0x108] sm:$0xff]
  %v56 = vld [vmem:[%s1 + $0x110] sm:$0xff]
  %v57 = vld [vmem:[%s1 + $0x118] sm:$0xff]
  %v58 = vld [vmem:[%s1 + $0x120] sm:$0xff]
  %v59 = vld [vmem:[%s1 + $0x128] sm:$0xff]
  %v60 = vld [vmem:[%s1 + $0x130] sm:$0xff]
  %v61 = vld [vmem:[%s1 + $0x138] sm:$0xff]
  %v62 = vld [vmem:[%s1 + $0x140] sm:$0xff]
  %v63 = vld [vmem:[%s1 + $0x148] sm:$0xff]
  %v64 = vld [vmem:[%s1 + $0x150] sm:$0xff]
  %v65 = vld [vmem:[%s1 + $0x158] sm:$0xff]
  %v66 = vld [vmem:[%s1 + $0x160] sm:$0xff]
  %v67 = vld [vmem:[%s1 + $0x168] sm:$0xff]
  %v68 = vld [vmem:[%s1 + $0x170] sm:$0xff]
  %v69 = vld [vmem:[%s1 + $0x178] sm:$0xff]
  %v70 = vld [vmem:[%s1 + $0x180] sm:$0xff]
  %v71 = vld [vmem:[%s1 + $0x188] sm:$0xff]
  %v72 = vld [vmem:[%s1 + $0x190] sm:$0xff]
  %v73 = vld [vmem:[%s1 + $0x198] sm:$0xff]
  %v74 = vld [vmem:[%s1 + $0x1a0] sm:$0xff]
  %v75 = vld [vmem:[%s1 + $0x1a8] sm:$0xff]
  %v76 = vld [vmem:[%s1 + $0x1b0] sm:$0xff]
  %v77 = vld [vmem:[%s1 + $0x1b8] sm:$0xff]
  %v78 = vld [vmem:[%s1 + $0x1c0] sm:$0xff]
  %v79 = vld [vmem:[%s1 + $0x1c8] sm:$0xff]
  %v80 = vld [vmem:[%s1 + $0x1d0] sm:$0xff]
  %v81 = vld [vmem:[%s1 + $0x1d8] sm:$0xff]
  %v82 = vld [vmem:[%s1 + $0x1e0] sm:$0xff]
  %v83 = vld [vmem:[%s1 + $0x1e8] sm:$0xff]
  %v84 = vld [vmem:[%s1 + $0x1f0] sm:$0xff]
  %v85 = vld [vmem:[%s1 + $0x1f8] sm:$0xff]
  %v86 = vld [vmem:[%s1 + $0x200] sm:$0xff]
  %v87 = vld [vmem:[%s1 + $0x208] sm:$0xff]
  %v88 = vld [vmem:[%s1 + $0x210] sm:$0xff]
  %v89 = vld [vmem:[%s1 + $0x218] sm:$0xff]
  %v90 = vld [vmem:[%s1 + $0x220] sm:$0xff]
  %v91 = vld [vmem:[%s1 + $0x228] sm:$0xff]
  %v92 = vld [vmem:[%s1 + $0x230] sm:$0xff]
  %v93 = vld [vmem:[%s1 + $0x238] sm:$0xff]
  %v94 = vld [vmem:[%s2] sm:$0xff]
  %v95 = vld [vmem:[%s2 + $0x8] sm:$0xff]
  %v96 = vld [vmem:[%s2 + $0x10] sm:$0xff]
  %v97 = vld [vmem:[%s2 + $0x18] sm:$0xff]
  %99 = vset.pattern.permute.xlu0 0
  %100 = vperm.xlu0 %99, %v94
  %v101 = vpop.permute.xlu0 %100
  %104 = vset.pattern.permute.xlu0 0
  %105 = vperm.xlu0 %104, %v95
  %v106 = vpop.permute.xlu0 %105
  %109 = vset.pattern.permute.xlu0 0
  %110 = vperm.xlu0 %109, %v96
  %v111 = vpop.permute.xlu0 %110
  %114 = vset.pattern.permute.xlu0 0
  %115 = vperm.xlu0 %114, %v97
  %v116 = vpop.permute.xlu0 %115
  %vm118 = vcmask 130048
  %v120 = vsel %vm118, %v15, 0
  %v123 = vsel %vm118, %v17, 0
  %v126 = vsel %vm118, %v19, 0
  %v129 = vsel %vm118, %v21, 0
  %131 = vmatprep.subr.mxu0 %v23
  %132 = vmatpush1.msra.mxu0 %v22
  %133 = vmatprep.subr.mxu0 %v27
  %134 = vmatpush1.msra.mxu0 %v26
  %135 = vmatprep.subr.mxu0 %v31
  %136 = vmatpush1.msra.mxu0 %v30
  %137 = vmatprep.subr.mxu0 %v35
  %138 = vmatpush1.msra.mxu0 %v34
  %139 = vmatprep.subr.mxu0 %v39
  %140 = vmatpush1.msra.mxu0 %v38
  %141 = vmatprep.subr.mxu0 %v43
  %142 = vmatpush1.msra.mxu0 %v42
  %143 = vmatprep.subr.mxu0 %v47
  %144 = vmatpush1.msra.mxu0 %v46
  %145 = vmatprep.subr.mxu0 %v51
  %146 = vmatpush1.msra.mxu0 %v50
  %147 = vmatprep.subr.mxu0 %v55
  %148 = vmatpush1.msra.mxu0 %v54
  %149 = vmatprep.subr.mxu0 %v59
  %150 = vmatpush1.msra.mxu0 %v58
  %151 = vmatprep.subr.mxu0 %v63
  %152 = vmatpush1.msra.mxu0 %v62
  %153 = vmatprep.subr.mxu0 %v67
  %154 = vmatpush1.msra.mxu0 %v66
  %155 = vmatprep.subr.mxu0 %v71
  %156 = vmatpush1.msra.mxu0 %v70
  %157 = vmatprep.subr.mxu0 %v75
  %158 = vmatpush1.msra.mxu0 %v74
  %159 = vmatprep.subr.mxu0 %v79
  %160 = vmatpush1.msra.mxu0 %v78
  %161 = vmatprep.subr.mxu0 %v83
  %162 = vmatpush1.msra.mxu0 %v82
  %163 = vmatprep.subr.mxu0 %v87
  %164 = vmatpush1.msra.mxu0 %v86
  %165 = vmatprep.subr.mxu0 %v91
  %166 = vmatpush1.msra.mxu0 %v90
  %167 = vmatprep.subr.mxu0 0.0
  %168 = vmatpush1.msra.mxu0 0.0
  %169 = vmatprep.subr.mxu0 0.0
  %170 = vmatpush1.msra.mxu0 0.0
  %171 = vmatprep.subr.mxu0 0.0
  %172 = vmatpush1.msra.mxu0 0.0
  %173 = vmatprep.subr.mxu0 0.0
  %174 = vmatpush1.msra.mxu0 0.0
  %175 = vmatprep.subr.mxu0 0.0
  %176 = vmatpush1.msra.mxu0 0.0
  %177 = vmatprep.subr.mxu0 0.0
  %178 = vmatpush1.msra.mxu0 0.0
  %179 = vmatprep.subr.mxu0 0.0
  %180 = vmatpush1.msra.mxu0 0.0
  %181 = vmatprep.subr.mxu0 0.0
  %182 = vmatpush1.msra.mxu0 0.0
  %183 = vmatprep.subr.mxu0 0.0
  %184 = vmatpush1.msra.mxu0 0.0
  %185 = vmatprep.subr.mxu0 0.0
  %186 = vmatpush1.msra.mxu0 0.0
  %187 = vmatprep.subr.mxu0 0.0
  %188 = vmatpush1.msra.mxu0 0.0
  %189 = vmatprep.subr.mxu0 0.0
  %190 = vmatpush1.msra.mxu0 0.0
  %191 = vmatprep.subr.mxu0 0.0
  %192 = vmatpush1.msra.mxu0 0.0
  %193 = vmatprep.subr.mxu0 0.0
  %194 = vmatpush1.msra.mxu0 0.0
  %195 = vmatprep.mubr.f32.mxu0 %v120
  %196 = vmatmul.mubr.f32.gmra.mrb[0].mxu0 %v14
  %v197 = vpop.f32.mrb[0].mxu0
  %v198 = vadd.f32 %v101, %v197
  %v199 = vpop.f32.mrb[0].mxu0
  %v200 = vadd.f32 %v101, %v199
  %201 = vmatprep.mubr.f32.mxu0 %v123
  %202 = vmatmul.mubr.f32.gmra.mrb[0].mxu0 %v16
  %v203 = vpop.f32.mrb[0].mxu0
  %v204 = vadd.f32 %v106, %v203
  %v205 = vpop.f32.mrb[0].mxu0
  %v206 = vadd.f32 %v106, %v205
  %207 = vmatprep.mubr.f32.mxu0 %v126
  %208 = vmatmul.mubr.f32.gmra.mrb[0].mxu0 %v18
  %v209 = vpop.f32.mrb[0].mxu0
  %v210 = vadd.f32 %v111, %v209
  %v211 = vpop.f32.mrb[0].mxu0
  %v212 = vadd.f32 %v111, %v211
  %213 = vmatprep.mubr.f32.mxu0 %v129
  %214 = vmatmul.mubr.f32.gmra.mrb[0].mxu0 %v20
  %v215 = vpop.f32.mrb[0].mxu0
  %v216 = vadd.f32 %v116, %v215
  %v217 = vpop.f32.mrb[0].mxu0
  %v218 = vadd.f32 %v116, %v217
  %219 = vdwg.mxu0
  %220 = vmatprep.subr.mxu0 %v25
  %221 = vmatpush1.msra.mxu0 %v24
  %222 = vmatprep.subr.mxu0 %v29
  %223 = vmatpush1.msra.mxu0 %v28
  %224 = vmatprep.subr.mxu0 %v33
  %225 = vmatpush1.msra.mxu0 %v32
  %226 = vmatprep.subr.mxu0 %v37
  %227 = vmatpush1.msra.mxu0 %v36
  %228 = vmatprep.subr.mxu0 %v41
  %229 = vmatpush1.msra.mxu0 %v40
  %230 = vmatprep.subr.mxu0 %v45
  %231 = vmatpush1.msra.mxu0 %v44
  %232 = vmatprep.subr.mxu0 %v49
  %233 = vmatpush1.msra.mxu0 %v48
  %234 = vmatprep.subr.mxu0 %v53
  %235 = vmatpush1.msra.mxu0 %v52
  %236 = vmatprep.subr.mxu0 %v57
  %237 = vmatpush1.msra.mxu0 %v56
  %238 = vmatprep.subr.mxu0 %v61
  %239 = vmatpush1.msra.mxu0 %v60
  %240 = vmatprep.subr.mxu0 %v65
  %241 = vmatpush1.msra.mxu0 %v64
  %242 = vmatprep.subr.mxu0 %v69
  %243 = vmatpush1.msra.mxu0 %v68
  %244 = vmatprep.subr.mxu0 %v73
  %245 = vmatpush1.msra.mxu0 %v72
  %246 = vmatprep.subr.mxu0 %v77
  %247 = vmatpush1.msra.mxu0 %v76
  %248 = vmatprep.subr.mxu0 %v81
  %249 = vmatpush1.msra.mxu0 %v80
  %250 = vmatprep.subr.mxu0 %v85
  %251 = vmatpush1.msra.mxu0 %v84
  %252 = vmatprep.subr.mxu0 %v89
  %253 = vmatpush1.msra.mxu0 %v88
  %254 = vmatprep.subr.mxu0 %v93
  %255 = vmatpush1.msra.mxu0 %v92
  %256 = vmatprep.subr.mxu0 0.0
  %257 = vmatpush1.msra.mxu0 0.0
  %258 = vmatprep.subr.mxu0 0.0
  %259 = vmatpush1.msra.mxu0 0.0
  %260 = vmatprep.subr.mxu0 0.0
  %261 = vmatpush1.msra.mxu0 0.0
  %262 = vmatprep.subr.mxu0 0.0
  %263 = vmatpush1.msra.mxu0 0.0
  %264 = vmatprep.subr.mxu0 0.0
  %265 = vmatpush1.msra.mxu0 0.0
  %266 = vmatprep.subr.mxu0 0.0
  %267 = vmatpush1.msra.mxu0 0.0
  %268 = vmatprep.subr.mxu0 0.0
  %269 = vmatpush1.msra.mxu0 0.0
  %270 = vmatprep.subr.mxu0 0.0
  %271 = vmatpush1.msra.mxu0 0.0
  %272 = vmatprep.subr.mxu0 0.0
  %273 = vmatpush1.msra.mxu0 0.0
  %274 = vmatprep.subr.mxu0 0.0
  %275 = vmatpush1.msra.mxu0 0.0
  %276 = vmatprep.subr.mxu0 0.0
  %277 = vmatpush1.msra.mxu0 0.0
  %278 = vmatprep.subr.mxu0 0.0
  %279 = vmatpush1.msra.mxu0 0.0
  %280 = vmatprep.subr.mxu0 0.0
  %281 = vmatpush1.msra.mxu0 0.0
  %282 = vmatprep.subr.mxu0 0.0
  %283 = vmatpush1.msra.mxu0 0.0
  %284 = vmatprep.mubr.f32.mxu0 %v120
  %285 = vmatmul.mubr.f32.gmra.mrb[0].mxu0 %v14
  %v286 = vpop.f32.mrb[0].mxu0
  %v287 = vadd.f32 %v101, %v286
  %v288 = vpop.f32.mrb[0].mxu0
  %v289 = vadd.f32 %v101, %v288
  %290 = vmatprep.mubr.f32.mxu0 %v123
  %291 = vmatmul.mubr.f32.gmra.mrb[0].mxu0 %v16
  %v292 = vpop.f32.mrb[0].mxu0
  %v293 = vadd.f32 %v106, %v292
  %v294 = vpop.f32.mrb[0].mxu0
  %v295 = vadd.f32 %v106, %v294
  %296 = vmatprep.mubr.f32.mxu0 %v126
  %297 = vmatmul.mubr.f32.gmra.mrb[0].mxu0 %v18
  %v298 = vpop.f32.mrb[0].mxu0
  %v299 = vadd.f32 %v111, %v298
  %v300 = vpop.f32.mrb[0].mxu0
  %v301 = vadd.f32 %v111, %v300
  %302 = vmatprep.mubr.f32.mxu0 %v129
  %303 = vmatmul.mubr.f32.gmra.mrb[0].mxu0 %v20
  %v304 = vpop.f32.mrb[0].mxu0
  %v305 = vadd.f32 %v116, %v304
  %v306 = vpop.f32.mrb[0].mxu0
  %v307 = vadd.f32 %v116, %v306
  %308 = vdwg.mxu0
  %v309 = vmax.f32 %v198, 0.0
  %v310 = vmax.f32 %v200, 0.0
  %v311 = vmax.f32 %v287, 0.0
  %v312 = vmax.f32 %v289, 0.0
  %v313 = vmax.f32 %v204, 0.0
  %v314 = vmax.f32 %v206, 0.0
  %v315 = vmax.f32 %v293, 0.0
  %v316 = vmax.f32 %v295, 0.0
  %v317 = vmax.f32 %v210, 0.0
  %v318 = vmax.f32 %v212, 0.0
  %v319 = vmax.f32 %v299, 0.0
  %v320 = vmax.f32 %v301, 0.0
  %v321 = vmax.f32 %v216, 0.0
  %v322 = vmax.f32 %v218, 0.0
  %v323 = vmax.f32 %v305, 0.0
  %v324 = vmax.f32 %v307, 0.0
  %325 = vst [vmem:[%s3] sm:$0xff] %v309
  %326 = vst [vmem:[%s3 + $0x8] sm:$0xff] %v310
  %327 = vst [vmem:[%s3 + $0x10] sm:$0xff] %v311
  %328 = vst [vmem:[%s3 + $0x18] sm:$0xff] %v312
  %329 = vst [vmem:[%s3 + $0x20] sm:$0xff] %v313
  %330 = vst [vmem:[%s3 + $0x28] sm:$0xff] %v314
  %331 = vst [vmem:[%s3 + $0x30] sm:$0xff] %v315
  %332 = vst [vmem:[%s3 + $0x38] sm:$0xff] %v316
  %333 = vst [vmem:[%s3 + $0x40] sm:$0xff] %v317
  %334 = vst [vmem:[%s3 + $0x48] sm:$0xff] %v318
  %335 = vst [vmem:[%s3 + $0x50] sm:$0xff] %v319
  %336 = vst [vmem:[%s3 + $0x58] sm:$0xff] %v320
  %337 = vst [vmem:[%s3 + $0x60] sm:$0xff] %v321
  %338 = vst [vmem:[%s3 + $0x68] sm:$0xff] %v322
  %339 = vst [vmem:[%s3 + $0x70] sm:$0xff] %v323
  %340 = vst [vmem:[%s3 + $0x78] sm:$0xff] %v324
  // Predicated region
  $region14: #{mustafa_forward.13} parent=0 // pred_check
    _
  $region15: #{mustafa_forward.13} parent=0 // pred_check_branch
    %342 = sbr.rel (0) target = $region17
  $region16: #{mustafa_forward.13} parent=0 // pred_region
    _
  $region17: #{mustafa_forward.13} parent=0 // pred_fallthru
    _
  // Predicated region
  $region18: #{mustafa_forward.13} parent=0 // pred_check
    _
  $region19: #{mustafa_forward.13} parent=0 // pred_check_branch
    %344 = sbr.rel (0) target = $region21
  $region20: #{mustafa_forward.13} parent=0 // pred_region
    _
  $region21: #{mustafa_forward.13} parent=0 // pred_fallthru
    _

// kernel: mustafa_forward.14
$region0: #{mustafa_forward.14}
  #allocation0 [shape = 'u32[]', space=smem, size = 0x4, offset = 0x4, fixed_abs, tag = 'smem constant byte address 0x4 - core index']
  #allocation1 [shape = 'u32[144,128]{1,0:T(1,128)}', space=vmem, size = 0x12000, scoped, tag = 'internal scratch']
  %s0 = inlined_call_operand.vmem [shape: f32[32,16], index: 0, kind: input, shape index: {}]
  %s1 = inlined_call_operand.vmem [shape: f32[16,512], index: 1, kind: input, shape index: {}]
  %s2 = inlined_call_operand.vmem [shape: f32[32,1], index: 2, kind: input, shape index: {}]
  %s3 = inlined_call_operand.vmem [shape: f32[32,512], index: 3, kind: output, shape index: {}]
  %s4 = sld [smem:[#allocation0]]
  $region22: #{mustafa_forward.14} parent=0
    _
  %s6 = ssub.s32 1, %s4
  %s7 = scalar_select 0, %s6, %s4
  // Predicated region
  $region2: #{mustafa_forward.14} parent=0 // pred_check
    _
  $region3: #{mustafa_forward.14} parent=0 // pred_check_branch
    %9 = sbr.rel (0) target = $region5
  $region4: #{mustafa_forward.14} parent=0 // pred_region
    _
  $region5: #{mustafa_forward.14} parent=0 // pred_fallthru
    _
  // Predicated region
  $region6: #{mustafa_forward.14} parent=0 // pred_check
    _
  $region7: #{mustafa_forward.14} parent=0 // pred_check_branch
    %11 = sbr.rel (0) target = $region9
  $region8: #{mustafa_forward.14} parent=0 // pred_region
    _
  $region9: #{mustafa_forward.14} parent=0 // pred_fallthru
    _
  // Predicated region
  $region10: #{mustafa_forward.14} parent=0 // pred_check
    _
  $region11: #{mustafa_forward.14} parent=0 // pred_check_branch
    %13 = sbr.rel (0) target = $region13
  $region12: #{mustafa_forward.14} parent=0 // pred_region
    _
  $region13: #{mustafa_forward.14} parent=0 // pred_fallthru
    _
  %v14 = vld [vmem:[%s0] sm:$0xff]
  %v15 = vld [vmem:[%s0 + $0x8] sm:$0xff]
  %v16 = vld [vmem:[%s0 + $0x10] sm:$0xff]
  %v17 = vld [vmem:[%s0 + $0x18] sm:$0xff]
  %v18 = vld [vmem:[%s1] sm:$0xff]
  %v19 = vld [vmem:[%s1 + $0x8] sm:$0xff]
  %v20 = vld [vmem:[%s1 + $0x10] sm:$0xff]
  %v21 = vld [vmem:[%s1 + $0x18] sm:$0xff]
  %v22 = vld [vmem:[%s1 + $0x20] sm:$0xff]
  %v23 = vld [vmem:[%s1 + $0x28] sm:$0xff]
  %v24 = vld [vmem:[%s1 + $0x30] sm:$0xff]
  %v25 = vld [vmem:[%s1 + $0x38] sm:$0xff]
  %v26 = vld [vmem:[%s2] sm:$0xff]
  %v27 = vld [vmem:[%s2 + $0x8] sm:$0xff]
  %v28 = vld [vmem:[%s2 + $0x10] sm:$0xff]
  %v29 = vld [vmem:[%s2 + $0x18] sm:$0xff]
  %31 = vset.pattern.permute.xlu0 0
  %32 = vperm.xlu0 %31, %v26
  %v33 = vpop.permute.xlu0 %32
  %36 = vset.pattern.permute.xlu0 0
  %37 = vperm.xlu0 %36, %v27
  %v38 = vpop.permute.xlu0 %37
  %41 = vset.pattern.permute.xlu0 0
  %42 = vperm.xlu0 %41, %v28
  %v43 = vpop.permute.xlu0 %42
  %46 = vset.pattern.permute.xlu0 0
  %47 = vperm.xlu0 %46, %v29
  %v48 = vpop.permute.xlu0 %47
  %vm50 = vcmask 130048
  %v52 = vsel %vm50, %v14, 0
  %v55 = vsel %vm50, %v15, 0
  %v58 = vsel %vm50, %v16, 0
  %v61 = vsel %vm50, %v17, 0
  %63 = vmatprep.subr.mxu0 %v19
  %64 = vmatpush1.msra.mxu0 %v18
  %65 = vmatprep.subr.mxu0 %v23
  %66 = vmatpush1.msra.mxu0 %v22
  %67 = vmatprep.subr.mxu0 0.0
  %68 = vmatpush1.msra.mxu0 0.0
  %69 = vmatprep.subr.mxu0 0.0
  %70 = vmatpush1.msra.mxu0 0.0
  %71 = vmatprep.subr.mxu0 0.0
  %72 = vmatpush1.msra.mxu0 0.0
  %73 = vmatprep.subr.mxu0 0.0
  %74 = vmatpush1.msra.mxu0 0.0
  %75 = vmatprep.subr.mxu0 0.0
  %76 = vmatpush1.msra.mxu0 0.0
  %77 = vmatprep.subr.mxu0 0.0
  %78 = vmatpush1.msra.mxu0 0.0
  %79 = vmatprep.subr.mxu0 0.0
  %80 = vmatpush1.msra.mxu0 0.0
  %81 = vmatprep.subr.mxu0 0.0
  %82 = vmatpush1.msra.mxu0 0.0
  %83 = vmatprep.subr.mxu0 0.0
  %84 = vmatpush1.msra.mxu0 0.0
  %85 = vmatprep.subr.mxu0 0.0
  %86 = vmatpush1.msra.mxu0 0.0
  %87 = vmatprep.subr.mxu0 0.0
  %88 = vmatpush1.msra.mxu0 0.0
  %89 = vmatprep.subr.mxu0 0.0
  %90 = vmatpush1.msra.mxu0 0.0
  %91 = vmatprep.subr.mxu0 0.0
  %92 = vmatpush1.msra.mxu0 0.0
  %93 = vmatprep.subr.mxu0 0.0
  %94 = vmatpush1.msra.mxu0 0.0
  %95 = vmatprep.subr.mxu0 0.0
  %96 = vmatpush1.msra.mxu0 0.0
  %97 = vmatprep.subr.mxu0 0.0
  %98 = vmatpush1.msra.mxu0 0.0
  %99 = vmatprep.subr.mxu0 0.0
  %100 = vmatpush1.msra.mxu0 0.0
  %101 = vmatprep.subr.mxu0 0.0
  %102 = vmatpush1.msra.mxu0 0.0
  %103 = vmatprep.subr.mxu0 0.0
  %104 = vmatpush1.msra.mxu0 0.0
  %105 = vmatprep.subr.mxu0 0.0
  %106 = vmatpush1.msra.mxu0 0.0
  %107 = vmatprep.subr.mxu0 0.0
  %108 = vmatpush1.msra.mxu0 0.0
  %109 = vmatprep.subr.mxu0 0.0
  %110 = vmatpush1.msra.mxu0 0.0
  %111 = vmatprep.subr.mxu0 0.0
  %112 = vmatpush1.msra.mxu0 0.0
  %113 = vmatprep.subr.mxu0 0.0
  %114 = vmatpush1.msra.mxu0 0.0
  %115 = vmatprep.subr.mxu0 0.0
  %116 = vmatpush1.msra.mxu0 0.0
  %117 = vmatprep.subr.mxu0 0.0
  %118 = vmatpush1.msra.mxu0 0.0
  %119 = vmatprep.subr.mxu0 0.0
  %120 = vmatpush1.msra.mxu0 0.0
  %121 = vmatprep.subr.mxu0 0.0
  %122 = vmatpush1.msra.mxu0 0.0
  %123 = vmatprep.subr.mxu0 0.0
  %124 = vmatpush1.msra.mxu0 0.0
  %125 = vmatprep.subr.mxu0 0.0
  %126 = vmatpush1.msra.mxu0 0.0
  %127 = vmatprep.mubr.f32.mxu0 0.0
  %128 = vmatmul.mubr.f32.gmra.mrb[0].mxu0 %v52
  %v129 = vpop.f32.mrb[0].mxu0
  %v130 = vadd.f32 %v33, %v129
  %v131 = vpop.f32.mrb[0].mxu0
  %v132 = vadd.f32 %v33, %v131
  %133 = vmatprep.mubr.f32.mxu0 0.0
  %134 = vmatmul.mubr.f32.gmra.mrb[0].mxu0 %v55
  %v135 = vpop.f32.mrb[0].mxu0
  %v136 = vadd.f32 %v38, %v135
  %v137 = vpop.f32.mrb[0].mxu0
  %v138 = vadd.f32 %v38, %v137
  %139 = vmatprep.mubr.f32.mxu0 0.0
  %140 = vmatmul.mubr.f32.gmra.mrb[0].mxu0 %v58
  %v141 = vpop.f32.mrb[0].mxu0
  %v142 = vadd.f32 %v43, %v141
  %v143 = vpop.f32.mrb[0].mxu0
  %v144 = vadd.f32 %v43, %v143
  %145 = vmatprep.mubr.f32.mxu0 0.0
  %146 = vmatmul.mubr.f32.gmra.mrb[0].mxu0 %v61
  %v147 = vpop.f32.mrb[0].mxu0
  %v148 = vadd.f32 %v48, %v147
  %v149 = vpop.f32.mrb[0].mxu0
  %v150 = vadd.f32 %v48, %v149
  %151 = vdwg.mxu0
  %152 = vmatprep.subr.mxu0 %v21
  %153 = vmatpush1.msra.mxu0 %v20
  %154 = vmatprep.subr.mxu0 %v25
  %155 = vmatpush1.msra.mxu0 %v24
  %156 = vmatprep.subr.mxu0 0.0
  %157 = vmatpush1.msra.mxu0 0.0
  %158 = vmatprep.subr.mxu0 0.0
  %159 = vmatpush1.msra.mxu0 0.0
  %160 = vmatprep.subr.mxu0 0.0
  %161 = vmatpush1.msra.mxu0 0.0
  %162 = vmatprep.subr.mxu0 0.0
  %163 = vmatpush1.msra.mxu0 0.0
  %164 = vmatprep.subr.mxu0 0.0
  %165 = vmatpush1.msra.mxu0 0.0
  %166 = vmatprep.subr.mxu0 0.0
  %167 = vmatpush1.msra.mxu0 0.0
  %168 = vmatprep.subr.mxu0 0.0
  %169 = vmatpush1.msra.mxu0 0.0
  %170 = vmatprep.subr.mxu0 0.0
  %171 = vmatpush1.msra.mxu0 0.0
  %172 = vmatprep.subr.mxu0 0.0
  %173 = vmatpush1.msra.mxu0 0.0
  %174 = vmatprep.subr.mxu0 0.0
  %175 = vmatpush1.msra.mxu0 0.0
  %176 = vmatprep.subr.mxu0 0.0
  %177 = vmatpush1.msra.mxu0 0.0
  %178 = vmatprep.subr.mxu0 0.0
  %179 = vmatpush1.msra.mxu0 0.0
  %180 = vmatprep.subr.mxu0 0.0
  %181 = vmatpush1.msra.mxu0 0.0
  %182 = vmatprep.subr.mxu0 0.0
  %183 = vmatpush1.msra.mxu0 0.0
  %184 = vmatprep.subr.mxu0 0.0
  %185 = vmatpush1.msra.mxu0 0.0
  %186 = vmatprep.subr.mxu0 0.0
  %187 = vmatpush1.msra.mxu0 0.0
  %188 = vmatprep.subr.mxu0 0.0
  %189 = vmatpush1.msra.mxu0 0.0
  %190 = vmatprep.subr.mxu0 0.0
  %191 = vmatpush1.msra.mxu0 0.0
  %192 = vmatprep.subr.mxu0 0.0
  %193 = vmatpush1.msra.mxu0 0.0
  %194 = vmatprep.subr.mxu0 0.0
  %195 = vmatpush1.msra.mxu0 0.0
  %196 = vmatprep.subr.mxu0 0.0
  %197 = vmatpush1.msra.mxu0 0.0
  %198 = vmatprep.subr.mxu0 0.0
  %199 = vmatpush1.msra.mxu0 0.0
  %200 = vmatprep.subr.mxu0 0.0
  %201 = vmatpush1.msra.mxu0 0.0
  %202 = vmatprep.subr.mxu0 0.0
  %203 = vmatpush1.msra.mxu0 0.0
  %204 = vmatprep.subr.mxu0 0.0
  %205 = vmatpush1.msra.mxu0 0.0
  %206 = vmatprep.subr.mxu0 0.0
  %207 = vmatpush1.msra.mxu0 0.0
  %208 = vmatprep.subr.mxu0 0.0
  %209 = vmatpush1.msra.mxu0 0.0
  %210 = vmatprep.subr.mxu0 0.0
  %211 = vmatpush1.msra.mxu0 0.0
  %212 = vmatprep.subr.mxu0 0.0
  %213 = vmatpush1.msra.mxu0 0.0
  %214 = vmatprep.subr.mxu0 0.0
  %215 = vmatpush1.msra.mxu0 0.0
  %216 = vmatprep.mubr.f32.mxu0 0.0
  %217 = vmatmul.mubr.f32.gmra.mrb[0].mxu0 %v52
  %v218 = vpop.f32.mrb[0].mxu0
  %v219 = vadd.f32 %v33, %v218
  %v220 = vpop.f32.mrb[0].mxu0
  %v221 = vadd.f32 %v33, %v220
  %222 = vmatprep.mubr.f32.mxu0 0.0
  %223 = vmatmul.mubr.f32.gmra.mrb[0].mxu0 %v55
  %v224 = vpop.f32.mrb[0].mxu0
  %v225 = vadd.f32 %v38, %v224
  %v226 = vpop.f32.mrb[0].mxu0
  %v227 = vadd.f32 %v38, %v226
  %228 = vmatprep.mubr.f32.mxu0 0.0
  %229 = vmatmul.mubr.f32.gmra.mrb[0].mxu0 %v58
  %v230 = vpop.f32.mrb[0].mxu0
  %v231 = vadd.f32 %v43, %v230
  %v232 = vpop.f32.mrb[0].mxu0
  %v233 = vadd.f32 %v43, %v232
  %234 = vmatprep.mubr.f32.mxu0 0.0
  %235 = vmatmul.mubr.f32.gmra.mrb[0].mxu0 %v61
  %v236 = vpop.f32.mrb[0].mxu0
  %v237 = vadd.f32 %v48, %v236
  %v238 = vpop.f32.mrb[0].mxu0
  %v239 = vadd.f32 %v48, %v238
  %240 = vdwg.mxu0
  %241 = vst [vmem:[%s3] sm:$0xff] %v130
  %242 = vst [vmem:[%s3 + $0x8] sm:$0xff] %v132
  %243 = vst [vmem:[%s3 + $0x10] sm:$0xff] %v219
  %244 = vst [vmem:[%s3 + $0x18] sm:$0xff] %v221
  %245 = vst [vmem:[%s3 + $0x20] sm:$0xff] %v136
  %246 = vst [vmem:[%s3 + $0x28] sm:$0xff] %v138
  %247 = vst [vmem:[%s3 + $0x30] sm:$0xff] %v225
  %248 = vst [vmem:[%s3 + $0x38] sm:$0xff] %v227
  %249 = vst [vmem:[%s3 + $0x40] sm:$0xff] %v142
  %250 = vst [vmem:[%s3 + $0x48] sm:$0xff] %v144
  %251 = vst [vmem:[%s3 + $0x50] sm:$0xff] %v231
  %252 = vst [vmem:[%s3 + $0x58] sm:$0xff] %v233
  %253 = vst [vmem:[%s3 + $0x60] sm:$0xff] %v148
  %254 = vst [vmem:[%s3 + $0x68] sm:$0xff] %v150
  %255 = vst [vmem:[%s3 + $0x70] sm:$0xff] %v237
  %256 = vst [vmem:[%s3 + $0x78] sm:$0xff] %v239
  // Predicated region
  $region14: #{mustafa_forward.14} parent=0 // pred_check
    _
  $region15: #{mustafa_forward.14} parent=0 // pred_check_branch
    %258 = sbr.rel (0) target = $region17
  $region16: #{mustafa_forward.14} parent=0 // pred_region
    _
  $region17: #{mustafa_forward.14} parent=0 // pred_fallthru
    _
  // Predicated region
  $region18: #{mustafa_forward.14} parent=0 // pred_check
    _
  $region19: #{mustafa_forward.14} parent=0 // pred_check_branch
    %260 = sbr.rel (0) target = $region21
  $region20: #{mustafa_forward.14} parent=0 // pred_region
    _
  $region21: #{mustafa_forward.14} parent=0 // pred_fallthru
    _

// kernel: mustafa_forward.15
$region0: #{mustafa_forward.15}
  #allocation0 [shape = 'u32[]', space=smem, size = 0x4, offset = 0x4, fixed_abs, tag = 'smem constant byte address 0x4 - core index']
  #allocation1 [shape = 'u32[144,128]{1,0:T(1,128)}', space=vmem, size = 0x12000, scoped, tag = 'internal scratch']
  %s0 = inlined_call_operand.vmem [shape: f32[32,288], index: 0, kind: input, shape index: {}]
  %s1 = inlined_call_operand.vmem [shape: f32[288,512], index: 1, kind: input, shape index: {}]
  %s2 = inlined_call_operand.vmem [shape: f32[32,1], index: 2, kind: input, shape index: {}]
  %s3 = inlined_call_operand.vmem [shape: f32[32,512], index: 3, kind: input, shape index: {}]
  %s4 = inlined_call_operand.vmem [shape: f32[32,512], index: 4, kind: output, shape index: {}]
  %s5 = sld [smem:[#allocation0]]
  $region26: #{mustafa_forward.15} parent=0
    _
  %s7 = ssub.s32 1, %s5
  %s8 = scalar_select 0, %s7, %s5
  // Predicated region
  $region2: #{mustafa_forward.15} parent=0 // pred_check
    _
  $region3: #{mustafa_forward.15} parent=0 // pred_check_branch
    %10 = sbr.rel (0) target = $region5
  $region4: #{mustafa_forward.15} parent=0 // pred_region
    _
  $region5: #{mustafa_forward.15} parent=0 // pred_fallthru
    _
  // Predicated region
  $region6: #{mustafa_forward.15} parent=0 // pred_check
    _
  $region7: #{mustafa_forward.15} parent=0 // pred_check_branch
    %12 = sbr.rel (0) target = $region9
  $region8: #{mustafa_forward.15} parent=0 // pred_region
    _
  $region9: #{mustafa_forward.15} parent=0 // pred_fallthru
    _
  // Predicated region
  $region10: #{mustafa_forward.15} parent=0 // pred_check
    _
  $region11: #{mustafa_forward.15} parent=0 // pred_check_branch
    %14 = sbr.rel (0) target = $region13
  $region12: #{mustafa_forward.15} parent=0 // pred_region
    _
  $region13: #{mustafa_forward.15} parent=0 // pred_fallthru
    _
  // Predicated region
  $region14: #{mustafa_forward.15} parent=0 // pred_check
    _
  $region15: #{mustafa_forward.15} parent=0 // pred_check_branch
    %16 = sbr.rel (0) target = $region17
  $region16: #{mustafa_forward.15} parent=0 // pred_region
    _
  $region17: #{mustafa_forward.15} parent=0 // pred_fallthru
    _
  %v17 = vld [vmem:[%s0] sm:$0xff]
  %v18 = vld [vmem:[%s0 + $0x8] sm:$0xff]
  %v19 = vld [vmem:[%s0 + $0x10] sm:$0xff]
  %v20 = vld [vmem:[%s0 + $0x18] sm:$0xff]
  %v21 = vld [vmem:[%s0 + $0x20] sm:$0xff]
  %v22 = vld [vmem:[%s0 + $0x28] sm:$0xff]
  %v23 = vld [vmem:[%s0 + $0x30] sm:$0xff]
  %v24 = vld [vmem:[%s0 + $0x38] sm:$0xff]
  %v25 = vld [vmem:[%s0 + $0x40] sm:$0xff]
  %v26 = vld [vmem:[%s0 + $0x48] sm:$0xff]
  %v27 = vld [vmem:[%s0 + $0x50] sm:$0xff]
  %v28 = vld [vmem:[%s0 + $0x58] sm:$0xff]
  %v29 = vld [vmem:[%s1] sm:$0xff]
  %v30 = vld [vmem:[%s1 + $0x8] sm:$0xff]
  %v31 = vld [vmem:[%s1 + $0x10] sm:$0xff]
  %v32 = vld [vmem:[%s1 + $0x18] sm:$0xff]
  %v33 = vld [vmem:[%s1 + $0x20] sm:$0xff]
  %v34 = vld [vmem:[%s1 + $0x28] sm:$0xff]
  %v35 = vld [vmem:[%s1 + $0x30] sm:$0xff]
  %v36 = vld [vmem:[%s1 + $0x38] sm:$0xff]
  %v37 = vld [vmem:[%s1 + $0x40] sm:$0xff]
  %v38 = vld [vmem:[%s1 + $0x48] sm:$0xff]
  %v39 = vld [vmem:[%s1 + $0x50] sm:$0xff]
  %v40 = vld [vmem:[%s1 + $0x58] sm:$0xff]
  %v41 = vld [vmem:[%s1 + $0x60] sm:$0xff]
  %v42 = vld [vmem:[%s1 + $0x68] sm:$0xff]
  %v43 = vld [vmem:[%s1 + $0x70] sm:$0xff]
  %v44 = vld [vmem:[%s1 + $0x78] sm:$0xff]
  %v45 = vld [vmem:[%s1 + $0x80] sm:$0xff]
  %v46 = vld [vmem:[%s1 + $0x88] sm:$0xff]
  %v47 = vld [vmem:[%s1 + $0x90] sm:$0xff]
  %v48 = vld [vmem:[%s1 + $0x98] sm:$0xff]
  %v49 = vld [vmem:[%s1 + $0xa0] sm:$0xff]
  %v50 = vld [vmem:[%s1 + $0xa8] sm:$0xff]
  %v51 = vld [vmem:[%s1 + $0xb0] sm:$0xff]
  %v52 = vld [vmem:[%s1 + $0xb8] sm:$0xff]
  %v53 = vld [vmem:[%s1 + $0xc0] sm:$0xff]
  %v54 = vld [vmem:[%s1 + $0xc8] sm:$0xff]
  %v55 = vld [vmem:[%s1 + $0xd0] sm:$0xff]
  %v56 = vld [vmem:[%s1 + $0xd8] sm:$0xff]
  %v57 = vld [vmem:[%s1 + $0xe0] sm:$0xff]
  %v58 = vld [vmem:[%s1 + $0xe8] sm:$0xff]
  %v59 = vld [vmem:[%s1 + $0xf0] sm:$0xff]
  %v60 = vld [vmem:[%s1 + $0xf8] sm:$0xff]
  %v61 = vld [vmem:[%s1 + $0x100] sm:$0xff]
  %v62 = vld [vmem:[%s1 + $0x108] sm:$0xff]
  %v63 = vld [vmem:[%s1 + $0x110] sm:$0xff]
  %v64 = vld [vmem:[%s1 + $0x118] sm:$0xff]
  %v65 = vld [vmem:[%s1 + $0x120] sm:$0xff]
  %v66 = vld [vmem:[%s1 + $0x128] sm:$0xff]
  %v67 = vld [vmem:[%s1 + $0x130] sm:$0xff]
  %v68 = vld [vmem:[%s1 + $0x138] sm:$0xff]
  %v69 = vld [vmem:[%s1 + $0x140] sm:$0xff]
  %v70 = vld [vmem:[%s1 + $0x148] sm:$0xff]
  %v71 = vld [vmem:[%s1 + $0x150] sm:$0xff]
  %v72 = vld [vmem:[%s1 + $0x158] sm:$0xff]
  %v73 = vld [vmem:[%s1 + $0x160] sm:$0xff]
  %v74 = vld [vmem:[%s1 + $0x168] sm:$0xff]
  %v75 = vld [vmem:[%s1 + $0x170] sm:$0xff]
  %v76 = vld [vmem:[%s1 + $0x178] sm:$0xff]
  %v77 = vld [vmem:[%s1 + $0x180] sm:$0xff]
  %v78 = vld [vmem:[%s1 + $0x188] sm:$0xff]
  %v79 = vld [vmem:[%s1 + $0x190] sm:$0xff]
  %v80 = vld [vmem:[%s1 + $0x198] sm:$0xff]
  %v81 = vld [vmem:[%s1 + $0x1a0] sm:$0xff]
  %v82 = vld [vmem:[%s1 + $0x1a8] sm:$0xff]
  %v83 = vld [vmem:[%s1 + $0x1b0] sm:$0xff]
  %v84 = vld [vmem:[%s1 + $0x1b8] sm:$0xff]
  %v85 = vld [vmem:[%s1 + $0x1c0] sm:$0xff]
  %v86 = vld [vmem:[%s1 + $0x1c8] sm:$0xff]
  %v87 = vld [vmem:[%s1 + $0x1d0] sm:$0xff]
  %v88 = vld [vmem:[%s1 + $0x1d8] sm:$0xff]
  %v89 = vld [vmem:[%s1 + $0x1e0] sm:$0xff]
  %v90 = vld [vmem:[%s1 + $0x1e8] sm:$0xff]
  %v91 = vld [vmem:[%s1 + $0x1f0] sm:$0xff]
  %v92 = vld [vmem:[%s1 + $0x1f8] sm:$0xff]
  %v93 = vld [vmem:[%s1 + $0x200] sm:$0xff]
  %v94 = vld [vmem:[%s1 + $0x208] sm:$0xff]
  %v95 = vld [vmem:[%s1 + $0x210] sm:$0xff]
  %v96 = vld [vmem:[%s1 + $0x218] sm:$0xff]
  %v97 = vld [vmem:[%s1 + $0x220] sm:$0xff]
  %v98 = vld [vmem:[%s1 + $0x228] sm:$0xff]
  %v99 = vld [vmem:[%s1 + $0x230] sm:$0xff]
  %v100 = vld [vmem:[%s1 + $0x238] sm:$0xff]
  %v101 = vld [vmem:[%s1 + $0x240] sm:$0xff]
  %v102 = vld [vmem:[%s1 + $0x248] sm:$0xff]
  %v103 = vld [vmem:[%s1 + $0x250] sm:$0xff]
  %v104 = vld [vmem:[%s1 + $0x258] sm:$0xff]
  %v105 = vld [vmem:[%s1 + $0x260] sm:$0xff]
  %v106 = vld [vmem:[%s1 + $0x268] sm:$0xff]
  %v107 = vld [vmem:[%s1 + $0x270] sm:$0xff]
  %v108 = vld [vmem:[%s1 + $0x278] sm:$0xff]
  %v109 = vld [vmem:[%s1 + $0x280] sm:$0xff]
  %v110 = vld [vmem:[%s1 + $0x288] sm:$0xff]
  %v111 = vld [vmem:[%s1 + $0x290] sm:$0xff]
  %v112 = vld [vmem:[%s1 + $0x298] sm:$0xff]
  %v113 = vld [vmem:[%s1 + $0x2a0] sm:$0xff]
  %v114 = vld [vmem:[%s1 + $0x2a8] sm:$0xff]
  %v115 = vld [vmem:[%s1 + $0x2b0] sm:$0xff]
  %v116 = vld [vmem:[%s1 + $0x2b8] sm:$0xff]
  %v117 = vld [vmem:[%s1 + $0x2c0] sm:$0xff]
  %v118 = vld [vmem:[%s1 + $0x2c8] sm:$0xff]
  %v119 = vld [vmem:[%s1 + $0x2d0] sm:$0xff]
  %v120 = vld [vmem:[%s1 + $0x2d8] sm:$0xff]
  %v121 = vld [vmem:[%s1 + $0x2e0] sm:$0xff]
  %v122 = vld [vmem:[%s1 + $0x2e8] sm:$0xff]
  %v123 = vld [vmem:[%s1 + $0x2f0] sm:$0xff]
  %v124 = vld [vmem:[%s1 + $0x2f8] sm:$0xff]
  %v125 = vld [vmem:[%s1 + $0x300] sm:$0xff]
  %v126 = vld [vmem:[%s1 + $0x308] sm:$0xff]
  %v127 = vld [vmem:[%s1 + $0x310] sm:$0xff]
  %v128 = vld [vmem:[%s1 + $0x318] sm:$0xff]
  %v129 = vld [vmem:[%s1 + $0x320] sm:$0xff]
  %v130 = vld [vmem:[%s1 + $0x328] sm:$0xff]
  %v131 = vld [vmem:[%s1 + $0x330] sm:$0xff]
  %v132 = vld [vmem:[%s1 + $0x338] sm:$0xff]
  %v133 = vld [vmem:[%s1 + $0x340] sm:$0xff]
  %v134 = vld [vmem:[%s1 + $0x348] sm:$0xff]
  %v135 = vld [vmem:[%s1 + $0x350] sm:$0xff]
  %v136 = vld [vmem:[%s1 + $0x358] sm:$0xff]
  %v137 = vld [vmem:[%s1 + $0x360] sm:$0xff]
  %v138 = vld [vmem:[%s1 + $0x368] sm:$0xff]
  %v139 = vld [vmem:[%s1 + $0x370] sm:$0xff]
  %v140 = vld [vmem:[%s1 + $0x378] sm:$0xff]
  %v141 = vld [vmem:[%s1 + $0x380] sm:$0xff]
  %v142 = vld [vmem:[%s1 + $0x388] sm:$0xff]
  %v143 = vld [vmem:[%s1 + $0x390] sm:$0xff]
  %v144 = vld [vmem:[%s1 + $0x398] sm:$0xff]
  %v145 = vld [vmem:[%s1 + $0x3a0] sm:$0xff]
  %v146 = vld [vmem:[%s1 + $0x3a8] sm:$0xff]
  %v147 = vld [vmem:[%s1 + $0x3b0] sm:$0xff]
  %v148 = vld [vmem:[%s1 + $0x3b8] sm:$0xff]
  %v149 = vld [vmem:[%s1 + $0x3c0] sm:$0xff]
  %v150 = vld [vmem:[%s1 + $0x3c8] sm:$0xff]
  %v151 = vld [vmem:[%s1 + $0x3d0] sm:$0xff]
  %v152 = vld [vmem:[%s1 + $0x3d8] sm:$0xff]
  %v153 = vld [vmem:[%s1 + $0x3e0] sm:$0xff]
  %v154 = vld [vmem:[%s1 + $0x3e8] sm:$0xff]
  %v155 = vld [vmem:[%s1 + $0x3f0] sm:$0xff]
  %v156 = vld [vmem:[%s1 + $0x3f8] sm:$0xff]
  %v157 = vld [vmem:[%s1 + $0x400] sm:$0xff]
  %v158 = vld [vmem:[%s1 + $0x408] sm:$0xff]
  %v159 = vld [vmem:[%s1 + $0x410] sm:$0xff]
  %v160 = vld [vmem:[%s1 + $0x418] sm:$0xff]
  %v161 = vld [vmem:[%s1 + $0x420] sm:$0xff]
  %v162 = vld [vmem:[%s1 + $0x428] sm:$0xff]
  %v163 = vld [vmem:[%s1 + $0x430] sm:$0xff]
  %v164 = vld [vmem:[%s1 + $0x438] sm:$0xff]
  %v165 = vld [vmem:[%s1 + $0x440] sm:$0xff]
  %v166 = vld [vmem:[%s1 + $0x448] sm:$0xff]
  %v167 = vld [vmem:[%s1 + $0x450] sm:$0xff]
  %v168 = vld [vmem:[%s1 + $0x458] sm:$0xff]
  %v169 = vld [vmem:[%s1 + $0x460] sm:$0xff]
  %v170 = vld [vmem:[%s1 + $0x468] sm:$0xff]
  %v171 = vld [vmem:[%s1 + $0x470] sm:$0xff]
  %v172 = vld [vmem:[%s1 + $0x478] sm:$0xff]
  %v173 = vld [vmem:[%s2] sm:$0xff]
  %v174 = vld [vmem:[%s2 + $0x8] sm:$0xff]
  %v175 = vld [vmem:[%s2 + $0x10] sm:$0xff]
  %v176 = vld [vmem:[%s2 + $0x18] sm:$0xff]
  %178 = vset.pattern.permute.xlu0 0
  %179 = vperm.xlu0 %178, %v173
  %v180 = vpop.permute.xlu0 %179
  %183 = vset.pattern.permute.xlu0 0
  %184 = vperm.xlu0 %183, %v174
  %v185 = vpop.permute.xlu0 %184
  %188 = vset.pattern.permute.xlu0 0
  %189 = vperm.xlu0 %188, %v175
  %v190 = vpop.permute.xlu0 %189
  %193 = vset.pattern.permute.xlu0 0
  %194 = vperm.xlu0 %193, %v176
  %v195 = vpop.permute.xlu0 %194
  %vm197 = vcmask 261120
  %v199 = vsel %vm197, %v19, 0
  %v202 = vsel %vm197, %v22, 0
  %v205 = vsel %vm197, %v25, 0
  %v208 = vsel %vm197, %v28, 0
  %210 = vmatprep.subr.mxu0 %v30
  %211 = vmatpush1.msra.mxu0 %v29
  %212 = vmatprep.subr.mxu0 %v34
  %213 = vmatpush1.msra.mxu0 %v33
  %214 = vmatprep.subr.mxu0 %v38
  %215 = vmatpush1.msra.mxu0 %v37
  %216 = vmatprep.subr.mxu0 %v42
  %217 = vmatpush1.msra.mxu0 %v41
  %218 = vmatprep.subr.mxu0 %v46
  %219 = vmatpush1.msra.mxu0 %v45
  %220 = vmatprep.subr.mxu0 %v50
  %221 = vmatpush1.msra.mxu0 %v49
  %222 = vmatprep.subr.mxu0 %v54
  %223 = vmatpush1.msra.mxu0 %v53
  %224 = vmatprep.subr.mxu0 %v58
  %225 = vmatpush1.msra.mxu0 %v57
  %226 = vmatprep.subr.mxu0 %v62
  %227 = vmatpush1.msra.mxu0 %v61
  %228 = vmatprep.subr.mxu0 %v66
  %229 = vmatpush1.msra.mxu0 %v65
  %230 = vmatprep.subr.mxu0 %v70
  %231 = vmatpush1.msra.mxu0 %v69
  %232 = vmatprep.subr.mxu0 %v74
  %233 = vmatpush1.msra.mxu0 %v73
  %234 = vmatprep.subr.mxu0 %v78
  %235 = vmatpush1.msra.mxu0 %v77
  %236 = vmatprep.subr.mxu0 %v82
  %237 = vmatpush1.msra.mxu0 %v81
  %238 = vmatprep.subr.mxu0 %v86
  %239 = vmatpush1.msra.mxu0 %v85
  %240 = vmatprep.subr.mxu0 %v90
  %241 = vmatpush1.msra.mxu0 %v89
  %242 = vmatprep.subr.mxu0 %v94
  %243 = vmatpush1.msra.mxu0 %v93
  %244 = vmatprep.subr.mxu0 %v98
  %245 = vmatpush1.msra.mxu0 %v97
  %246 = vmatprep.subr.mxu0 %v102
  %247 = vmatpush1.msra.mxu0 %v101
  %248 = vmatprep.subr.mxu0 %v106
  %249 = vmatpush1.msra.mxu0 %v105
  %250 = vmatprep.subr.mxu0 %v110
  %251 = vmatpush1.msra.mxu0 %v109
  %252 = vmatprep.subr.mxu0 %v114
  %253 = vmatpush1.msra.mxu0 %v113
  %254 = vmatprep.subr.mxu0 %v118
  %255 = vmatpush1.msra.mxu0 %v117
  %256 = vmatprep.subr.mxu0 %v122
  %257 = vmatpush1.msra.mxu0 %v121
  %258 = vmatprep.subr.mxu0 %v126
  %259 = vmatpush1.msra.mxu0 %v125
  %260 = vmatprep.subr.mxu0 %v130
  %261 = vmatpush1.msra.mxu0 %v129
  %262 = vmatprep.subr.mxu0 %v134
  %263 = vmatpush1.msra.mxu0 %v133
  %264 = vmatprep.subr.mxu0 %v138
  %265 = vmatpush1.msra.mxu0 %v137
  %266 = vmatprep.subr.mxu0 %v142
  %267 = vmatpush1.msra.mxu0 %v141
  %268 = vmatprep.subr.mxu0 %v146
  %269 = vmatpush1.msra.mxu0 %v145
  %270 = vmatprep.subr.mxu0 %v150
  %271 = vmatpush1.msra.mxu0 %v149
  %272 = vmatprep.subr.mxu0 %v154
  %273 = vmatpush1.msra.mxu0 %v153
  %274 = vmatprep.mubr.f32.mxu0 %v18
  %275 = vmatmul.mubr.f32.gmra.mrb[0].mxu0 %v17
  %v276 = vpop.f32.mrb[0].mxu0
  %v277 = vadd.f32 %v180, %v276
  %v278 = vpop.f32.mrb[0].mxu0
  %v279 = vadd.f32 %v180, %v278
  %280 = vmatprep.mubr.f32.mxu0 %v21
  %281 = vmatmul.mubr.f32.gmra.mrb[0].mxu0 %v20
  %v282 = vpop.f32.mrb[0].mxu0
  %v283 = vadd.f32 %v185, %v282
  %v284 = vpop.f32.mrb[0].mxu0
  %v285 = vadd.f32 %v185, %v284
  %286 = vmatprep.mubr.f32.mxu0 %v24
  %287 = vmatmul.mubr.f32.gmra.mrb[0].mxu0 %v23
  %v288 = vpop.f32.mrb[0].mxu0
  %v289 = vadd.f32 %v190, %v288
  %v290 = vpop.f32.mrb[0].mxu0
  %v291 = vadd.f32 %v190, %v290
  %292 = vmatprep.mubr.f32.mxu0 %v27
  %293 = vmatmul.mubr.f32.gmra.mrb[0].mxu0 %v26
  %v294 = vpop.f32.mrb[0].mxu0
  %v295 = vadd.f32 %v195, %v294
  %v296 = vpop.f32.mrb[0].mxu0
  %v297 = vadd.f32 %v195, %v296
  %298 = vdwg.mxu0
  %299 = vmatprep.subr.mxu0 %v158
  %300 = vmatpush1.msra.mxu0 %v157
  %301 = vmatprep.subr.mxu0 %v162
  %302 = vmatpush1.msra.mxu0 %v161
  %303 = vmatprep.subr.mxu0 %v166
  %304 = vmatpush1.msra.mxu0 %v165
  %305 = vmatprep.subr.mxu0 %v170
  %306 = vmatpush1.msra.mxu0 %v169
  %307 = vmatprep.subr.mxu0 0.0
  %308 = vmatpush1.msra.mxu0 0.0
  %309 = vmatprep.subr.mxu0 0.0
  %310 = vmatpush1.msra.mxu0 0.0
  %311 = vmatprep.subr.mxu0 0.0
  %312 = vmatpush1.msra.mxu0 0.0
  %313 = vmatprep.subr.mxu0 0.0
  %314 = vmatpush1.msra.mxu0 0.0
  %315 = vmatprep.subr.mxu0 0.0
  %316 = vmatpush1.msra.mxu0 0.0
  %317 = vmatprep.subr.mxu0 0.0
  %318 = vmatpush1.msra.mxu0 0.0
  %319 = vmatprep.subr.mxu0 0.0
  %320 = vmatpush1.msra.mxu0 0.0
  %321 = vmatprep.subr.mxu0 0.0
  %322 = vmatpush1.msra.mxu0 0.0
  %323 = vmatprep.subr.mxu0 0.0
  %324 = vmatpush1.msra.mxu0 0.0
  %325 = vmatprep.subr.mxu0 0.0
  %326 = vmatpush1.msra.mxu0 0.0
  %327 = vmatprep.subr.mxu0 0.0
  %328 = vmatpush1.msra.mxu0 0.0
  %329 = vmatprep.subr.mxu0 0.0
  %330 = vmatpush1.msra.mxu0 0.0
  %331 = vmatprep.subr.mxu0 0.0
  %332 = vmatpush1.msra.mxu0 0.0
  %333 = vmatprep.subr.mxu0 0.0
  %334 = vmatpush1.msra.mxu0 0.0
  %335 = vmatprep.subr.mxu0 0.0
  %336 = vmatpush1.msra.mxu0 0.0
  %337 = vmatprep.subr.mxu0 0.0
  %338 = vmatpush1.msra.mxu0 0.0
  %339 = vmatprep.subr.mxu0 0.0
  %340 = vmatpush1.msra.mxu0 0.0
  %341 = vmatprep.subr.mxu0 0.0
  %342 = vmatpush1.msra.mxu0 0.0
  %343 = vmatprep.subr.mxu0 0.0
  %344 = vmatpush1.msra.mxu0 0.0
  %345 = vmatprep.subr.mxu0 0.0
  %346 = vmatpush1.msra.mxu0 0.0
  %347 = vmatprep.subr.mxu0 0.0
  %348 = vmatpush1.msra.mxu0 0.0
  %349 = vmatprep.subr.mxu0 0.0
  %350 = vmatpush1.msra.mxu0 0.0
  %351 = vmatprep.subr.mxu0 0.0
  %352 = vmatpush1.msra.mxu0 0.0
  %353 = vmatprep.subr.mxu0 0.0
  %354 = vmatpush1.msra.mxu0 0.0
  %355 = vmatprep.subr.mxu0 0.0
  %356 = vmatpush1.msra.mxu0 0.0
  %357 = vmatprep.subr.mxu0 0.0
  %358 = vmatpush1.msra.mxu0 0.0
  %359 = vmatprep.subr.mxu0 0.0
  %360 = vmatpush1.msra.mxu0 0.0
  %361 = vmatprep.subr.mxu0 0.0
  %362 = vmatpush1.msra.mxu0 0.0
  %363 = vmatprep.mubr.f32.mxu0 0.0
  %364 = vmatmul.mubr.f32.gmra.mrb[0].mxu0 %v199
  %v365 = vpop.f32.mrb[0].mxu0
  %v366 = vadd.f32 %v277, %v365
  %v367 = vpop.f32.mrb[0].mxu0
  %v368 = vadd.f32 %v279, %v367
  %369 = vmatprep.mubr.f32.mxu0 0.0
  %370 = vmatmul.mubr.f32.gmra.mrb[0].mxu0 %v202
  %v371 = vpop.f32.mrb[0].mxu0
  %v372 = vadd.f32 %v283, %v371
  %v373 = vpop.f32.mrb[0].mxu0
  %v374 = vadd.f32 %v285, %v373
  %375 = vmatprep.mubr.f32.mxu0 0.0
  %376 = vmatmul.mubr.f32.gmra.mrb[0].mxu0 %v205
  %v377 = vpop.f32.mrb[0].mxu0
  %v378 = vadd.f32 %v289, %v377
  %v379 = vpop.f32.mrb[0].mxu0
  %v380 = vadd.f32 %v291, %v379
  %381 = vmatprep.mubr.f32.mxu0 0.0
  %382 = vmatmul.mubr.f32.gmra.mrb[0].mxu0 %v208
  %v383 = vpop.f32.mrb[0].mxu0
  %v384 = vadd.f32 %v295, %v383
  %v385 = vpop.f32.mrb[0].mxu0
  %v386 = vadd.f32 %v297, %v385
  %387 = vdwg.mxu0
  %388 = vmatprep.subr.mxu0 %v32
  %389 = vmatpush1.msra.mxu0 %v31
  %390 = vmatprep.subr.mxu0 %v36
  %391 = vmatpush1.msra.mxu0 %v35
  %392 = vmatprep.subr.mxu0 %v40
  %393 = vmatpush1.msra.mxu0 %v39
  %394 = vmatprep.subr.mxu0 %v44
  %395 = vmatpush1.msra.mxu0 %v43
  %396 = vmatprep.subr.mxu0 %v48
  %397 = vmatpush1.msra.mxu0 %v47
  %398 = vmatprep.subr.mxu0 %v52
  %399 = vmatpush1.msra.mxu0 %v51
  %400 = vmatprep.subr.mxu0 %v56
  %401 = vmatpush1.msra.mxu0 %v55
  %402 = vmatprep.subr.mxu0 %v60
  %403 = vmatpush1.msra.mxu0 %v59
  %404 = vmatprep.subr.mxu0 %v64
  %405 = vmatpush1.msra.mxu0 %v63
  %406 = vmatprep.subr.mxu0 %v68
  %407 = vmatpush1.msra.mxu0 %v67
  %408 = vmatprep.subr.mxu0 %v72
  %409 = vmatpush1.msra.mxu0 %v71
  %410 = vmatprep.subr.mxu0 %v76
  %411 = vmatpush1.msra.mxu0 %v75
  %412 = vmatprep.subr.mxu0 %v80
  %413 = vmatpush1.msra.mxu0 %v79
  %414 = vmatprep.subr.mxu0 %v84
  %415 = vmatpush1.msra.mxu0 %v83
  %416 = vmatprep.subr.mxu0 %v88
  %417 = vmatpush1.msra.mxu0 %v87
  %418 = vmatprep.subr.mxu0 %v92
  %419 = vmatpush1.msra.mxu0 %v91
  %420 = vmatprep.subr.mxu0 %v96
  %421 = vmatpush1.msra.mxu0 %v95
  %422 = vmatprep.subr.mxu0 %v100
  %423 = vmatpush1.msra.mxu0 %v99
  %424 = vmatprep.subr.mxu0 %v104
  %425 = vmatpush1.msra.mxu0 %v103
  %426 = vmatprep.subr.mxu0 %v108
  %427 = vmatpush1.msra.mxu0 %v107
  %428 = vmatprep.subr.mxu0 %v112
  %429 = vmatpush1.msra.mxu0 %v111
  %430 = vmatprep.subr.mxu0 %v116
  %431 = vmatpush1.msra.mxu0 %v115
  %432 = vmatprep.subr.mxu0 %v120
  %433 = vmatpush1.msra.mxu0 %v119
  %434 = vmatprep.subr.mxu0 %v124
  %435 = vmatpush1.msra.mxu0 %v123
  %436 = vmatprep.subr.mxu0 %v128
  %437 = vmatpush1.msra.mxu0 %v127
  %438 = vmatprep.subr.mxu0 %v132
  %439 = vmatpush1.msra.mxu0 %v131
  %440 = vmatprep.subr.mxu0 %v136
  %441 = vmatpush1.msra.mxu0 %v135
  %442 = vmatprep.subr.mxu0 %v140
  %443 = vmatpush1.msra.mxu0 %v139
  %444 = vmatprep.subr.mxu0 %v144
  %445 = vmatpush1.msra.mxu0 %v143
  %446 = vmatprep.subr.mxu0 %v148
  %447 = vmatpush1.msra.mxu0 %v147
  %448 = vmatprep.subr.mxu0 %v152
  %449 = vmatpush1.msra.mxu0 %v151
  %450 = vmatprep.subr.mxu0 %v156
  %451 = vmatpush1.msra.mxu0 %v155
  %452 = vmatprep.mubr.f32.mxu0 %v18
  %453 = vmatmul.mubr.f32.gmra.mrb[0].mxu0 %v17
  %v454 = vpop.f32.mrb[0].mxu0
  %v455 = vadd.f32 %v180, %v454
  %v456 = vpop.f32.mrb[0].mxu0
  %v457 = vadd.f32 %v180, %v456
  %458 = vmatprep.mubr.f32.mxu0 %v21
  %459 = vmatmul.mubr.f32.gmra.mrb[0].mxu0 %v20
  %v460 = vpop.f32.mrb[0].mxu0
  %v461 = vadd.f32 %v185, %v460
  %v462 = vpop.f32.mrb[0].mxu0
  %v463 = vadd.f32 %v185, %v462
  %464 = vmatprep.mubr.f32.mxu0 %v24
  %465 = vmatmul.mubr.f32.gmra.mrb[0].mxu0 %v23
  %v466 = vpop.f32.mrb[0].mxu0
  %v467 = vadd.f32 %v190, %v466
  %v468 = vpop.f32.mrb[0].mxu0
  %v469 = vadd.f32 %v190, %v468
  %470 = vmatprep.mubr.f32.mxu0 %v27
  %471 = vmatmul.mubr.f32.gmra.mrb[0].mxu0 %v26
  %v472 = vpop.f32.mrb[0].mxu0
  %v473 = vadd.f32 %v195, %v472
  %v474 = vpop.f32.mrb[0].mxu0
  %v475 = vadd.f32 %v195, %v474
  %476 = vdwg.mxu0
  %477 = vmatprep.subr.mxu0 %v160
  %478 = vmatpush1.msra.mxu0 %v159
  %479 = vmatprep.subr.mxu0 %v164
  %480 = vmatpush1.msra.mxu0 %v163
  %481 = vmatprep.subr.mxu0 %v168
  %482 = vmatpush1.msra.mxu0 %v167
  %483 = vmatprep.subr.mxu0 %v172
  %484 = vmatpush1.msra.mxu0 %v171
  %485 = vmatprep.subr.mxu0 0.0
  %486 = vmatpush1.msra.mxu0 0.0
  %487 = vmatprep.subr.mxu0 0.0
  %488 = vmatpush1.msra.mxu0 0.0
  %489 = vmatprep.subr.mxu0 0.0
  %490 = vmatpush1.msra.mxu0 0.0
  %491 = vmatprep.subr.mxu0 0.0
  %492 = vmatpush1.msra.mxu0 0.0
  %493 = vmatprep.subr.mxu0 0.0
  %494 = vmatpush1.msra.mxu0 0.0
  %495 = vmatprep.subr.mxu0 0.0
  %496 = vmatpush1.msra.mxu0 0.0
  %497 = vmatprep.subr.mxu0 0.0
  %498 = vmatpush1.msra.mxu0 0.0
  %499 = vmatprep.subr.mxu0 0.0
  %500 = vmatpush1.msra.mxu0 0.0
  %501 = vmatprep.subr.mxu0 0.0
  %502 = vmatpush1.msra.mxu0 0.0
  %503 = vmatprep.subr.mxu0 0.0
  %504 = vmatpush1.msra.mxu0 0.0
  %505 = vmatprep.subr.mxu0 0.0
  %506 = vmatpush1.msra.mxu0 0.0
  %507 = vmatprep.subr.mxu0 0.0
  %508 = vmatpush1.msra.mxu0 0.0
  %509 = vmatprep.subr.mxu0 0.0
  %510 = vmatpush1.msra.mxu0 0.0
  %511 = vmatprep.subr.mxu0 0.0
  %512 = vmatpush1.msra.mxu0 0.0
  %513 = vmatprep.subr.mxu0 0.0
  %514 = vmatpush1.msra.mxu0 0.0
  %515 = vmatprep.subr.mxu0 0.0
  %516 = vmatpush1.msra.mxu0 0.0
  %517 = vmatprep.subr.mxu0 0.0
  %518 = vmatpush1.msra.mxu0 0.0
  %519 = vmatprep.subr.mxu0 0.0
  %520 = vmatpush1.msra.mxu0 0.0
  %521 = vmatprep.subr.mxu0 0.0
  %522 = vmatpush1.msra.mxu0 0.0
  %523 = vmatprep.subr.mxu0 0.0
  %524 = vmatpush1.msra.mxu0 0.0
  %525 = vmatprep.subr.mxu0 0.0
  %526 = vmatpush1.msra.mxu0 0.0
  %527 = vmatprep.subr.mxu0 0.0
  %528 = vmatpush1.msra.mxu0 0.0
  %529 = vmatprep.subr.mxu0 0.0
  %530 = vmatpush1.msra.mxu0 0.0
  %531 = vmatprep.subr.mxu0 0.0
  %532 = vmatpush1.msra.mxu0 0.0
  %533 = vmatprep.subr.mxu0 0.0
  %534 = vmatpush1.msra.mxu0 0.0
  %535 = vmatprep.subr.mxu0 0.0
  %536 = vmatpush1.msra.mxu0 0.0
  %537 = vmatprep.subr.mxu0 0.0
  %538 = vmatpush1.msra.mxu0 0.0
  %539 = vmatprep.subr.mxu0 0.0
  %540 = vmatpush1.msra.mxu0 0.0
  %541 = vmatprep.mubr.f32.mxu0 0.0
  %542 = vmatmul.mubr.f32.gmra.mrb[0].mxu0 %v199
  %v543 = vpop.f32.mrb[0].mxu0
  %v544 = vadd.f32 %v455, %v543
  %v545 = vpop.f32.mrb[0].mxu0
  %v546 = vadd.f32 %v457, %v545
  %547 = vmatprep.mubr.f32.mxu0 0.0
  %548 = vmatmul.mubr.f32.gmra.mrb[0].mxu0 %v202
  %v549 = vpop.f32.mrb[0].mxu0
  %v550 = vadd.f32 %v461, %v549
  %v551 = vpop.f32.mrb[0].mxu0
  %v552 = vadd.f32 %v463, %v551
  %553 = vmatprep.mubr.f32.mxu0 0.0
  %554 = vmatmul.mubr.f32.gmra.mrb[0].mxu0 %v205
  %v555 = vpop.f32.mrb[0].mxu0
  %v556 = vadd.f32 %v467, %v555
  %v557 = vpop.f32.mrb[0].mxu0
  %v558 = vadd.f32 %v469, %v557
  %559 = vmatprep.mubr.f32.mxu0 0.0
  %560 = vmatmul.mubr.f32.gmra.mrb[0].mxu0 %v208
  %v561 = vpop.f32.mrb[0].mxu0
  %v562 = vadd.f32 %v473, %v561
  %v563 = vpop.f32.mrb[0].mxu0
  %v564 = vadd.f32 %v475, %v563
  %565 = vdwg.mxu0
  %v566 = vmax.f32 %v366, 0.0
  %v567 = vmax.f32 %v368, 0.0
  %v568 = vmax.f32 %v544, 0.0
  %v569 = vmax.f32 %v546, 0.0
  %v570 = vmax.f32 %v372, 0.0
  %v571 = vmax.f32 %v374, 0.0
  %v572 = vmax.f32 %v550, 0.0
  %v573 = vmax.f32 %v552, 0.0
  %v574 = vmax.f32 %v378, 0.0
  %v575 = vmax.f32 %v380, 0.0
  %v576 = vmax.f32 %v556, 0.0
  %v577 = vmax.f32 %v558, 0.0
  %v578 = vmax.f32 %v384, 0.0
  %v579 = vmax.f32 %v386, 0.0
  %v580 = vmax.f32 %v562, 0.0
  %v581 = vmax.f32 %v564, 0.0
  %v582 = vld [vmem:[%s3] sm:$0xff]
  %v583 = vld [vmem:[%s3 + $0x8] sm:$0xff]
  %v584 = vld [vmem:[%s3 + $0x10] sm:$0xff]
  %v585 = vld [vmem:[%s3 + $0x18] sm:$0xff]
  %v586 = vld [vmem:[%s3 + $0x20] sm:$0xff]
  %v587 = vld [vmem:[%s3 + $0x28] sm:$0xff]
  %v588 = vld [vmem:[%s3 + $0x30] sm:$0xff]
  %v589 = vld [vmem:[%s3 + $0x38] sm:$0xff]
  %v590 = vld [vmem:[%s3 + $0x40] sm:$0xff]
  %v591 = vld [vmem:[%s3 + $0x48] sm:$0xff]
  %v592 = vld [vmem:[%s3 + $0x50] sm:$0xff]
  %v593 = vld [vmem:[%s3 + $0x58] sm:$0xff]
  %v594 = vld [vmem:[%s3 + $0x60] sm:$0xff]
  %v595 = vld [vmem:[%s3 + $0x68] sm:$0xff]
  %v596 = vld [vmem:[%s3 + $0x70] sm:$0xff]
  %v597 = vld [vmem:[%s3 + $0x78] sm:$0xff]
  %v598 = vadd.f32 %v566, %v582
  %v599 = vadd.f32 %v567, %v583
  %v600 = vadd.f32 %v568, %v584
  %v601 = vadd.f32 %v569, %v585
  %v602 = vadd.f32 %v570, %v586
  %v603 = vadd.f32 %v571, %v587
  %v604 = vadd.f32 %v572, %v588
  %v605 = vadd.f32 %v573, %v589
  %v606 = vadd.f32 %v574, %v590
  %v607 = vadd.f32 %v575, %v591
  %v608 = vadd.f32 %v576, %v592
  %v609 = vadd.f32 %v577, %v593
  %v610 = vadd.f32 %v578, %v594
  %v611 = vadd.f32 %v579, %v595
  %v612 = vadd.f32 %v580, %v596
  %v613 = vadd.f32 %v581, %v597
  %v614 = vmax.f32 %v598, 0.0
  %v615 = vmax.f32 %v599, 0.0
  %v616 = vmax.f32 %v600, 0.0
  %v617 = vmax.f32 %v601, 0.0
  %v618 = vmax.f32 %v602, 0.0
  %v619 = vmax.f32 %v603, 0.0
  %v620 = vmax.f32 %v604, 0.0
  %v621 = vmax.f32 %v605, 0.0
  %v622 = vmax.f32 %v606, 0.0
  %v623 = vmax.f32 %v607, 0.0
  %v624 = vmax.f32 %v608, 0.0
  %v625 = vmax.f32 %v609, 0.0
  %v626 = vmax.f32 %v610, 0.0
  %v627 = vmax.f32 %v611, 0.0
  %v628 = vmax.f32 %v612, 0.0
  %v629 = vmax.f32 %v613, 0.0
  %630 = vst [vmem:[%s4] sm:$0xff] %v614
  %631 = vst [vmem:[%s4 + $0x8] sm:$0xff] %v615
  %632 = vst [vmem:[%s4 + $0x10] sm:$0xff] %v616
  %633 = vst [vmem:[%s4 + $0x18] sm:$0xff] %v617
  %634 = vst [vmem:[%s4 + $0x20] sm:$0xff] %v618
  %635 = vst [vmem:[%s4 + $0x28] sm:$0xff] %v619
  %636 = vst [vmem:[%s4 + $0x30] sm:$0xff] %v620
  %637 = vst [vmem:[%s4 + $0x38] sm:$0xff] %v621
  %638 = vst [vmem:[%s4 + $0x40] sm:$0xff] %v622
  %639 = vst [vmem:[%s4 + $0x48] sm:$0xff] %v623
  %640 = vst [vmem:[%s4 + $0x50] sm:$0xff] %v624
  %641 = vst [vmem:[%s4 + $0x58] sm:$0xff] %v625
  %642 = vst [vmem:[%s4 + $0x60] sm:$0xff] %v626
  %643 = vst [vmem:[%s4 + $0x68] sm:$0xff] %v627
  %644 = vst [vmem:[%s4 + $0x70] sm:$0xff] %v628
  %645 = vst [vmem:[%s4 + $0x78] sm:$0xff] %v629
  // Predicated region
  $region18: #{mustafa_forward.15} parent=0 // pred_check
    _
  $region19: #{mustafa_forward.15} parent=0 // pred_check_branch
    %647 = sbr.rel (0) target = $region21
  $region20: #{mustafa_forward.15} parent=0 // pred_region
    _
  $region21: #{mustafa_forward.15} parent=0 // pred_fallthru
    _
  // Predicated region
  $region22: #{mustafa_forward.15} parent=0 // pred_check
    _
  $region23: #{mustafa_forward.15} parent=0 // pred_check_branch
    %649 = sbr.rel (0) target = $region25
  $region24: #{mustafa_forward.15} parent=0 // pred_region
    _
  $region25: #{mustafa_forward.15} parent=0 // pred_fallthru
    _

// kernel: mustafa_forward.16
$region0: #{mustafa_forward.16}
  #allocation0 [shape = 'u32[]', space=smem, size = 0x4, offset = 0x4, fixed_abs, tag = 'smem constant byte address 0x4 - core index']
  #allocation1 [shape = 'u32[144,128]{1,0:T(1,128)}', space=vmem, size = 0x12000, scoped, tag = 'internal scratch']
  %s0 = inlined_call_operand.vmem [shape: f32[64,288], index: 0, kind: input, shape index: {}]
  %s1 = inlined_call_operand.vmem [shape: f32[288,128], index: 1, kind: input, shape index: {}]
  %s2 = inlined_call_operand.vmem [shape: f32[64,1], index: 2, kind: input, shape index: {}]
  %s3 = inlined_call_operand.vmem [shape: f32[64,128], index: 3, kind: output, shape index: {}]
  %s4 = sld [smem:[#allocation0]]
  $region22: #{mustafa_forward.16} parent=0
    _
  %s6 = ssub.s32 1, %s4
  %s7 = scalar_select 0, %s6, %s4
  // Predicated region
  $region2: #{mustafa_forward.16} parent=0 // pred_check
    _
  $region3: #{mustafa_forward.16} parent=0 // pred_check_branch
    %9 = sbr.rel (0) target = $region5
  $region4: #{mustafa_forward.16} parent=0 // pred_region
    _
  $region5: #{mustafa_forward.16} parent=0 // pred_fallthru
    _
  // Predicated region
  $region6: #{mustafa_forward.16} parent=0 // pred_check
    _
  $region7: #{mustafa_forward.16} parent=0 // pred_check_branch
    %11 = sbr.rel (0) target = $region9
  $region8: #{mustafa_forward.16} parent=0 // pred_region
    _
  $region9: #{mustafa_forward.16} parent=0 // pred_fallthru
    _
  // Predicated region
  $region10: #{mustafa_forward.16} parent=0 // pred_check
    _
  $region11: #{mustafa_forward.16} parent=0 // pred_check_branch
    %13 = sbr.rel (0) target = $region13
  $region12: #{mustafa_forward.16} parent=0 // pred_region
    _
  $region13: #{mustafa_forward.16} parent=0 // pred_fallthru
    _
  %v14 = vld [vmem:[%s0] sm:$0xff]
  %v15 = vld [vmem:[%s0 + $0x8] sm:$0xff]
  %v16 = vld [vmem:[%s0 + $0x10] sm:$0xff]
  %v17 = vld [vmem:[%s0 + $0x18] sm:$0xff]
  %v18 = vld [vmem:[%s0 + $0x20] sm:$0xff]
  %v19 = vld [vmem:[%s0 + $0x28] sm:$0xff]
  %v20 = vld [vmem:[%s0 + $0x30] sm:$0xff]
  %v21 = vld [vmem:[%s0 + $0x38] sm:$0xff]
  %v22 = vld [vmem:[%s0 + $0x40] sm:$0xff]
  %v23 = vld [vmem:[%s0 + $0x48] sm:$0xff]
  %v24 = vld [vmem:[%s0 + $0x50] sm:$0xff]
  %v25 = vld [vmem:[%s0 + $0x58] sm:$0xff]
  %v26 = vld [vmem:[%s0 + $0x60] sm:$0xff]
  %v27 = vld [vmem:[%s0 + $0x68] sm:$0xff]
  %v28 = vld [vmem:[%s0 + $0x70] sm:$0xff]
  %v29 = vld [vmem:[%s0 + $0x78] sm:$0xff]
  %v30 = vld [vmem:[%s0 + $0x80] sm:$0xff]
  %v31 = vld [vmem:[%s0 + $0x88] sm:$0xff]
  %v32 = vld [vmem:[%s0 + $0x90] sm:$0xff]
  %v33 = vld [vmem:[%s0 + $0x98] sm:$0xff]
  %v34 = vld [vmem:[%s0 + $0xa0] sm:$0xff]
  %v35 = vld [vmem:[%s0 + $0xa8] sm:$0xff]
  %v36 = vld [vmem:[%s0 + $0xb0] sm:$0xff]
  %v37 = vld [vmem:[%s0 + $0xb8] sm:$0xff]
  %v38 = vld [vmem:[%s1] sm:$0xff]
  %v39 = vld [vmem:[%s1 + $0x8] sm:$0xff]
  %v40 = vld [vmem:[%s1 + $0x10] sm:$0xff]
  %v41 = vld [vmem:[%s1 + $0x18] sm:$0xff]
  %v42 = vld [vmem:[%s1 + $0x20] sm:$0xff]
  %v43 = vld [vmem:[%s1 + $0x28] sm:$0xff]
  %v44 = vld [vmem:[%s1 + $0x30] sm:$0xff]
  %v45 = vld [vmem:[%s1 + $0x38] sm:$0xff]
  %v46 = vld [vmem:[%s1 + $0x40] sm:$0xff]
  %v47 = vld [vmem:[%s1 + $0x48] sm:$0xff]
  %v48 = vld [vmem:[%s1 + $0x50] sm:$0xff]
  %v49 = vld [vmem:[%s1 + $0x58] sm:$0xff]
  %v50 = vld [vmem:[%s1 + $0x60] sm:$0xff]
  %v51 = vld [vmem:[%s1 + $0x68] sm:$0xff]
  %v52 = vld [vmem:[%s1 + $0x70] sm:$0xff]
  %v53 = vld [vmem:[%s1 + $0x78] sm:$0xff]
  %v54 = vld [vmem:[%s1 + $0x80] sm:$0xff]
  %v55 = vld [vmem:[%s1 + $0x88] sm:$0xff]
  %v56 = vld [vmem:[%s1 + $0x90] sm:$0xff]
  %v57 = vld [vmem:[%s1 + $0x98] sm:$0xff]
  %v58 = vld [vmem:[%s1 + $0xa0] sm:$0xff]
  %v59 = vld [vmem:[%s1 + $0xa8] sm:$0xff]
  %v60 = vld [vmem:[%s1 + $0xb0] sm:$0xff]
  %v61 = vld [vmem:[%s1 + $0xb8] sm:$0xff]
  %v62 = vld [vmem:[%s1 + $0xc0] sm:$0xff]
  %v63 = vld [vmem:[%s1 + $0xc8] sm:$0xff]
  %v64 = vld [vmem:[%s1 + $0xd0] sm:$0xff]
  %v65 = vld [vmem:[%s1 + $0xd8] sm:$0xff]
  %v66 = vld [vmem:[%s1 + $0xe0] sm:$0xff]
  %v67 = vld [vmem:[%s1 + $0xe8] sm:$0xff]
  %v68 = vld [vmem:[%s1 + $0xf0] sm:$0xff]
  %v69 = vld [vmem:[%s1 + $0xf8] sm:$0xff]
  %v70 = vld [vmem:[%s1 + $0x100] sm:$0xff]
  %v71 = vld [vmem:[%s1 + $0x108] sm:$0xff]
  %v72 = vld [vmem:[%s1 + $0x110] sm:$0xff]
  %v73 = vld [vmem:[%s1 + $0x118] sm:$0xff]
  %v74 = vld [vmem:[%s2] sm:$0xff]
  %v75 = vld [vmem:[%s2 + $0x8] sm:$0xff]
  %v76 = vld [vmem:[%s2 + $0x10] sm:$0xff]
  %v77 = vld [vmem:[%s2 + $0x18] sm:$0xff]
  %v78 = vld [vmem:[%s2 + $0x20] sm:$0xff]
  %v79 = vld [vmem:[%s2 + $0x28] sm:$0xff]
  %v80 = vld [vmem:[%s2 + $0x30] sm:$0xff]
  %v81 = vld [vmem:[%s2 + $0x38] sm:$0xff]
  %83 = vset.pattern.permute.xlu0 0
  %84 = vperm.xlu0 %83, %v74
  %v85 = vpop.permute.xlu0 %84
  %88 = vset.pattern.permute.xlu0 0
  %89 = vperm.xlu0 %88, %v75
  %v90 = vpop.permute.xlu0 %89
  %93 = vset.pattern.permute.xlu0 0
  %94 = vperm.xlu0 %93, %v76
  %v95 = vpop.permute.xlu0 %94
  %98 = vset.pattern.permute.xlu0 0
  %99 = vperm.xlu0 %98, %v77
  %v100 = vpop.permute.xlu0 %99
  %103 = vset.pattern.permute.xlu0 0
  %104 = vperm.xlu0 %103, %v78
  %v105 = vpop.permute.xlu0 %104
  %108 = vset.pattern.permute.xlu0 0
  %109 = vperm.xlu0 %108, %v79
  %v110 = vpop.permute.xlu0 %109
  %113 = vset.pattern.permute.xlu0 0
  %114 = vperm.xlu0 %113, %v80
  %v115 = vpop.permute.xlu0 %114
  %118 = vset.pattern.permute.xlu0 0
  %119 = vperm.xlu0 %118, %v81
  %v120 = vpop.permute.xlu0 %119
  %vm122 = vcmask 261120
  %v124 = vsel %vm122, %v16, 0
  %v127 = vsel %vm122, %v19, 0
  %v130 = vsel %vm122, %v22, 0
  %v133 = vsel %vm122, %v25, 0
  %v136 = vsel %vm122, %v28, 0
  %v139 = vsel %vm122, %v31, 0
  %v142 = vsel %vm122, %v34, 0
  %v145 = vsel %vm122, %v37, 0
  %147 = vmatprep.subr.mxu0 0.0
  %148 = vmatpush1.msra.mxu0 %v38
  %149 = vmatprep.subr.mxu0 0.0
  %150 = vmatpush1.msra.mxu0 %v39
  %151 = vmatprep.subr.mxu0 0.0
  %152 = vmatpush1.msra.mxu0 %v40
  %153 = vmatprep.subr.mxu0 0.0
  %154 = vmatpush1.msra.mxu0 %v41
  %155 = vmatprep.subr.mxu0 0.0
  %156 = vmatpush1.msra.mxu0 %v42
  %157 = vmatprep.subr.mxu0 0.0
  %158 = vmatpush1.msra.mxu0 %v43
  %159 = vmatprep.subr.mxu0 0.0
  %160 = vmatpush1.msra.mxu0 %v44
  %161 = vmatprep.subr.mxu0 0.0
  %162 = vmatpush1.msra.mxu0 %v45
  %163 = vmatprep.subr.mxu0 0.0
  %164 = vmatpush1.msra.mxu0 %v46
  %165 = vmatprep.subr.mxu0 0.0
  %166 = vmatpush1.msra.mxu0 %v47
  %167 = vmatprep.subr.mxu0 0.0
  %168 = vmatpush1.msra.mxu0 %v48
  %169 = vmatprep.subr.mxu0 0.0
  %170 = vmatpush1.msra.mxu0 %v49
  %171 = vmatprep.subr.mxu0 0.0
  %172 = vmatpush1.msra.mxu0 %v50
  %173 = vmatprep.subr.mxu0 0.0
  %174 = vmatpush1.msra.mxu0 %v51
  %175 = vmatprep.subr.mxu0 0.0
  %176 = vmatpush1.msra.mxu0 %v52
  %177 = vmatprep.subr.mxu0 0.0
  %178 = vmatpush1.msra.mxu0 %v53
  %179 = vmatprep.subr.mxu0 0.0
  %180 = vmatpush1.msra.mxu0 %v54
  %181 = vmatprep.subr.mxu0 0.0
  %182 = vmatpush1.msra.mxu0 %v55
  %183 = vmatprep.subr.mxu0 0.0
  %184 = vmatpush1.msra.mxu0 %v56
  %185 = vmatprep.subr.mxu0 0.0
  %186 = vmatpush1.msra.mxu0 %v57
  %187 = vmatprep.subr.mxu0 0.0
  %188 = vmatpush1.msra.mxu0 %v58
  %189 = vmatprep.subr.mxu0 0.0
  %190 = vmatpush1.msra.mxu0 %v59
  %191 = vmatprep.subr.mxu0 0.0
  %192 = vmatpush1.msra.mxu0 %v60
  %193 = vmatprep.subr.mxu0 0.0
  %194 = vmatpush1.msra.mxu0 %v61
  %195 = vmatprep.subr.mxu0 0.0
  %196 = vmatpush1.msra.mxu0 %v62
  %197 = vmatprep.subr.mxu0 0.0
  %198 = vmatpush1.msra.mxu0 %v63
  %199 = vmatprep.subr.mxu0 0.0
  %200 = vmatpush1.msra.mxu0 %v64
  %201 = vmatprep.subr.mxu0 0.0
  %202 = vmatpush1.msra.mxu0 %v65
  %203 = vmatprep.subr.mxu0 0.0
  %204 = vmatpush1.msra.mxu0 %v66
  %205 = vmatprep.subr.mxu0 0.0
  %206 = vmatpush1.msra.mxu0 %v67
  %207 = vmatprep.subr.mxu0 0.0
  %208 = vmatpush1.msra.mxu0 %v68
  %209 = vmatprep.subr.mxu0 0.0
  %210 = vmatpush1.msra.mxu0 %v69
  %211 = vmatprep.mubr.f32.mxu0 %v15
  %212 = vmatmul.mubr.f32.gmra.mrb[0].mxu0 %v14
  %v213 = vpop.f32.mrb[0].mxu0
  %v214 = vadd.f32 %v85, %v213
  %v215 = vpop.f32.mrb[0].mxu0
  %216 = vmatprep.mubr.f32.mxu0 %v18
  %217 = vmatmul.mubr.f32.gmra.mrb[0].mxu0 %v17
  %v218 = vpop.f32.mrb[0].mxu0
  %v219 = vadd.f32 %v90, %v218
  %v220 = vpop.f32.mrb[0].mxu0
  %221 = vmatprep.mubr.f32.mxu0 %v21
  %222 = vmatmul.mubr.f32.gmra.mrb[0].mxu0 %v20
  %v223 = vpop.f32.mrb[0].mxu0
  %v224 = vadd.f32 %v95, %v223
  %v225 = vpop.f32.mrb[0].mxu0
  %226 = vmatprep.mubr.f32.mxu0 %v24
  %227 = vmatmul.mubr.f32.gmra.mrb[0].mxu0 %v23
  %v228 = vpop.f32.mrb[0].mxu0
  %v229 = vadd.f32 %v100, %v228
  %v230 = vpop.f32.mrb[0].mxu0
  %231 = vmatprep.mubr.f32.mxu0 %v27
  %232 = vmatmul.mubr.f32.gmra.mrb[0].mxu0 %v26
  %v233 = vpop.f32.mrb[0].mxu0
  %v234 = vadd.f32 %v105, %v233
  %v235 = vpop.f32.mrb[0].mxu0
  %236 = vmatprep.mubr.f32.mxu0 %v30
  %237 = vmatmul.mubr.f32.gmra.mrb[0].mxu0 %v29
  %v238 = vpop.f32.mrb[0].mxu0
  %v239 = vadd.f32 %v110, %v238
  %v240 = vpop.f32.mrb[0].mxu0
  %241 = vmatprep.mubr.f32.mxu0 %v33
  %242 = vmatmul.mubr.f32.gmra.mrb[0].mxu0 %v32
  %v243 = vpop.f32.mrb[0].mxu0
  %v244 = vadd.f32 %v115, %v243
  %v245 = vpop.f32.mrb[0].mxu0
  %246 = vmatprep.mubr.f32.mxu0 %v36
  %247 = vmatmul.mubr.f32.gmra.mrb[0].mxu0 %v35
  %v248 = vpop.f32.mrb[0].mxu0
  %v249 = vadd.f32 %v120, %v248
  %v250 = vpop.f32.mrb[0].mxu0
  %251 = vdwg.mxu0
  %252 = vmatprep.subr.mxu0 0.0
  %253 = vmatpush1.msra.mxu0 %v70
  %254 = vmatprep.subr.mxu0 0.0
  %255 = vmatpush1.msra.mxu0 %v71
  %256 = vmatprep.subr.mxu0 0.0
  %257 = vmatpush1.msra.mxu0 %v72
  %258 = vmatprep.subr.mxu0 0.0
  %259 = vmatpush1.msra.mxu0 %v73
  %260 = vmatprep.subr.mxu0 0.0
  %261 = vmatpush1.msra.mxu0 0.0
  %262 = vmatprep.subr.mxu0 0.0
  %263 = vmatpush1.msra.mxu0 0.0
  %264 = vmatprep.subr.mxu0 0.0
  %265 = vmatpush1.msra.mxu0 0.0
  %266 = vmatprep.subr.mxu0 0.0
  %267 = vmatpush1.msra.mxu0 0.0
  %268 = vmatprep.subr.mxu0 0.0
  %269 = vmatpush1.msra.mxu0 0.0
  %270 = vmatprep.subr.mxu0 0.0
  %271 = vmatpush1.msra.mxu0 0.0
  %272 = vmatprep.subr.mxu0 0.0
  %273 = vmatpush1.msra.mxu0 0.0
  %274 = vmatprep.subr.mxu0 0.0
  %275 = vmatpush1.msra.mxu0 0.0
  %276 = vmatprep.subr.mxu0 0.0
  %277 = vmatpush1.msra.mxu0 0.0
  %278 = vmatprep.subr.mxu0 0.0
  %279 = vmatpush1.msra.mxu0 0.0
  %280 = vmatprep.subr.mxu0 0.0
  %281 = vmatpush1.msra.mxu0 0.0
  %282 = vmatprep.subr.mxu0 0.0
  %283 = vmatpush1.msra.mxu0 0.0
  %284 = vmatprep.subr.mxu0 0.0
  %285 = vmatpush1.msra.mxu0 0.0
  %286 = vmatprep.subr.mxu0 0.0
  %287 = vmatpush1.msra.mxu0 0.0
  %288 = vmatprep.subr.mxu0 0.0
  %289 = vmatpush1.msra.mxu0 0.0
  %290 = vmatprep.subr.mxu0 0.0
  %291 = vmatpush1.msra.mxu0 0.0
  %292 = vmatprep.subr.mxu0 0.0
  %293 = vmatpush1.msra.mxu0 0.0
  %294 = vmatprep.subr.mxu0 0.0
  %295 = vmatpush1.msra.mxu0 0.0
  %296 = vmatprep.subr.mxu0 0.0
  %297 = vmatpush1.msra.mxu0 0.0
  %298 = vmatprep.subr.mxu0 0.0
  %299 = vmatpush1.msra.mxu0 0.0
  %300 = vmatprep.subr.mxu0 0.0
  %301 = vmatpush1.msra.mxu0 0.0
  %302 = vmatprep.subr.mxu0 0.0
  %303 = vmatpush1.msra.mxu0 0.0
  %304 = vmatprep.subr.mxu0 0.0
  %305 = vmatpush1.msra.mxu0 0.0
  %306 = vmatprep.subr.mxu0 0.0
  %307 = vmatpush1.msra.mxu0 0.0
  %308 = vmatprep.subr.mxu0 0.0
  %309 = vmatpush1.msra.mxu0 0.0
  %310 = vmatprep.subr.mxu0 0.0
  %311 = vmatpush1.msra.mxu0 0.0
  %312 = vmatprep.subr.mxu0 0.0
  %313 = vmatpush1.msra.mxu0 0.0
  %314 = vmatprep.subr.mxu0 0.0
  %315 = vmatpush1.msra.mxu0 0.0
  %316 = vmatprep.mubr.f32.mxu0 0.0
  %317 = vmatmul.mubr.f32.gmra.mrb[0].mxu0 %v124
  %v318 = vpop.f32.mrb[0].mxu0
  %v319 = vadd.f32 %v214, %v318
  %v320 = vpop.f32.mrb[0].mxu0
  %321 = vmatprep.mubr.f32.mxu0 0.0
  %322 = vmatmul.mubr.f32.gmra.mrb[0].mxu0 %v127
  %v323 = vpop.f32.mrb[0].mxu0
  %v324 = vadd.f32 %v219, %v323
  %v325 = vpop.f32.mrb[0].mxu0
  %326 = vmatprep.mubr.f32.mxu0 0.0
  %327 = vmatmul.mubr.f32.gmra.mrb[0].mxu0 %v130
  %v328 = vpop.f32.mrb[0].mxu0
  %v329 = vadd.f32 %v224, %v328
  %v330 = vpop.f32.mrb[0].mxu0
  %331 = vmatprep.mubr.f32.mxu0 0.0
  %332 = vmatmul.mubr.f32.gmra.mrb[0].mxu0 %v133
  %v333 = vpop.f32.mrb[0].mxu0
  %v334 = vadd.f32 %v229, %v333
  %v335 = vpop.f32.mrb[0].mxu0
  %336 = vmatprep.mubr.f32.mxu0 0.0
  %337 = vmatmul.mubr.f32.gmra.mrb[0].mxu0 %v136
  %v338 = vpop.f32.mrb[0].mxu0
  %v339 = vadd.f32 %v234, %v338
  %v340 = vpop.f32.mrb[0].mxu0
  %341 = vmatprep.mubr.f32.mxu0 0.0
  %342 = vmatmul.mubr.f32.gmra.mrb[0].mxu0 %v139
  %v343 = vpop.f32.mrb[0].mxu0
  %v344 = vadd.f32 %v239, %v343
  %v345 = vpop.f32.mrb[0].mxu0
  %346 = vmatprep.mubr.f32.mxu0 0.0
  %347 = vmatmul.mubr.f32.gmra.mrb[0].mxu0 %v142
  %v348 = vpop.f32.mrb[0].mxu0
  %v349 = vadd.f32 %v244, %v348
  %v350 = vpop.f32.mrb[0].mxu0
  %351 = vmatprep.mubr.f32.mxu0 0.0
  %352 = vmatmul.mubr.f32.gmra.mrb[0].mxu0 %v145
  %v353 = vpop.f32.mrb[0].mxu0
  %v354 = vadd.f32 %v249, %v353
  %v355 = vpop.f32.mrb[0].mxu0
  %356 = vdwg.mxu0
  %v357 = vmax.f32 %v319, 0.0
  %v358 = vmax.f32 %v324, 0.0
  %v359 = vmax.f32 %v329, 0.0
  %v360 = vmax.f32 %v334, 0.0
  %v361 = vmax.f32 %v339, 0.0
  %v362 = vmax.f32 %v344, 0.0
  %v363 = vmax.f32 %v349, 0.0
  %v364 = vmax.f32 %v354, 0.0
  %365 = vst [vmem:[%s3] sm:$0xff] %v357
  %366 = vst [vmem:[%s3 + $0x8] sm:$0xff] %v358
  %367 = vst [vmem:[%s3 + $0x10] sm:$0xff] %v359
  %368 = vst [vmem:[%s3 + $0x18] sm:$0xff] %v360
  %369 = vst [vmem:[%s3 + $0x20] sm:$0xff] %v361
  %370 = vst [vmem:[%s3 + $0x28] sm:$0xff] %v362
  %371 = vst [vmem:[%s3 + $0x30] sm:$0xff] %v363
  %372 = vst [vmem:[%s3 + $0x38] sm:$0xff] %v364
  // Predicated region
  $region14: #{mustafa_forward.16} parent=0 // pred_check
    _
  $region15: #{mustafa_forward.16} parent=0 // pred_check_branch
    %374 = sbr.rel (0) target = $region17
  $region16: #{mustafa_forward.16} parent=0 // pred_region
    _
  $region17: #{mustafa_forward.16} parent=0 // pred_fallthru
    _
  // Predicated region
  $region18: #{mustafa_forward.16} parent=0 // pred_check
    _
  $region19: #{mustafa_forward.16} parent=0 // pred_check_branch
    %376 = sbr.rel (0) target = $region21
  $region20: #{mustafa_forward.16} parent=0 // pred_region
    _
  $region21: #{mustafa_forward.16} parent=0 // pred_fallthru
    _

// kernel: mustafa_forward.17
$region0: #{mustafa_forward.17}
  #allocation0 [shape = 'u32[]', space=smem, size = 0x4, offset = 0x4, fixed_abs, tag = 'smem constant byte address 0x4 - core index']
  #allocation1 [shape = 'u32[144,128]{1,0:T(1,128)}', space=vmem, size = 0x12000, scoped, tag = 'internal scratch']
  %s0 = inlined_call_operand.vmem [shape: f32[64,32], index: 0, kind: input, shape index: {}]
  %s1 = inlined_call_operand.vmem [shape: f32[32,128], index: 1, kind: input, shape index: {}]
  %s2 = inlined_call_operand.vmem [shape: f32[64,1], index: 2, kind: input, shape index: {}]
  %s3 = inlined_call_operand.vmem [shape: f32[64,128], index: 3, kind: output, shape index: {}]
  %s4 = sld [smem:[#allocation0]]
  $region22: #{mustafa_forward.17} parent=0
    _
  %s6 = ssub.s32 1, %s4
  %s7 = scalar_select 0, %s6, %s4
  // Predicated region
  $region2: #{mustafa_forward.17} parent=0 // pred_check
    _
  $region3: #{mustafa_forward.17} parent=0 // pred_check_branch
    %9 = sbr.rel (0) target = $region5
  $region4: #{mustafa_forward.17} parent=0 // pred_region
    _
  $region5: #{mustafa_forward.17} parent=0 // pred_fallthru
    _
  // Predicated region
  $region6: #{mustafa_forward.17} parent=0 // pred_check
    _
  $region7: #{mustafa_forward.17} parent=0 // pred_check_branch
    %11 = sbr.rel (0) target = $region9
  $region8: #{mustafa_forward.17} parent=0 // pred_region
    _
  $region9: #{mustafa_forward.17} parent=0 // pred_fallthru
    _
  // Predicated region
  $region10: #{mustafa_forward.17} parent=0 // pred_check
    _
  $region11: #{mustafa_forward.17} parent=0 // pred_check_branch
    %13 = sbr.rel (0) target = $region13
  $region12: #{mustafa_forward.17} parent=0 // pred_region
    _
  $region13: #{mustafa_forward.17} parent=0 // pred_fallthru
    _
  %v14 = vld [vmem:[%s0] sm:$0xff]
  %v15 = vld [vmem:[%s0 + $0x8] sm:$0xff]
  %v16 = vld [vmem:[%s0 + $0x10] sm:$0xff]
  %v17 = vld [vmem:[%s0 + $0x18] sm:$0xff]
  %v18 = vld [vmem:[%s0 + $0x20] sm:$0xff]
  %v19 = vld [vmem:[%s0 + $0x28] sm:$0xff]
  %v20 = vld [vmem:[%s0 + $0x30] sm:$0xff]
  %v21 = vld [vmem:[%s0 + $0x38] sm:$0xff]
  %v22 = vld [vmem:[%s1] sm:$0xff]
  %v23 = vld [vmem:[%s1 + $0x8] sm:$0xff]
  %v24 = vld [vmem:[%s1 + $0x10] sm:$0xff]
  %v25 = vld [vmem:[%s1 + $0x18] sm:$0xff]
  %v26 = vld [vmem:[%s2] sm:$0xff]
  %v27 = vld [vmem:[%s2 + $0x8] sm:$0xff]
  %v28 = vld [vmem:[%s2 + $0x10] sm:$0xff]
  %v29 = vld [vmem:[%s2 + $0x18] sm:$0xff]
  %v30 = vld [vmem:[%s2 + $0x20] sm:$0xff]
  %v31 = vld [vmem:[%s2 + $0x28] sm:$0xff]
  %v32 = vld [vmem:[%s2 + $0x30] sm:$0xff]
  %v33 = vld [vmem:[%s2 + $0x38] sm:$0xff]
  %35 = vset.pattern.permute.xlu0 0
  %36 = vperm.xlu0 %35, %v26
  %v37 = vpop.permute.xlu0 %36
  %40 = vset.pattern.permute.xlu0 0
  %41 = vperm.xlu0 %40, %v27
  %v42 = vpop.permute.xlu0 %41
  %45 = vset.pattern.permute.xlu0 0
  %46 = vperm.xlu0 %45, %v28
  %v47 = vpop.permute.xlu0 %46
  %50 = vset.pattern.permute.xlu0 0
  %51 = vperm.xlu0 %50, %v29
  %v52 = vpop.permute.xlu0 %51
  %55 = vset.pattern.permute.xlu0 0
  %56 = vperm.xlu0 %55, %v30
  %v57 = vpop.permute.xlu0 %56
  %60 = vset.pattern.permute.xlu0 0
  %61 = vperm.xlu0 %60, %v31
  %v62 = vpop.permute.xlu0 %61
  %65 = vset.pattern.permute.xlu0 0
  %66 = vperm.xlu0 %65, %v32
  %v67 = vpop.permute.xlu0 %66
  %70 = vset.pattern.permute.xlu0 0
  %71 = vperm.xlu0 %70, %v33
  %v72 = vpop.permute.xlu0 %71
  %vm74 = vcmask 261120
  %v76 = vsel %vm74, %v14, 0
  %v79 = vsel %vm74, %v15, 0
  %v82 = vsel %vm74, %v16, 0
  %v85 = vsel %vm74, %v17, 0
  %v88 = vsel %vm74, %v18, 0
  %v91 = vsel %vm74, %v19, 0
  %v94 = vsel %vm74, %v20, 0
  %v97 = vsel %vm74, %v21, 0
  %99 = vmatprep.subr.mxu0 0.0
  %100 = vmatpush1.msra.mxu0 %v22
  %101 = vmatprep.subr.mxu0 0.0
  %102 = vmatpush1.msra.mxu0 %v23
  %103 = vmatprep.subr.mxu0 0.0
  %104 = vmatpush1.msra.mxu0 %v24
  %105 = vmatprep.subr.mxu0 0.0
  %106 = vmatpush1.msra.mxu0 %v25
  %107 = vmatprep.subr.mxu0 0.0
  %108 = vmatpush1.msra.mxu0 0.0
  %109 = vmatprep.subr.mxu0 0.0
  %110 = vmatpush1.msra.mxu0 0.0
  %111 = vmatprep.subr.mxu0 0.0
  %112 = vmatpush1.msra.mxu0 0.0
  %113 = vmatprep.subr.mxu0 0.0
  %114 = vmatpush1.msra.mxu0 0.0
  %115 = vmatprep.subr.mxu0 0.0
  %116 = vmatpush1.msra.mxu0 0.0
  %117 = vmatprep.subr.mxu0 0.0
  %118 = vmatpush1.msra.mxu0 0.0
  %119 = vmatprep.subr.mxu0 0.0
  %120 = vmatpush1.msra.mxu0 0.0
  %121 = vmatprep.subr.mxu0 0.0
  %122 = vmatpush1.msra.mxu0 0.0
  %123 = vmatprep.subr.mxu0 0.0
  %124 = vmatpush1.msra.mxu0 0.0
  %125 = vmatprep.subr.mxu0 0.0
  %126 = vmatpush1.msra.mxu0 0.0
  %127 = vmatprep.subr.mxu0 0.0
  %128 = vmatpush1.msra.mxu0 0.0
  %129 = vmatprep.subr.mxu0 0.0
  %130 = vmatpush1.msra.mxu0 0.0
  %131 = vmatprep.subr.mxu0 0.0
  %132 = vmatpush1.msra.mxu0 0.0
  %133 = vmatprep.subr.mxu0 0.0
  %134 = vmatpush1.msra.mxu0 0.0
  %135 = vmatprep.subr.mxu0 0.0
  %136 = vmatpush1.msra.mxu0 0.0
  %137 = vmatprep.subr.mxu0 0.0
  %138 = vmatpush1.msra.mxu0 0.0
  %139 = vmatprep.subr.mxu0 0.0
  %140 = vmatpush1.msra.mxu0 0.0
  %141 = vmatprep.subr.mxu0 0.0
  %142 = vmatpush1.msra.mxu0 0.0
  %143 = vmatprep.subr.mxu0 0.0
  %144 = vmatpush1.msra.mxu0 0.0
  %145 = vmatprep.subr.mxu0 0.0
  %146 = vmatpush1.msra.mxu0 0.0
  %147 = vmatprep.subr.mxu0 0.0
  %148 = vmatpush1.msra.mxu0 0.0
  %149 = vmatprep.subr.mxu0 0.0
  %150 = vmatpush1.msra.mxu0 0.0
  %151 = vmatprep.subr.mxu0 0.0
  %152 = vmatpush1.msra.mxu0 0.0
  %153 = vmatprep.subr.mxu0 0.0
  %154 = vmatpush1.msra.mxu0 0.0
  %155 = vmatprep.subr.mxu0 0.0
  %156 = vmatpush1.msra.mxu0 0.0
  %157 = vmatprep.subr.mxu0 0.0
  %158 = vmatpush1.msra.mxu0 0.0
  %159 = vmatprep.subr.mxu0 0.0
  %160 = vmatpush1.msra.mxu0 0.0
  %161 = vmatprep.subr.mxu0 0.0
  %162 = vmatpush1.msra.mxu0 0.0
  %163 = vmatprep.mubr.f32.mxu0 0.0
  %164 = vmatmul.mubr.f32.gmra.mrb[0].mxu0 %v76
  %v165 = vpop.f32.mrb[0].mxu0
  %v166 = vadd.f32 %v37, %v165
  %v167 = vpop.f32.mrb[0].mxu0
  %168 = vmatprep.mubr.f32.mxu0 0.0
  %169 = vmatmul.mubr.f32.gmra.mrb[0].mxu0 %v79
  %v170 = vpop.f32.mrb[0].mxu0
  %v171 = vadd.f32 %v42, %v170
  %v172 = vpop.f32.mrb[0].mxu0
  %173 = vmatprep.mubr.f32.mxu0 0.0
  %174 = vmatmul.mubr.f32.gmra.mrb[0].mxu0 %v82
  %v175 = vpop.f32.mrb[0].mxu0
  %v176 = vadd.f32 %v47, %v175
  %v177 = vpop.f32.mrb[0].mxu0
  %178 = vmatprep.mubr.f32.mxu0 0.0
  %179 = vmatmul.mubr.f32.gmra.mrb[0].mxu0 %v85
  %v180 = vpop.f32.mrb[0].mxu0
  %v181 = vadd.f32 %v52, %v180
  %v182 = vpop.f32.mrb[0].mxu0
  %183 = vmatprep.mubr.f32.mxu0 0.0
  %184 = vmatmul.mubr.f32.gmra.mrb[0].mxu0 %v88
  %v185 = vpop.f32.mrb[0].mxu0
  %v186 = vadd.f32 %v57, %v185
  %v187 = vpop.f32.mrb[0].mxu0
  %188 = vmatprep.mubr.f32.mxu0 0.0
  %189 = vmatmul.mubr.f32.gmra.mrb[0].mxu0 %v91
  %v190 = vpop.f32.mrb[0].mxu0
  %v191 = vadd.f32 %v62, %v190
  %v192 = vpop.f32.mrb[0].mxu0
  %193 = vmatprep.mubr.f32.mxu0 0.0
  %194 = vmatmul.mubr.f32.gmra.mrb[0].mxu0 %v94
  %v195 = vpop.f32.mrb[0].mxu0
  %v196 = vadd.f32 %v67, %v195
  %v197 = vpop.f32.mrb[0].mxu0
  %198 = vmatprep.mubr.f32.mxu0 0.0
  %199 = vmatmul.mubr.f32.gmra.mrb[0].mxu0 %v97
  %v200 = vpop.f32.mrb[0].mxu0
  %v201 = vadd.f32 %v72, %v200
  %v202 = vpop.f32.mrb[0].mxu0
  %203 = vdwg.mxu0
  %204 = vst [vmem:[%s3] sm:$0xff] %v166
  %205 = vst [vmem:[%s3 + $0x8] sm:$0xff] %v171
  %206 = vst [vmem:[%s3 + $0x10] sm:$0xff] %v176
  %207 = vst [vmem:[%s3 + $0x18] sm:$0xff] %v181
  %208 = vst [vmem:[%s3 + $0x20] sm:$0xff] %v186
  %209 = vst [vmem:[%s3 + $0x28] sm:$0xff] %v191
  %210 = vst [vmem:[%s3 + $0x30] sm:$0xff] %v196
  %211 = vst [vmem:[%s3 + $0x38] sm:$0xff] %v201
  // Predicated region
  $region14: #{mustafa_forward.17} parent=0 // pred_check
    _
  $region15: #{mustafa_forward.17} parent=0 // pred_check_branch
    %213 = sbr.rel (0) target = $region17
  $region16: #{mustafa_forward.17} parent=0 // pred_region
    _
  $region17: #{mustafa_forward.17} parent=0 // pred_fallthru
    _
  // Predicated region
  $region18: #{mustafa_forward.17} parent=0 // pred_check
    _
  $region19: #{mustafa_forward.17} parent=0 // pred_check_branch
    %215 = sbr.rel (0) target = $region21
  $region20: #{mustafa_forward.17} parent=0 // pred_region
    _
  $region21: #{mustafa_forward.17} parent=0 // pred_fallthru
    _

// kernel: mustafa_forward.18
$region0: #{mustafa_forward.18}
  #allocation0 [shape = 'u32[]', space=smem, size = 0x4, offset = 0x4, fixed_abs, tag = 'smem constant byte address 0x4 - core index']
  #allocation1 [shape = 'u32[144,128]{1,0:T(1,128)}', space=vmem, size = 0x12000, scoped, tag = 'internal scratch']
  %s0 = inlined_call_operand.vmem [shape: f32[64,576], index: 0, kind: input, shape index: {}]
  %s1 = inlined_call_operand.vmem [shape: f32[576,128], index: 1, kind: input, shape index: {}]
  %s2 = inlined_call_operand.vmem [shape: f32[64,1], index: 2, kind: input, shape index: {}]
  %s3 = inlined_call_operand.vmem [shape: f32[64,128], index: 3, kind: input, shape index: {}]
  %s4 = inlined_call_operand.vmem [shape: f32[64,128], index: 4, kind: output, shape index: {}]
  %s5 = sld [smem:[#allocation0]]
  $region26: #{mustafa_forward.18} parent=0
    _
  %s7 = ssub.s32 1, %s5
  %s8 = scalar_select 0, %s7, %s5
  // Predicated region
  $region2: #{mustafa_forward.18} parent=0 // pred_check
    _
  $region3: #{mustafa_forward.18} parent=0 // pred_check_branch
    %10 = sbr.rel (0) target = $region5
  $region4: #{mustafa_forward.18} parent=0 // pred_region
    _
  $region5: #{mustafa_forward.18} parent=0 // pred_fallthru
    _
  // Predicated region
  $region6: #{mustafa_forward.18} parent=0 // pred_check
    _
  $region7: #{mustafa_forward.18} parent=0 // pred_check_branch
    %12 = sbr.rel (0) target = $region9
  $region8: #{mustafa_forward.18} parent=0 // pred_region
    _
  $region9: #{mustafa_forward.18} parent=0 // pred_fallthru
    _
  // Predicated region
  $region10: #{mustafa_forward.18} parent=0 // pred_check
    _
  $region11: #{mustafa_forward.18} parent=0 // pred_check_branch
    %14 = sbr.rel (0) target = $region13
  $region12: #{mustafa_forward.18} parent=0 // pred_region
    _
  $region13: #{mustafa_forward.18} parent=0 // pred_fallthru
    _
  // Predicated region
  $region14: #{mustafa_forward.18} parent=0 // pred_check
    _
  $region15: #{mustafa_forward.18} parent=0 // pred_check_branch
    %16 = sbr.rel (0) target = $region17
  $region16: #{mustafa_forward.18} parent=0 // pred_region
    _
  $region17: #{mustafa_forward.18} parent=0 // pred_fallthru
    _
  %v17 = vld [vmem:[%s0] sm:$0xff]
  %v18 = vld [vmem:[%s0 + $0x8] sm:$0xff]
  %v19 = vld [vmem:[%s0 + $0x10] sm:$0xff]
  %v20 = vld [vmem:[%s0 + $0x18] sm:$0xff]
  %v21 = vld [vmem:[%s0 + $0x20] sm:$0xff]
  %v22 = vld [vmem:[%s0 + $0x28] sm:$0xff]
  %v23 = vld [vmem:[%s0 + $0x30] sm:$0xff]
  %v24 = vld [vmem:[%s0 + $0x38] sm:$0xff]
  %v25 = vld [vmem:[%s0 + $0x40] sm:$0xff]
  %v26 = vld [vmem:[%s0 + $0x48] sm:$0xff]
  %v27 = vld [vmem:[%s0 + $0x50] sm:$0xff]
  %v28 = vld [vmem:[%s0 + $0x58] sm:$0xff]
  %v29 = vld [vmem:[%s0 + $0x60] sm:$0xff]
  %v30 = vld [vmem:[%s0 + $0x68] sm:$0xff]
  %v31 = vld [vmem:[%s0 + $0x70] sm:$0xff]
  %v32 = vld [vmem:[%s0 + $0x78] sm:$0xff]
  %v33 = vld [vmem:[%s0 + $0x80] sm:$0xff]
  %v34 = vld [vmem:[%s0 + $0x88] sm:$0xff]
  %v35 = vld [vmem:[%s0 + $0x90] sm:$0xff]
  %v36 = vld [vmem:[%s0 + $0x98] sm:$0xff]
  %v37 = vld [vmem:[%s0 + $0xa0] sm:$0xff]
  %v38 = vld [vmem:[%s0 + $0xa8] sm:$0xff]
  %v39 = vld [vmem:[%s0 + $0xb0] sm:$0xff]
  %v40 = vld [vmem:[%s0 + $0xb8] sm:$0xff]
  %v41 = vld [vmem:[%s0 + $0xc0] sm:$0xff]
  %v42 = vld [vmem:[%s0 + $0xc8] sm:$0xff]
  %v43 = vld [vmem:[%s0 + $0xd0] sm:$0xff]
  %v44 = vld [vmem:[%s0 + $0xd8] sm:$0xff]
  %v45 = vld [vmem:[%s0 + $0xe0] sm:$0xff]
  %v46 = vld [vmem:[%s0 + $0xe8] sm:$0xff]
  %v47 = vld [vmem:[%s0 + $0xf0] sm:$0xff]
  %v48 = vld [vmem:[%s0 + $0xf8] sm:$0xff]
  %v49 = vld [vmem:[%s0 + $0x100] sm:$0xff]
  %v50 = vld [vmem:[%s0 + $0x108] sm:$0xff]
  %v51 = vld [vmem:[%s0 + $0x110] sm:$0xff]
  %v52 = vld [vmem:[%s0 + $0x118] sm:$0xff]
  %v53 = vld [vmem:[%s0 + $0x120] sm:$0xff]
  %v54 = vld [vmem:[%s0 + $0x128] sm:$0xff]
  %v55 = vld [vmem:[%s0 + $0x130] sm:$0xff]
  %v56 = vld [vmem:[%s0 + $0x138] sm:$0xff]
  %v57 = vld [vmem:[%s1] sm:$0xff]
  %v58 = vld [vmem:[%s1 + $0x8] sm:$0xff]
  %v59 = vld [vmem:[%s1 + $0x10] sm:$0xff]
  %v60 = vld [vmem:[%s1 + $0x18] sm:$0xff]
  %v61 = vld [vmem:[%s1 + $0x20] sm:$0xff]
  %v62 = vld [vmem:[%s1 + $0x28] sm:$0xff]
  %v63 = vld [vmem:[%s1 + $0x30] sm:$0xff]
  %v64 = vld [vmem:[%s1 + $0x38] sm:$0xff]
  %v65 = vld [vmem:[%s1 + $0x40] sm:$0xff]
  %v66 = vld [vmem:[%s1 + $0x48] sm:$0xff]
  %v67 = vld [vmem:[%s1 + $0x50] sm:$0xff]
  %v68 = vld [vmem:[%s1 + $0x58] sm:$0xff]
  %v69 = vld [vmem:[%s1 + $0x60] sm:$0xff]
  %v70 = vld [vmem:[%s1 + $0x68] sm:$0xff]
  %v71 = vld [vmem:[%s1 + $0x70] sm:$0xff]
  %v72 = vld [vmem:[%s1 + $0x78] sm:$0xff]
  %v73 = vld [vmem:[%s1 + $0x80] sm:$0xff]
  %v74 = vld [vmem:[%s1 + $0x88] sm:$0xff]
  %v75 = vld [vmem:[%s1 + $0x90] sm:$0xff]
  %v76 = vld [vmem:[%s1 + $0x98] sm:$0xff]
  %v77 = vld [vmem:[%s1 + $0xa0] sm:$0xff]
  %v78 = vld [vmem:[%s1 + $0xa8] sm:$0xff]
  %v79 = vld [vmem:[%s1 + $0xb0] sm:$0xff]
  %v80 = vld [vmem:[%s1 + $0xb8] sm:$0xff]
  %v81 = vld [vmem:[%s1 + $0xc0] sm:$0xff]
  %v82 = vld [vmem:[%s1 + $0xc8] sm:$0xff]
  %v83 = vld [vmem:[%s1 + $0xd0] sm:$0xff]
  %v84 = vld [vmem:[%s1 + $0xd8] sm:$0xff]
  %v85 = vld [vmem:[%s1 + $0xe0] sm:$0xff]
  %v86 = vld [vmem:[%s1 + $0xe8] sm:$0xff]
  %v87 = vld [vmem:[%s1 + $0xf0] sm:$0xff]
  %v88 = vld [vmem:[%s1 + $0xf8] sm:$0xff]
  %v89 = vld [vmem:[%s1 + $0x100] sm:$0xff]
  %v90 = vld [vmem:[%s1 + $0x108] sm:$0xff]
  %v91 = vld [vmem:[%s1 + $0x110] sm:$0xff]
  %v92 = vld [vmem:[%s1 + $0x118] sm:$0xff]
  %v93 = vld [vmem:[%s1 + $0x120] sm:$0xff]
  %v94 = vld [vmem:[%s1 + $0x128] sm:$0xff]
  %v95 = vld [vmem:[%s1 + $0x130] sm:$0xff]
  %v96 = vld [vmem:[%s1 + $0x138] sm:$0xff]
  %v97 = vld [vmem:[%s1 + $0x140] sm:$0xff]
  %v98 = vld [vmem:[%s1 + $0x148] sm:$0xff]
  %v99 = vld [vmem:[%s1 + $0x150] sm:$0xff]
  %v100 = vld [vmem:[%s1 + $0x158] sm:$0xff]
  %v101 = vld [vmem:[%s1 + $0x160] sm:$0xff]
  %v102 = vld [vmem:[%s1 + $0x168] sm:$0xff]
  %v103 = vld [vmem:[%s1 + $0x170] sm:$0xff]
  %v104 = vld [vmem:[%s1 + $0x178] sm:$0xff]
  %v105 = vld [vmem:[%s1 + $0x180] sm:$0xff]
  %v106 = vld [vmem:[%s1 + $0x188] sm:$0xff]
  %v107 = vld [vmem:[%s1 + $0x190] sm:$0xff]
  %v108 = vld [vmem:[%s1 + $0x198] sm:$0xff]
  %v109 = vld [vmem:[%s1 + $0x1a0] sm:$0xff]
  %v110 = vld [vmem:[%s1 + $0x1a8] sm:$0xff]
  %v111 = vld [vmem:[%s1 + $0x1b0] sm:$0xff]
  %v112 = vld [vmem:[%s1 + $0x1b8] sm:$0xff]
  %v113 = vld [vmem:[%s1 + $0x1c0] sm:$0xff]
  %v114 = vld [vmem:[%s1 + $0x1c8] sm:$0xff]
  %v115 = vld [vmem:[%s1 + $0x1d0] sm:$0xff]
  %v116 = vld [vmem:[%s1 + $0x1d8] sm:$0xff]
  %v117 = vld [vmem:[%s1 + $0x1e0] sm:$0xff]
  %v118 = vld [vmem:[%s1 + $0x1e8] sm:$0xff]
  %v119 = vld [vmem:[%s1 + $0x1f0] sm:$0xff]
  %v120 = vld [vmem:[%s1 + $0x1f8] sm:$0xff]
  %v121 = vld [vmem:[%s1 + $0x200] sm:$0xff]
  %v122 = vld [vmem:[%s1 + $0x208] sm:$0xff]
  %v123 = vld [vmem:[%s1 + $0x210] sm:$0xff]
  %v124 = vld [vmem:[%s1 + $0x218] sm:$0xff]
  %v125 = vld [vmem:[%s1 + $0x220] sm:$0xff]
  %v126 = vld [vmem:[%s1 + $0x228] sm:$0xff]
  %v127 = vld [vmem:[%s1 + $0x230] sm:$0xff]
  %v128 = vld [vmem:[%s1 + $0x238] sm:$0xff]
  %v129 = vld [vmem:[%s2] sm:$0xff]
  %v130 = vld [vmem:[%s2 + $0x8] sm:$0xff]
  %v131 = vld [vmem:[%s2 + $0x10] sm:$0xff]
  %v132 = vld [vmem:[%s2 + $0x18] sm:$0xff]
  %v133 = vld [vmem:[%s2 + $0x20] sm:$0xff]
  %v134 = vld [vmem:[%s2 + $0x28] sm:$0xff]
  %v135 = vld [vmem:[%s2 + $0x30] sm:$0xff]
  %v136 = vld [vmem:[%s2 + $0x38] sm:$0xff]
  %138 = vset.pattern.permute.xlu0 0
  %139 = vperm.xlu0 %138, %v129
  %v140 = vpop.permute.xlu0 %139
  %143 = vset.pattern.permute.xlu0 0
  %144 = vperm.xlu0 %143, %v130
  %v145 = vpop.permute.xlu0 %144
  %148 = vset.pattern.permute.xlu0 0
  %149 = vperm.xlu0 %148, %v131
  %v150 = vpop.permute.xlu0 %149
  %153 = vset.pattern.permute.xlu0 0
  %154 = vperm.xlu0 %153, %v132
  %v155 = vpop.permute.xlu0 %154
  %158 = vset.pattern.permute.xlu0 0
  %159 = vperm.xlu0 %158, %v133
  %v160 = vpop.permute.xlu0 %159
  %163 = vset.pattern.permute.xlu0 0
  %164 = vperm.xlu0 %163, %v134
  %v165 = vpop.permute.xlu0 %164
  %168 = vset.pattern.permute.xlu0 0
  %169 = vperm.xlu0 %168, %v135
  %v170 = vpop.permute.xlu0 %169
  %173 = vset.pattern.permute.xlu0 0
  %174 = vperm.xlu0 %173, %v136
  %v175 = vpop.permute.xlu0 %174
  %vm177 = vcmask 523264
  %v179 = vsel %vm177, %v21, 0
  %v182 = vsel %vm177, %v26, 0
  %v185 = vsel %vm177, %v31, 0
  %v188 = vsel %vm177, %v36, 0
  %v191 = vsel %vm177, %v41, 0
  %v194 = vsel %vm177, %v46, 0
  %v197 = vsel %vm177, %v51, 0
  %v200 = vsel %vm177, %v56, 0
  %202 = vmatprep.subr.mxu0 0.0
  %203 = vmatpush1.msra.mxu0 %v57
  %204 = vmatprep.subr.mxu0 0.0
  %205 = vmatpush1.msra.mxu0 %v58
  %206 = vmatprep.subr.mxu0 0.0
  %207 = vmatpush1.msra.mxu0 %v59
  %208 = vmatprep.subr.mxu0 0.0
  %209 = vmatpush1.msra.mxu0 %v60
  %210 = vmatprep.subr.mxu0 0.0
  %211 = vmatpush1.msra.mxu0 %v61
  %212 = vmatprep.subr.mxu0 0.0
  %213 = vmatpush1.msra.mxu0 %v62
  %214 = vmatprep.subr.mxu0 0.0
  %215 = vmatpush1.msra.mxu0 %v63
  %216 = vmatprep.subr.mxu0 0.0
  %217 = vmatpush1.msra.mxu0 %v64
  %218 = vmatprep.subr.mxu0 0.0
  %219 = vmatpush1.msra.mxu0 %v65
  %220 = vmatprep.subr.mxu0 0.0
  %221 = vmatpush1.msra.mxu0 %v66
  %222 = vmatprep.subr.mxu0 0.0
  %223 = vmatpush1.msra.mxu0 %v67
  %224 = vmatprep.subr.mxu0 0.0
  %225 = vmatpush1.msra.mxu0 %v68
  %226 = vmatprep.subr.mxu0 0.0
  %227 = vmatpush1.msra.mxu0 %v69
  %228 = vmatprep.subr.mxu0 0.0
  %229 = vmatpush1.msra.mxu0 %v70
  %230 = vmatprep.subr.mxu0 0.0
  %231 = vmatpush1.msra.mxu0 %v71
  %232 = vmatprep.subr.mxu0 0.0
  %233 = vmatpush1.msra.mxu0 %v72
  %234 = vmatprep.subr.mxu0 0.0
  %235 = vmatpush1.msra.mxu0 %v73
  %236 = vmatprep.subr.mxu0 0.0
  %237 = vmatpush1.msra.mxu0 %v74
  %238 = vmatprep.subr.mxu0 0.0
  %239 = vmatpush1.msra.mxu0 %v75
  %240 = vmatprep.subr.mxu0 0.0
  %241 = vmatpush1.msra.mxu0 %v76
  %242 = vmatprep.subr.mxu0 0.0
  %243 = vmatpush1.msra.mxu0 %v77
  %244 = vmatprep.subr.mxu0 0.0
  %245 = vmatpush1.msra.mxu0 %v78
  %246 = vmatprep.subr.mxu0 0.0
  %247 = vmatpush1.msra.mxu0 %v79
  %248 = vmatprep.subr.mxu0 0.0
  %249 = vmatpush1.msra.mxu0 %v80
  %250 = vmatprep.subr.mxu0 0.0
  %251 = vmatpush1.msra.mxu0 %v81
  %252 = vmatprep.subr.mxu0 0.0
  %253 = vmatpush1.msra.mxu0 %v82
  %254 = vmatprep.subr.mxu0 0.0
  %255 = vmatpush1.msra.mxu0 %v83
  %256 = vmatprep.subr.mxu0 0.0
  %257 = vmatpush1.msra.mxu0 %v84
  %258 = vmatprep.subr.mxu0 0.0
  %259 = vmatpush1.msra.mxu0 %v85
  %260 = vmatprep.subr.mxu0 0.0
  %261 = vmatpush1.msra.mxu0 %v86
  %262 = vmatprep.subr.mxu0 0.0
  %263 = vmatpush1.msra.mxu0 %v87
  %264 = vmatprep.subr.mxu0 0.0
  %265 = vmatpush1.msra.mxu0 %v88
  %266 = vmatprep.mubr.f32.mxu0 %v18
  %267 = vmatmul.mubr.f32.gmra.mrb[0].mxu0 %v17
  %v268 = vpop.f32.mrb[0].mxu0
  %v269 = vadd.f32 %v140, %v268
  %v270 = vpop.f32.mrb[0].mxu0
  %271 = vmatprep.mubr.f32.mxu0 %v23
  %272 = vmatmul.mubr.f32.gmra.mrb[0].mxu0 %v22
  %v273 = vpop.f32.mrb[0].mxu0
  %v274 = vadd.f32 %v145, %v273
  %v275 = vpop.f32.mrb[0].mxu0
  %276 = vmatprep.mubr.f32.mxu0 %v28
  %277 = vmatmul.mubr.f32.gmra.mrb[0].mxu0 %v27
  %v278 = vpop.f32.mrb[0].mxu0
  %v279 = vadd.f32 %v150, %v278
  %v280 = vpop.f32.mrb[0].mxu0
  %281 = vmatprep.mubr.f32.mxu0 %v33
  %282 = vmatmul.mubr.f32.gmra.mrb[0].mxu0 %v32
  %v283 = vpop.f32.mrb[0].mxu0
  %v284 = vadd.f32 %v155, %v283
  %v285 = vpop.f32.mrb[0].mxu0
  %286 = vmatprep.mubr.f32.mxu0 %v38
  %287 = vmatmul.mubr.f32.gmra.mrb[0].mxu0 %v37
  %v288 = vpop.f32.mrb[0].mxu0
  %v289 = vadd.f32 %v160, %v288
  %v290 = vpop.f32.mrb[0].mxu0
  %291 = vmatprep.mubr.f32.mxu0 %v43
  %292 = vmatmul.mubr.f32.gmra.mrb[0].mxu0 %v42
  %v293 = vpop.f32.mrb[0].mxu0
  %v294 = vadd.f32 %v165, %v293
  %v295 = vpop.f32.mrb[0].mxu0
  %296 = vmatprep.mubr.f32.mxu0 %v48
  %297 = vmatmul.mubr.f32.gmra.mrb[0].mxu0 %v47
  %v298 = vpop.f32.mrb[0].mxu0
  %v299 = vadd.f32 %v170, %v298
  %v300 = vpop.f32.mrb[0].mxu0
  %301 = vmatprep.mubr.f32.mxu0 %v53
  %302 = vmatmul.mubr.f32.gmra.mrb[0].mxu0 %v52
  %v303 = vpop.f32.mrb[0].mxu0
  %v304 = vadd.f32 %v175, %v303
  %v305 = vpop.f32.mrb[0].mxu0
  %306 = vdwg.mxu0
  %307 = vmatprep.subr.mxu0 0.0
  %308 = vmatpush1.msra.mxu0 %v89
  %309 = vmatprep.subr.mxu0 0.0
  %310 = vmatpush1.msra.mxu0 %v90
  %311 = vmatprep.subr.mxu0 0.0
  %312 = vmatpush1.msra.mxu0 %v91
  %313 = vmatprep.subr.mxu0 0.0
  %314 = vmatpush1.msra.mxu0 %v92
  %315 = vmatprep.subr.mxu0 0.0
  %316 = vmatpush1.msra.mxu0 %v93
  %317 = vmatprep.subr.mxu0 0.0
  %318 = vmatpush1.msra.mxu0 %v94
  %319 = vmatprep.subr.mxu0 0.0
  %320 = vmatpush1.msra.mxu0 %v95
  %321 = vmatprep.subr.mxu0 0.0
  %322 = vmatpush1.msra.mxu0 %v96
  %323 = vmatprep.subr.mxu0 0.0
  %324 = vmatpush1.msra.mxu0 %v97
  %325 = vmatprep.subr.mxu0 0.0
  %326 = vmatpush1.msra.mxu0 %v98
  %327 = vmatprep.subr.mxu0 0.0
  %328 = vmatpush1.msra.mxu0 %v99
  %329 = vmatprep.subr.mxu0 0.0
  %330 = vmatpush1.msra.mxu0 %v100
  %331 = vmatprep.subr.mxu0 0.0
  %332 = vmatpush1.msra.mxu0 %v101
  %333 = vmatprep.subr.mxu0 0.0
  %334 = vmatpush1.msra.mxu0 %v102
  %335 = vmatprep.subr.mxu0 0.0
  %336 = vmatpush1.msra.mxu0 %v103
  %337 = vmatprep.subr.mxu0 0.0
  %338 = vmatpush1.msra.mxu0 %v104
  %339 = vmatprep.subr.mxu0 0.0
  %340 = vmatpush1.msra.mxu0 %v105
  %341 = vmatprep.subr.mxu0 0.0
  %342 = vmatpush1.msra.mxu0 %v106
  %343 = vmatprep.subr.mxu0 0.0
  %344 = vmatpush1.msra.mxu0 %v107
  %345 = vmatprep.subr.mxu0 0.0
  %346 = vmatpush1.msra.mxu0 %v108
  %347 = vmatprep.subr.mxu0 0.0
  %348 = vmatpush1.msra.mxu0 %v109
  %349 = vmatprep.subr.mxu0 0.0
  %350 = vmatpush1.msra.mxu0 %v110
  %351 = vmatprep.subr.mxu0 0.0
  %352 = vmatpush1.msra.mxu0 %v111
  %353 = vmatprep.subr.mxu0 0.0
  %354 = vmatpush1.msra.mxu0 %v112
  %355 = vmatprep.subr.mxu0 0.0
  %356 = vmatpush1.msra.mxu0 %v113
  %357 = vmatprep.subr.mxu0 0.0
  %358 = vmatpush1.msra.mxu0 %v114
  %359 = vmatprep.subr.mxu0 0.0
  %360 = vmatpush1.msra.mxu0 %v115
  %361 = vmatprep.subr.mxu0 0.0
  %362 = vmatpush1.msra.mxu0 %v116
  %363 = vmatprep.subr.mxu0 0.0
  %364 = vmatpush1.msra.mxu0 %v117
  %365 = vmatprep.subr.mxu0 0.0
  %366 = vmatpush1.msra.mxu0 %v118
  %367 = vmatprep.subr.mxu0 0.0
  %368 = vmatpush1.msra.mxu0 %v119
  %369 = vmatprep.subr.mxu0 0.0
  %370 = vmatpush1.msra.mxu0 %v120
  %371 = vmatprep.mubr.f32.mxu0 %v20
  %372 = vmatmul.mubr.f32.gmra.mrb[0].mxu0 %v19
  %v373 = vpop.f32.mrb[0].mxu0
  %v374 = vadd.f32 %v269, %v373
  %v375 = vpop.f32.mrb[0].mxu0
  %376 = vmatprep.mubr.f32.mxu0 %v25
  %377 = vmatmul.mubr.f32.gmra.mrb[0].mxu0 %v24
  %v378 = vpop.f32.mrb[0].mxu0
  %v379 = vadd.f32 %v274, %v378
  %v380 = vpop.f32.mrb[0].mxu0
  %381 = vmatprep.mubr.f32.mxu0 %v30
  %382 = vmatmul.mubr.f32.gmra.mrb[0].mxu0 %v29
  %v383 = vpop.f32.mrb[0].mxu0
  %v384 = vadd.f32 %v279, %v383
  %v385 = vpop.f32.mrb[0].mxu0
  %386 = vmatprep.mubr.f32.mxu0 %v35
  %387 = vmatmul.mubr.f32.gmra.mrb[0].mxu0 %v34
  %v388 = vpop.f32.mrb[0].mxu0
  %v389 = vadd.f32 %v284, %v388
  %v390 = vpop.f32.mrb[0].mxu0
  %391 = vmatprep.mubr.f32.mxu0 %v40
  %392 = vmatmul.mubr.f32.gmra.mrb[0].mxu0 %v39
  %v393 = vpop.f32.mrb[0].mxu0
  %v394 = vadd.f32 %v289, %v393
  %v395 = vpop.f32.mrb[0].mxu0
  %396 = vmatprep.mubr.f32.mxu0 %v45
  %397 = vmatmul.mubr.f32.gmra.mrb[0].mxu0 %v44
  %v398 = vpop.f32.mrb[0].mxu0
  %v399 = vadd.f32 %v294, %v398
  %v400 = vpop.f32.mrb[0].mxu0
  %401 = vmatprep.mubr.f32.mxu0 %v50
  %402 = vmatmul.mubr.f32.gmra.mrb[0].mxu0 %v49
  %v403 = vpop.f32.mrb[0].mxu0
  %v404 = vadd.f32 %v299, %v403
  %v405 = vpop.f32.mrb[0].mxu0
  %406 = vmatprep.mubr.f32.mxu0 %v55
  %407 = vmatmul.mubr.f32.gmra.mrb[0].mxu0 %v54
  %v408 = vpop.f32.mrb[0].mxu0
  %v409 = vadd.f32 %v304, %v408
  %v410 = vpop.f32.mrb[0].mxu0
  %411 = vdwg.mxu0
  %412 = vmatprep.subr.mxu0 0.0
  %413 = vmatpush1.msra.mxu0 %v121
  %414 = vmatprep.subr.mxu0 0.0
  %415 = vmatpush1.msra.mxu0 %v122
  %416 = vmatprep.subr.mxu0 0.0
  %417 = vmatpush1.msra.mxu0 %v123
  %418 = vmatprep.subr.mxu0 0.0
  %419 = vmatpush1.msra.mxu0 %v124
  %420 = vmatprep.subr.mxu0 0.0
  %421 = vmatpush1.msra.mxu0 %v125
  %422 = vmatprep.subr.mxu0 0.0
  %423 = vmatpush1.msra.mxu0 %v126
  %424 = vmatprep.subr.mxu0 0.0
  %425 = vmatpush1.msra.mxu0 %v127
  %426 = vmatprep.subr.mxu0 0.0
  %427 = vmatpush1.msra.mxu0 %v128
  %428 = vmatprep.subr.mxu0 0.0
  %429 = vmatpush1.msra.mxu0 0.0
  %430 = vmatprep.subr.mxu0 0.0
  %431 = vmatpush1.msra.mxu0 0.0
  %432 = vmatprep.subr.mxu0 0.0
  %433 = vmatpush1.msra.mxu0 0.0
  %434 = vmatprep.subr.mxu0 0.0
  %435 = vmatpush1.msra.mxu0 0.0
  %436 = vmatprep.subr.mxu0 0.0
  %437 = vmatpush1.msra.mxu0 0.0
  %438 = vmatprep.subr.mxu0 0.0
  %439 = vmatpush1.msra.mxu0 0.0
  %440 = vmatprep.subr.mxu0 0.0
  %441 = vmatpush1.msra.mxu0 0.0
  %442 = vmatprep.subr.mxu0 0.0
  %443 = vmatpush1.msra.mxu0 0.0
  %444 = vmatprep.subr.mxu0 0.0
  %445 = vmatpush1.msra.mxu0 0.0
  %446 = vmatprep.subr.mxu0 0.0
  %447 = vmatpush1.msra.mxu0 0.0
  %448 = vmatprep.subr.mxu0 0.0
  %449 = vmatpush1.msra.mxu0 0.0
  %450 = vmatprep.subr.mxu0 0.0
  %451 = vmatpush1.msra.mxu0 0.0
  %452 = vmatprep.subr.mxu0 0.0
  %453 = vmatpush1.msra.mxu0 0.0
  %454 = vmatprep.subr.mxu0 0.0
  %455 = vmatpush1.msra.mxu0 0.0
  %456 = vmatprep.subr.mxu0 0.0
  %457 = vmatpush1.msra.mxu0 0.0
  %458 = vmatprep.subr.mxu0 0.0
  %459 = vmatpush1.msra.mxu0 0.0
  %460 = vmatprep.subr.mxu0 0.0
  %461 = vmatpush1.msra.mxu0 0.0
  %462 = vmatprep.subr.mxu0 0.0
  %463 = vmatpush1.msra.mxu0 0.0
  %464 = vmatprep.subr.mxu0 0.0
  %465 = vmatpush1.msra.mxu0 0.0
  %466 = vmatprep.subr.mxu0 0.0
  %467 = vmatpush1.msra.mxu0 0.0
  %468 = vmatprep.subr.mxu0 0.0
  %469 = vmatpush1.msra.mxu0 0.0
  %470 = vmatprep.subr.mxu0 0.0
  %471 = vmatpush1.msra.mxu0 0.0
  %472 = vmatprep.subr.mxu0 0.0
  %473 = vmatpush1.msra.mxu0 0.0
  %474 = vmatprep.subr.mxu0 0.0
  %475 = vmatpush1.msra.mxu0 0.0
  %476 = vmatprep.mubr.f32.mxu0 0.0
  %477 = vmatmul.mubr.f32.gmra.mrb[0].mxu0 %v179
  %v478 = vpop.f32.mrb[0].mxu0
  %v479 = vadd.f32 %v374, %v478
  %v480 = vpop.f32.mrb[0].mxu0
  %481 = vmatprep.mubr.f32.mxu0 0.0
  %482 = vmatmul.mubr.f32.gmra.mrb[0].mxu0 %v182
  %v483 = vpop.f32.mrb[0].mxu0
  %v484 = vadd.f32 %v379, %v483
  %v485 = vpop.f32.mrb[0].mxu0
  %486 = vmatprep.mubr.f32.mxu0 0.0
  %487 = vmatmul.mubr.f32.gmra.mrb[0].mxu0 %v185
  %v488 = vpop.f32.mrb[0].mxu0
  %v489 = vadd.f32 %v384, %v488
  %v490 = vpop.f32.mrb[0].mxu0
  %491 = vmatprep.mubr.f32.mxu0 0.0
  %492 = vmatmul.mubr.f32.gmra.mrb[0].mxu0 %v188
  %v493 = vpop.f32.mrb[0].mxu0
  %v494 = vadd.f32 %v389, %v493
  %v495 = vpop.f32.mrb[0].mxu0
  %496 = vmatprep.mubr.f32.mxu0 0.0
  %497 = vmatmul.mubr.f32.gmra.mrb[0].mxu0 %v191
  %v498 = vpop.f32.mrb[0].mxu0
  %v499 = vadd.f32 %v394, %v498
  %v500 = vpop.f32.mrb[0].mxu0
  %501 = vmatprep.mubr.f32.mxu0 0.0
  %502 = vmatmul.mubr.f32.gmra.mrb[0].mxu0 %v194
  %v503 = vpop.f32.mrb[0].mxu0
  %v504 = vadd.f32 %v399, %v503
  %v505 = vpop.f32.mrb[0].mxu0
  %506 = vmatprep.mubr.f32.mxu0 0.0
  %507 = vmatmul.mubr.f32.gmra.mrb[0].mxu0 %v197
  %v508 = vpop.f32.mrb[0].mxu0
  %v509 = vadd.f32 %v404, %v508
  %v510 = vpop.f32.mrb[0].mxu0
  %511 = vmatprep.mubr.f32.mxu0 0.0
  %512 = vmatmul.mubr.f32.gmra.mrb[0].mxu0 %v200
  %v513 = vpop.f32.mrb[0].mxu0
  %v514 = vadd.f32 %v409, %v513
  %v515 = vpop.f32.mrb[0].mxu0
  %516 = vdwg.mxu0
  %v517 = vmax.f32 %v479, 0.0
  %v518 = vmax.f32 %v484, 0.0
  %v519 = vmax.f32 %v489, 0.0
  %v520 = vmax.f32 %v494, 0.0
  %v521 = vmax.f32 %v499, 0.0
  %v522 = vmax.f32 %v504, 0.0
  %v523 = vmax.f32 %v509, 0.0
  %v524 = vmax.f32 %v514, 0.0
  %v525 = vld [vmem:[%s3] sm:$0xff]
  %v526 = vld [vmem:[%s3 + $0x8] sm:$0xff]
  %v527 = vld [vmem:[%s3 + $0x10] sm:$0xff]
  %v528 = vld [vmem:[%s3 + $0x18] sm:$0xff]
  %v529 = vld [vmem:[%s3 + $0x20] sm:$0xff]
  %v530 = vld [vmem:[%s3 + $0x28] sm:$0xff]
  %v531 = vld [vmem:[%s3 + $0x30] sm:$0xff]
  %v532 = vld [vmem:[%s3 + $0x38] sm:$0xff]
  %v533 = vadd.f32 %v517, %v525
  %v534 = vadd.f32 %v518, %v526
  %v535 = vadd.f32 %v519, %v527
  %v536 = vadd.f32 %v520, %v528
  %v537 = vadd.f32 %v521, %v529
  %v538 = vadd.f32 %v522, %v530
  %v539 = vadd.f32 %v523, %v531
  %v540 = vadd.f32 %v524, %v532
  %v541 = vmax.f32 %v533, 0.0
  %v542 = vmax.f32 %v534, 0.0
  %v543 = vmax.f32 %v535, 0.0
  %v544 = vmax.f32 %v536, 0.0
  %v545 = vmax.f32 %v537, 0.0
  %v546 = vmax.f32 %v538, 0.0
  %v547 = vmax.f32 %v539, 0.0
  %v548 = vmax.f32 %v540, 0.0
  %549 = vst [vmem:[%s4] sm:$0xff] %v541
  %550 = vst [vmem:[%s4 + $0x8] sm:$0xff] %v542
  %551 = vst [vmem:[%s4 + $0x10] sm:$0xff] %v543
  %552 = vst [vmem:[%s4 + $0x18] sm:$0xff] %v544
  %553 = vst [vmem:[%s4 + $0x20] sm:$0xff] %v545
  %554 = vst [vmem:[%s4 + $0x28] sm:$0xff] %v546
  %555 = vst [vmem:[%s4 + $0x30] sm:$0xff] %v547
  %556 = vst [vmem:[%s4 + $0x38] sm:$0xff] %v548
  // Predicated region
  $region18: #{mustafa_forward.18} parent=0 // pred_check
    _
  $region19: #{mustafa_forward.18} parent=0 // pred_check_branch
    %558 = sbr.rel (0) target = $region21
  $region20: #{mustafa_forward.18} parent=0 // pred_region
    _
  $region21: #{mustafa_forward.18} parent=0 // pred_fallthru
    _
  // Predicated region
  $region22: #{mustafa_forward.18} parent=0 // pred_check
    _
  $region23: #{mustafa_forward.18} parent=0 // pred_check_branch
    %560 = sbr.rel (0) target = $region25
  $region24: #{mustafa_forward.18} parent=0 // pred_region
    _
  $region25: #{mustafa_forward.18} parent=0 // pred_fallthru
    _

// kernel: mustafa_forward.19
$region0: #{mustafa_forward.19}
  #allocation0 [shape = 'u32[]', space=smem, size = 0x4, offset = 0x4, fixed_abs, tag = 'smem constant byte address 0x4 - core index']
  #allocation1 [shape = 'u32[144,128]{1,0:T(1,128)}', space=vmem, size = 0x12000, scoped, tag = 'internal scratch']
  %s0 = inlined_call_operand.vmem [shape: f32[2,4,64], index: 0, kind: input, shape index: {}]
  %s1 = inlined_call_operand.vmem [shape: f32[2,576,64], index: 1, kind: input, shape index: {}]
  %s2 = inlined_call_operand.vmem [shape: f32[64,64], index: 2, kind: input, shape index: {}]
  %s3 = inlined_call_operand.vmem [shape: f32[64,64], index: 3, kind: input, shape index: {}]
  %s4 = inlined_call_operand.vmem [shape: f32[64,64], index: 4, kind: input, shape index: {}]
  %s5 = inlined_call_operand.vmem [shape: f32[1,64], index: 5, kind: input, shape index: {}]
  %s6 = inlined_call_operand.vmem [shape: f32[1,64], index: 6, kind: input, shape index: {}]
  %s7 = inlined_call_operand.vmem [shape: f32[1,64], index: 7, kind: input, shape index: {}]
  %s8 = inlined_call_operand.vmem [shape: f32[64,64], index: 8, kind: input, shape index: {}]
  %s9 = inlined_call_operand.vmem [shape: f32[1,64], index: 9, kind: input, shape index: {}]
  %s10 = inlined_call_operand.vmem [shape: f32[64,48], index: 10, kind: input, shape index: {}]
  %s11 = inlined_call_operand.vmem [shape: f32[1,48], index: 11, kind: input, shape index: {}]
  %s12 = inlined_call_operand.vmem [shape: f32[64,64], index: 12, kind: input, shape index: {}]
  %s13 = inlined_call_operand.vmem [shape: f32[4,64], index: 13, kind: input, shape index: {}]
  %s14 = inlined_call_operand.vmem [shape: f32[64,4], index: 14, kind: input, shape index: {}]
  %s15 = inlined_call_operand.hbm [shape: f32[2,1,48], index: 15, kind: output, shape index: {0}]
  %s16 = inlined_call_operand.vmem [shape: f32[2,4,64], index: 16, kind: output, shape index: {1}]
  %s17 = inlined_call_operand.hbm [shape: f32[2,4,576], index: 17, kind: output, shape index: {2}]
  %18 = xla_tuple %s15, %s16, %s17
  %s19 = sld [smem:[#allocation0]]
  $region109: #{mustafa_forward.19} parent=0
    _
  %s21 = ssub.s32 1, %s19
  %s22 = scalar_select 0, %s21, %s19
  $region1: #{mustafa_forward.19} parent=0
    #allocation2 [shape = 'u8[1024]{0}', space=vmem, size = 0x400, scoped, tag = 'output window, operand 0']
    #allocation3 [shape = 's32[2]{0}', space=sflag, size = 0x8, scoped, tag = 'scoped memory for mustafa_forward.19']
    #allocation4 [shape = 'u8[20480]{0}', space=vmem, size = 0x5000, scoped, tag = 'output window, operand 2']
    #allocation5 [shape = 's32[2]{0}', space=sflag, size = 0x8, scoped, tag = 'scoped memory for mustafa_forward.19']
    %23 = vsyncpa [#allocation3], 0
    %s24 = scalar_lea.sflag [#allocation3], 1
    %25 = vsyncpa %s24, 0
    %26 = vsyncpa [#allocation5], 0
    %s27 = scalar_lea.sflag [#allocation5], 1
    %28 = vsyncpa %s27, 0
    loop: start=0, step=1, limit=4
    $region2: #{mustafa_forward.19} parent=1 // loop_pre_header
      _
    $region3: #{mustafa_forward.19} parent=1 // loop_header
      %s30 = sphi 0, %s34
      %p31 = scmp.ge.s32.totalorder %s30, 4
      %s40 = sphi 0, %s42
      %s43 = sphi 0, %s40
      %s44 = sphi 0, %s43
      %s60 = sphi 0, %s44
      %s66 = sphi 0, %s68
      %s69 = sphi 0, %s66
      %s70 = sphi 0, %s69
      %s86 = sphi 0, %s70
      %s90 = sphi 0, %s90
      %s92 = sphi 0, %s90
      %s93 = sphi 0, %s92
      %s107 = sphi 0, %s93
      %s111 = sphi 0, %s111
      %s113 = sphi 0, %s111
      %s114 = sphi 0, %s113
      %s128 = sphi 0, %s114
      %s132 = sphi 0, %s132
      %s134 = sphi 0, %s132
      %s135 = sphi 0, %s134
      %s149 = sphi 0, %s135
      %s153 = sphi 0, %s153
      %s155 = sphi 0, %s153
      %s156 = sphi 0, %s155
      %s170 = sphi 0, %s156
      %s174 = sphi 0, %s174
      %s176 = sphi 0, %s174
      %s177 = sphi 0, %s176
      %s191 = sphi 0, %s177
      %s195 = sphi 0, %s195
      %s197 = sphi 0, %s195
      %s198 = sphi 0, %s197
      %s212 = sphi 0, %s198
      %s216 = sphi 0, %s216
      %s218 = sphi 0, %s216
      %s219 = sphi 0, %s218
      %s233 = sphi 0, %s219
      %s237 = sphi 0, %s237
      %s239 = sphi 0, %s237
      %s240 = sphi 0, %s239
      %s254 = sphi 0, %s240
      %s258 = sphi 0, %s258
      %s260 = sphi 0, %s258
      %s261 = sphi 0, %s260
      %s275 = sphi 0, %s261
      %s279 = sphi 0, %s279
      %s281 = sphi 0, %s279
      %s282 = sphi 0, %s281
      %s296 = sphi 0, %s282
      %s300 = sphi 0, %s300
      %s302 = sphi 0, %s300
      %s303 = sphi 0, %s302
      %s317 = sphi 0, %s303
      %s321 = sphi 0, %s321
      %s323 = sphi 0, %s321
      %s324 = sphi 0, %s323
      %s338 = sphi 0, %s324
      %s342 = sphi 0, %s342
      %s344 = sphi 0, %s342
      %s345 = sphi 0, %s344
      %s359 = sphi 0, %s345
      %s365 = sphi 0, %s367
      %s368 = sphi 0, %s365
      %s369 = sphi 0, %s368
      %s385 = sphi 0, %s369
      %s391 = sphi 0, %s393
      %s394 = sphi 0, %s391
      %s395 = sphi 0, %s394
      %s411 = sphi 0, %s395
      %s417 = sphi 0, %s419
      %s420 = sphi 0, %s417
      %s421 = sphi 0, %s420
      %s437 = sphi 0, %s421
    $region4: #{mustafa_forward.19} parent=1 // loop_header_branch
      %33 = sbr.rel (%p31) target = $region8
    $region5: #{mustafa_forward.19} parent=1 // loop_body
      %s35 = ssub.s32 %s30, 1
      %s36 = ssub.s32 %s30, 2
      %s37 = sadd.s32 %s30, 1
      %s38 = ssub.s32 %s30, %s37
      %p39 = scmp.eq.s32.totalorder %s38, 0
      %s41 = sadd.s32 %s40, 1
      %s42 = scalar_select %p39, %s40, %s41
      %p45 = pneg %p39
      %p46 = scmp.eq.s32.totalorder %s30, 1
      %p47 = por %p45, %p46
      %p48 = scmp.ne.s32.totalorder %s40, %s43
      %p49 = scmp.eq.s32.totalorder %s30, 0
      %p50 = por %p48, %p49
      %p51 = scmp.ne.s32.totalorder %s40, %s43
      %p52 = scmp.eq.s32.totalorder %s35, 1
      %p53 = por %p51, %p52
      %p54 = scmp.ne.s32.totalorder %s43, %s44
      %p55 = scmp.eq.s32.totalorder %s35, 0
      %p56 = por %p54, %p55
      %p57 = scmp.ne.s32.totalorder %s43, %s44
      %p58 = scmp.eq.s32.totalorder %s36, 1
      %p59 = por %p57, %p58
      %p61 = scmp.ne.s32.totalorder %s44, %s60
      %p62 = scmp.eq.s32.totalorder %s36, 0
      %p63 = por %p61, %p62
      %s64 = ssub.s32 %s30, %s37
      %p65 = scmp.eq.s32.totalorder %s64, 0
      %s67 = sadd.s32 %s66, 1
      %s68 = scalar_select %p65, %s66, %s67
      %p71 = pneg %p65
      %p72 = scmp.eq.s32.totalorder %s30, 1
      %p73 = por %p71, %p72
      %p74 = scmp.ne.s32.totalorder %s66, %s69
      %p75 = scmp.eq.s32.totalorder %s30, 0
      %p76 = por %p74, %p75
      %p77 = scmp.ne.s32.totalorder %s66, %s69
      %p78 = scmp.eq.s32.totalorder %s35, 1
      %p79 = por %p77, %p78
      %p80 = scmp.ne.s32.totalorder %s69, %s70
      %p81 = scmp.eq.s32.totalorder %s35, 0
      %p82 = por %p80, %p81
      %p83 = scmp.ne.s32.totalorder %s69, %s70
      %p84 = scmp.eq.s32.totalorder %s36, 1
      %p85 = por %p83, %p84
      %p87 = scmp.ne.s32.totalorder %s70, %s86
      %p88 = scmp.eq.s32.totalorder %s36, 0
      %p89 = por %p87, %p88
      %s91 = sadd.s32 %s90, 1
      %p94 = scmp.eq.s32.totalorder %s30, 1
      %p95 = scmp.ne.s32.totalorder %s90, %s92
      %p96 = scmp.eq.s32.totalorder %s30, 0
      %p97 = por %p95, %p96
      %p98 = scmp.ne.s32.totalorder %s90, %s92
      %p99 = scmp.eq.s32.totalorder %s35, 1
      %p100 = por %p98, %p99
      %p101 = scmp.ne.s32.totalorder %s92, %s93
      %p102 = scmp.eq.s32.totalorder %s35, 0
      %p103 = por %p101, %p102
      %p104 = scmp.ne.s32.totalorder %s92, %s93
      %p105 = scmp.eq.s32.totalorder %s36, 1
      %p106 = por %p104, %p105
      %p108 = scmp.ne.s32.totalorder %s93, %s107
      %p109 = scmp.eq.s32.totalorder %s36, 0
      %p110 = por %p108, %p109
      %s112 = sadd.s32 %s111, 1
      %p115 = scmp.eq.s32.totalorder %s30, 1
      %p116 = scmp.ne.s32.totalorder %s111, %s113
      %p117 = scmp.eq.s32.totalorder %s30, 0
      %p118 = por %p116, %p117
      %p119 = scmp.ne.s32.totalorder %s111, %s113
      %p120 = scmp.eq.s32.totalorder %s35, 1
      %p121 = por %p119, %p120
      %p122 = scmp.ne.s32.totalorder %s113, %s114
      %p123 = scmp.eq.s32.totalorder %s35, 0
      %p124 = por %p122, %p123
      %p125 = scmp.ne.s32.totalorder %s113, %s114
      %p126 = scmp.eq.s32.totalorder %s36, 1
      %p127 = por %p125, %p126
      %p129 = scmp.ne.s32.totalorder %s114, %s128
      %p130 = scmp.eq.s32.totalorder %s36, 0
      %p131 = por %p129, %p130
      %s133 = sadd.s32 %s132, 1
      %p136 = scmp.eq.s32.totalorder %s30, 1
      %p137 = scmp.ne.s32.totalorder %s132, %s134
      %p138 = scmp.eq.s32.totalorder %s30, 0
      %p139 = por %p137, %p138
      %p140 = scmp.ne.s32.totalorder %s132, %s134
      %p141 = scmp.eq.s32.totalorder %s35, 1
      %p142 = por %p140, %p141
      %p143 = scmp.ne.s32.totalorder %s134, %s135
      %p144 = scmp.eq.s32.totalorder %s35, 0
      %p145 = por %p143, %p144
      %p146 = scmp.ne.s32.totalorder %s134, %s135
      %p147 = scmp.eq.s32.totalorder %s36, 1
      %p148 = por %p146, %p147
      %p150 = scmp.ne.s32.totalorder %s135, %s149
      %p151 = scmp.eq.s32.totalorder %s36, 0
      %p152 = por %p150, %p151
      %s154 = sadd.s32 %s153, 1
      %p157 = scmp.eq.s32.totalorder %s30, 1
      %p158 = scmp.ne.s32.totalorder %s153, %s155
      %p159 = scmp.eq.s32.totalorder %s30, 0
      %p160 = por %p158, %p159
      %p161 = scmp.ne.s32.totalorder %s153, %s155
      %p162 = scmp.eq.s32.totalorder %s35, 1
      %p163 = por %p161, %p162
      %p164 = scmp.ne.s32.totalorder %s155, %s156
      %p165 = scmp.eq.s32.totalorder %s35, 0
      %p166 = por %p164, %p165
      %p167 = scmp.ne.s32.totalorder %s155, %s156
      %p168 = scmp.eq.s32.totalorder %s36, 1
      %p169 = por %p167, %p168
      %p171 = scmp.ne.s32.totalorder %s156, %s170
      %p172 = scmp.eq.s32.totalorder %s36, 0
      %p173 = por %p171, %p172
      %s175 = sadd.s32 %s174, 1
      %p178 = scmp.eq.s32.totalorder %s30, 1
      %p179 = scmp.ne.s32.totalorder %s174, %s176
      %p180 = scmp.eq.s32.totalorder %s30, 0
      %p181 = por %p179, %p180
      %p182 = scmp.ne.s32.totalorder %s174, %s176
      %p183 = scmp.eq.s32.totalorder %s35, 1
      %p184 = por %p182, %p183
      %p185 = scmp.ne.s32.totalorder %s176, %s177
      %p186 = scmp.eq.s32.totalorder %s35, 0
      %p187 = por %p185, %p186
      %p188 = scmp.ne.s32.totalorder %s176, %s177
      %p189 = scmp.eq.s32.totalorder %s36, 1
      %p190 = por %p188, %p189
      %p192 = scmp.ne.s32.totalorder %s177, %s191
      %p193 = scmp.eq.s32.totalorder %s36, 0
      %p194 = por %p192, %p193
      %s196 = sadd.s32 %s195, 1
      %p199 = scmp.eq.s32.totalorder %s30, 1
      %p200 = scmp.ne.s32.totalorder %s195, %s197
      %p201 = scmp.eq.s32.totalorder %s30, 0
      %p202 = por %p200, %p201
      %p203 = scmp.ne.s32.totalorder %s195, %s197
      %p204 = scmp.eq.s32.totalorder %s35, 1
      %p205 = por %p203, %p204
      %p206 = scmp.ne.s32.totalorder %s197, %s198
      %p207 = scmp.eq.s32.totalorder %s35, 0
      %p208 = por %p206, %p207
      %p209 = scmp.ne.s32.totalorder %s197, %s198
      %p210 = scmp.eq.s32.totalorder %s36, 1
      %p211 = por %p209, %p210
      %p213 = scmp.ne.s32.totalorder %s198, %s212
      %p214 = scmp.eq.s32.totalorder %s36, 0
      %p215 = por %p213, %p214
      %s217 = sadd.s32 %s216, 1
      %p220 = scmp.eq.s32.totalorder %s30, 1
      %p221 = scmp.ne.s32.totalorder %s216, %s218
      %p222 = scmp.eq.s32.totalorder %s30, 0
      %p223 = por %p221, %p222
      %p224 = scmp.ne.s32.totalorder %s216, %s218
      %p225 = scmp.eq.s32.totalorder %s35, 1
      %p226 = por %p224, %p225
      %p227 = scmp.ne.s32.totalorder %s218, %s219
      %p228 = scmp.eq.s32.totalorder %s35, 0
      %p229 = por %p227, %p228
      %p230 = scmp.ne.s32.totalorder %s218, %s219
      %p231 = scmp.eq.s32.totalorder %s36, 1
      %p232 = por %p230, %p231
      %p234 = scmp.ne.s32.totalorder %s219, %s233
      %p235 = scmp.eq.s32.totalorder %s36, 0
      %p236 = por %p234, %p235
      %s238 = sadd.s32 %s237, 1
      %p241 = scmp.eq.s32.totalorder %s30, 1
      %p242 = scmp.ne.s32.totalorder %s237, %s239
      %p243 = scmp.eq.s32.totalorder %s30, 0
      %p244 = por %p242, %p243
      %p245 = scmp.ne.s32.totalorder %s237, %s239
      %p246 = scmp.eq.s32.totalorder %s35, 1
      %p247 = por %p245, %p246
      %p248 = scmp.ne.s32.totalorder %s239, %s240
      %p249 = scmp.eq.s32.totalorder %s35, 0
      %p250 = por %p248, %p249
      %p251 = scmp.ne.s32.totalorder %s239, %s240
      %p252 = scmp.eq.s32.totalorder %s36, 1
      %p253 = por %p251, %p252
      %p255 = scmp.ne.s32.totalorder %s240, %s254
      %p256 = scmp.eq.s32.totalorder %s36, 0
      %p257 = por %p255, %p256
      %s259 = sadd.s32 %s258, 1
      %p262 = scmp.eq.s32.totalorder %s30, 1
      %p263 = scmp.ne.s32.totalorder %s258, %s260
      %p264 = scmp.eq.s32.totalorder %s30, 0
      %p265 = por %p263, %p264
      %p266 = scmp.ne.s32.totalorder %s258, %s260
      %p267 = scmp.eq.s32.totalorder %s35, 1
      %p268 = por %p266, %p267
      %p269 = scmp.ne.s32.totalorder %s260, %s261
      %p270 = scmp.eq.s32.totalorder %s35, 0
      %p271 = por %p269, %p270
      %p272 = scmp.ne.s32.totalorder %s260, %s261
      %p273 = scmp.eq.s32.totalorder %s36, 1
      %p274 = por %p272, %p273
      %p276 = scmp.ne.s32.totalorder %s261, %s275
      %p277 = scmp.eq.s32.totalorder %s36, 0
      %p278 = por %p276, %p277
      %s280 = sadd.s32 %s279, 1
      %p283 = scmp.eq.s32.totalorder %s30, 1
      %p284 = scmp.ne.s32.totalorder %s279, %s281
      %p285 = scmp.eq.s32.totalorder %s30, 0
      %p286 = por %p284, %p285
      %p287 = scmp.ne.s32.totalorder %s279, %s281
      %p288 = scmp.eq.s32.totalorder %s35, 1
      %p289 = por %p287, %p288
      %p290 = scmp.ne.s32.totalorder %s281, %s282
      %p291 = scmp.eq.s32.totalorder %s35, 0
      %p292 = por %p290, %p291
      %p293 = scmp.ne.s32.totalorder %s281, %s282
      %p294 = scmp.eq.s32.totalorder %s36, 1
      %p295 = por %p293, %p294
      %p297 = scmp.ne.s32.totalorder %s282, %s296
      %p298 = scmp.eq.s32.totalorder %s36, 0
      %p299 = por %p297, %p298
      %s301 = sadd.s32 %s300, 1
      %p304 = scmp.eq.s32.totalorder %s30, 1
      %p305 = scmp.ne.s32.totalorder %s300, %s302
      %p306 = scmp.eq.s32.totalorder %s30, 0
      %p307 = por %p305, %p306
      %p308 = scmp.ne.s32.totalorder %s300, %s302
      %p309 = scmp.eq.s32.totalorder %s35, 1
      %p310 = por %p308, %p309
      %p311 = scmp.ne.s32.totalorder %s302, %s303
      %p312 = scmp.eq.s32.totalorder %s35, 0
      %p313 = por %p311, %p312
      %p314 = scmp.ne.s32.totalorder %s302, %s303
      %p315 = scmp.eq.s32.totalorder %s36, 1
      %p316 = por %p314, %p315
      %p318 = scmp.ne.s32.totalorder %s303, %s317
      %p319 = scmp.eq.s32.totalorder %s36, 0
      %p320 = por %p318, %p319
      %s322 = sadd.s32 %s321, 1
      %p325 = scmp.eq.s32.totalorder %s30, 1
      %p326 = scmp.ne.s32.totalorder %s321, %s323
      %p327 = scmp.eq.s32.totalorder %s30, 0
      %p328 = por %p326, %p327
      %p329 = scmp.ne.s32.totalorder %s321, %s323
      %p330 = scmp.eq.s32.totalorder %s35, 1
      %p331 = por %p329, %p330
      %p332 = scmp.ne.s32.totalorder %s323, %s324
      %p333 = scmp.eq.s32.totalorder %s35, 0
      %p334 = por %p332, %p333
      %p335 = scmp.ne.s32.totalorder %s323, %s324
      %p336 = scmp.eq.s32.totalorder %s36, 1
      %p337 = por %p335, %p336
      %p339 = scmp.ne.s32.totalorder %s324, %s338
      %p340 = scmp.eq.s32.totalorder %s36, 0
      %p341 = por %p339, %p340
      %s343 = sadd.s32 %s342, 1
      %p346 = scmp.eq.s32.totalorder %s30, 1
      %p347 = scmp.ne.s32.totalorder %s342, %s344
      %p348 = scmp.eq.s32.totalorder %s30, 0
      %p349 = por %p347, %p348
      %p350 = scmp.ne.s32.totalorder %s342, %s344
      %p351 = scmp.eq.s32.totalorder %s35, 1
      %p352 = por %p350, %p351
      %p353 = scmp.ne.s32.totalorder %s344, %s345
      %p354 = scmp.eq.s32.totalorder %s35, 0
      %p355 = por %p353, %p354
      %p356 = scmp.ne.s32.totalorder %s344, %s345
      %p357 = scmp.eq.s32.totalorder %s36, 1
      %p358 = por %p356, %p357
      %p360 = scmp.ne.s32.totalorder %s345, %s359
      %p361 = scmp.eq.s32.totalorder %s36, 0
      %p362 = por %p360, %p361
      %s363 = ssub.s32 %s30, %s37
      %p364 = scmp.eq.s32.totalorder %s363, 0
      %s366 = sadd.s32 %s365, 1
      %s367 = scalar_select %p364, %s365, %s366
      %p370 = pneg %p364
      %p371 = scmp.eq.s32.totalorder %s30, 1
      %p372 = por %p370, %p371
      %p373 = scmp.ne.s32.totalorder %s365, %s368
      %p374 = scmp.eq.s32.totalorder %s30, 0
      %p375 = por %p373, %p374
      %p376 = scmp.ne.s32.totalorder %s365, %s368
      %p377 = scmp.eq.s32.totalorder %s35, 1
      %p378 = por %p376, %p377
      %p379 = scmp.ne.s32.totalorder %s368, %s369
      %p380 = scmp.eq.s32.totalorder %s35, 0
      %p381 = por %p379, %p380
      %p382 = scmp.ne.s32.totalorder %s368, %s369
      %p383 = scmp.eq.s32.totalorder %s36, 1
      %p384 = por %p382, %p383
      %p386 = scmp.ne.s32.totalorder %s369, %s385
      %p387 = scmp.eq.s32.totalorder %s36, 0
      %p388 = por %p386, %p387
      %s389 = ssub.s32 %s30, %s37
      %p390 = scmp.eq.s32.totalorder %s389, 0
      %s392 = sadd.s32 %s391, 1
      %s393 = scalar_select %p390, %s391, %s392
      %p396 = pneg %p390
      %p397 = scmp.eq.s32.totalorder %s30, 1
      %p398 = por %p396, %p397
      %p399 = scmp.ne.s32.totalorder %s391, %s394
      %p400 = scmp.eq.s32.totalorder %s30, 0
      %p401 = por %p399, %p400
      %p402 = scmp.ne.s32.totalorder %s391, %s394
      %p403 = scmp.eq.s32.totalorder %s35, 1
      %p404 = por %p402, %p403
      %p405 = scmp.ne.s32.totalorder %s394, %s395
      %p406 = scmp.eq.s32.totalorder %s35, 0
      %p407 = por %p405, %p406
      %p408 = scmp.ne.s32.totalorder %s394, %s395
      %p409 = scmp.eq.s32.totalorder %s36, 1
      %p410 = por %p408, %p409
      %p412 = scmp.ne.s32.totalorder %s395, %s411
      %p413 = scmp.eq.s32.totalorder %s36, 0
      %p414 = por %p412, %p413
      %s415 = ssub.s32 %s30, %s37
      %p416 = scmp.eq.s32.totalorder %s415, 0
      %s418 = sadd.s32 %s417, 1
      %s419 = scalar_select %p416, %s417, %s418
      %p422 = pneg %p416
      %p423 = scmp.eq.s32.totalorder %s30, 1
      %p424 = por %p422, %p423
      %p425 = scmp.ne.s32.totalorder %s417, %s420
      %p426 = scmp.eq.s32.totalorder %s30, 0
      %p427 = por %p425, %p426
      %p428 = scmp.ne.s32.totalorder %s417, %s420
      %p429 = scmp.eq.s32.totalorder %s35, 1
      %p430 = por %p428, %p429
      %p431 = scmp.ne.s32.totalorder %s420, %s421
      %p432 = scmp.eq.s32.totalorder %s35, 0
      %p433 = por %p431, %p432
      %p434 = scmp.ne.s32.totalorder %s420, %s421
      %p435 = scmp.eq.s32.totalorder %s36, 1
      %p436 = por %p434, %p435
      %p438 = scmp.ne.s32.totalorder %s421, %s437
      %p439 = scmp.eq.s32.totalorder %s36, 0
      %p440 = por %p438, %p439
      %p441 = scmp.le.s32.totalorder 1, %s30
      %p442 = scmp.lt.s32.totalorder %s30, 3
      %p443 = pnand %p441, %p442
      %p444 = pneg %p443
      // Predicated region
      $region9: #{mustafa_forward.19} parent=5 // pred_check
        _
      $region10: #{mustafa_forward.19} parent=5 // pred_check_branch
        %446 = sbr.rel (%p443) target = $region12
      $region11: #{mustafa_forward.19} parent=5 // pred_region
        %s447 = ssub.s32 %s30, 1
        // Predicated region
        $region13: #{mustafa_forward.19} parent=11 // pred_check
          %p448 = pneg %p103
        $region14: #{mustafa_forward.19} parent=11 // pred_check_branch
          %450 = sbr.rel (%p448) target = $region16
        $region15: #{mustafa_forward.19} parent=11 // pred_region
          _
        $region16: #{mustafa_forward.19} parent=11 // pred_fallthru
          _
        // Predicated region
        $region17: #{mustafa_forward.19} parent=11 // pred_check
          %p451 = pneg %p124
        $region18: #{mustafa_forward.19} parent=11 // pred_check_branch
          %453 = sbr.rel (%p451) target = $region20
        $region19: #{mustafa_forward.19} parent=11 // pred_region
          _
        $region20: #{mustafa_forward.19} parent=11 // pred_fallthru
          _
        // Predicated region
        $region21: #{mustafa_forward.19} parent=11 // pred_check
          %p454 = pneg %p145
        $region22: #{mustafa_forward.19} parent=11 // pred_check_branch
          %456 = sbr.rel (%p454) target = $region24
        $region23: #{mustafa_forward.19} parent=11 // pred_region
          _
        $region24: #{mustafa_forward.19} parent=11 // pred_fallthru
          _
        // Predicated region
        $region25: #{mustafa_forward.19} parent=11 // pred_check
          %p457 = pneg %p166
        $region26: #{mustafa_forward.19} parent=11 // pred_check_branch
          %459 = sbr.rel (%p457) target = $region28
        $region27: #{mustafa_forward.19} parent=11 // pred_region
          _
        $region28: #{mustafa_forward.19} parent=11 // pred_fallthru
          _
        // Predicated region
        $region29: #{mustafa_forward.19} parent=11 // pred_check
          %p460 = pneg %p187
        $region30: #{mustafa_forward.19} parent=11 // pred_check_branch
          %462 = sbr.rel (%p460) target = $region32
        $region31: #{mustafa_forward.19} parent=11 // pred_region
          _
        $region32: #{mustafa_forward.19} parent=11 // pred_fallthru
          _
        // Predicated region
        $region33: #{mustafa_forward.19} parent=11 // pred_check
          %p463 = pneg %p208
        $region34: #{mustafa_forward.19} parent=11 // pred_check_branch
          %465 = sbr.rel (%p463) target = $region36
        $region35: #{mustafa_forward.19} parent=11 // pred_region
          _
        $region36: #{mustafa_forward.19} parent=11 // pred_fallthru
          _
        // Predicated region
        $region37: #{mustafa_forward.19} parent=11 // pred_check
          %p466 = pneg %p229
        $region38: #{mustafa_forward.19} parent=11 // pred_check_branch
          %468 = sbr.rel (%p466) target = $region40
        $region39: #{mustafa_forward.19} parent=11 // pred_region
          _
        $region40: #{mustafa_forward.19} parent=11 // pred_fallthru
          _
        // Predicated region
        $region41: #{mustafa_forward.19} parent=11 // pred_check
          %p469 = pneg %p250
        $region42: #{mustafa_forward.19} parent=11 // pred_check_branch
          %471 = sbr.rel (%p469) target = $region44
        $region43: #{mustafa_forward.19} parent=11 // pred_region
          _
        $region44: #{mustafa_forward.19} parent=11 // pred_fallthru
          _
        // Predicated region
        $region45: #{mustafa_forward.19} parent=11 // pred_check
          %p472 = pneg %p271
        $region46: #{mustafa_forward.19} parent=11 // pred_check_branch
          %474 = sbr.rel (%p472) target = $region48
        $region47: #{mustafa_forward.19} parent=11 // pred_region
          _
        $region48: #{mustafa_forward.19} parent=11 // pred_fallthru
          _
        // Predicated region
        $region49: #{mustafa_forward.19} parent=11 // pred_check
          %p475 = pneg %p292
        $region50: #{mustafa_forward.19} parent=11 // pred_check_branch
          %477 = sbr.rel (%p475) target = $region52
        $region51: #{mustafa_forward.19} parent=11 // pred_region
          _
        $region52: #{mustafa_forward.19} parent=11 // pred_fallthru
          _
        // Predicated region
        $region53: #{mustafa_forward.19} parent=11 // pred_check
          %p478 = pneg %p313
        $region54: #{mustafa_forward.19} parent=11 // pred_check_branch
          %480 = sbr.rel (%p478) target = $region56
        $region55: #{mustafa_forward.19} parent=11 // pred_region
          _
        $region56: #{mustafa_forward.19} parent=11 // pred_fallthru
          _
        // Predicated region
        $region57: #{mustafa_forward.19} parent=11 // pred_check
          %p481 = pneg %p334
        $region58: #{mustafa_forward.19} parent=11 // pred_check_branch
          %483 = sbr.rel (%p481) target = $region60
        $region59: #{mustafa_forward.19} parent=11 // pred_region
          _
        $region60: #{mustafa_forward.19} parent=11 // pred_fallthru
          _
        // Predicated region
        $region61: #{mustafa_forward.19} parent=11 // pred_check
          %p484 = pneg %p355
        $region62: #{mustafa_forward.19} parent=11 // pred_check_branch
          %486 = sbr.rel (%p484) target = $region64
        $region63: #{mustafa_forward.19} parent=11 // pred_region
          _
        $region64: #{mustafa_forward.19} parent=11 // pred_fallthru
          _
      $region12: #{mustafa_forward.19} parent=5 // pred_fallthru
        _
      %p487 = scmp.lt.s32.totalorder %s30, 2
      // Predicated region
      $region65: #{mustafa_forward.19} parent=5 // pred_check
        %p488 = pneg %p487
      $region66: #{mustafa_forward.19} parent=5 // pred_check_branch
        %490 = sbr.rel (%p488) target = $region68
      $region67: #{mustafa_forward.19} parent=5 // pred_region
        // Predicated region
        $region69: #{mustafa_forward.19} parent=67 // pred_check
          %p491 = pneg %p50
        $region70: #{mustafa_forward.19} parent=67 // pred_check_branch
          %493 = sbr.rel (%p491) target = $region72
        $region71: #{mustafa_forward.19} parent=67 // pred_region
          %p494 = scmp.lt.s32.totalorder %s30, 1
          %s495 = scalar_select %p494, %s30, 1
          %s496 = smul.addr %s495, 4
          %s497 = scalar_lea.vmem %s0, %s496
        $region72: #{mustafa_forward.19} parent=67 // pred_fallthru
          _
        // Predicated region
        $region73: #{mustafa_forward.19} parent=67 // pred_check
          %p498 = pneg %p76
        $region74: #{mustafa_forward.19} parent=67 // pred_check_branch
          %500 = sbr.rel (%p498) target = $region76
        $region75: #{mustafa_forward.19} parent=67 // pred_region
          %p501 = scmp.lt.s32.totalorder %s30, 1
          %s502 = scalar_select %p501, %s30, 1
          %s503 = smul.addr %s502, 72
          %s504 = smul.addr %s503, 8
          %s505 = scalar_lea.vmem %s1, %s504
        $region76: #{mustafa_forward.19} parent=67 // pred_fallthru
          _
      $region68: #{mustafa_forward.19} parent=5 // pred_fallthru
        _
      %p506 = scmp.le.s32.totalorder 1, %s30
      %p507 = scmp.lt.s32.totalorder %s30, 3
      %p508 = pnand %p506, %p507
      %p509 = pneg %p508
      // Predicated region
      $region77: #{mustafa_forward.19} parent=5 // pred_check
        _
      $region78: #{mustafa_forward.19} parent=5 // pred_check_branch
        %511 = sbr.rel (%p508) target = $region80
      $region79: #{mustafa_forward.19} parent=5 // pred_region
        %s512 = ssub.s32 %s30, 1
        %p513 = scmp.lt.s32.totalorder %s35, 1
        %s514 = scalar_select %p513, %s35, 1
        %s515 = smul.addr %s514, 4
        %s516 = scalar_lea.vmem %s0, %s515
        %p517 = pneg %p56
        %p518 = pneg %p53
        %p519 = scmp.lt.s32.totalorder %s35, 1
        %s520 = scalar_select %p519, %s35, 1
        %s521 = smul.addr %s520, 72
        %s522 = smul.addr %s521, 8
        %s523 = scalar_lea.vmem %s1, %s522
        %p524 = pneg %p82
        %p525 = pneg %p79
        %p526 = pneg %p103
        %p527 = pneg %p100
        %p528 = pneg %p124
        %p529 = pneg %p121
        %p530 = pneg %p145
        %p531 = pneg %p142
        %p532 = pneg %p166
        %p533 = pneg %p163
        %p534 = pneg %p187
        %p535 = pneg %p184
        %p536 = pneg %p208
        %p537 = pneg %p205
        %p538 = pneg %p229
        %p539 = pneg %p226
        %p540 = pneg %p250
        %p541 = pneg %p247
        %p542 = pneg %p271
        %p543 = pneg %p268
        %p544 = pneg %p292
        %p545 = pneg %p289
        %p546 = pneg %p313
        %p547 = pneg %p310
        %p548 = pneg %p334
        %p549 = pneg %p331
        %p550 = pneg %p355
        %p551 = pneg %p352
        %p552 = pneg %p381
        %p553 = pneg %p378
        %s554 = sand.u32 %s368, 1
        %s555 = scalar_lea.sflag [#allocation3], %s554
        %s556 = sand.u32 %s368, 1
        %s557 = scalar_lea.vmem [#allocation2], %s556
        %p558 = pneg %p407
        %p559 = pneg %p404
        %p560 = scmp.lt.s32.totalorder %s35, 1
        %s561 = scalar_select %p560, %s35, 1
        %s562 = smul.addr %s561, 4
        %s563 = scalar_lea.vmem %s16, %s562
        %p564 = pneg %p433
        %p565 = pneg %p430
        %s566 = sand.u32 %s420, 1
        %s567 = scalar_lea.sflag [#allocation5], %s566
        %s568 = sand.u32 %s420, 1
        %s569 = smul.addr %s568, 20
        %s570 = scalar_lea.vmem [#allocation4], %s569
        %p571 = scmp.lt.s32.totalorder %s35, 1
        %s572 = scalar_select %p571, %s35, 1
        %s573 = smul.addr %s572, 4
        %s574 = scalar_lea.vmem %s0, %s573
        %p575 = scmp.lt.s32.totalorder %s35, 1
        %s576 = scalar_select %p575, %s35, 1
        %s577 = smul.addr %s576, 72
        %s578 = smul.addr %s577, 8
        %s579 = scalar_lea.vmem %s1, %s578
        %p580 = scmp.lt.s32.totalorder %s35, 1
        %s581 = scalar_select %p580, %s35, 1
        %s582 = smul.addr %s581, 4
        %s583 = scalar_lea.vmem %s16, %s582
        %v584 = vld [vmem:[%s12] sm:$0xff]
        %v585 = vld [vmem:[%s12 + $0x8] sm:$0xff]
        %v586 = vld [vmem:[%s12 + $0x10] sm:$0xff]
        %v587 = vld [vmem:[%s12 + $0x18] sm:$0xff]
        %v588 = vld [vmem:[%s12 + $0x20] sm:$0xff]
        %v589 = vld [vmem:[%s12 + $0x28] sm:$0xff]
        %v590 = vld [vmem:[%s12 + $0x30] sm:$0xff]
        %v591 = vld [vmem:[%s12 + $0x38] sm:$0xff]
        %v592 = vld [vmem:[%s13] sm:$0xf]
        %v593 = vld [vmem:[%s14] sm:$0xff]
        %v594 = vld [vmem:[%s14 + $0x8] sm:$0xff]
        %v595 = vld [vmem:[%s14 + $0x10] sm:$0xff]
        %v596 = vld [vmem:[%s14 + $0x18] sm:$0xff]
        %v597 = vld [vmem:[%s14 + $0x20] sm:$0xff]
        %v598 = vld [vmem:[%s14 + $0x28] sm:$0xff]
        %v599 = vld [vmem:[%s14 + $0x30] sm:$0xff]
        %v600 = vld [vmem:[%s14 + $0x38] sm:$0xff]
        %v601 = vld [vmem:[%s574] sm:$0xf]
        %v602 = vld [vmem:[%s2] sm:$0xff]
        %v603 = vld [vmem:[%s2 + $0x8] sm:$0xff]
        %v604 = vld [vmem:[%s2 + $0x10] sm:$0xff]
        %v605 = vld [vmem:[%s2 + $0x18] sm:$0xff]
        %v606 = vld [vmem:[%s2 + $0x20] sm:$0xff]
        %v607 = vld [vmem:[%s2 + $0x28] sm:$0xff]
        %v608 = vld [vmem:[%s2 + $0x30] sm:$0xff]
        %v609 = vld [vmem:[%s2 + $0x38] sm:$0xff]
        %v610 = vld [vmem:[%s5] sm:$0x1]
        %v612 = vlaneseq
        %v613 = vshrl.u32 %v612, 7
        %v614 = vsub.s32 0, %v613
        %v615 = vrot.slane %v610, %v614
        %vm617 = vcmask 523264
        %v619 = vsel %vm617, %v601, 0
        %621 = vmatprep.subr.mxu0 0.0
        %622 = vmatpush1.msra.mxu0 %v602
        %623 = vmatprep.subr.mxu0 0.0
        %624 = vmatpush1.msra.mxu0 %v603
        %625 = vmatprep.subr.mxu0 0.0
        %626 = vmatpush1.msra.mxu0 %v604
        %627 = vmatprep.subr.mxu0 0.0
        %628 = vmatpush1.msra.mxu0 %v605
        %629 = vmatprep.subr.mxu0 0.0
        %630 = vmatpush1.msra.mxu0 %v606
        %631 = vmatprep.subr.mxu0 0.0
        %632 = vmatpush1.msra.mxu0 %v607
        %633 = vmatprep.subr.mxu0 0.0
        %634 = vmatpush1.msra.mxu0 %v608
        %635 = vmatprep.subr.mxu0 0.0
        %636 = vmatpush1.msra.mxu0 %v609
        %637 = vmatprep.subr.mxu0 0.0
        %638 = vmatpush1.msra.mxu0 0.0
        %639 = vmatprep.subr.mxu0 0.0
        %640 = vmatpush1.msra.mxu0 0.0
        %641 = vmatprep.subr.mxu0 0.0
        %642 = vmatpush1.msra.mxu0 0.0
        %643 = vmatprep.subr.mxu0 0.0
        %644 = vmatpush1.msra.mxu0 0.0
        %645 = vmatprep.subr.mxu0 0.0
        %646 = vmatpush1.msra.mxu0 0.0
        %647 = vmatprep.subr.mxu0 0.0
        %648 = vmatpush1.msra.mxu0 0.0
        %649 = vmatprep.subr.mxu0 0.0
        %650 = vmatpush1.msra.mxu0 0.0
        %651 = vmatprep.subr.mxu0 0.0
        %652 = vmatpush1.msra.mxu0 0.0
        %653 = vmatprep.subr.mxu0 0.0
        %654 = vmatpush1.msra.mxu0 0.0
        %655 = vmatprep.subr.mxu0 0.0
        %656 = vmatpush1.msra.mxu0 0.0
        %657 = vmatprep.subr.mxu0 0.0
        %658 = vmatpush1.msra.mxu0 0.0
        %659 = vmatprep.subr.mxu0 0.0
        %660 = vmatpush1.msra.mxu0 0.0
        %661 = vmatprep.subr.mxu0 0.0
        %662 = vmatpush1.msra.mxu0 0.0
        %663 = vmatprep.subr.mxu0 0.0
        %664 = vmatpush1.msra.mxu0 0.0
        %665 = vmatprep.subr.mxu0 0.0
        %666 = vmatpush1.msra.mxu0 0.0
        %667 = vmatprep.subr.mxu0 0.0
        %668 = vmatpush1.msra.mxu0 0.0
        %669 = vmatprep.subr.mxu0 0.0
        %670 = vmatpush1.msra.mxu0 0.0
        %671 = vmatprep.subr.mxu0 0.0
        %672 = vmatpush1.msra.mxu0 0.0
        %673 = vmatprep.subr.mxu0 0.0
        %674 = vmatpush1.msra.mxu0 0.0
        %675 = vmatprep.subr.mxu0 0.0
        %676 = vmatpush1.msra.mxu0 0.0
        %677 = vmatprep.subr.mxu0 0.0
        %678 = vmatpush1.msra.mxu0 0.0
        %679 = vmatprep.subr.mxu0 0.0
        %680 = vmatpush1.msra.mxu0 0.0
        %681 = vmatprep.subr.mxu0 0.0
        %682 = vmatpush1.msra.mxu0 0.0
        %683 = vmatprep.subr.mxu0 0.0
        %684 = vmatpush1.msra.mxu0 0.0
        %685 = vmatprep.mubr.f32.mxu0 0.0
        %686 = vmatmul.mubr.f32.gmra.mrb[0].mxu0 %v619
        %v687 = vpop.f32.mrb[0].mxu0
        %v688 = vadd.f32 %v615, %v687
        %v689 = vpop.f32.mrb[0].mxu0
        %690 = vdwg.mxu0
        %v691 = vld [vmem:[%s579] sm:$0xff]
        %v692 = vld [vmem:[%s579 + $0x8] sm:$0xff]
        %v693 = vld [vmem:[%s579 + $0x10] sm:$0xff]
        %v694 = vld [vmem:[%s579 + $0x18] sm:$0xff]
        %v695 = vld [vmem:[%s579 + $0x20] sm:$0xff]
        %v696 = vld [vmem:[%s579 + $0x28] sm:$0xff]
        %v697 = vld [vmem:[%s579 + $0x30] sm:$0xff]
        %v698 = vld [vmem:[%s579 + $0x38] sm:$0xff]
        %v699 = vld [vmem:[%s579 + $0x40] sm:$0xff]
        %v700 = vld [vmem:[%s579 + $0x48] sm:$0xff]
        %v701 = vld [vmem:[%s579 + $0x50] sm:$0xff]
        %v702 = vld [vmem:[%s579 + $0x58] sm:$0xff]
        %v703 = vld [vmem:[%s579 + $0x60] sm:$0xff]
        %v704 = vld [vmem:[%s579 + $0x68] sm:$0xff]
        %v705 = vld [vmem:[%s579 + $0x70] sm:$0xff]
        %v706 = vld [vmem:[%s579 + $0x78] sm:$0xff]
        %v707 = vld [vmem:[%s579 + $0x80] sm:$0xff]
        %v708 = vld [vmem:[%s579 + $0x88] sm:$0xff]
        %v709 = vld [vmem:[%s579 + $0x90] sm:$0xff]
        %v710 = vld [vmem:[%s579 + $0x98] sm:$0xff]
        %v711 = vld [vmem:[%s579 + $0xa0] sm:$0xff]
        %v712 = vld [vmem:[%s579 + $0xa8] sm:$0xff]
        %v713 = vld [vmem:[%s579 + $0xb0] sm:$0xff]
        %v714 = vld [vmem:[%s579 + $0xb8] sm:$0xff]
        %v715 = vld [vmem:[%s579 + $0xc0] sm:$0xff]
        %v716 = vld [vmem:[%s579 + $0xc8] sm:$0xff]
        %v717 = vld [vmem:[%s579 + $0xd0] sm:$0xff]
        %v718 = vld [vmem:[%s579 + $0xd8] sm:$0xff]
        %v719 = vld [vmem:[%s579 + $0xe0] sm:$0xff]
        %v720 = vld [vmem:[%s579 + $0xe8] sm:$0xff]
        %v721 = vld [vmem:[%s579 + $0xf0] sm:$0xff]
        %v722 = vld [vmem:[%s579 + $0xf8] sm:$0xff]
        %v723 = vld [vmem:[%s579 + $0x100] sm:$0xff]
        %v724 = vld [vmem:[%s579 + $0x108] sm:$0xff]
        %v725 = vld [vmem:[%s579 + $0x110] sm:$0xff]
        %v726 = vld [vmem:[%s579 + $0x118] sm:$0xff]
        %v727 = vld [vmem:[%s579 + $0x120] sm:$0xff]
        %v728 = vld [vmem:[%s579 + $0x128] sm:$0xff]
        %v729 = vld [vmem:[%s579 + $0x130] sm:$0xff]
        %v730 = vld [vmem:[%s579 + $0x138] sm:$0xff]
        %v731 = vld [vmem:[%s579 + $0x140] sm:$0xff]
        %v732 = vld [vmem:[%s579 + $0x148] sm:$0xff]
        %v733 = vld [vmem:[%s579 + $0x150] sm:$0xff]
        %v734 = vld [vmem:[%s579 + $0x158] sm:$0xff]
        %v735 = vld [vmem:[%s579 + $0x160] sm:$0xff]
        %v736 = vld [vmem:[%s579 + $0x168] sm:$0xff]
        %v737 = vld [vmem:[%s579 + $0x170] sm:$0xff]
        %v738 = vld [vmem:[%s579 + $0x178] sm:$0xff]
        %v739 = vld [vmem:[%s579 + $0x180] sm:$0xff]
        %v740 = vld [vmem:[%s579 + $0x188] sm:$0xff]
        %v741 = vld [vmem:[%s579 + $0x190] sm:$0xff]
        %v742 = vld [vmem:[%s579 + $0x198] sm:$0xff]
        %v743 = vld [vmem:[%s579 + $0x1a0] sm:$0xff]
        %v744 = vld [vmem:[%s579 + $0x1a8] sm:$0xff]
        %v745 = vld [vmem:[%s579 + $0x1b0] sm:$0xff]
        %v746 = vld [vmem:[%s579 + $0x1b8] sm:$0xff]
        %v747 = vld [vmem:[%s579 + $0x1c0] sm:$0xff]
        %v748 = vld [vmem:[%s579 + $0x1c8] sm:$0xff]
        %v749 = vld [vmem:[%s579 + $0x1d0] sm:$0xff]
        %v750 = vld [vmem:[%s579 + $0x1d8] sm:$0xff]
        %v751 = vld [vmem:[%s579 + $0x1e0] sm:$0xff]
        %v752 = vld [vmem:[%s579 + $0x1e8] sm:$0xff]
        %v753 = vld [vmem:[%s579 + $0x1f0] sm:$0xff]
        %v754 = vld [vmem:[%s579 + $0x1f8] sm:$0xff]
        %v755 = vld [vmem:[%s579 + $0x200] sm:$0xff]
        %v756 = vld [vmem:[%s579 + $0x208] sm:$0xff]
        %v757 = vld [vmem:[%s579 + $0x210] sm:$0xff]
        %v758 = vld [vmem:[%s579 + $0x218] sm:$0xff]
        %v759 = vld [vmem:[%s579 + $0x220] sm:$0xff]
        %v760 = vld [vmem:[%s579 + $0x228] sm:$0xff]
        %v761 = vld [vmem:[%s579 + $0x230] sm:$0xff]
        %v762 = vld [vmem:[%s579 + $0x238] sm:$0xff]
        %v763 = vld [vmem:[%s3] sm:$0xff]
        %v764 = vld [vmem:[%s3 + $0x8] sm:$0xff]
        %v765 = vld [vmem:[%s3 + $0x10] sm:$0xff]
        %v766 = vld [vmem:[%s3 + $0x18] sm:$0xff]
        %v767 = vld [vmem:[%s3 + $0x20] sm:$0xff]
        %v768 = vld [vmem:[%s3 + $0x28] sm:$0xff]
        %v769 = vld [vmem:[%s3 + $0x30] sm:$0xff]
        %v770 = vld [vmem:[%s3 + $0x38] sm:$0xff]
        %v771 = vld [vmem:[%s6] sm:$0x1]
        %v773 = vlaneseq
        %v774 = vshrl.u32 %v773, 7
        %v775 = vsub.s32 0, %v774
        %v776 = vrot.slane %v771, %v775
        %v779 = vsel %vm617, %v691, 0
        %v782 = vsel %vm617, %v692, 0
        %v785 = vsel %vm617, %v693, 0
        %v788 = vsel %vm617, %v694, 0
        %v791 = vsel %vm617, %v695, 0
        %v794 = vsel %vm617, %v696, 0
        %v797 = vsel %vm617, %v697, 0
        %v800 = vsel %vm617, %v698, 0
        %v803 = vsel %vm617, %v699, 0
        %v806 = vsel %vm617, %v700, 0
        %v809 = vsel %vm617, %v701, 0
        %v812 = vsel %vm617, %v702, 0
        %v815 = vsel %vm617, %v703, 0
        %v818 = vsel %vm617, %v704, 0
        %v821 = vsel %vm617, %v705, 0
        %v824 = vsel %vm617, %v706, 0
        %v827 = vsel %vm617, %v707, 0
        %v830 = vsel %vm617, %v708, 0
        %v833 = vsel %vm617, %v709, 0
        %v836 = vsel %vm617, %v710, 0
        %v839 = vsel %vm617, %v711, 0
        %v842 = vsel %vm617, %v712, 0
        %v845 = vsel %vm617, %v713, 0
        %v848 = vsel %vm617, %v714, 0
        %v851 = vsel %vm617, %v715, 0
        %v854 = vsel %vm617, %v716, 0
        %v857 = vsel %vm617, %v717, 0
        %v860 = vsel %vm617, %v718, 0
        %v863 = vsel %vm617, %v719, 0
        %v866 = vsel %vm617, %v720, 0
        %v869 = vsel %vm617, %v721, 0
        %v872 = vsel %vm617, %v722, 0
        %v875 = vsel %vm617, %v723, 0
        %v878 = vsel %vm617, %v724, 0
        %v881 = vsel %vm617, %v725, 0
        %v884 = vsel %vm617, %v726, 0
        %v887 = vsel %vm617, %v727, 0
        %v890 = vsel %vm617, %v728, 0
        %v893 = vsel %vm617, %v729, 0
        %v896 = vsel %vm617, %v730, 0
        %v899 = vsel %vm617, %v731, 0
        %v902 = vsel %vm617, %v732, 0
        %v905 = vsel %vm617, %v733, 0
        %v908 = vsel %vm617, %v734, 0
        %v911 = vsel %vm617, %v735, 0
        %v914 = vsel %vm617, %v736, 0
        %v917 = vsel %vm617, %v737, 0
        %v920 = vsel %vm617, %v738, 0
        %v923 = vsel %vm617, %v739, 0
        %v926 = vsel %vm617, %v740, 0
        %v929 = vsel %vm617, %v741, 0
        %v932 = vsel %vm617, %v742, 0
        %v935 = vsel %vm617, %v743, 0
        %v938 = vsel %vm617, %v744, 0
        %v941 = vsel %vm617, %v745, 0
        %v944 = vsel %vm617, %v746, 0
        %v947 = vsel %vm617, %v747, 0
        %v950 = vsel %vm617, %v748, 0
        %v953 = vsel %vm617, %v749, 0
        %v956 = vsel %vm617, %v750, 0
        %v959 = vsel %vm617, %v751, 0
        %v962 = vsel %vm617, %v752, 0
        %v965 = vsel %vm617, %v753, 0
        %v968 = vsel %vm617, %v754, 0
        %v971 = vsel %vm617, %v755, 0
        %v974 = vsel %vm617, %v756, 0
        %v977 = vsel %vm617, %v757, 0
        %v980 = vsel %vm617, %v758, 0
        %v983 = vsel %vm617, %v759, 0
        %v986 = vsel %vm617, %v760, 0
        %v989 = vsel %vm617, %v761, 0
        %v992 = vsel %vm617, %v762, 0
        %994 = vmatprep.subr.mxu0 0.0
        %995 = vmatpush1.msra.mxu0 %v763
        %996 = vmatprep.subr.mxu0 0.0
        %997 = vmatpush1.msra.mxu0 %v764
        %998 = vmatprep.subr.mxu0 0.0
        %999 = vmatpush1.msra.mxu0 %v765
        %1000 = vmatprep.subr.mxu0 0.0
        %1001 = vmatpush1.msra.mxu0 %v766
        %1002 = vmatprep.subr.mxu0 0.0
        %1003 = vmatpush1.msra.mxu0 %v767
        %1004 = vmatprep.subr.mxu0 0.0
        %1005 = vmatpush1.msra.mxu0 %v768
        %1006 = vmatprep.subr.mxu0 0.0
        %1007 = vmatpush1.msra.mxu0 %v769
        %1008 = vmatprep.subr.mxu0 0.0
        %1009 = vmatpush1.msra.mxu0 %v770
        %1010 = vmatprep.subr.mxu0 0.0
        %1011 = vmatpush1.msra.mxu0 0.0
        %1012 = vmatprep.subr.mxu0 0.0
        %1013 = vmatpush1.msra.mxu0 0.0
        %1014 = vmatprep.subr.mxu0 0.0
        %1015 = vmatpush1.msra.mxu0 0.0
        %1016 = vmatprep.subr.mxu0 0.0
        %1017 = vmatpush1.msra.mxu0 0.0
        %1018 = vmatprep.subr.mxu0 0.0
        %1019 = vmatpush1.msra.mxu0 0.0
        %1020 = vmatprep.subr.mxu0 0.0
        %1021 = vmatpush1.msra.mxu0 0.0
        %1022 = vmatprep.subr.mxu0 0.0
        %1023 = vmatpush1.msra.mxu0 0.0
        %1024 = vmatprep.subr.mxu0 0.0
        %1025 = vmatpush1.msra.mxu0 0.0
        %1026 = vmatprep.subr.mxu0 0.0
        %1027 = vmatpush1.msra.mxu0 0.0
        %1028 = vmatprep.subr.mxu0 0.0
        %1029 = vmatpush1.msra.mxu0 0.0
        %1030 = vmatprep.subr.mxu0 0.0
        %1031 = vmatpush1.msra.mxu0 0.0
        %1032 = vmatprep.subr.mxu0 0.0
        %1033 = vmatpush1.msra.mxu0 0.0
        %1034 = vmatprep.subr.mxu0 0.0
        %1035 = vmatpush1.msra.mxu0 0.0
        %1036 = vmatprep.subr.mxu0 0.0
        %1037 = vmatpush1.msra.mxu0 0.0
        %1038 = vmatprep.subr.mxu0 0.0
        %1039 = vmatpush1.msra.mxu0 0.0
        %1040 = vmatprep.subr.mxu0 0.0
        %1041 = vmatpush1.msra.mxu0 0.0
        %1042 = vmatprep.subr.mxu0 0.0
        %1043 = vmatpush1.msra.mxu0 0.0
        %1044 = vmatprep.subr.mxu0 0.0
        %1045 = vmatpush1.msra.mxu0 0.0
        %1046 = vmatprep.subr.mxu0 0.0
        %1047 = vmatpush1.msra.mxu0 0.0
        %1048 = vmatprep.subr.mxu0 0.0
        %1049 = vmatpush1.msra.mxu0 0.0
        %1050 = vmatprep.subr.mxu0 0.0
        %1051 = vmatpush1.msra.mxu0 0.0
        %1052 = vmatprep.subr.mxu0 0.0
        %1053 = vmatpush1.msra.mxu0 0.0
        %1054 = vmatprep.subr.mxu0 0.0
        %1055 = vmatpush1.msra.mxu0 0.0
        %1056 = vmatprep.subr.mxu0 0.0
        %1057 = vmatpush1.msra.mxu0 0.0
        %1058 = vmatprep.mubr.f32.mxu0 0.0
        %1059 = vmatmul.mubr.f32.gmra.mrb[0].mxu0 %v779
        %v1060 = vpop.f32.mrb[0].mxu0
        %v1061 = vadd.f32 %v776, %v1060
        %v1062 = vpop.f32.mrb[0].mxu0
        %1063 = vmatprep.mubr.f32.mxu0 0.0
        %1064 = vmatmul.mubr.f32.gmra.mrb[0].mxu0 %v782
        %v1065 = vpop.f32.mrb[0].mxu0
        %v1066 = vadd.f32 %v776, %v1065
        %v1067 = vpop.f32.mrb[0].mxu0
        %1068 = vmatprep.mubr.f32.mxu0 0.0
        %1069 = vmatmul.mubr.f32.gmra.mrb[0].mxu0 %v785
        %v1070 = vpop.f32.mrb[0].mxu0
        %v1071 = vadd.f32 %v776, %v1070
        %v1072 = vpop.f32.mrb[0].mxu0
        %1073 = vmatprep.mubr.f32.mxu0 0.0
        %1074 = vmatmul.mubr.f32.gmra.mrb[0].mxu0 %v788
        %v1075 = vpop.f32.mrb[0].mxu0
        %v1076 = vadd.f32 %v776, %v1075
        %v1077 = vpop.f32.mrb[0].mxu0
        %1078 = vmatprep.mubr.f32.mxu0 0.0
        %1079 = vmatmul.mubr.f32.gmra.mrb[0].mxu0 %v791
        %v1080 = vpop.f32.mrb[0].mxu0
        %v1081 = vadd.f32 %v776, %v1080
        %v1082 = vpop.f32.mrb[0].mxu0
        %1083 = vmatprep.mubr.f32.mxu0 0.0
        %1084 = vmatmul.mubr.f32.gmra.mrb[0].mxu0 %v794
        %v1085 = vpop.f32.mrb[0].mxu0
        %v1086 = vadd.f32 %v776, %v1085
        %v1087 = vpop.f32.mrb[0].mxu0
        %1088 = vmatprep.mubr.f32.mxu0 0.0
        %1089 = vmatmul.mubr.f32.gmra.mrb[0].mxu0 %v797
        %v1090 = vpop.f32.mrb[0].mxu0
        %v1091 = vadd.f32 %v776, %v1090
        %v1092 = vpop.f32.mrb[0].mxu0
        %1093 = vmatprep.mubr.f32.mxu0 0.0
        %1094 = vmatmul.mubr.f32.gmra.mrb[0].mxu0 %v800
        %v1095 = vpop.f32.mrb[0].mxu0
        %v1096 = vadd.f32 %v776, %v1095
        %v1097 = vpop.f32.mrb[0].mxu0
        %1098 = vmatprep.mubr.f32.mxu0 0.0
        %1099 = vmatmul.mubr.f32.gmra.mrb[0].mxu0 %v803
        %v1100 = vpop.f32.mrb[0].mxu0
        %v1101 = vadd.f32 %v776, %v1100
        %v1102 = vpop.f32.mrb[0].mxu0
        %1103 = vmatprep.mubr.f32.mxu0 0.0
        %1104 = vmatmul.mubr.f32.gmra.mrb[0].mxu0 %v806
        %v1105 = vpop.f32.mrb[0].mxu0
        %v1106 = vadd.f32 %v776, %v1105
        %v1107 = vpop.f32.mrb[0].mxu0
        %1108 = vmatprep.mubr.f32.mxu0 0.0
        %1109 = vmatmul.mubr.f32.gmra.mrb[0].mxu0 %v809
        %v1110 = vpop.f32.mrb[0].mxu0
        %v1111 = vadd.f32 %v776, %v1110
        %v1112 = vpop.f32.mrb[0].mxu0
        %1113 = vmatprep.mubr.f32.mxu0 0.0
        %1114 = vmatmul.mubr.f32.gmra.mrb[0].mxu0 %v812
        %v1115 = vpop.f32.mrb[0].mxu0
        %v1116 = vadd.f32 %v776, %v1115
        %v1117 = vpop.f32.mrb[0].mxu0
        %1118 = vmatprep.mubr.f32.mxu0 0.0
        %1119 = vmatmul.mubr.f32.gmra.mrb[0].mxu0 %v815
        %v1120 = vpop.f32.mrb[0].mxu0
        %v1121 = vadd.f32 %v776, %v1120
        %v1122 = vpop.f32.mrb[0].mxu0
        %1123 = vmatprep.mubr.f32.mxu0 0.0
        %1124 = vmatmul.mubr.f32.gmra.mrb[0].mxu0 %v818
        %v1125 = vpop.f32.mrb[0].mxu0
        %v1126 = vadd.f32 %v776, %v1125
        %v1127 = vpop.f32.mrb[0].mxu0
        %1128 = vmatprep.mubr.f32.mxu0 0.0
        %1129 = vmatmul.mubr.f32.gmra.mrb[0].mxu0 %v821
        %v1130 = vpop.f32.mrb[0].mxu0
        %v1131 = vadd.f32 %v776, %v1130
        %v1132 = vpop.f32.mrb[0].mxu0
        %1133 = vmatprep.mubr.f32.mxu0 0.0
        %1134 = vmatmul.mubr.f32.gmra.mrb[0].mxu0 %v824
        %v1135 = vpop.f32.mrb[0].mxu0
        %v1136 = vadd.f32 %v776, %v1135
        %v1137 = vpop.f32.mrb[0].mxu0
        %1138 = vmatprep.mubr.f32.mxu0 0.0
        %1139 = vmatmul.mubr.f32.gmra.mrb[0].mxu0 %v827
        %v1140 = vpop.f32.mrb[0].mxu0
        %v1141 = vadd.f32 %v776, %v1140
        %v1142 = vpop.f32.mrb[0].mxu0
        %1143 = vmatprep.mubr.f32.mxu0 0.0
        %1144 = vmatmul.mubr.f32.gmra.mrb[0].mxu0 %v830
        %v1145 = vpop.f32.mrb[0].mxu0
        %v1146 = vadd.f32 %v776, %v1145
        %v1147 = vpop.f32.mrb[0].mxu0
        %1148 = vmatprep.mubr.f32.mxu0 0.0
        %1149 = vmatmul.mubr.f32.gmra.mrb[0].mxu0 %v833
        %v1150 = vpop.f32.mrb[0].mxu0
        %v1151 = vadd.f32 %v776, %v1150
        %v1152 = vpop.f32.mrb[0].mxu0
        %1153 = vmatprep.mubr.f32.mxu0 0.0
        %1154 = vmatmul.mubr.f32.gmra.mrb[0].mxu0 %v836
        %v1155 = vpop.f32.mrb[0].mxu0
        %v1156 = vadd.f32 %v776, %v1155
        %v1157 = vpop.f32.mrb[0].mxu0
        %1158 = vmatprep.mubr.f32.mxu0 0.0
        %1159 = vmatmul.mubr.f32.gmra.mrb[0].mxu0 %v839
        %v1160 = vpop.f32.mrb[0].mxu0
        %v1161 = vadd.f32 %v776, %v1160
        %v1162 = vpop.f32.mrb[0].mxu0
        %1163 = vmatprep.mubr.f32.mxu0 0.0
        %1164 = vmatmul.mubr.f32.gmra.mrb[0].mxu0 %v842
        %v1165 = vpop.f32.mrb[0].mxu0
        %v1166 = vadd.f32 %v776, %v1165
        %v1167 = vpop.f32.mrb[0].mxu0
        %1168 = vmatprep.mubr.f32.mxu0 0.0
        %1169 = vmatmul.mubr.f32.gmra.mrb[0].mxu0 %v845
        %v1170 = vpop.f32.mrb[0].mxu0
        %v1171 = vadd.f32 %v776, %v1170
        %v1172 = vpop.f32.mrb[0].mxu0
        %1173 = vmatprep.mubr.f32.mxu0 0.0
        %1174 = vmatmul.mubr.f32.gmra.mrb[0].mxu0 %v848
        %v1175 = vpop.f32.mrb[0].mxu0
        %v1176 = vadd.f32 %v776, %v1175
        %v1177 = vpop.f32.mrb[0].mxu0
        %1178 = vmatprep.mubr.f32.mxu0 0.0
        %1179 = vmatmul.mubr.f32.gmra.mrb[0].mxu0 %v851
        %v1180 = vpop.f32.mrb[0].mxu0
        %v1181 = vadd.f32 %v776, %v1180
        %v1182 = vpop.f32.mrb[0].mxu0
        %1183 = vmatprep.mubr.f32.mxu0 0.0
        %1184 = vmatmul.mubr.f32.gmra.mrb[0].mxu0 %v854
        %v1185 = vpop.f32.mrb[0].mxu0
        %v1186 = vadd.f32 %v776, %v1185
        %v1187 = vpop.f32.mrb[0].mxu0
        %1188 = vmatprep.mubr.f32.mxu0 0.0
        %1189 = vmatmul.mubr.f32.gmra.mrb[0].mxu0 %v857
        %v1190 = vpop.f32.mrb[0].mxu0
        %v1191 = vadd.f32 %v776, %v1190
        %v1192 = vpop.f32.mrb[0].mxu0
        %1193 = vmatprep.mubr.f32.mxu0 0.0
        %1194 = vmatmul.mubr.f32.gmra.mrb[0].mxu0 %v860
        %v1195 = vpop.f32.mrb[0].mxu0
        %v1196 = vadd.f32 %v776, %v1195
        %v1197 = vpop.f32.mrb[0].mxu0
        %1198 = vmatprep.mubr.f32.mxu0 0.0
        %1199 = vmatmul.mubr.f32.gmra.mrb[0].mxu0 %v863
        %v1200 = vpop.f32.mrb[0].mxu0
        %v1201 = vadd.f32 %v776, %v1200
        %v1202 = vpop.f32.mrb[0].mxu0
        %1203 = vmatprep.mubr.f32.mxu0 0.0
        %1204 = vmatmul.mubr.f32.gmra.mrb[0].mxu0 %v866
        %v1205 = vpop.f32.mrb[0].mxu0
        %v1206 = vadd.f32 %v776, %v1205
        %v1207 = vpop.f32.mrb[0].mxu0
        %1208 = vmatprep.mubr.f32.mxu0 0.0
        %1209 = vmatmul.mubr.f32.gmra.mrb[0].mxu0 %v869
        %v1210 = vpop.f32.mrb[0].mxu0
        %v1211 = vadd.f32 %v776, %v1210
        %v1212 = vpop.f32.mrb[0].mxu0
        %1213 = vmatprep.mubr.f32.mxu0 0.0
        %1214 = vmatmul.mubr.f32.gmra.mrb[0].mxu0 %v872
        %v1215 = vpop.f32.mrb[0].mxu0
        %v1216 = vadd.f32 %v776, %v1215
        %v1217 = vpop.f32.mrb[0].mxu0
        %1218 = vmatprep.mubr.f32.mxu0 0.0
        %1219 = vmatmul.mubr.f32.gmra.mrb[0].mxu0 %v875
        %v1220 = vpop.f32.mrb[0].mxu0
        %v1221 = vadd.f32 %v776, %v1220
        %v1222 = vpop.f32.mrb[0].mxu0
        %1223 = vmatprep.mubr.f32.mxu0 0.0
        %1224 = vmatmul.mubr.f32.gmra.mrb[0].mxu0 %v878
        %v1225 = vpop.f32.mrb[0].mxu0
        %v1226 = vadd.f32 %v776, %v1225
        %v1227 = vpop.f32.mrb[0].mxu0
        %1228 = vmatprep.mubr.f32.mxu0 0.0
        %1229 = vmatmul.mubr.f32.gmra.mrb[0].mxu0 %v881
        %v1230 = vpop.f32.mrb[0].mxu0
        %v1231 = vadd.f32 %v776, %v1230
        %v1232 = vpop.f32.mrb[0].mxu0
        %1233 = vmatprep.mubr.f32.mxu0 0.0
        %1234 = vmatmul.mubr.f32.gmra.mrb[0].mxu0 %v884
        %v1235 = vpop.f32.mrb[0].mxu0
        %v1236 = vadd.f32 %v776, %v1235
        %v1237 = vpop.f32.mrb[0].mxu0
        %1238 = vmatprep.mubr.f32.mxu0 0.0
        %1239 = vmatmul.mubr.f32.gmra.mrb[0].mxu0 %v887
        %v1240 = vpop.f32.mrb[0].mxu0
        %v1241 = vadd.f32 %v776, %v1240
        %v1242 = vpop.f32.mrb[0].mxu0
        %1243 = vmatprep.mubr.f32.mxu0 0.0
        %1244 = vmatmul.mubr.f32.gmra.mrb[0].mxu0 %v890
        %v1245 = vpop.f32.mrb[0].mxu0
        %v1246 = vadd.f32 %v776, %v1245
        %v1247 = vpop.f32.mrb[0].mxu0
        %1248 = vmatprep.mubr.f32.mxu0 0.0
        %1249 = vmatmul.mubr.f32.gmra.mrb[0].mxu0 %v893
        %v1250 = vpop.f32.mrb[0].mxu0
        %v1251 = vadd.f32 %v776, %v1250
        %v1252 = vpop.f32.mrb[0].mxu0
        %1253 = vmatprep.mubr.f32.mxu0 0.0
        %1254 = vmatmul.mubr.f32.gmra.mrb[0].mxu0 %v896
        %v1255 = vpop.f32.mrb[0].mxu0
        %v1256 = vadd.f32 %v776, %v1255
        %v1257 = vpop.f32.mrb[0].mxu0
        %1258 = vmatprep.mubr.f32.mxu0 0.0
        %1259 = vmatmul.mubr.f32.gmra.mrb[0].mxu0 %v899
        %v1260 = vpop.f32.mrb[0].mxu0
        %v1261 = vadd.f32 %v776, %v1260
        %v1262 = vpop.f32.mrb[0].mxu0
        %1263 = vmatprep.mubr.f32.mxu0 0.0
        %1264 = vmatmul.mubr.f32.gmra.mrb[0].mxu0 %v902
        %v1265 = vpop.f32.mrb[0].mxu0
        %v1266 = vadd.f32 %v776, %v1265
        %v1267 = vpop.f32.mrb[0].mxu0
        %1268 = vmatprep.mubr.f32.mxu0 0.0
        %1269 = vmatmul.mubr.f32.gmra.mrb[0].mxu0 %v905
        %v1270 = vpop.f32.mrb[0].mxu0
        %v1271 = vadd.f32 %v776, %v1270
        %v1272 = vpop.f32.mrb[0].mxu0
        %1273 = vmatprep.mubr.f32.mxu0 0.0
        %1274 = vmatmul.mubr.f32.gmra.mrb[0].mxu0 %v908
        %v1275 = vpop.f32.mrb[0].mxu0
        %v1276 = vadd.f32 %v776, %v1275
        %v1277 = vpop.f32.mrb[0].mxu0
        %1278 = vmatprep.mubr.f32.mxu0 0.0
        %1279 = vmatmul.mubr.f32.gmra.mrb[0].mxu0 %v911
        %v1280 = vpop.f32.mrb[0].mxu0
        %v1281 = vadd.f32 %v776, %v1280
        %v1282 = vpop.f32.mrb[0].mxu0
        %1283 = vmatprep.mubr.f32.mxu0 0.0
        %1284 = vmatmul.mubr.f32.gmra.mrb[0].mxu0 %v914
        %v1285 = vpop.f32.mrb[0].mxu0
        %v1286 = vadd.f32 %v776, %v1285
        %v1287 = vpop.f32.mrb[0].mxu0
        %1288 = vmatprep.mubr.f32.mxu0 0.0
        %1289 = vmatmul.mubr.f32.gmra.mrb[0].mxu0 %v917
        %v1290 = vpop.f32.mrb[0].mxu0
        %v1291 = vadd.f32 %v776, %v1290
        %v1292 = vpop.f32.mrb[0].mxu0
        %1293 = vmatprep.mubr.f32.mxu0 0.0
        %1294 = vmatmul.mubr.f32.gmra.mrb[0].mxu0 %v920
        %v1295 = vpop.f32.mrb[0].mxu0
        %v1296 = vadd.f32 %v776, %v1295
        %v1297 = vpop.f32.mrb[0].mxu0
        %1298 = vmatprep.mubr.f32.mxu0 0.0
        %1299 = vmatmul.mubr.f32.gmra.mrb[0].mxu0 %v923
        %v1300 = vpop.f32.mrb[0].mxu0
        %v1301 = vadd.f32 %v776, %v1300
        %v1302 = vpop.f32.mrb[0].mxu0
        %1303 = vmatprep.mubr.f32.mxu0 0.0
        %1304 = vmatmul.mubr.f32.gmra.mrb[0].mxu0 %v926
        %v1305 = vpop.f32.mrb[0].mxu0
        %v1306 = vadd.f32 %v776, %v1305
        %v1307 = vpop.f32.mrb[0].mxu0
        %1308 = vmatprep.mubr.f32.mxu0 0.0
        %1309 = vmatmul.mubr.f32.gmra.mrb[0].mxu0 %v929
        %v1310 = vpop.f32.mrb[0].mxu0
        %v1311 = vadd.f32 %v776, %v1310
        %v1312 = vpop.f32.mrb[0].mxu0
        %1313 = vmatprep.mubr.f32.mxu0 0.0
        %1314 = vmatmul.mubr.f32.gmra.mrb[0].mxu0 %v932
        %v1315 = vpop.f32.mrb[0].mxu0
        %v1316 = vadd.f32 %v776, %v1315
        %v1317 = vpop.f32.mrb[0].mxu0
        %1318 = vmatprep.mubr.f32.mxu0 0.0
        %1319 = vmatmul.mubr.f32.gmra.mrb[0].mxu0 %v935
        %v1320 = vpop.f32.mrb[0].mxu0
        %v1321 = vadd.f32 %v776, %v1320
        %v1322 = vpop.f32.mrb[0].mxu0
        %1323 = vmatprep.mubr.f32.mxu0 0.0
        %1324 = vmatmul.mubr.f32.gmra.mrb[0].mxu0 %v938
        %v1325 = vpop.f32.mrb[0].mxu0
        %v1326 = vadd.f32 %v776, %v1325
        %v1327 = vpop.f32.mrb[0].mxu0
        %1328 = vmatprep.mubr.f32.mxu0 0.0
        %1329 = vmatmul.mubr.f32.gmra.mrb[0].mxu0 %v941
        %v1330 = vpop.f32.mrb[0].mxu0
        %v1331 = vadd.f32 %v776, %v1330
        %v1332 = vpop.f32.mrb[0].mxu0
        %1333 = vmatprep.mubr.f32.mxu0 0.0
        %1334 = vmatmul.mubr.f32.gmra.mrb[0].mxu0 %v944
        %v1335 = vpop.f32.mrb[0].mxu0
        %v1336 = vadd.f32 %v776, %v1335
        %v1337 = vpop.f32.mrb[0].mxu0
        %1338 = vmatprep.mubr.f32.mxu0 0.0
        %1339 = vmatmul.mubr.f32.gmra.mrb[0].mxu0 %v947
        %v1340 = vpop.f32.mrb[0].mxu0
        %v1341 = vadd.f32 %v776, %v1340
        %v1342 = vpop.f32.mrb[0].mxu0
        %1343 = vmatprep.mubr.f32.mxu0 0.0
        %1344 = vmatmul.mubr.f32.gmra.mrb[0].mxu0 %v950
        %v1345 = vpop.f32.mrb[0].mxu0
        %v1346 = vadd.f32 %v776, %v1345
        %v1347 = vpop.f32.mrb[0].mxu0
        %1348 = vmatprep.mubr.f32.mxu0 0.0
        %1349 = vmatmul.mubr.f32.gmra.mrb[0].mxu0 %v953
        %v1350 = vpop.f32.mrb[0].mxu0
        %v1351 = vadd.f32 %v776, %v1350
        %v1352 = vpop.f32.mrb[0].mxu0
        %1353 = vmatprep.mubr.f32.mxu0 0.0
        %1354 = vmatmul.mubr.f32.gmra.mrb[0].mxu0 %v956
        %v1355 = vpop.f32.mrb[0].mxu0
        %v1356 = vadd.f32 %v776, %v1355
        %v1357 = vpop.f32.mrb[0].mxu0
        %1358 = vmatprep.mubr.f32.mxu0 0.0
        %1359 = vmatmul.mubr.f32.gmra.mrb[0].mxu0 %v959
        %v1360 = vpop.f32.mrb[0].mxu0
        %v1361 = vadd.f32 %v776, %v1360
        %v1362 = vpop.f32.mrb[0].mxu0
        %1363 = vmatprep.mubr.f32.mxu0 0.0
        %1364 = vmatmul.mubr.f32.gmra.mrb[0].mxu0 %v962
        %v1365 = vpop.f32.mrb[0].mxu0
        %v1366 = vadd.f32 %v776, %v1365
        %v1367 = vpop.f32.mrb[0].mxu0
        %1368 = vmatprep.mubr.f32.mxu0 0.0
        %1369 = vmatmul.mubr.f32.gmra.mrb[0].mxu0 %v965
        %v1370 = vpop.f32.mrb[0].mxu0
        %v1371 = vadd.f32 %v776, %v1370
        %v1372 = vpop.f32.mrb[0].mxu0
        %1373 = vmatprep.mubr.f32.mxu0 0.0
        %1374 = vmatmul.mubr.f32.gmra.mrb[0].mxu0 %v968
        %v1375 = vpop.f32.mrb[0].mxu0
        %v1376 = vadd.f32 %v776, %v1375
        %v1377 = vpop.f32.mrb[0].mxu0
        %1378 = vmatprep.mubr.f32.mxu0 0.0
        %1379 = vmatmul.mubr.f32.gmra.mrb[0].mxu0 %v971
        %v1380 = vpop.f32.mrb[0].mxu0
        %v1381 = vadd.f32 %v776, %v1380
        %v1382 = vpop.f32.mrb[0].mxu0
        %1383 = vmatprep.mubr.f32.mxu0 0.0
        %1384 = vmatmul.mubr.f32.gmra.mrb[0].mxu0 %v974
        %v1385 = vpop.f32.mrb[0].mxu0
        %v1386 = vadd.f32 %v776, %v1385
        %v1387 = vpop.f32.mrb[0].mxu0
        %1388 = vmatprep.mubr.f32.mxu0 0.0
        %1389 = vmatmul.mubr.f32.gmra.mrb[0].mxu0 %v977
        %v1390 = vpop.f32.mrb[0].mxu0
        %v1391 = vadd.f32 %v776, %v1390
        %v1392 = vpop.f32.mrb[0].mxu0
        %1393 = vmatprep.mubr.f32.mxu0 0.0
        %1394 = vmatmul.mubr.f32.gmra.mrb[0].mxu0 %v980
        %v1395 = vpop.f32.mrb[0].mxu0
        %v1396 = vadd.f32 %v776, %v1395
        %v1397 = vpop.f32.mrb[0].mxu0
        %1398 = vmatprep.mubr.f32.mxu0 0.0
        %1399 = vmatmul.mubr.f32.gmra.mrb[0].mxu0 %v983
        %v1400 = vpop.f32.mrb[0].mxu0
        %v1401 = vadd.f32 %v776, %v1400
        %v1402 = vpop.f32.mrb[0].mxu0
        %1403 = vmatprep.mubr.f32.mxu0 0.0
        %1404 = vmatmul.mubr.f32.gmra.mrb[0].mxu0 %v986
        %v1405 = vpop.f32.mrb[0].mxu0
        %v1406 = vadd.f32 %v776, %v1405
        %v1407 = vpop.f32.mrb[0].mxu0
        %1408 = vmatprep.mubr.f32.mxu0 0.0
        %1409 = vmatmul.mubr.f32.gmra.mrb[0].mxu0 %v989
        %v1410 = vpop.f32.mrb[0].mxu0
        %v1411 = vadd.f32 %v776, %v1410
        %v1412 = vpop.f32.mrb[0].mxu0
        %1413 = vmatprep.mubr.f32.mxu0 0.0
        %1414 = vmatmul.mubr.f32.gmra.mrb[0].mxu0 %v992
        %v1415 = vpop.f32.mrb[0].mxu0
        %v1416 = vadd.f32 %v776, %v1415
        %v1417 = vpop.f32.mrb[0].mxu0
        %1418 = vdwg.mxu0
        %v1419 = vld [vmem:[%s4] sm:$0xff]
        %v1420 = vld [vmem:[%s4 + $0x8] sm:$0xff]
        %v1421 = vld [vmem:[%s4 + $0x10] sm:$0xff]
        %v1422 = vld [vmem:[%s4 + $0x18] sm:$0xff]
        %v1423 = vld [vmem:[%s4 + $0x20] sm:$0xff]
        %v1424 = vld [vmem:[%s4 + $0x28] sm:$0xff]
        %v1425 = vld [vmem:[%s4 + $0x30] sm:$0xff]
        %v1426 = vld [vmem:[%s4 + $0x38] sm:$0xff]
        %v1427 = vld [vmem:[%s7] sm:$0x1]
        %v1429 = vlaneseq
        %v1430 = vshrl.u32 %v1429, 7
        %v1431 = vsub.s32 0, %v1430
        %v1432 = vrot.slane %v1427, %v1431
        %1434 = vmatprep.subr.mxu0 0.0
        %1435 = vmatpush1.msra.mxu0 %v1419
        %1436 = vmatprep.subr.mxu0 0.0
        %1437 = vmatpush1.msra.mxu0 %v1420
        %1438 = vmatprep.subr.mxu0 0.0
        %1439 = vmatpush1.msra.mxu0 %v1421
        %1440 = vmatprep.subr.mxu0 0.0
        %1441 = vmatpush1.msra.mxu0 %v1422
        %1442 = vmatprep.subr.mxu0 0.0
        %1443 = vmatpush1.msra.mxu0 %v1423
        %1444 = vmatprep.subr.mxu0 0.0
        %1445 = vmatpush1.msra.mxu0 %v1424
        %1446 = vmatprep.subr.mxu0 0.0
        %1447 = vmatpush1.msra.mxu0 %v1425
        %1448 = vmatprep.subr.mxu0 0.0
        %1449 = vmatpush1.msra.mxu0 %v1426
        %1450 = vmatprep.subr.mxu0 0.0
        %1451 = vmatpush1.msra.mxu0 0.0
        %1452 = vmatprep.subr.mxu0 0.0
        %1453 = vmatpush1.msra.mxu0 0.0
        %1454 = vmatprep.subr.mxu0 0.0
        %1455 = vmatpush1.msra.mxu0 0.0
        %1456 = vmatprep.subr.mxu0 0.0
        %1457 = vmatpush1.msra.mxu0 0.0
        %1458 = vmatprep.subr.mxu0 0.0
        %1459 = vmatpush1.msra.mxu0 0.0
        %1460 = vmatprep.subr.mxu0 0.0
        %1461 = vmatpush1.msra.mxu0 0.0
        %1462 = vmatprep.subr.mxu0 0.0
        %1463 = vmatpush1.msra.mxu0 0.0
        %1464 = vmatprep.subr.mxu0 0.0
        %1465 = vmatpush1.msra.mxu0 0.0
        %1466 = vmatprep.subr.mxu0 0.0
        %1467 = vmatpush1.msra.mxu0 0.0
        %1468 = vmatprep.subr.mxu0 0.0
        %1469 = vmatpush1.msra.mxu0 0.0
        %1470 = vmatprep.subr.mxu0 0.0
        %1471 = vmatpush1.msra.mxu0 0.0
        %1472 = vmatprep.subr.mxu0 0.0
        %1473 = vmatpush1.msra.mxu0 0.0
        %1474 = vmatprep.subr.mxu0 0.0
        %1475 = vmatpush1.msra.mxu0 0.0
        %1476 = vmatprep.subr.mxu0 0.0
        %1477 = vmatpush1.msra.mxu0 0.0
        %1478 = vmatprep.subr.mxu0 0.0
        %1479 = vmatpush1.msra.mxu0 0.0
        %1480 = vmatprep.subr.mxu0 0.0
        %1481 = vmatpush1.msra.mxu0 0.0
        %1482 = vmatprep.subr.mxu0 0.0
        %1483 = vmatpush1.msra.mxu0 0.0
        %1484 = vmatprep.subr.mxu0 0.0
        %1485 = vmatpush1.msra.mxu0 0.0
        %1486 = vmatprep.subr.mxu0 0.0
        %1487 = vmatpush1.msra.mxu0 0.0
        %1488 = vmatprep.subr.mxu0 0.0
        %1489 = vmatpush1.msra.mxu0 0.0
        %1490 = vmatprep.subr.mxu0 0.0
        %1491 = vmatpush1.msra.mxu0 0.0
        %1492 = vmatprep.subr.mxu0 0.0
        %1493 = vmatpush1.msra.mxu0 0.0
        %1494 = vmatprep.subr.mxu0 0.0
        %1495 = vmatpush1.msra.mxu0 0.0
        %1496 = vmatprep.subr.mxu0 0.0
        %1497 = vmatpush1.msra.mxu0 0.0
        %1498 = vmatprep.mubr.f32.mxu0 0.0
        %1499 = vmatmul.mubr.f32.gmra.mrb[0].mxu0 %v779
        %v1500 = vpop.f32.mrb[0].mxu0
        %v1501 = vadd.f32 %v1432, %v1500
        %v1502 = vpop.f32.mrb[0].mxu0
        %1503 = vmatprep.mubr.f32.mxu0 0.0
        %1504 = vmatmul.mubr.f32.gmra.mrb[0].mxu0 %v782
        %v1505 = vpop.f32.mrb[0].mxu0
        %v1506 = vadd.f32 %v1432, %v1505
        %v1507 = vpop.f32.mrb[0].mxu0
        %1508 = vmatprep.mubr.f32.mxu0 0.0
        %1509 = vmatmul.mubr.f32.gmra.mrb[0].mxu0 %v785
        %v1510 = vpop.f32.mrb[0].mxu0
        %v1511 = vadd.f32 %v1432, %v1510
        %v1512 = vpop.f32.mrb[0].mxu0
        %1513 = vmatprep.mubr.f32.mxu0 0.0
        %1514 = vmatmul.mubr.f32.gmra.mrb[0].mxu0 %v788
        %v1515 = vpop.f32.mrb[0].mxu0
        %v1516 = vadd.f32 %v1432, %v1515
        %v1517 = vpop.f32.mrb[0].mxu0
        %1518 = vmatprep.mubr.f32.mxu0 0.0
        %1519 = vmatmul.mubr.f32.gmra.mrb[0].mxu0 %v791
        %v1520 = vpop.f32.mrb[0].mxu0
        %v1521 = vadd.f32 %v1432, %v1520
        %v1522 = vpop.f32.mrb[0].mxu0
        %1523 = vmatprep.mubr.f32.mxu0 0.0
        %1524 = vmatmul.mubr.f32.gmra.mrb[0].mxu0 %v794
        %v1525 = vpop.f32.mrb[0].mxu0
        %v1526 = vadd.f32 %v1432, %v1525
        %v1527 = vpop.f32.mrb[0].mxu0
        %1528 = vmatprep.mubr.f32.mxu0 0.0
        %1529 = vmatmul.mubr.f32.gmra.mrb[0].mxu0 %v797
        %v1530 = vpop.f32.mrb[0].mxu0
        %v1531 = vadd.f32 %v1432, %v1530
        %v1532 = vpop.f32.mrb[0].mxu0
        %1533 = vmatprep.mubr.f32.mxu0 0.0
        %1534 = vmatmul.mubr.f32.gmra.mrb[0].mxu0 %v800
        %v1535 = vpop.f32.mrb[0].mxu0
        %v1536 = vadd.f32 %v1432, %v1535
        %v1537 = vpop.f32.mrb[0].mxu0
        %1538 = vmatprep.mubr.f32.mxu0 0.0
        %1539 = vmatmul.mubr.f32.gmra.mrb[0].mxu0 %v803
        %v1540 = vpop.f32.mrb[0].mxu0
        %v1541 = vadd.f32 %v1432, %v1540
        %v1542 = vpop.f32.mrb[0].mxu0
        %1543 = vmatprep.mubr.f32.mxu0 0.0
        %1544 = vmatmul.mubr.f32.gmra.mrb[0].mxu0 %v806
        %v1545 = vpop.f32.mrb[0].mxu0
        %v1546 = vadd.f32 %v1432, %v1545
        %v1547 = vpop.f32.mrb[0].mxu0
        %1548 = vmatprep.mubr.f32.mxu0 0.0
        %1549 = vmatmul.mubr.f32.gmra.mrb[0].mxu0 %v809
        %v1550 = vpop.f32.mrb[0].mxu0
        %v1551 = vadd.f32 %v1432, %v1550
        %v1552 = vpop.f32.mrb[0].mxu0
        %1553 = vmatprep.mubr.f32.mxu0 0.0
        %1554 = vmatmul.mubr.f32.gmra.mrb[0].mxu0 %v812
        %v1555 = vpop.f32.mrb[0].mxu0
        %v1556 = vadd.f32 %v1432, %v1555
        %v1557 = vpop.f32.mrb[0].mxu0
        %1558 = vmatprep.mubr.f32.mxu0 0.0
        %1559 = vmatmul.mubr.f32.gmra.mrb[0].mxu0 %v815
        %v1560 = vpop.f32.mrb[0].mxu0
        %v1561 = vadd.f32 %v1432, %v1560
        %v1562 = vpop.f32.mrb[0].mxu0
        %1563 = vmatprep.mubr.f32.mxu0 0.0
        %1564 = vmatmul.mubr.f32.gmra.mrb[0].mxu0 %v818
        %v1565 = vpop.f32.mrb[0].mxu0
        %v1566 = vadd.f32 %v1432, %v1565
        %v1567 = vpop.f32.mrb[0].mxu0
        %1568 = vmatprep.mubr.f32.mxu0 0.0
        %1569 = vmatmul.mubr.f32.gmra.mrb[0].mxu0 %v821
        %v1570 = vpop.f32.mrb[0].mxu0
        %v1571 = vadd.f32 %v1432, %v1570
        %v1572 = vpop.f32.mrb[0].mxu0
        %1573 = vmatprep.mubr.f32.mxu0 0.0
        %1574 = vmatmul.mubr.f32.gmra.mrb[0].mxu0 %v824
        %v1575 = vpop.f32.mrb[0].mxu0
        %v1576 = vadd.f32 %v1432, %v1575
        %v1577 = vpop.f32.mrb[0].mxu0
        %1578 = vmatprep.mubr.f32.mxu0 0.0
        %1579 = vmatmul.mubr.f32.gmra.mrb[0].mxu0 %v827
        %v1580 = vpop.f32.mrb[0].mxu0
        %v1581 = vadd.f32 %v1432, %v1580
        %v1582 = vpop.f32.mrb[0].mxu0
        %1583 = vmatprep.mubr.f32.mxu0 0.0
        %1584 = vmatmul.mubr.f32.gmra.mrb[0].mxu0 %v830
        %v1585 = vpop.f32.mrb[0].mxu0
        %v1586 = vadd.f32 %v1432, %v1585
        %v1587 = vpop.f32.mrb[0].mxu0
        %1588 = vmatprep.mubr.f32.mxu0 0.0
        %1589 = vmatmul.mubr.f32.gmra.mrb[0].mxu0 %v833
        %v1590 = vpop.f32.mrb[0].mxu0
        %v1591 = vadd.f32 %v1432, %v1590
        %v1592 = vpop.f32.mrb[0].mxu0
        %1593 = vmatprep.mubr.f32.mxu0 0.0
        %1594 = vmatmul.mubr.f32.gmra.mrb[0].mxu0 %v836
        %v1595 = vpop.f32.mrb[0].mxu0
        %v1596 = vadd.f32 %v1432, %v1595
        %v1597 = vpop.f32.mrb[0].mxu0
        %1598 = vmatprep.mubr.f32.mxu0 0.0
        %1599 = vmatmul.mubr.f32.gmra.mrb[0].mxu0 %v839
        %v1600 = vpop.f32.mrb[0].mxu0
        %v1601 = vadd.f32 %v1432, %v1600
        %v1602 = vpop.f32.mrb[0].mxu0
        %1603 = vmatprep.mubr.f32.mxu0 0.0
        %1604 = vmatmul.mubr.f32.gmra.mrb[0].mxu0 %v842
        %v1605 = vpop.f32.mrb[0].mxu0
        %v1606 = vadd.f32 %v1432, %v1605
        %v1607 = vpop.f32.mrb[0].mxu0
        %1608 = vmatprep.mubr.f32.mxu0 0.0
        %1609 = vmatmul.mubr.f32.gmra.mrb[0].mxu0 %v845
        %v1610 = vpop.f32.mrb[0].mxu0
        %v1611 = vadd.f32 %v1432, %v1610
        %v1612 = vpop.f32.mrb[0].mxu0
        %1613 = vmatprep.mubr.f32.mxu0 0.0
        %1614 = vmatmul.mubr.f32.gmra.mrb[0].mxu0 %v848
        %v1615 = vpop.f32.mrb[0].mxu0
        %v1616 = vadd.f32 %v1432, %v1615
        %v1617 = vpop.f32.mrb[0].mxu0
        %1618 = vmatprep.mubr.f32.mxu0 0.0
        %1619 = vmatmul.mubr.f32.gmra.mrb[0].mxu0 %v851
        %v1620 = vpop.f32.mrb[0].mxu0
        %v1621 = vadd.f32 %v1432, %v1620
        %v1622 = vpop.f32.mrb[0].mxu0
        %1623 = vmatprep.mubr.f32.mxu0 0.0
        %1624 = vmatmul.mubr.f32.gmra.mrb[0].mxu0 %v854
        %v1625 = vpop.f32.mrb[0].mxu0
        %v1626 = vadd.f32 %v1432, %v1625
        %v1627 = vpop.f32.mrb[0].mxu0
        %1628 = vmatprep.mubr.f32.mxu0 0.0
        %1629 = vmatmul.mubr.f32.gmra.mrb[0].mxu0 %v857
        %v1630 = vpop.f32.mrb[0].mxu0
        %v1631 = vadd.f32 %v1432, %v1630
        %v1632 = vpop.f32.mrb[0].mxu0
        %1633 = vmatprep.mubr.f32.mxu0 0.0
        %1634 = vmatmul.mubr.f32.gmra.mrb[0].mxu0 %v860
        %v1635 = vpop.f32.mrb[0].mxu0
        %v1636 = vadd.f32 %v1432, %v1635
        %v1637 = vpop.f32.mrb[0].mxu0
        %1638 = vmatprep.mubr.f32.mxu0 0.0
        %1639 = vmatmul.mubr.f32.gmra.mrb[0].mxu0 %v863
        %v1640 = vpop.f32.mrb[0].mxu0
        %v1641 = vadd.f32 %v1432, %v1640
        %v1642 = vpop.f32.mrb[0].mxu0
        %1643 = vmatprep.mubr.f32.mxu0 0.0
        %1644 = vmatmul.mubr.f32.gmra.mrb[0].mxu0 %v866
        %v1645 = vpop.f32.mrb[0].mxu0
        %v1646 = vadd.f32 %v1432, %v1645
        %v1647 = vpop.f32.mrb[0].mxu0
        %1648 = vmatprep.mubr.f32.mxu0 0.0
        %1649 = vmatmul.mubr.f32.gmra.mrb[0].mxu0 %v869
        %v1650 = vpop.f32.mrb[0].mxu0
        %v1651 = vadd.f32 %v1432, %v1650
        %v1652 = vpop.f32.mrb[0].mxu0
        %1653 = vmatprep.mubr.f32.mxu0 0.0
        %1654 = vmatmul.mubr.f32.gmra.mrb[0].mxu0 %v872
        %v1655 = vpop.f32.mrb[0].mxu0
        %v1656 = vadd.f32 %v1432, %v1655
        %v1657 = vpop.f32.mrb[0].mxu0
        %1658 = vmatprep.mubr.f32.mxu0 0.0
        %1659 = vmatmul.mubr.f32.gmra.mrb[0].mxu0 %v875
        %v1660 = vpop.f32.mrb[0].mxu0
        %v1661 = vadd.f32 %v1432, %v1660
        %v1662 = vpop.f32.mrb[0].mxu0
        %1663 = vmatprep.mubr.f32.mxu0 0.0
        %1664 = vmatmul.mubr.f32.gmra.mrb[0].mxu0 %v878
        %v1665 = vpop.f32.mrb[0].mxu0
        %v1666 = vadd.f32 %v1432, %v1665
        %v1667 = vpop.f32.mrb[0].mxu0
        %1668 = vmatprep.mubr.f32.mxu0 0.0
        %1669 = vmatmul.mubr.f32.gmra.mrb[0].mxu0 %v881
        %v1670 = vpop.f32.mrb[0].mxu0
        %v1671 = vadd.f32 %v1432, %v1670
        %v1672 = vpop.f32.mrb[0].mxu0
        %1673 = vmatprep.mubr.f32.mxu0 0.0
        %1674 = vmatmul.mubr.f32.gmra.mrb[0].mxu0 %v884
        %v1675 = vpop.f32.mrb[0].mxu0
        %v1676 = vadd.f32 %v1432, %v1675
        %v1677 = vpop.f32.mrb[0].mxu0
        %1678 = vmatprep.mubr.f32.mxu0 0.0
        %1679 = vmatmul.mubr.f32.gmra.mrb[0].mxu0 %v887
        %v1680 = vpop.f32.mrb[0].mxu0
        %v1681 = vadd.f32 %v1432, %v1680
        %v1682 = vpop.f32.mrb[0].mxu0
        %1683 = vmatprep.mubr.f32.mxu0 0.0
        %1684 = vmatmul.mubr.f32.gmra.mrb[0].mxu0 %v890
        %v1685 = vpop.f32.mrb[0].mxu0
        %v1686 = vadd.f32 %v1432, %v1685
        %v1687 = vpop.f32.mrb[0].mxu0
        %1688 = vmatprep.mubr.f32.mxu0 0.0
        %1689 = vmatmul.mubr.f32.gmra.mrb[0].mxu0 %v893
        %v1690 = vpop.f32.mrb[0].mxu0
        %v1691 = vadd.f32 %v1432, %v1690
        %v1692 = vpop.f32.mrb[0].mxu0
        %1693 = vmatprep.mubr.f32.mxu0 0.0
        %1694 = vmatmul.mubr.f32.gmra.mrb[0].mxu0 %v896
        %v1695 = vpop.f32.mrb[0].mxu0
        %v1696 = vadd.f32 %v1432, %v1695
        %v1697 = vpop.f32.mrb[0].mxu0
        %1698 = vmatprep.mubr.f32.mxu0 0.0
        %1699 = vmatmul.mubr.f32.gmra.mrb[0].mxu0 %v899
        %v1700 = vpop.f32.mrb[0].mxu0
        %v1701 = vadd.f32 %v1432, %v1700
        %v1702 = vpop.f32.mrb[0].mxu0
        %1703 = vmatprep.mubr.f32.mxu0 0.0
        %1704 = vmatmul.mubr.f32.gmra.mrb[0].mxu0 %v902
        %v1705 = vpop.f32.mrb[0].mxu0
        %v1706 = vadd.f32 %v1432, %v1705
        %v1707 = vpop.f32.mrb[0].mxu0
        %1708 = vmatprep.mubr.f32.mxu0 0.0
        %1709 = vmatmul.mubr.f32.gmra.mrb[0].mxu0 %v905
        %v1710 = vpop.f32.mrb[0].mxu0
        %v1711 = vadd.f32 %v1432, %v1710
        %v1712 = vpop.f32.mrb[0].mxu0
        %1713 = vmatprep.mubr.f32.mxu0 0.0
        %1714 = vmatmul.mubr.f32.gmra.mrb[0].mxu0 %v908
        %v1715 = vpop.f32.mrb[0].mxu0
        %v1716 = vadd.f32 %v1432, %v1715
        %v1717 = vpop.f32.mrb[0].mxu0
        %1718 = vmatprep.mubr.f32.mxu0 0.0
        %1719 = vmatmul.mubr.f32.gmra.mrb[0].mxu0 %v911
        %v1720 = vpop.f32.mrb[0].mxu0
        %v1721 = vadd.f32 %v1432, %v1720
        %v1722 = vpop.f32.mrb[0].mxu0
        %1723 = vmatprep.mubr.f32.mxu0 0.0
        %1724 = vmatmul.mubr.f32.gmra.mrb[0].mxu0 %v914
        %v1725 = vpop.f32.mrb[0].mxu0
        %v1726 = vadd.f32 %v1432, %v1725
        %v1727 = vpop.f32.mrb[0].mxu0
        %1728 = vmatprep.mubr.f32.mxu0 0.0
        %1729 = vmatmul.mubr.f32.gmra.mrb[0].mxu0 %v917
        %v1730 = vpop.f32.mrb[0].mxu0
        %v1731 = vadd.f32 %v1432, %v1730
        %v1732 = vpop.f32.mrb[0].mxu0
        %1733 = vmatprep.mubr.f32.mxu0 0.0
        %1734 = vmatmul.mubr.f32.gmra.mrb[0].mxu0 %v920
        %v1735 = vpop.f32.mrb[0].mxu0
        %v1736 = vadd.f32 %v1432, %v1735
        %v1737 = vpop.f32.mrb[0].mxu0
        %1738 = vmatprep.mubr.f32.mxu0 0.0
        %1739 = vmatmul.mubr.f32.gmra.mrb[0].mxu0 %v923
        %v1740 = vpop.f32.mrb[0].mxu0
        %v1741 = vadd.f32 %v1432, %v1740
        %v1742 = vpop.f32.mrb[0].mxu0
        %1743 = vmatprep.mubr.f32.mxu0 0.0
        %1744 = vmatmul.mubr.f32.gmra.mrb[0].mxu0 %v926
        %v1745 = vpop.f32.mrb[0].mxu0
        %v1746 = vadd.f32 %v1432, %v1745
        %v1747 = vpop.f32.mrb[0].mxu0
        %1748 = vmatprep.mubr.f32.mxu0 0.0
        %1749 = vmatmul.mubr.f32.gmra.mrb[0].mxu0 %v929
        %v1750 = vpop.f32.mrb[0].mxu0
        %v1751 = vadd.f32 %v1432, %v1750
        %v1752 = vpop.f32.mrb[0].mxu0
        %1753 = vmatprep.mubr.f32.mxu0 0.0
        %1754 = vmatmul.mubr.f32.gmra.mrb[0].mxu0 %v932
        %v1755 = vpop.f32.mrb[0].mxu0
        %v1756 = vadd.f32 %v1432, %v1755
        %v1757 = vpop.f32.mrb[0].mxu0
        %1758 = vmatprep.mubr.f32.mxu0 0.0
        %1759 = vmatmul.mubr.f32.gmra.mrb[0].mxu0 %v935
        %v1760 = vpop.f32.mrb[0].mxu0
        %v1761 = vadd.f32 %v1432, %v1760
        %v1762 = vpop.f32.mrb[0].mxu0
        %1763 = vmatprep.mubr.f32.mxu0 0.0
        %1764 = vmatmul.mubr.f32.gmra.mrb[0].mxu0 %v938
        %v1765 = vpop.f32.mrb[0].mxu0
        %v1766 = vadd.f32 %v1432, %v1765
        %v1767 = vpop.f32.mrb[0].mxu0
        %1768 = vmatprep.mubr.f32.mxu0 0.0
        %1769 = vmatmul.mubr.f32.gmra.mrb[0].mxu0 %v941
        %v1770 = vpop.f32.mrb[0].mxu0
        %v1771 = vadd.f32 %v1432, %v1770
        %v1772 = vpop.f32.mrb[0].mxu0
        %1773 = vmatprep.mubr.f32.mxu0 0.0
        %1774 = vmatmul.mubr.f32.gmra.mrb[0].mxu0 %v944
        %v1775 = vpop.f32.mrb[0].mxu0
        %v1776 = vadd.f32 %v1432, %v1775
        %v1777 = vpop.f32.mrb[0].mxu0
        %1778 = vmatprep.mubr.f32.mxu0 0.0
        %1779 = vmatmul.mubr.f32.gmra.mrb[0].mxu0 %v947
        %v1780 = vpop.f32.mrb[0].mxu0
        %v1781 = vadd.f32 %v1432, %v1780
        %v1782 = vpop.f32.mrb[0].mxu0
        %1783 = vmatprep.mubr.f32.mxu0 0.0
        %1784 = vmatmul.mubr.f32.gmra.mrb[0].mxu0 %v950
        %v1785 = vpop.f32.mrb[0].mxu0
        %v1786 = vadd.f32 %v1432, %v1785
        %v1787 = vpop.f32.mrb[0].mxu0
        %1788 = vmatprep.mubr.f32.mxu0 0.0
        %1789 = vmatmul.mubr.f32.gmra.mrb[0].mxu0 %v953
        %v1790 = vpop.f32.mrb[0].mxu0
        %v1791 = vadd.f32 %v1432, %v1790
        %v1792 = vpop.f32.mrb[0].mxu0
        %1793 = vmatprep.mubr.f32.mxu0 0.0
        %1794 = vmatmul.mubr.f32.gmra.mrb[0].mxu0 %v956
        %v1795 = vpop.f32.mrb[0].mxu0
        %v1796 = vadd.f32 %v1432, %v1795
        %v1797 = vpop.f32.mrb[0].mxu0
        %1798 = vmatprep.mubr.f32.mxu0 0.0
        %1799 = vmatmul.mubr.f32.gmra.mrb[0].mxu0 %v959
        %v1800 = vpop.f32.mrb[0].mxu0
        %v1801 = vadd.f32 %v1432, %v1800
        %v1802 = vpop.f32.mrb[0].mxu0
        %1803 = vmatprep.mubr.f32.mxu0 0.0
        %1804 = vmatmul.mubr.f32.gmra.mrb[0].mxu0 %v962
        %v1805 = vpop.f32.mrb[0].mxu0
        %v1806 = vadd.f32 %v1432, %v1805
        %v1807 = vpop.f32.mrb[0].mxu0
        %1808 = vmatprep.mubr.f32.mxu0 0.0
        %1809 = vmatmul.mubr.f32.gmra.mrb[0].mxu0 %v965
        %v1810 = vpop.f32.mrb[0].mxu0
        %v1811 = vadd.f32 %v1432, %v1810
        %v1812 = vpop.f32.mrb[0].mxu0
        %1813 = vmatprep.mubr.f32.mxu0 0.0
        %1814 = vmatmul.mubr.f32.gmra.mrb[0].mxu0 %v968
        %v1815 = vpop.f32.mrb[0].mxu0
        %v1816 = vadd.f32 %v1432, %v1815
        %v1817 = vpop.f32.mrb[0].mxu0
        %1818 = vmatprep.mubr.f32.mxu0 0.0
        %1819 = vmatmul.mubr.f32.gmra.mrb[0].mxu0 %v971
        %v1820 = vpop.f32.mrb[0].mxu0
        %v1821 = vadd.f32 %v1432, %v1820
        %v1822 = vpop.f32.mrb[0].mxu0
        %1823 = vmatprep.mubr.f32.mxu0 0.0
        %1824 = vmatmul.mubr.f32.gmra.mrb[0].mxu0 %v974
        %v1825 = vpop.f32.mrb[0].mxu0
        %v1826 = vadd.f32 %v1432, %v1825
        %v1827 = vpop.f32.mrb[0].mxu0
        %1828 = vmatprep.mubr.f32.mxu0 0.0
        %1829 = vmatmul.mubr.f32.gmra.mrb[0].mxu0 %v977
        %v1830 = vpop.f32.mrb[0].mxu0
        %v1831 = vadd.f32 %v1432, %v1830
        %v1832 = vpop.f32.mrb[0].mxu0
        %1833 = vmatprep.mubr.f32.mxu0 0.0
        %1834 = vmatmul.mubr.f32.gmra.mrb[0].mxu0 %v980
        %v1835 = vpop.f32.mrb[0].mxu0
        %v1836 = vadd.f32 %v1432, %v1835
        %v1837 = vpop.f32.mrb[0].mxu0
        %1838 = vmatprep.mubr.f32.mxu0 0.0
        %1839 = vmatmul.mubr.f32.gmra.mrb[0].mxu0 %v983
        %v1840 = vpop.f32.mrb[0].mxu0
        %v1841 = vadd.f32 %v1432, %v1840
        %v1842 = vpop.f32.mrb[0].mxu0
        %1843 = vmatprep.mubr.f32.mxu0 0.0
        %1844 = vmatmul.mubr.f32.gmra.mrb[0].mxu0 %v986
        %v1845 = vpop.f32.mrb[0].mxu0
        %v1846 = vadd.f32 %v1432, %v1845
        %v1847 = vpop.f32.mrb[0].mxu0
        %1848 = vmatprep.mubr.f32.mxu0 0.0
        %1849 = vmatmul.mubr.f32.gmra.mrb[0].mxu0 %v989
        %v1850 = vpop.f32.mrb[0].mxu0
        %v1851 = vadd.f32 %v1432, %v1850
        %v1852 = vpop.f32.mrb[0].mxu0
        %1853 = vmatprep.mubr.f32.mxu0 0.0
        %1854 = vmatmul.mubr.f32.gmra.mrb[0].mxu0 %v992
        %v1855 = vpop.f32.mrb[0].mxu0
        %v1856 = vadd.f32 %v1432, %v1855
        %v1857 = vpop.f32.mrb[0].mxu0
        %1858 = vdwg.mxu0
        %vm1859 = vcmask 31744
        %v1861 = vsel %vm1859, %v593, 0
        %v1864 = vsel %vm1859, %v594, 0
        %v1867 = vsel %vm1859, %v595, 0
        %v1870 = vsel %vm1859, %v596, 0
        %v1873 = vsel %vm1859, %v597, 0
        %v1876 = vsel %vm1859, %v598, 0
        %v1879 = vsel %vm1859, %v599, 0
        %v1882 = vsel %vm1859, %v600, 0
        %vm1884 = vcmask 1043456
        %v1886 = vsel %vm1884, %v688, 0
        %1888 = vmatprep.subr.mxu0 0.0
        %1889 = vmatpush1.msra.mxu0 %v1886
        %1890 = vmatprep.subr.mxu0 0.0
        %1891 = vmatpush1.msra.mxu0 0.0
        %1892 = vmatprep.subr.mxu0 0.0
        %1893 = vmatpush1.msra.mxu0 0.0
        %1894 = vmatprep.subr.mxu0 0.0
        %1895 = vmatpush1.msra.mxu0 0.0
        %1896 = vmatprep.subr.mxu0 0.0
        %1897 = vmatpush1.msra.mxu0 0.0
        %1898 = vmatprep.subr.mxu0 0.0
        %1899 = vmatpush1.msra.mxu0 0.0
        %1900 = vmatprep.subr.mxu0 0.0
        %1901 = vmatpush1.msra.mxu0 0.0
        %1902 = vmatprep.subr.mxu0 0.0
        %1903 = vmatpush1.msra.mxu0 0.0
        %1904 = vmatprep.subr.mxu0 0.0
        %1905 = vmatpush1.msra.mxu0 0.0
        %1906 = vmatprep.subr.mxu0 0.0
        %1907 = vmatpush1.msra.mxu0 0.0
        %1908 = vmatprep.subr.mxu0 0.0
        %1909 = vmatpush1.msra.mxu0 0.0
        %1910 = vmatprep.subr.mxu0 0.0
        %1911 = vmatpush1.msra.mxu0 0.0
        %1912 = vmatprep.subr.mxu0 0.0
        %1913 = vmatpush1.msra.mxu0 0.0
        %1914 = vmatprep.subr.mxu0 0.0
        %1915 = vmatpush1.msra.mxu0 0.0
        %1916 = vmatprep.subr.mxu0 0.0
        %1917 = vmatpush1.msra.mxu0 0.0
        %1918 = vmatprep.subr.mxu0 0.0
        %1919 = vmatpush1.msra.mxu0 0.0
        %1920 = vmatprep.subr.mxu0 0.0
        %1921 = vmatpush1.msra.mxu0 0.0
        %1922 = vmatprep.subr.mxu0 0.0
        %1923 = vmatpush1.msra.mxu0 0.0
        %1924 = vmatprep.subr.mxu0 0.0
        %1925 = vmatpush1.msra.mxu0 0.0
        %1926 = vmatprep.subr.mxu0 0.0
        %1927 = vmatpush1.msra.mxu0 0.0
        %1928 = vmatprep.subr.mxu0 0.0
        %1929 = vmatpush1.msra.mxu0 0.0
        %1930 = vmatprep.subr.mxu0 0.0
        %1931 = vmatpush1.msra.mxu0 0.0
        %1932 = vmatprep.subr.mxu0 0.0
        %1933 = vmatpush1.msra.mxu0 0.0
        %1934 = vmatprep.subr.mxu0 0.0
        %1935 = vmatpush1.msra.mxu0 0.0
        %1936 = vmatprep.subr.mxu0 0.0
        %1937 = vmatpush1.msra.mxu0 0.0
        %1938 = vmatprep.subr.mxu0 0.0
        %1939 = vmatpush1.msra.mxu0 0.0
        %1940 = vmatprep.subr.mxu0 0.0
        %1941 = vmatpush1.msra.mxu0 0.0
        %1942 = vmatprep.subr.mxu0 0.0
        %1943 = vmatpush1.msra.mxu0 0.0
        %1944 = vmatprep.subr.mxu0 0.0
        %1945 = vmatpush1.msra.mxu0 0.0
        %1946 = vmatprep.subr.mxu0 0.0
        %1947 = vmatpush1.msra.mxu0 0.0
        %1948 = vmatprep.subr.mxu0 0.0
        %1949 = vmatpush1.msra.mxu0 0.0
        %1950 = vmatprep.subr.mxu0 0.0
        %1951 = vmatpush1.msra.mxu0 0.0
        %1952 = vmatprep.mubr.f32.mxu0 0.0
        %1953 = vmatmul.mubr.f32.gmra.mrb[0].mxu0 %v1861
        %v1954 = vpop.f32.mrb[0].mxu0
        %v1955 = vadd.f32 0.0, %v1954
        %v1956 = vpop.f32.mrb[0].mxu0
        %1957 = vmatprep.mubr.f32.mxu0 0.0
        %1958 = vmatmul.mubr.f32.gmra.mrb[0].mxu0 %v1864
        %v1959 = vpop.f32.mrb[0].mxu0
        %v1960 = vadd.f32 0.0, %v1959
        %v1961 = vpop.f32.mrb[0].mxu0
        %1962 = vmatprep.mubr.f32.mxu0 0.0
        %1963 = vmatmul.mubr.f32.gmra.mrb[0].mxu0 %v1867
        %v1964 = vpop.f32.mrb[0].mxu0
        %v1965 = vadd.f32 0.0, %v1964
        %v1966 = vpop.f32.mrb[0].mxu0
        %1967 = vmatprep.mubr.f32.mxu0 0.0
        %1968 = vmatmul.mubr.f32.gmra.mrb[0].mxu0 %v1870
        %v1969 = vpop.f32.mrb[0].mxu0
        %v1970 = vadd.f32 0.0, %v1969
        %v1971 = vpop.f32.mrb[0].mxu0
        %1972 = vmatprep.mubr.f32.mxu0 0.0
        %1973 = vmatmul.mubr.f32.gmra.mrb[0].mxu0 %v1873
        %v1974 = vpop.f32.mrb[0].mxu0
        %v1975 = vadd.f32 0.0, %v1974
        %v1976 = vpop.f32.mrb[0].mxu0
        %1977 = vmatprep.mubr.f32.mxu0 0.0
        %1978 = vmatmul.mubr.f32.gmra.mrb[0].mxu0 %v1876
        %v1979 = vpop.f32.mrb[0].mxu0
        %v1980 = vadd.f32 0.0, %v1979
        %v1981 = vpop.f32.mrb[0].mxu0
        %1982 = vmatprep.mubr.f32.mxu0 0.0
        %1983 = vmatmul.mubr.f32.gmra.mrb[0].mxu0 %v1879
        %v1984 = vpop.f32.mrb[0].mxu0
        %v1985 = vadd.f32 0.0, %v1984
        %v1986 = vpop.f32.mrb[0].mxu0
        %1987 = vmatprep.mubr.f32.mxu0 0.0
        %1988 = vmatmul.mubr.f32.gmra.mrb[0].mxu0 %v1882
        %v1989 = vpop.f32.mrb[0].mxu0
        %v1990 = vadd.f32 0.0, %v1989
        %v1991 = vpop.f32.mrb[0].mxu0
        %1992 = vdwg.mxu0
        %v1993 = vmul.f32 %v1955, %v584
        %v1994 = vmul.f32 %v1960, %v585
        %v1995 = vmul.f32 %v1965, %v586
        %v1996 = vmul.f32 %v1970, %v587
        %v1997 = vmul.f32 %v1975, %v588
        %v1998 = vmul.f32 %v1980, %v589
        %v1999 = vmul.f32 %v1985, %v590
        %v2000 = vmul.f32 %v1990, %v591
        %v2002 = vsel %vm617, %v1993, 0
        %v2005 = vsel %vm617, %v1994, 0
        %v2008 = vsel %vm617, %v1995, 0
        %v2011 = vsel %vm617, %v1996, 0
        %v2014 = vsel %vm617, %v1997, 0
        %v2017 = vsel %vm617, %v1998, 0
        %v2020 = vsel %vm617, %v1999, 0
        %v2023 = vsel %vm617, %v2000, 0
        %v2026 = vsel %vm617, %v1061, 0
        %v2029 = vsel %vm617, %v1066, 0
        %v2032 = vsel %vm617, %v1071, 0
        %v2035 = vsel %vm617, %v1076, 0
        %v2038 = vsel %vm617, %v1081, 0
        %v2041 = vsel %vm617, %v1086, 0
        %v2044 = vsel %vm617, %v1091, 0
        %v2047 = vsel %vm617, %v1096, 0
        %v2050 = vsel %vm617, %v1101, 0
        %v2053 = vsel %vm617, %v1106, 0
        %v2056 = vsel %vm617, %v1111, 0
        %v2059 = vsel %vm617, %v1116, 0
        %v2062 = vsel %vm617, %v1121, 0
        %v2065 = vsel %vm617, %v1126, 0
        %v2068 = vsel %vm617, %v1131, 0
        %v2071 = vsel %vm617, %v1136, 0
        %v2074 = vsel %vm617, %v1141, 0
        %v2077 = vsel %vm617, %v1146, 0
        %v2080 = vsel %vm617, %v1151, 0
        %v2083 = vsel %vm617, %v1156, 0
        %v2086 = vsel %vm617, %v1161, 0
        %v2089 = vsel %vm617, %v1166, 0
        %v2092 = vsel %vm617, %v1171, 0
        %v2095 = vsel %vm617, %v1176, 0
        %v2098 = vsel %vm617, %v1181, 0
        %v2101 = vsel %vm617, %v1186, 0
        %v2104 = vsel %vm617, %v1191, 0
        %v2107 = vsel %vm617, %v1196, 0
        %v2110 = vsel %vm617, %v1201, 0
        %v2113 = vsel %vm617, %v1206, 0
        %v2116 = vsel %vm617, %v1211, 0
        %v2119 = vsel %vm617, %v1216, 0
        %v2122 = vsel %vm617, %v1221, 0
        %v2125 = vsel %vm617, %v1226, 0
        %v2128 = vsel %vm617, %v1231, 0
        %v2131 = vsel %vm617, %v1236, 0
        %v2134 = vsel %vm617, %v1241, 0
        %v2137 = vsel %vm617, %v1246, 0
        %v2140 = vsel %vm617, %v1251, 0
        %v2143 = vsel %vm617, %v1256, 0
        %v2146 = vsel %vm617, %v1261, 0
        %v2149 = vsel %vm617, %v1266, 0
        %v2152 = vsel %vm617, %v1271, 0
        %v2155 = vsel %vm617, %v1276, 0
        %v2158 = vsel %vm617, %v1281, 0
        %v2161 = vsel %vm617, %v1286, 0
        %v2164 = vsel %vm617, %v1291, 0
        %v2167 = vsel %vm617, %v1296, 0
        %v2170 = vsel %vm617, %v1301, 0
        %v2173 = vsel %vm617, %v1306, 0
        %v2176 = vsel %vm617, %v1311, 0
        %v2179 = vsel %vm617, %v1316, 0
        %v2182 = vsel %vm617, %v1321, 0
        %v2185 = vsel %vm617, %v1326, 0
        %v2188 = vsel %vm617, %v1331, 0
        %v2191 = vsel %vm617, %v1336, 0
        %v2194 = vsel %vm617, %v1341, 0
        %v2197 = vsel %vm617, %v1346, 0
        %v2200 = vsel %vm617, %v1351, 0
        %v2203 = vsel %vm617, %v1356, 0
        %v2206 = vsel %vm617, %v1361, 0
        %v2209 = vsel %vm617, %v1366, 0
        %v2212 = vsel %vm617, %v1371, 0
        %v2215 = vsel %vm617, %v1376, 0
        %v2218 = vsel %vm617, %v1381, 0
        %v2221 = vsel %vm617, %v1386, 0
        %v2224 = vsel %vm617, %v1391, 0
        %v2227 = vsel %vm617, %v1396, 0
        %v2230 = vsel %vm617, %v1401, 0
        %v2233 = vsel %vm617, %v1406, 0
        %v2236 = vsel %vm617, %v1411, 0
        %v2239 = vsel %vm617, %v1416, 0
        %2241 = vmatprep.subr.mxu0 0.0
        %2242 = vmatpush1.xpose.msra.mxu0 %v2026
        %2243 = vmatprep.subr.mxu0 0.0
        %2244 = vmatpush1.xpose.msra.mxu0 %v2029
        %2245 = vmatprep.subr.mxu0 0.0
        %2246 = vmatpush1.xpose.msra.mxu0 %v2032
        %2247 = vmatprep.subr.mxu0 0.0
        %2248 = vmatpush1.xpose.msra.mxu0 %v2035
        %2249 = vmatprep.subr.mxu0 0.0
        %2250 = vmatpush1.xpose.msra.mxu0 %v2038
        %2251 = vmatprep.subr.mxu0 0.0
        %2252 = vmatpush1.xpose.msra.mxu0 %v2041
        %2253 = vmatprep.subr.mxu0 0.0
        %2254 = vmatpush1.xpose.msra.mxu0 %v2044
        %2255 = vmatprep.subr.mxu0 0.0
        %2256 = vmatpush1.xpose.msra.mxu0 %v2047
        %2257 = vmatprep.subr.mxu0 0.0
        %2258 = vmatpush1.xpose.msra.mxu0 %v2050
        %2259 = vmatprep.subr.mxu0 0.0
        %2260 = vmatpush1.xpose.msra.mxu0 %v2053
        %2261 = vmatprep.subr.mxu0 0.0
        %2262 = vmatpush1.xpose.msra.mxu0 %v2056
        %2263 = vmatprep.subr.mxu0 0.0
        %2264 = vmatpush1.xpose.msra.mxu0 %v2059
        %2265 = vmatprep.subr.mxu0 0.0
        %2266 = vmatpush1.xpose.msra.mxu0 %v2062
        %2267 = vmatprep.subr.mxu0 0.0
        %2268 = vmatpush1.xpose.msra.mxu0 %v2065
        %2269 = vmatprep.subr.mxu0 0.0
        %2270 = vmatpush1.xpose.msra.mxu0 %v2068
        %2271 = vmatprep.subr.mxu0 0.0
        %2272 = vmatpush1.xpose.msra.mxu0 %v2071
        %2273 = vmatprep.subr.mxu0 0.0
        %2274 = vmatpush1.xpose.msra.mxu0 %v2074
        %2275 = vmatprep.subr.mxu0 0.0
        %2276 = vmatpush1.xpose.msra.mxu0 %v2077
        %2277 = vmatprep.subr.mxu0 0.0
        %2278 = vmatpush1.xpose.msra.mxu0 %v2080
        %2279 = vmatprep.subr.mxu0 0.0
        %2280 = vmatpush1.xpose.msra.mxu0 %v2083
        %2281 = vmatprep.subr.mxu0 0.0
        %2282 = vmatpush1.xpose.msra.mxu0 %v2086
        %2283 = vmatprep.subr.mxu0 0.0
        %2284 = vmatpush1.xpose.msra.mxu0 %v2089
        %2285 = vmatprep.subr.mxu0 0.0
        %2286 = vmatpush1.xpose.msra.mxu0 %v2092
        %2287 = vmatprep.subr.mxu0 0.0
        %2288 = vmatpush1.xpose.msra.mxu0 %v2095
        %2289 = vmatprep.subr.mxu0 0.0
        %2290 = vmatpush1.xpose.msra.mxu0 %v2098
        %2291 = vmatprep.subr.mxu0 0.0
        %2292 = vmatpush1.xpose.msra.mxu0 %v2101
        %2293 = vmatprep.subr.mxu0 0.0
        %2294 = vmatpush1.xpose.msra.mxu0 %v2104
        %2295 = vmatprep.subr.mxu0 0.0
        %2296 = vmatpush1.xpose.msra.mxu0 %v2107
        %2297 = vmatprep.subr.mxu0 0.0
        %2298 = vmatpush1.xpose.msra.mxu0 %v2110
        %2299 = vmatprep.subr.mxu0 0.0
        %2300 = vmatpush1.xpose.msra.mxu0 %v2113
        %2301 = vmatprep.subr.mxu0 0.0
        %2302 = vmatpush1.xpose.msra.mxu0 %v2116
        %2303 = vmatprep.subr.mxu0 0.0
        %2304 = vmatpush1.xpose.msra.mxu0 %v2119
        %2305 = vmatprep.mubr.f32.mxu0 0.0
        %2306 = vmatmul.mubr.f32.gmra.mrb[0].mxu0 %v2002
        %v2307 = vpop.f32.mrb[0].mxu0
        %v2308 = vadd.f32 0.0, %v2307
        %v2309 = vpop.f32.mrb[0].mxu0
        %v2310 = vadd.f32 0.0, %v2309
        %2311 = vmatprep.mubr.f32.mxu0 0.0
        %2312 = vmatmul.mubr.f32.gmra.mrb[0].mxu0 %v2005
        %v2313 = vpop.f32.mrb[0].mxu0
        %v2314 = vadd.f32 0.0, %v2313
        %v2315 = vpop.f32.mrb[0].mxu0
        %v2316 = vadd.f32 0.0, %v2315
        %2317 = vmatprep.mubr.f32.mxu0 0.0
        %2318 = vmatmul.mubr.f32.gmra.mrb[0].mxu0 %v2008
        %v2319 = vpop.f32.mrb[0].mxu0
        %v2320 = vadd.f32 0.0, %v2319
        %v2321 = vpop.f32.mrb[0].mxu0
        %v2322 = vadd.f32 0.0, %v2321
        %2323 = vmatprep.mubr.f32.mxu0 0.0
        %2324 = vmatmul.mubr.f32.gmra.mrb[0].mxu0 %v2011
        %v2325 = vpop.f32.mrb[0].mxu0
        %v2326 = vadd.f32 0.0, %v2325
        %v2327 = vpop.f32.mrb[0].mxu0
        %v2328 = vadd.f32 0.0, %v2327
        %2329 = vmatprep.mubr.f32.mxu0 0.0
        %2330 = vmatmul.mubr.f32.gmra.mrb[0].mxu0 %v2014
        %v2331 = vpop.f32.mrb[0].mxu0
        %v2332 = vadd.f32 0.0, %v2331
        %v2333 = vpop.f32.mrb[0].mxu0
        %v2334 = vadd.f32 0.0, %v2333
        %2335 = vmatprep.mubr.f32.mxu0 0.0
        %2336 = vmatmul.mubr.f32.gmra.mrb[0].mxu0 %v2017
        %v2337 = vpop.f32.mrb[0].mxu0
        %v2338 = vadd.f32 0.0, %v2337
        %v2339 = vpop.f32.mrb[0].mxu0
        %v2340 = vadd.f32 0.0, %v2339
        %2341 = vmatprep.mubr.f32.mxu0 0.0
        %2342 = vmatmul.mubr.f32.gmra.mrb[0].mxu0 %v2020
        %v2343 = vpop.f32.mrb[0].mxu0
        %v2344 = vadd.f32 0.0, %v2343
        %v2345 = vpop.f32.mrb[0].mxu0
        %v2346 = vadd.f32 0.0, %v2345
        %2347 = vmatprep.mubr.f32.mxu0 0.0
        %2348 = vmatmul.mubr.f32.gmra.mrb[0].mxu0 %v2023
        %v2349 = vpop.f32.mrb[0].mxu0
        %v2350 = vadd.f32 0.0, %v2349
        %v2351 = vpop.f32.mrb[0].mxu0
        %v2352 = vadd.f32 0.0, %v2351
        %2353 = vdwg.mxu0
        %2354 = vmatprep.subr.mxu0 0.0
        %2355 = vmatpush1.xpose.msra.mxu0 %v2122
        %2356 = vmatprep.subr.mxu0 0.0
        %2357 = vmatpush1.xpose.msra.mxu0 %v2125
        %2358 = vmatprep.subr.mxu0 0.0
        %2359 = vmatpush1.xpose.msra.mxu0 %v2128
        %2360 = vmatprep.subr.mxu0 0.0
        %2361 = vmatpush1.xpose.msra.mxu0 %v2131
        %2362 = vmatprep.subr.mxu0 0.0
        %2363 = vmatpush1.xpose.msra.mxu0 %v2134
        %2364 = vmatprep.subr.mxu0 0.0
        %2365 = vmatpush1.xpose.msra.mxu0 %v2137
        %2366 = vmatprep.subr.mxu0 0.0
        %2367 = vmatpush1.xpose.msra.mxu0 %v2140
        %2368 = vmatprep.subr.mxu0 0.0
        %2369 = vmatpush1.xpose.msra.mxu0 %v2143
        %2370 = vmatprep.subr.mxu0 0.0
        %2371 = vmatpush1.xpose.msra.mxu0 %v2146
        %2372 = vmatprep.subr.mxu0 0.0
        %2373 = vmatpush1.xpose.msra.mxu0 %v2149
        %2374 = vmatprep.subr.mxu0 0.0
        %2375 = vmatpush1.xpose.msra.mxu0 %v2152
        %2376 = vmatprep.subr.mxu0 0.0
        %2377 = vmatpush1.xpose.msra.mxu0 %v2155
        %2378 = vmatprep.subr.mxu0 0.0
        %2379 = vmatpush1.xpose.msra.mxu0 %v2158
        %2380 = vmatprep.subr.mxu0 0.0
        %2381 = vmatpush1.xpose.msra.mxu0 %v2161
        %2382 = vmatprep.subr.mxu0 0.0
        %2383 = vmatpush1.xpose.msra.mxu0 %v2164
        %2384 = vmatprep.subr.mxu0 0.0
        %2385 = vmatpush1.xpose.msra.mxu0 %v2167
        %2386 = vmatprep.subr.mxu0 0.0
        %2387 = vmatpush1.xpose.msra.mxu0 %v2170
        %2388 = vmatprep.subr.mxu0 0.0
        %2389 = vmatpush1.xpose.msra.mxu0 %v2173
        %2390 = vmatprep.subr.mxu0 0.0
        %2391 = vmatpush1.xpose.msra.mxu0 %v2176
        %2392 = vmatprep.subr.mxu0 0.0
        %2393 = vmatpush1.xpose.msra.mxu0 %v2179
        %2394 = vmatprep.subr.mxu0 0.0
        %2395 = vmatpush1.xpose.msra.mxu0 %v2182
        %2396 = vmatprep.subr.mxu0 0.0
        %2397 = vmatpush1.xpose.msra.mxu0 %v2185
        %2398 = vmatprep.subr.mxu0 0.0
        %2399 = vmatpush1.xpose.msra.mxu0 %v2188
        %2400 = vmatprep.subr.mxu0 0.0
        %2401 = vmatpush1.xpose.msra.mxu0 %v2191
        %2402 = vmatprep.subr.mxu0 0.0
        %2403 = vmatpush1.xpose.msra.mxu0 %v2194
        %2404 = vmatprep.subr.mxu0 0.0
        %2405 = vmatpush1.xpose.msra.mxu0 %v2197
        %2406 = vmatprep.subr.mxu0 0.0
        %2407 = vmatpush1.xpose.msra.mxu0 %v2200
        %2408 = vmatprep.subr.mxu0 0.0
        %2409 = vmatpush1.xpose.msra.mxu0 %v2203
        %2410 = vmatprep.subr.mxu0 0.0
        %2411 = vmatpush1.xpose.msra.mxu0 %v2206
        %2412 = vmatprep.subr.mxu0 0.0
        %2413 = vmatpush1.xpose.msra.mxu0 %v2209
        %2414 = vmatprep.subr.mxu0 0.0
        %2415 = vmatpush1.xpose.msra.mxu0 %v2212
        %2416 = vmatprep.subr.mxu0 0.0
        %2417 = vmatpush1.xpose.msra.mxu0 %v2215
        %2418 = vmatprep.mubr.f32.mxu0 0.0
        %2419 = vmatmul.mubr.f32.gmra.mrb[0].mxu0 %v2002
        %v2420 = vpop.f32.mrb[0].mxu0
        %v2421 = vadd.f32 0.0, %v2420
        %v2422 = vpop.f32.mrb[0].mxu0
        %v2423 = vadd.f32 0.0, %v2422
        %2424 = vmatprep.mubr.f32.mxu0 0.0
        %2425 = vmatmul.mubr.f32.gmra.mrb[0].mxu0 %v2005
        %v2426 = vpop.f32.mrb[0].mxu0
        %v2427 = vadd.f32 0.0, %v2426
        %v2428 = vpop.f32.mrb[0].mxu0
        %v2429 = vadd.f32 0.0, %v2428
        %2430 = vmatprep.mubr.f32.mxu0 0.0
        %2431 = vmatmul.mubr.f32.gmra.mrb[0].mxu0 %v2008
        %v2432 = vpop.f32.mrb[0].mxu0
        %v2433 = vadd.f32 0.0, %v2432
        %v2434 = vpop.f32.mrb[0].mxu0
        %v2435 = vadd.f32 0.0, %v2434
        %2436 = vmatprep.mubr.f32.mxu0 0.0
        %2437 = vmatmul.mubr.f32.gmra.mrb[0].mxu0 %v2011
        %v2438 = vpop.f32.mrb[0].mxu0
        %v2439 = vadd.f32 0.0, %v2438
        %v2440 = vpop.f32.mrb[0].mxu0
        %v2441 = vadd.f32 0.0, %v2440
        %2442 = vmatprep.mubr.f32.mxu0 0.0
        %2443 = vmatmul.mubr.f32.gmra.mrb[0].mxu0 %v2014
        %v2444 = vpop.f32.mrb[0].mxu0
        %v2445 = vadd.f32 0.0, %v2444
        %v2446 = vpop.f32.mrb[0].mxu0
        %v2447 = vadd.f32 0.0, %v2446
        %2448 = vmatprep.mubr.f32.mxu0 0.0
        %2449 = vmatmul.mubr.f32.gmra.mrb[0].mxu0 %v2017
        %v2450 = vpop.f32.mrb[0].mxu0
        %v2451 = vadd.f32 0.0, %v2450
        %v2452 = vpop.f32.mrb[0].mxu0
        %v2453 = vadd.f32 0.0, %v2452
        %2454 = vmatprep.mubr.f32.mxu0 0.0
        %2455 = vmatmul.mubr.f32.gmra.mrb[0].mxu0 %v2020
        %v2456 = vpop.f32.mrb[0].mxu0
        %v2457 = vadd.f32 0.0, %v2456
        %v2458 = vpop.f32.mrb[0].mxu0
        %v2459 = vadd.f32 0.0, %v2458
        %2460 = vmatprep.mubr.f32.mxu0 0.0
        %2461 = vmatmul.mubr.f32.gmra.mrb[0].mxu0 %v2023
        %v2462 = vpop.f32.mrb[0].mxu0
        %v2463 = vadd.f32 0.0, %v2462
        %v2464 = vpop.f32.mrb[0].mxu0
        %v2465 = vadd.f32 0.0, %v2464
        %2466 = vdwg.mxu0
        %2467 = vmatprep.subr.mxu0 0.0
        %2468 = vmatpush1.xpose.msra.mxu0 %v2218
        %2469 = vmatprep.subr.mxu0 0.0
        %2470 = vmatpush1.xpose.msra.mxu0 %v2221
        %2471 = vmatprep.subr.mxu0 0.0
        %2472 = vmatpush1.xpose.msra.mxu0 %v2224
        %2473 = vmatprep.subr.mxu0 0.0
        %2474 = vmatpush1.xpose.msra.mxu0 %v2227
        %2475 = vmatprep.subr.mxu0 0.0
        %2476 = vmatpush1.xpose.msra.mxu0 %v2230
        %2477 = vmatprep.subr.mxu0 0.0
        %2478 = vmatpush1.xpose.msra.mxu0 %v2233
        %2479 = vmatprep.subr.mxu0 0.0
        %2480 = vmatpush1.xpose.msra.mxu0 %v2236
        %2481 = vmatprep.subr.mxu0 0.0
        %2482 = vmatpush1.xpose.msra.mxu0 %v2239
        %2483 = vmatprep.subr.mxu0 0.0
        %2484 = vmatpush1.xpose.msra.mxu0 0.0
        %2485 = vmatprep.subr.mxu0 0.0
        %2486 = vmatpush1.xpose.msra.mxu0 0.0
        %2487 = vmatprep.subr.mxu0 0.0
        %2488 = vmatpush1.xpose.msra.mxu0 0.0
        %2489 = vmatprep.subr.mxu0 0.0
        %2490 = vmatpush1.xpose.msra.mxu0 0.0
        %2491 = vmatprep.subr.mxu0 0.0
        %2492 = vmatpush1.xpose.msra.mxu0 0.0
        %2493 = vmatprep.subr.mxu0 0.0
        %2494 = vmatpush1.xpose.msra.mxu0 0.0
        %2495 = vmatprep.subr.mxu0 0.0
        %2496 = vmatpush1.xpose.msra.mxu0 0.0
        %2497 = vmatprep.subr.mxu0 0.0
        %2498 = vmatpush1.xpose.msra.mxu0 0.0
        %2499 = vmatprep.subr.mxu0 0.0
        %2500 = vmatpush1.xpose.msra.mxu0 0.0
        %2501 = vmatprep.subr.mxu0 0.0
        %2502 = vmatpush1.xpose.msra.mxu0 0.0
        %2503 = vmatprep.subr.mxu0 0.0
        %2504 = vmatpush1.xpose.msra.mxu0 0.0
        %2505 = vmatprep.subr.mxu0 0.0
        %2506 = vmatpush1.xpose.msra.mxu0 0.0
        %2507 = vmatprep.subr.mxu0 0.0
        %2508 = vmatpush1.xpose.msra.mxu0 0.0
        %2509 = vmatprep.subr.mxu0 0.0
        %2510 = vmatpush1.xpose.msra.mxu0 0.0
        %2511 = vmatprep.subr.mxu0 0.0
        %2512 = vmatpush1.xpose.msra.mxu0 0.0
        %2513 = vmatprep.subr.mxu0 0.0
        %2514 = vmatpush1.xpose.msra.mxu0 0.0
        %2515 = vmatprep.subr.mxu0 0.0
        %2516 = vmatpush1.xpose.msra.mxu0 0.0
        %2517 = vmatprep.subr.mxu0 0.0
        %2518 = vmatpush1.xpose.msra.mxu0 0.0
        %2519 = vmatprep.subr.mxu0 0.0
        %2520 = vmatpush1.xpose.msra.mxu0 0.0
        %2521 = vmatprep.subr.mxu0 0.0
        %2522 = vmatpush1.xpose.msra.mxu0 0.0
        %2523 = vmatprep.subr.mxu0 0.0
        %2524 = vmatpush1.xpose.msra.mxu0 0.0
        %2525 = vmatprep.subr.mxu0 0.0
        %2526 = vmatpush1.xpose.msra.mxu0 0.0
        %2527 = vmatprep.subr.mxu0 0.0
        %2528 = vmatpush1.xpose.msra.mxu0 0.0
        %2529 = vmatprep.subr.mxu0 0.0
        %2530 = vmatpush1.xpose.msra.mxu0 0.0
        %2531 = vmatprep.mubr.f32.mxu0 0.0
        %2532 = vmatmul.mubr.f32.gmra.mrb[0].mxu0 %v2002
        %v2533 = vpop.f32.mrb[0].mxu0
        %v2534 = vadd.f32 0.0, %v2533
        %v2535 = vpop.f32.mrb[0].mxu0
        %2536 = vmatprep.mubr.f32.mxu0 0.0
        %2537 = vmatmul.mubr.f32.gmra.mrb[0].mxu0 %v2005
        %v2538 = vpop.f32.mrb[0].mxu0
        %v2539 = vadd.f32 0.0, %v2538
        %v2540 = vpop.f32.mrb[0].mxu0
        %2541 = vmatprep.mubr.f32.mxu0 0.0
        %2542 = vmatmul.mubr.f32.gmra.mrb[0].mxu0 %v2008
        %v2543 = vpop.f32.mrb[0].mxu0
        %v2544 = vadd.f32 0.0, %v2543
        %v2545 = vpop.f32.mrb[0].mxu0
        %2546 = vmatprep.mubr.f32.mxu0 0.0
        %2547 = vmatmul.mubr.f32.gmra.mrb[0].mxu0 %v2011
        %v2548 = vpop.f32.mrb[0].mxu0
        %v2549 = vadd.f32 0.0, %v2548
        %v2550 = vpop.f32.mrb[0].mxu0
        %2551 = vmatprep.mubr.f32.mxu0 0.0
        %2552 = vmatmul.mubr.f32.gmra.mrb[0].mxu0 %v2014
        %v2553 = vpop.f32.mrb[0].mxu0
        %v2554 = vadd.f32 0.0, %v2553
        %v2555 = vpop.f32.mrb[0].mxu0
        %2556 = vmatprep.mubr.f32.mxu0 0.0
        %2557 = vmatmul.mubr.f32.gmra.mrb[0].mxu0 %v2017
        %v2558 = vpop.f32.mrb[0].mxu0
        %v2559 = vadd.f32 0.0, %v2558
        %v2560 = vpop.f32.mrb[0].mxu0
        %2561 = vmatprep.mubr.f32.mxu0 0.0
        %2562 = vmatmul.mubr.f32.gmra.mrb[0].mxu0 %v2020
        %v2563 = vpop.f32.mrb[0].mxu0
        %v2564 = vadd.f32 0.0, %v2563
        %v2565 = vpop.f32.mrb[0].mxu0
        %2566 = vmatprep.mubr.f32.mxu0 0.0
        %2567 = vmatmul.mubr.f32.gmra.mrb[0].mxu0 %v2023
        %v2568 = vpop.f32.mrb[0].mxu0
        %v2569 = vadd.f32 0.0, %v2568
        %v2570 = vpop.f32.mrb[0].mxu0
        %2571 = vdwg.mxu0
        %v2572 = vmul.f32 %v2308, 0.5
        %v2573 = vmul.f32 %v2310, 0.5
        %v2574 = vmul.f32 %v2421, 0.5
        %v2575 = vmul.f32 %v2423, 0.5
        %v2576 = vmul.f32 %v2534, 0.5
        %v2577 = vmul.f32 %v2314, 0.5
        %v2578 = vmul.f32 %v2316, 0.5
        %v2579 = vmul.f32 %v2427, 0.5
        %v2580 = vmul.f32 %v2429, 0.5
        %v2581 = vmul.f32 %v2539, 0.5
        %v2582 = vmul.f32 %v2320, 0.5
        %v2583 = vmul.f32 %v2322, 0.5
        %v2584 = vmul.f32 %v2433, 0.5
        %v2585 = vmul.f32 %v2435, 0.5
        %v2586 = vmul.f32 %v2544, 0.5
        %v2587 = vmul.f32 %v2326, 0.5
        %v2588 = vmul.f32 %v2328, 0.5
        %v2589 = vmul.f32 %v2439, 0.5
        %v2590 = vmul.f32 %v2441, 0.5
        %v2591 = vmul.f32 %v2549, 0.5
        %v2592 = vmul.f32 %v2332, 0.5
        %v2593 = vmul.f32 %v2334, 0.5
        %v2594 = vmul.f32 %v2445, 0.5
        %v2595 = vmul.f32 %v2447, 0.5
        %v2596 = vmul.f32 %v2554, 0.5
        %v2597 = vmul.f32 %v2338, 0.5
        %v2598 = vmul.f32 %v2340, 0.5
        %v2599 = vmul.f32 %v2451, 0.5
        %v2600 = vmul.f32 %v2453, 0.5
        %v2601 = vmul.f32 %v2559, 0.5
        %v2602 = vmul.f32 %v2344, 0.5
        %v2603 = vmul.f32 %v2346, 0.5
        %v2604 = vmul.f32 %v2457, 0.5
        %v2605 = vmul.f32 %v2459, 0.5
        %v2606 = vmul.f32 %v2564, 0.5
        %v2607 = vmul.f32 %v2350, 0.5
        %v2608 = vmul.f32 %v2352, 0.5
        %v2609 = vmul.f32 %v2463, 0.5
        %v2610 = vmul.f32 %v2465, 0.5
        %v2611 = vmul.f32 %v2569, 0.5
        %v2612 = vmax.f32 %v2572, %v2573
        %v2613 = vmax.f32 %v2612, %v2574
        %v2614 = vmax.f32 %v2613, %v2575
        %v2615 = vsel %vm617, %v2576, -inf
        %v2616 = vmax.f32 %v2614, %v2615
        %2617 = vmax.xlane.f32.xlu0 %v2616
        %v2618 = vpop.xlane.xlu0 %2617
        %v2619 = vmax.f32 %v2577, %v2578
        %v2620 = vmax.f32 %v2619, %v2579
        %v2621 = vmax.f32 %v2620, %v2580
        %v2622 = vsel %vm617, %v2581, -inf
        %v2623 = vmax.f32 %v2621, %v2622
        %2624 = vmax.xlane.f32.xlu0 %v2623
        %v2625 = vpop.xlane.xlu0 %2624
        %v2626 = vmax.f32 %v2582, %v2583
        %v2627 = vmax.f32 %v2626, %v2584
        %v2628 = vmax.f32 %v2627, %v2585
        %v2629 = vsel %vm617, %v2586, -inf
        %v2630 = vmax.f32 %v2628, %v2629
        %2631 = vmax.xlane.f32.xlu0 %v2630
        %v2632 = vpop.xlane.xlu0 %2631
        %v2633 = vmax.f32 %v2587, %v2588
        %v2634 = vmax.f32 %v2633, %v2589
        %v2635 = vmax.f32 %v2634, %v2590
        %v2636 = vsel %vm617, %v2591, -inf
        %v2637 = vmax.f32 %v2635, %v2636
        %2638 = vmax.xlane.f32.xlu0 %v2637
        %v2639 = vpop.xlane.xlu0 %2638
        %v2640 = vmax.f32 %v2592, %v2593
        %v2641 = vmax.f32 %v2640, %v2594
        %v2642 = vmax.f32 %v2641, %v2595
        %v2643 = vsel %vm617, %v2596, -inf
        %v2644 = vmax.f32 %v2642, %v2643
        %2645 = vmax.xlane.f32.xlu0 %v2644
        %v2646 = vpop.xlane.xlu0 %2645
        %v2647 = vmax.f32 %v2597, %v2598
        %v2648 = vmax.f32 %v2647, %v2599
        %v2649 = vmax.f32 %v2648, %v2600
        %v2650 = vsel %vm617, %v2601, -inf
        %v2651 = vmax.f32 %v2649, %v2650
        %2652 = vmax.xlane.f32.xlu0 %v2651
        %v2653 = vpop.xlane.xlu0 %2652
        %v2654 = vmax.f32 %v2602, %v2603
        %v2655 = vmax.f32 %v2654, %v2604
        %v2656 = vmax.f32 %v2655, %v2605
        %v2657 = vsel %vm617, %v2606, -inf
        %v2658 = vmax.f32 %v2656, %v2657
        %2659 = vmax.xlane.f32.xlu0 %v2658
        %v2660 = vpop.xlane.xlu0 %2659
        %v2661 = vmax.f32 %v2607, %v2608
        %v2662 = vmax.f32 %v2661, %v2609
        %v2663 = vmax.f32 %v2662, %v2610
        %v2664 = vsel %vm617, %v2611, -inf
        %v2665 = vmax.f32 %v2663, %v2664
        %2666 = vmax.xlane.f32.xlu0 %v2665
        %v2667 = vpop.xlane.xlu0 %2666
        %v2668 = vsub.f32 %v2572, %v2618
        %v2669 = vsub.f32 %v2573, %v2618
        %v2670 = vsub.f32 %v2574, %v2618
        %v2671 = vsub.f32 %v2575, %v2618
        %v2672 = vsub.f32 %v2576, %v2618
        %v2673 = vsub.f32 %v2577, %v2625
        %v2674 = vsub.f32 %v2578, %v2625
        %v2675 = vsub.f32 %v2579, %v2625
        %v2676 = vsub.f32 %v2580, %v2625
        %v2677 = vsub.f32 %v2581, %v2625
        %v2678 = vsub.f32 %v2582, %v2632
        %v2679 = vsub.f32 %v2583, %v2632
        %v2680 = vsub.f32 %v2584, %v2632
        %v2681 = vsub.f32 %v2585, %v2632
        %v2682 = vsub.f32 %v2586, %v2632
        %v2683 = vsub.f32 %v2587, %v2639
        %v2684 = vsub.f32 %v2588, %v2639
        %v2685 = vsub.f32 %v2589, %v2639
        %v2686 = vsub.f32 %v2590, %v2639
        %v2687 = vsub.f32 %v2591, %v2639
        %v2688 = vsub.f32 %v2592, %v2646
        %v2689 = vsub.f32 %v2593, %v2646
        %v2690 = vsub.f32 %v2594, %v2646
        %v2691 = vsub.f32 %v2595, %v2646
        %v2692 = vsub.f32 %v2596, %v2646
        %v2693 = vsub.f32 %v2597, %v2653
        %v2694 = vsub.f32 %v2598, %v2653
        %v2695 = vsub.f32 %v2599, %v2653
        %v2696 = vsub.f32 %v2600, %v2653
        %v2697 = vsub.f32 %v2601, %v2653
        %v2698 = vsub.f32 %v2602, %v2660
        %v2699 = vsub.f32 %v2603, %v2660
        %v2700 = vsub.f32 %v2604, %v2660
        %v2701 = vsub.f32 %v2605, %v2660
        %v2702 = vsub.f32 %v2606, %v2660
        %v2703 = vsub.f32 %v2607, %v2667
        %v2704 = vsub.f32 %v2608, %v2667
        %v2705 = vsub.f32 %v2609, %v2667
        %v2706 = vsub.f32 %v2610, %v2667
        %v2707 = vsub.f32 %v2611, %v2667
        %v2708 = vmul.f32 %v2668, 1.442695
        %v2709 = vpow.pop %v2708
        %v2710 = vmul.f32 %v2669, 1.442695
        %v2711 = vpow.pop %v2710
        %v2712 = vmul.f32 %v2670, 1.442695
        %v2713 = vpow.pop %v2712
        %v2714 = vmul.f32 %v2671, 1.442695
        %v2715 = vpow.pop %v2714
        %v2716 = vmul.f32 %v2672, 1.442695
        %v2717 = vpow.pop %v2716
        %v2718 = vmul.f32 %v2673, 1.442695
        %v2719 = vpow.pop %v2718
        %v2720 = vmul.f32 %v2674, 1.442695
        %v2721 = vpow.pop %v2720
        %v2722 = vmul.f32 %v2675, 1.442695
        %v2723 = vpow.pop %v2722
        %v2724 = vmul.f32 %v2676, 1.442695
        %v2725 = vpow.pop %v2724
        %v2726 = vmul.f32 %v2677, 1.442695
        %v2727 = vpow.pop %v2726
        %v2728 = vmul.f32 %v2678, 1.442695
        %v2729 = vpow.pop %v2728
        %v2730 = vmul.f32 %v2679, 1.442695
        %v2731 = vpow.pop %v2730
        %v2732 = vmul.f32 %v2680, 1.442695
        %v2733 = vpow.pop %v2732
        %v2734 = vmul.f32 %v2681, 1.442695
        %v2735 = vpow.pop %v2734
        %v2736 = vmul.f32 %v2682, 1.442695
        %v2737 = vpow.pop %v2736
        %v2738 = vmul.f32 %v2683, 1.442695
        %v2739 = vpow.pop %v2738
        %v2740 = vmul.f32 %v2684, 1.442695
        %v2741 = vpow.pop %v2740
        %v2742 = vmul.f32 %v2685, 1.442695
        %v2743 = vpow.pop %v2742
        %v2744 = vmul.f32 %v2686, 1.442695
        %v2745 = vpow.pop %v2744
        %v2746 = vmul.f32 %v2687, 1.442695
        %v2747 = vpow.pop %v2746
        %v2748 = vmul.f32 %v2688, 1.442695
        %v2749 = vpow.pop %v2748
        %v2750 = vmul.f32 %v2689, 1.442695
        %v2751 = vpow.pop %v2750
        %v2752 = vmul.f32 %v2690, 1.442695
        %v2753 = vpow.pop %v2752
        %v2754 = vmul.f32 %v2691, 1.442695
        %v2755 = vpow.pop %v2754
        %v2756 = vmul.f32 %v2692, 1.442695
        %v2757 = vpow.pop %v2756
        %v2758 = vmul.f32 %v2693, 1.442695
        %v2759 = vpow.pop %v2758
        %v2760 = vmul.f32 %v2694, 1.442695
        %v2761 = vpow.pop %v2760
        %v2762 = vmul.f32 %v2695, 1.442695
        %v2763 = vpow.pop %v2762
        %v2764 = vmul.f32 %v2696, 1.442695
        %v2765 = vpow.pop %v2764
        %v2766 = vmul.f32 %v2697, 1.442695
        %v2767 = vpow.pop %v2766
        %v2768 = vmul.f32 %v2698, 1.442695
        %v2769 = vpow.pop %v2768
        %v2770 = vmul.f32 %v2699, 1.442695
        %v2771 = vpow.pop %v2770
        %v2772 = vmul.f32 %v2700, 1.442695
        %v2773 = vpow.pop %v2772
        %v2774 = vmul.f32 %v2701, 1.442695
        %v2775 = vpow.pop %v2774
        %v2776 = vmul.f32 %v2702, 1.442695
        %v2777 = vpow.pop %v2776
        %v2778 = vmul.f32 %v2703, 1.442695
        %v2779 = vpow.pop %v2778
        %v2780 = vmul.f32 %v2704, 1.442695
        %v2781 = vpow.pop %v2780
        %v2782 = vmul.f32 %v2705, 1.442695
        %v2783 = vpow.pop %v2782
        %v2784 = vmul.f32 %v2706, 1.442695
        %v2785 = vpow.pop %v2784
        %v2786 = vmul.f32 %v2707, 1.442695
        %v2787 = vpow.pop %v2786
        %v2788 = vadd.f32 %v2709, %v2711
        %v2789 = vadd.f32 %v2788, %v2713
        %v2790 = vadd.f32 %v2789, %v2715
        %v2791 = vsel %vm617, %v2717, 0.0
        %v2792 = vadd.f32 %v2790, %v2791
        %2793 = vadd.xlane.f32.xlu0 %v2792
        %v2794 = vpop.xlane.xlu0 %2793
        %v2795 = vadd.f32 %v2719, %v2721
        %v2796 = vadd.f32 %v2795, %v2723
        %v2797 = vadd.f32 %v2796, %v2725
        %v2798 = vsel %vm617, %v2727, 0.0
        %v2799 = vadd.f32 %v2797, %v2798
        %2800 = vadd.xlane.f32.xlu0 %v2799
        %v2801 = vpop.xlane.xlu0 %2800
        %v2802 = vadd.f32 %v2729, %v2731
        %v2803 = vadd.f32 %v2802, %v2733
        %v2804 = vadd.f32 %v2803, %v2735
        %v2805 = vsel %vm617, %v2737, 0.0
        %v2806 = vadd.f32 %v2804, %v2805
        %2807 = vadd.xlane.f32.xlu0 %v2806
        %v2808 = vpop.xlane.xlu0 %2807
        %v2809 = vadd.f32 %v2739, %v2741
        %v2810 = vadd.f32 %v2809, %v2743
        %v2811 = vadd.f32 %v2810, %v2745
        %v2812 = vsel %vm617, %v2747, 0.0
        %v2813 = vadd.f32 %v2811, %v2812
        %2814 = vadd.xlane.f32.xlu0 %v2813
        %v2815 = vpop.xlane.xlu0 %2814
        %v2816 = vadd.f32 %v2749, %v2751
        %v2817 = vadd.f32 %v2816, %v2753
        %v2818 = vadd.f32 %v2817, %v2755
        %v2819 = vsel %vm617, %v2757, 0.0
        %v2820 = vadd.f32 %v2818, %v2819
        %2821 = vadd.xlane.f32.xlu0 %v2820
        %v2822 = vpop.xlane.xlu0 %2821
        %v2823 = vadd.f32 %v2759, %v2761
        %v2824 = vadd.f32 %v2823, %v2763
        %v2825 = vadd.f32 %v2824, %v2765
        %v2826 = vsel %vm617, %v2767, 0.0
        %v2827 = vadd.f32 %v2825, %v2826
        %2828 = vadd.xlane.f32.xlu0 %v2827
        %v2829 = vpop.xlane.xlu0 %2828
        %v2830 = vadd.f32 %v2769, %v2771
        %v2831 = vadd.f32 %v2830, %v2773
        %v2832 = vadd.f32 %v2831, %v2775
        %v2833 = vsel %vm617, %v2777, 0.0
        %v2834 = vadd.f32 %v2832, %v2833
        %2835 = vadd.xlane.f32.xlu0 %v2834
        %v2836 = vpop.xlane.xlu0 %2835
        %v2837 = vadd.f32 %v2779, %v2781
        %v2838 = vadd.f32 %v2837, %v2783
        %v2839 = vadd.f32 %v2838, %v2785
        %v2840 = vsel %vm617, %v2787, 0.0
        %v2841 = vadd.f32 %v2839, %v2840
        %2842 = vadd.xlane.f32.xlu0 %v2841
        %v2843 = vpop.xlane.xlu0 %2842
        %v2844 = vrcp.pop %v2794
        %v2845 = vrcp.pop %v2801
        %v2846 = vrcp.pop %v2808
        %v2847 = vrcp.pop %v2815
        %v2848 = vrcp.pop %v2822
        %v2849 = vrcp.pop %v2829
        %v2850 = vrcp.pop %v2836
        %v2851 = vrcp.pop %v2843
        %v2852 = vmul.f32 %v2709, %v2844
        %v2853 = vmul.f32 %v2711, %v2844
        %v2854 = vmul.f32 %v2713, %v2844
        %v2855 = vmul.f32 %v2715, %v2844
        %v2856 = vmul.f32 %v2717, %v2844
        %v2857 = vmul.f32 %v2719, %v2845
        %v2858 = vmul.f32 %v2721, %v2845
        %v2859 = vmul.f32 %v2723, %v2845
        %v2860 = vmul.f32 %v2725, %v2845
        %v2861 = vmul.f32 %v2727, %v2845
        %v2862 = vmul.f32 %v2729, %v2846
        %v2863 = vmul.f32 %v2731, %v2846
        %v2864 = vmul.f32 %v2733, %v2846
        %v2865 = vmul.f32 %v2735, %v2846
        %v2866 = vmul.f32 %v2737, %v2846
        %v2867 = vmul.f32 %v2739, %v2847
        %v2868 = vmul.f32 %v2741, %v2847
        %v2869 = vmul.f32 %v2743, %v2847
        %v2870 = vmul.f32 %v2745, %v2847
        %v2871 = vmul.f32 %v2747, %v2847
        %v2872 = vmul.f32 %v2749, %v2848
        %v2873 = vmul.f32 %v2751, %v2848
        %v2874 = vmul.f32 %v2753, %v2848
        %v2875 = vmul.f32 %v2755, %v2848
        %v2876 = vmul.f32 %v2757, %v2848
        %v2877 = vmul.f32 %v2759, %v2849
        %v2878 = vmul.f32 %v2761, %v2849
        %v2879 = vmul.f32 %v2763, %v2849
        %v2880 = vmul.f32 %v2765, %v2849
        %v2881 = vmul.f32 %v2767, %v2849
        %v2882 = vmul.f32 %v2769, %v2850
        %v2883 = vmul.f32 %v2771, %v2850
        %v2884 = vmul.f32 %v2773, %v2850
        %v2885 = vmul.f32 %v2775, %v2850
        %v2886 = vmul.f32 %v2777, %v2850
        %v2887 = vmul.f32 %v2779, %v2851
        %v2888 = vmul.f32 %v2781, %v2851
        %v2889 = vmul.f32 %v2783, %v2851
        %v2890 = vmul.f32 %v2785, %v2851
        %v2891 = vmul.f32 %v2787, %v2851
        %v2893 = vsel %vm617, %v592, 0
        %2895 = vmatprep.subr.mxu0 %v2853
        %2896 = vmatpush1.msra.mxu0 %v2852
        %2897 = vmatprep.subr.mxu0 %v2858
        %2898 = vmatpush1.msra.mxu0 %v2857
        %2899 = vmatprep.subr.mxu0 %v2863
        %2900 = vmatpush1.msra.mxu0 %v2862
        %2901 = vmatprep.subr.mxu0 %v2868
        %2902 = vmatpush1.msra.mxu0 %v2867
        %2903 = vmatprep.subr.mxu0 %v2873
        %2904 = vmatpush1.msra.mxu0 %v2872
        %2905 = vmatprep.subr.mxu0 %v2878
        %2906 = vmatpush1.msra.mxu0 %v2877
        %2907 = vmatprep.subr.mxu0 %v2883
        %2908 = vmatpush1.msra.mxu0 %v2882
        %2909 = vmatprep.subr.mxu0 %v2888
        %2910 = vmatpush1.msra.mxu0 %v2887
        %2911 = vmatprep.subr.mxu0 0.0
        %2912 = vmatpush1.msra.mxu0 0.0
        %2913 = vmatprep.subr.mxu0 0.0
        %2914 = vmatpush1.msra.mxu0 0.0
        %2915 = vmatprep.subr.mxu0 0.0
        %2916 = vmatpush1.msra.mxu0 0.0
        %2917 = vmatprep.subr.mxu0 0.0
        %2918 = vmatpush1.msra.mxu0 0.0
        %2919 = vmatprep.subr.mxu0 0.0
        %2920 = vmatpush1.msra.mxu0 0.0
        %2921 = vmatprep.subr.mxu0 0.0
        %2922 = vmatpush1.msra.mxu0 0.0
        %2923 = vmatprep.subr.mxu0 0.0
        %2924 = vmatpush1.msra.mxu0 0.0
        %2925 = vmatprep.subr.mxu0 0.0
        %2926 = vmatpush1.msra.mxu0 0.0
        %2927 = vmatprep.subr.mxu0 0.0
        %2928 = vmatpush1.msra.mxu0 0.0
        %2929 = vmatprep.subr.mxu0 0.0
        %2930 = vmatpush1.msra.mxu0 0.0
        %2931 = vmatprep.subr.mxu0 0.0
        %2932 = vmatpush1.msra.mxu0 0.0
        %2933 = vmatprep.subr.mxu0 0.0
        %2934 = vmatpush1.msra.mxu0 0.0
        %2935 = vmatprep.subr.mxu0 0.0
        %2936 = vmatpush1.msra.mxu0 0.0
        %2937 = vmatprep.subr.mxu0 0.0
        %2938 = vmatpush1.msra.mxu0 0.0
        %2939 = vmatprep.subr.mxu0 0.0
        %2940 = vmatpush1.msra.mxu0 0.0
        %2941 = vmatprep.subr.mxu0 0.0
        %2942 = vmatpush1.msra.mxu0 0.0
        %2943 = vmatprep.subr.mxu0 0.0
        %2944 = vmatpush1.msra.mxu0 0.0
        %2945 = vmatprep.subr.mxu0 0.0
        %2946 = vmatpush1.msra.mxu0 0.0
        %2947 = vmatprep.subr.mxu0 0.0
        %2948 = vmatpush1.msra.mxu0 0.0
        %2949 = vmatprep.subr.mxu0 0.0
        %2950 = vmatpush1.msra.mxu0 0.0
        %2951 = vmatprep.subr.mxu0 0.0
        %2952 = vmatpush1.msra.mxu0 0.0
        %2953 = vmatprep.subr.mxu0 0.0
        %2954 = vmatpush1.msra.mxu0 0.0
        %2955 = vmatprep.subr.mxu0 0.0
        %2956 = vmatpush1.msra.mxu0 0.0
        %2957 = vmatprep.subr.mxu0 0.0
        %2958 = vmatpush1.msra.mxu0 0.0
        %2959 = vmatprep.mubr.f32.mxu0 0.0
        %2960 = vmatmul.mubr.f32.gmra.mrb[0].mxu0 %v2893
        %v2961 = vpop.f32.mrb[0].mxu0
        %v2962 = vadd.f32 0.0, %v2961
        %v2963 = vpop.f32.mrb[0].mxu0
        %v2964 = vadd.f32 0.0, %v2963
        %2965 = vdwg.mxu0
        %2966 = vmatprep.subr.mxu0 %v2855
        %2967 = vmatpush1.msra.mxu0 %v2854
        %2968 = vmatprep.subr.mxu0 %v2860
        %2969 = vmatpush1.msra.mxu0 %v2859
        %2970 = vmatprep.subr.mxu0 %v2865
        %2971 = vmatpush1.msra.mxu0 %v2864
        %2972 = vmatprep.subr.mxu0 %v2870
        %2973 = vmatpush1.msra.mxu0 %v2869
        %2974 = vmatprep.subr.mxu0 %v2875
        %2975 = vmatpush1.msra.mxu0 %v2874
        %2976 = vmatprep.subr.mxu0 %v2880
        %2977 = vmatpush1.msra.mxu0 %v2879
        %2978 = vmatprep.subr.mxu0 %v2885
        %2979 = vmatpush1.msra.mxu0 %v2884
        %2980 = vmatprep.subr.mxu0 %v2890
        %2981 = vmatpush1.msra.mxu0 %v2889
        %2982 = vmatprep.subr.mxu0 0.0
        %2983 = vmatpush1.msra.mxu0 0.0
        %2984 = vmatprep.subr.mxu0 0.0
        %2985 = vmatpush1.msra.mxu0 0.0
        %2986 = vmatprep.subr.mxu0 0.0
        %2987 = vmatpush1.msra.mxu0 0.0
        %2988 = vmatprep.subr.mxu0 0.0
        %2989 = vmatpush1.msra.mxu0 0.0
        %2990 = vmatprep.subr.mxu0 0.0
        %2991 = vmatpush1.msra.mxu0 0.0
        %2992 = vmatprep.subr.mxu0 0.0
        %2993 = vmatpush1.msra.mxu0 0.0
        %2994 = vmatprep.subr.mxu0 0.0
        %2995 = vmatpush1.msra.mxu0 0.0
        %2996 = vmatprep.subr.mxu0 0.0
        %2997 = vmatpush1.msra.mxu0 0.0
        %2998 = vmatprep.subr.mxu0 0.0
        %2999 = vmatpush1.msra.mxu0 0.0
        %3000 = vmatprep.subr.mxu0 0.0
        %3001 = vmatpush1.msra.mxu0 0.0
        %3002 = vmatprep.subr.mxu0 0.0
        %3003 = vmatpush1.msra.mxu0 0.0
        %3004 = vmatprep.subr.mxu0 0.0
        %3005 = vmatpush1.msra.mxu0 0.0
        %3006 = vmatprep.subr.mxu0 0.0
        %3007 = vmatpush1.msra.mxu0 0.0
        %3008 = vmatprep.subr.mxu0 0.0
        %3009 = vmatpush1.msra.mxu0 0.0
        %3010 = vmatprep.subr.mxu0 0.0
        %3011 = vmatpush1.msra.mxu0 0.0
        %3012 = vmatprep.subr.mxu0 0.0
        %3013 = vmatpush1.msra.mxu0 0.0
        %3014 = vmatprep.subr.mxu0 0.0
        %3015 = vmatpush1.msra.mxu0 0.0
        %3016 = vmatprep.subr.mxu0 0.0
        %3017 = vmatpush1.msra.mxu0 0.0
        %3018 = vmatprep.subr.mxu0 0.0
        %3019 = vmatpush1.msra.mxu0 0.0
        %3020 = vmatprep.subr.mxu0 0.0
        %3021 = vmatpush1.msra.mxu0 0.0
        %3022 = vmatprep.subr.mxu0 0.0
        %3023 = vmatpush1.msra.mxu0 0.0
        %3024 = vmatprep.subr.mxu0 0.0
        %3025 = vmatpush1.msra.mxu0 0.0
        %3026 = vmatprep.subr.mxu0 0.0
        %3027 = vmatpush1.msra.mxu0 0.0
        %3028 = vmatprep.subr.mxu0 0.0
        %3029 = vmatpush1.msra.mxu0 0.0
        %3030 = vmatprep.mubr.f32.mxu0 0.0
        %3031 = vmatmul.mubr.f32.gmra.mrb[0].mxu0 %v2893
        %v3032 = vpop.f32.mrb[0].mxu0
        %v3033 = vadd.f32 0.0, %v3032
        %v3034 = vpop.f32.mrb[0].mxu0
        %v3035 = vadd.f32 0.0, %v3034
        %3036 = vdwg.mxu0
        %3037 = vmatprep.subr.mxu0 0.0
        %3038 = vmatpush1.msra.mxu0 %v2856
        %3039 = vmatprep.subr.mxu0 0.0
        %3040 = vmatpush1.msra.mxu0 %v2861
        %3041 = vmatprep.subr.mxu0 0.0
        %3042 = vmatpush1.msra.mxu0 %v2866
        %3043 = vmatprep.subr.mxu0 0.0
        %3044 = vmatpush1.msra.mxu0 %v2871
        %3045 = vmatprep.subr.mxu0 0.0
        %3046 = vmatpush1.msra.mxu0 %v2876
        %3047 = vmatprep.subr.mxu0 0.0
        %3048 = vmatpush1.msra.mxu0 %v2881
        %3049 = vmatprep.subr.mxu0 0.0
        %3050 = vmatpush1.msra.mxu0 %v2886
        %3051 = vmatprep.subr.mxu0 0.0
        %3052 = vmatpush1.msra.mxu0 %v2891
        %3053 = vmatprep.subr.mxu0 0.0
        %3054 = vmatpush1.msra.mxu0 0.0
        %3055 = vmatprep.subr.mxu0 0.0
        %3056 = vmatpush1.msra.mxu0 0.0
        %3057 = vmatprep.subr.mxu0 0.0
        %3058 = vmatpush1.msra.mxu0 0.0
        %3059 = vmatprep.subr.mxu0 0.0
        %3060 = vmatpush1.msra.mxu0 0.0
        %3061 = vmatprep.subr.mxu0 0.0
        %3062 = vmatpush1.msra.mxu0 0.0
        %3063 = vmatprep.subr.mxu0 0.0
        %3064 = vmatpush1.msra.mxu0 0.0
        %3065 = vmatprep.subr.mxu0 0.0
        %3066 = vmatpush1.msra.mxu0 0.0
        %3067 = vmatprep.subr.mxu0 0.0
        %3068 = vmatpush1.msra.mxu0 0.0
        %3069 = vmatprep.subr.mxu0 0.0
        %3070 = vmatpush1.msra.mxu0 0.0
        %3071 = vmatprep.subr.mxu0 0.0
        %3072 = vmatpush1.msra.mxu0 0.0
        %3073 = vmatprep.subr.mxu0 0.0
        %3074 = vmatpush1.msra.mxu0 0.0
        %3075 = vmatprep.subr.mxu0 0.0
        %3076 = vmatpush1.msra.mxu0 0.0
        %3077 = vmatprep.subr.mxu0 0.0
        %3078 = vmatpush1.msra.mxu0 0.0
        %3079 = vmatprep.subr.mxu0 0.0
        %3080 = vmatpush1.msra.mxu0 0.0
        %3081 = vmatprep.subr.mxu0 0.0
        %3082 = vmatpush1.msra.mxu0 0.0
        %3083 = vmatprep.subr.mxu0 0.0
        %3084 = vmatpush1.msra.mxu0 0.0
        %3085 = vmatprep.subr.mxu0 0.0
        %3086 = vmatpush1.msra.mxu0 0.0
        %3087 = vmatprep.subr.mxu0 0.0
        %3088 = vmatpush1.msra.mxu0 0.0
        %3089 = vmatprep.subr.mxu0 0.0
        %3090 = vmatpush1.msra.mxu0 0.0
        %3091 = vmatprep.subr.mxu0 0.0
        %3092 = vmatpush1.msra.mxu0 0.0
        %3093 = vmatprep.subr.mxu0 0.0
        %3094 = vmatpush1.msra.mxu0 0.0
        %3095 = vmatprep.subr.mxu0 0.0
        %3096 = vmatpush1.msra.mxu0 0.0
        %3097 = vmatprep.subr.mxu0 0.0
        %3098 = vmatpush1.msra.mxu0 0.0
        %3099 = vmatprep.subr.mxu0 0.0
        %3100 = vmatpush1.msra.mxu0 0.0
        %3101 = vmatprep.mubr.f32.mxu0 0.0
        %3102 = vmatmul.mubr.f32.gmra.mrb[0].mxu0 %v2893
        %v3103 = vpop.f32.mrb[0].mxu0
        %v3104 = vadd.f32 0.0, %v3103
        %v3105 = vpop.f32.mrb[0].mxu0
        %3106 = vdwg.mxu0
        %v3107 = vmul.f32 %v2962, 0.0625
        %v3108 = vmul.f32 %v2964, 0.0625
        %v3109 = vmul.f32 %v3033, 0.0625
        %v3110 = vmul.f32 %v3035, 0.0625
        %v3111 = vmul.f32 %v3104, 0.0625
        %v3116 = vcombine.low %v3107, %v3108
        %v3117 = vcombine.low %v3109, %v3110
        %3120 = vst [vmem:[%s570] sm:$0xff] %v3116
        %3121 = vst [vmem:[%s570 + $0x8] sm:$0xff] %v3117
        %vm3122 = vcmask 519168
        %3123 = vst.msk [vmem:[%s570 + $0x10] sm:$0xf] %vm3122, %v3111
        %v3125 = vsel %vm617, %v2856, 0
        %v3128 = vsel %vm617, %v2861, 0
        %v3131 = vsel %vm617, %v2866, 0
        %v3134 = vsel %vm617, %v2871, 0
        %v3137 = vsel %vm617, %v2876, 0
        %v3140 = vsel %vm617, %v2881, 0
        %v3143 = vsel %vm617, %v2886, 0
        %v3146 = vsel %vm617, %v2891, 0
        %3148 = vmatprep.subr.mxu0 0.0
        %3149 = vmatpush1.msra.mxu0 %v1501
        %3150 = vmatprep.subr.mxu0 0.0
        %3151 = vmatpush1.msra.mxu0 %v1506
        %3152 = vmatprep.subr.mxu0 0.0
        %3153 = vmatpush1.msra.mxu0 %v1511
        %3154 = vmatprep.subr.mxu0 0.0
        %3155 = vmatpush1.msra.mxu0 %v1516
        %3156 = vmatprep.subr.mxu0 0.0
        %3157 = vmatpush1.msra.mxu0 %v1521
        %3158 = vmatprep.subr.mxu0 0.0
        %3159 = vmatpush1.msra.mxu0 %v1526
        %3160 = vmatprep.subr.mxu0 0.0
        %3161 = vmatpush1.msra.mxu0 %v1531
        %3162 = vmatprep.subr.mxu0 0.0
        %3163 = vmatpush1.msra.mxu0 %v1536
        %3164 = vmatprep.subr.mxu0 0.0
        %3165 = vmatpush1.msra.mxu0 %v1541
        %3166 = vmatprep.subr.mxu0 0.0
        %3167 = vmatpush1.msra.mxu0 %v1546
        %3168 = vmatprep.subr.mxu0 0.0
        %3169 = vmatpush1.msra.mxu0 %v1551
        %3170 = vmatprep.subr.mxu0 0.0
        %3171 = vmatpush1.msra.mxu0 %v1556
        %3172 = vmatprep.subr.mxu0 0.0
        %3173 = vmatpush1.msra.mxu0 %v1561
        %3174 = vmatprep.subr.mxu0 0.0
        %3175 = vmatpush1.msra.mxu0 %v1566
        %3176 = vmatprep.subr.mxu0 0.0
        %3177 = vmatpush1.msra.mxu0 %v1571
        %3178 = vmatprep.subr.mxu0 0.0
        %3179 = vmatpush1.msra.mxu0 %v1576
        %3180 = vmatprep.subr.mxu0 0.0
        %3181 = vmatpush1.msra.mxu0 %v1581
        %3182 = vmatprep.subr.mxu0 0.0
        %3183 = vmatpush1.msra.mxu0 %v1586
        %3184 = vmatprep.subr.mxu0 0.0
        %3185 = vmatpush1.msra.mxu0 %v1591
        %3186 = vmatprep.subr.mxu0 0.0
        %3187 = vmatpush1.msra.mxu0 %v1596
        %3188 = vmatprep.subr.mxu0 0.0
        %3189 = vmatpush1.msra.mxu0 %v1601
        %3190 = vmatprep.subr.mxu0 0.0
        %3191 = vmatpush1.msra.mxu0 %v1606
        %3192 = vmatprep.subr.mxu0 0.0
        %3193 = vmatpush1.msra.mxu0 %v1611
        %3194 = vmatprep.subr.mxu0 0.0
        %3195 = vmatpush1.msra.mxu0 %v1616
        %3196 = vmatprep.subr.mxu0 0.0
        %3197 = vmatpush1.msra.mxu0 %v1621
        %3198 = vmatprep.subr.mxu0 0.0
        %3199 = vmatpush1.msra.mxu0 %v1626
        %3200 = vmatprep.subr.mxu0 0.0
        %3201 = vmatpush1.msra.mxu0 %v1631
        %3202 = vmatprep.subr.mxu0 0.0
        %3203 = vmatpush1.msra.mxu0 %v1636
        %3204 = vmatprep.subr.mxu0 0.0
        %3205 = vmatpush1.msra.mxu0 %v1641
        %3206 = vmatprep.subr.mxu0 0.0
        %3207 = vmatpush1.msra.mxu0 %v1646
        %3208 = vmatprep.subr.mxu0 0.0
        %3209 = vmatpush1.msra.mxu0 %v1651
        %3210 = vmatprep.subr.mxu0 0.0
        %3211 = vmatpush1.msra.mxu0 %v1656
        %3212 = vmatprep.mubr.f32.mxu0 %v2853
        %3213 = vmatmul.mubr.f32.gmra.mrb[0].mxu0 %v2852
        %v3214 = vpop.f32.mrb[0].mxu0
        %v3215 = vadd.f32 0.0, %v3214
        %v3216 = vpop.f32.mrb[0].mxu0
        %3217 = vmatprep.mubr.f32.mxu0 %v2858
        %3218 = vmatmul.mubr.f32.gmra.mrb[0].mxu0 %v2857
        %v3219 = vpop.f32.mrb[0].mxu0
        %v3220 = vadd.f32 0.0, %v3219
        %v3221 = vpop.f32.mrb[0].mxu0
        %3222 = vmatprep.mubr.f32.mxu0 %v2863
        %3223 = vmatmul.mubr.f32.gmra.mrb[0].mxu0 %v2862
        %v3224 = vpop.f32.mrb[0].mxu0
        %v3225 = vadd.f32 0.0, %v3224
        %v3226 = vpop.f32.mrb[0].mxu0
        %3227 = vmatprep.mubr.f32.mxu0 %v2868
        %3228 = vmatmul.mubr.f32.gmra.mrb[0].mxu0 %v2867
        %v3229 = vpop.f32.mrb[0].mxu0
        %v3230 = vadd.f32 0.0, %v3229
        %v3231 = vpop.f32.mrb[0].mxu0
        %3232 = vmatprep.mubr.f32.mxu0 %v2873
        %3233 = vmatmul.mubr.f32.gmra.mrb[0].mxu0 %v2872
        %v3234 = vpop.f32.mrb[0].mxu0
        %v3235 = vadd.f32 0.0, %v3234
        %v3236 = vpop.f32.mrb[0].mxu0
        %3237 = vmatprep.mubr.f32.mxu0 %v2878
        %3238 = vmatmul.mubr.f32.gmra.mrb[0].mxu0 %v2877
        %v3239 = vpop.f32.mrb[0].mxu0
        %v3240 = vadd.f32 0.0, %v3239
        %v3241 = vpop.f32.mrb[0].mxu0
        %3242 = vmatprep.mubr.f32.mxu0 %v2883
        %3243 = vmatmul.mubr.f32.gmra.mrb[0].mxu0 %v2882
        %v3244 = vpop.f32.mrb[0].mxu0
        %v3245 = vadd.f32 0.0, %v3244
        %v3246 = vpop.f32.mrb[0].mxu0
        %3247 = vmatprep.mubr.f32.mxu0 %v2888
        %3248 = vmatmul.mubr.f32.gmra.mrb[0].mxu0 %v2887
        %v3249 = vpop.f32.mrb[0].mxu0
        %v3250 = vadd.f32 0.0, %v3249
        %v3251 = vpop.f32.mrb[0].mxu0
        %3252 = vdwg.mxu0
        %3253 = vmatprep.subr.mxu0 0.0
        %3254 = vmatpush1.msra.mxu0 %v1661
        %3255 = vmatprep.subr.mxu0 0.0
        %3256 = vmatpush1.msra.mxu0 %v1666
        %3257 = vmatprep.subr.mxu0 0.0
        %3258 = vmatpush1.msra.mxu0 %v1671
        %3259 = vmatprep.subr.mxu0 0.0
        %3260 = vmatpush1.msra.mxu0 %v1676
        %3261 = vmatprep.subr.mxu0 0.0
        %3262 = vmatpush1.msra.mxu0 %v1681
        %3263 = vmatprep.subr.mxu0 0.0
        %3264 = vmatpush1.msra.mxu0 %v1686
        %3265 = vmatprep.subr.mxu0 0.0
        %3266 = vmatpush1.msra.mxu0 %v1691
        %3267 = vmatprep.subr.mxu0 0.0
        %3268 = vmatpush1.msra.mxu0 %v1696
        %3269 = vmatprep.subr.mxu0 0.0
        %3270 = vmatpush1.msra.mxu0 %v1701
        %3271 = vmatprep.subr.mxu0 0.0
        %3272 = vmatpush1.msra.mxu0 %v1706
        %3273 = vmatprep.subr.mxu0 0.0
        %3274 = vmatpush1.msra.mxu0 %v1711
        %3275 = vmatprep.subr.mxu0 0.0
        %3276 = vmatpush1.msra.mxu0 %v1716
        %3277 = vmatprep.subr.mxu0 0.0
        %3278 = vmatpush1.msra.mxu0 %v1721
        %3279 = vmatprep.subr.mxu0 0.0
        %3280 = vmatpush1.msra.mxu0 %v1726
        %3281 = vmatprep.subr.mxu0 0.0
        %3282 = vmatpush1.msra.mxu0 %v1731
        %3283 = vmatprep.subr.mxu0 0.0
        %3284 = vmatpush1.msra.mxu0 %v1736
        %3285 = vmatprep.subr.mxu0 0.0
        %3286 = vmatpush1.msra.mxu0 %v1741
        %3287 = vmatprep.subr.mxu0 0.0
        %3288 = vmatpush1.msra.mxu0 %v1746
        %3289 = vmatprep.subr.mxu0 0.0
        %3290 = vmatpush1.msra.mxu0 %v1751
        %3291 = vmatprep.subr.mxu0 0.0
        %3292 = vmatpush1.msra.mxu0 %v1756
        %3293 = vmatprep.subr.mxu0 0.0
        %3294 = vmatpush1.msra.mxu0 %v1761
        %3295 = vmatprep.subr.mxu0 0.0
        %3296 = vmatpush1.msra.mxu0 %v1766
        %3297 = vmatprep.subr.mxu0 0.0
        %3298 = vmatpush1.msra.mxu0 %v1771
        %3299 = vmatprep.subr.mxu0 0.0
        %3300 = vmatpush1.msra.mxu0 %v1776
        %3301 = vmatprep.subr.mxu0 0.0
        %3302 = vmatpush1.msra.mxu0 %v1781
        %3303 = vmatprep.subr.mxu0 0.0
        %3304 = vmatpush1.msra.mxu0 %v1786
        %3305 = vmatprep.subr.mxu0 0.0
        %3306 = vmatpush1.msra.mxu0 %v1791
        %3307 = vmatprep.subr.mxu0 0.0
        %3308 = vmatpush1.msra.mxu0 %v1796
        %3309 = vmatprep.subr.mxu0 0.0
        %3310 = vmatpush1.msra.mxu0 %v1801
        %3311 = vmatprep.subr.mxu0 0.0
        %3312 = vmatpush1.msra.mxu0 %v1806
        %3313 = vmatprep.subr.mxu0 0.0
        %3314 = vmatpush1.msra.mxu0 %v1811
        %3315 = vmatprep.subr.mxu0 0.0
        %3316 = vmatpush1.msra.mxu0 %v1816
        %3317 = vmatprep.mubr.f32.mxu0 %v2855
        %3318 = vmatmul.mubr.f32.gmra.mrb[0].mxu0 %v2854
        %v3319 = vpop.f32.mrb[0].mxu0
        %v3320 = vadd.f32 %v3215, %v3319
        %v3321 = vpop.f32.mrb[0].mxu0
        %3322 = vmatprep.mubr.f32.mxu0 %v2860
        %3323 = vmatmul.mubr.f32.gmra.mrb[0].mxu0 %v2859
        %v3324 = vpop.f32.mrb[0].mxu0
        %v3325 = vadd.f32 %v3220, %v3324
        %v3326 = vpop.f32.mrb[0].mxu0
        %3327 = vmatprep.mubr.f32.mxu0 %v2865
        %3328 = vmatmul.mubr.f32.gmra.mrb[0].mxu0 %v2864
        %v3329 = vpop.f32.mrb[0].mxu0
        %v3330 = vadd.f32 %v3225, %v3329
        %v3331 = vpop.f32.mrb[0].mxu0
        %3332 = vmatprep.mubr.f32.mxu0 %v2870
        %3333 = vmatmul.mubr.f32.gmra.mrb[0].mxu0 %v2869
        %v3334 = vpop.f32.mrb[0].mxu0
        %v3335 = vadd.f32 %v3230, %v3334
        %v3336 = vpop.f32.mrb[0].mxu0
        %3337 = vmatprep.mubr.f32.mxu0 %v2875
        %3338 = vmatmul.mubr.f32.gmra.mrb[0].mxu0 %v2874
        %v3339 = vpop.f32.mrb[0].mxu0
        %v3340 = vadd.f32 %v3235, %v3339
        %v3341 = vpop.f32.mrb[0].mxu0
        %3342 = vmatprep.mubr.f32.mxu0 %v2880
        %3343 = vmatmul.mubr.f32.gmra.mrb[0].mxu0 %v2879
        %v3344 = vpop.f32.mrb[0].mxu0
        %v3345 = vadd.f32 %v3240, %v3344
        %v3346 = vpop.f32.mrb[0].mxu0
        %3347 = vmatprep.mubr.f32.mxu0 %v2885
        %3348 = vmatmul.mubr.f32.gmra.mrb[0].mxu0 %v2884
        %v3349 = vpop.f32.mrb[0].mxu0
        %v3350 = vadd.f32 %v3245, %v3349
        %v3351 = vpop.f32.mrb[0].mxu0
        %3352 = vmatprep.mubr.f32.mxu0 %v2890
        %3353 = vmatmul.mubr.f32.gmra.mrb[0].mxu0 %v2889
        %v3354 = vpop.f32.mrb[0].mxu0
        %v3355 = vadd.f32 %v3250, %v3354
        %v3356 = vpop.f32.mrb[0].mxu0
        %3357 = vdwg.mxu0
        %3358 = vmatprep.subr.mxu0 0.0
        %3359 = vmatpush1.msra.mxu0 %v1821
        %3360 = vmatprep.subr.mxu0 0.0
        %3361 = vmatpush1.msra.mxu0 %v1826
        %3362 = vmatprep.subr.mxu0 0.0
        %3363 = vmatpush1.msra.mxu0 %v1831
        %3364 = vmatprep.subr.mxu0 0.0
        %3365 = vmatpush1.msra.mxu0 %v1836
        %3366 = vmatprep.subr.mxu0 0.0
        %3367 = vmatpush1.msra.mxu0 %v1841
        %3368 = vmatprep.subr.mxu0 0.0
        %3369 = vmatpush1.msra.mxu0 %v1846
        %3370 = vmatprep.subr.mxu0 0.0
        %3371 = vmatpush1.msra.mxu0 %v1851
        %3372 = vmatprep.subr.mxu0 0.0
        %3373 = vmatpush1.msra.mxu0 %v1856
        %3374 = vmatprep.subr.mxu0 0.0
        %3375 = vmatpush1.msra.mxu0 0.0
        %3376 = vmatprep.subr.mxu0 0.0
        %3377 = vmatpush1.msra.mxu0 0.0
        %3378 = vmatprep.subr.mxu0 0.0
        %3379 = vmatpush1.msra.mxu0 0.0
        %3380 = vmatprep.subr.mxu0 0.0
        %3381 = vmatpush1.msra.mxu0 0.0
        %3382 = vmatprep.subr.mxu0 0.0
        %3383 = vmatpush1.msra.mxu0 0.0
        %3384 = vmatprep.subr.mxu0 0.0
        %3385 = vmatpush1.msra.mxu0 0.0
        %3386 = vmatprep.subr.mxu0 0.0
        %3387 = vmatpush1.msra.mxu0 0.0
        %3388 = vmatprep.subr.mxu0 0.0
        %3389 = vmatpush1.msra.mxu0 0.0
        %3390 = vmatprep.subr.mxu0 0.0
        %3391 = vmatpush1.msra.mxu0 0.0
        %3392 = vmatprep.subr.mxu0 0.0
        %3393 = vmatpush1.msra.mxu0 0.0
        %3394 = vmatprep.subr.mxu0 0.0
        %3395 = vmatpush1.msra.mxu0 0.0
        %3396 = vmatprep.subr.mxu0 0.0
        %3397 = vmatpush1.msra.mxu0 0.0
        %3398 = vmatprep.subr.mxu0 0.0
        %3399 = vmatpush1.msra.mxu0 0.0
        %3400 = vmatprep.subr.mxu0 0.0
        %3401 = vmatpush1.msra.mxu0 0.0
        %3402 = vmatprep.subr.mxu0 0.0
        %3403 = vmatpush1.msra.mxu0 0.0
        %3404 = vmatprep.subr.mxu0 0.0
        %3405 = vmatpush1.msra.mxu0 0.0
        %3406 = vmatprep.subr.mxu0 0.0
        %3407 = vmatpush1.msra.mxu0 0.0
        %3408 = vmatprep.subr.mxu0 0.0
        %3409 = vmatpush1.msra.mxu0 0.0
        %3410 = vmatprep.subr.mxu0 0.0
        %3411 = vmatpush1.msra.mxu0 0.0
        %3412 = vmatprep.subr.mxu0 0.0
        %3413 = vmatpush1.msra.mxu0 0.0
        %3414 = vmatprep.subr.mxu0 0.0
        %3415 = vmatpush1.msra.mxu0 0.0
        %3416 = vmatprep.subr.mxu0 0.0
        %3417 = vmatpush1.msra.mxu0 0.0
        %3418 = vmatprep.subr.mxu0 0.0
        %3419 = vmatpush1.msra.mxu0 0.0
        %3420 = vmatprep.subr.mxu0 0.0
        %3421 = vmatpush1.msra.mxu0 0.0
        %3422 = vmatprep.mubr.f32.mxu0 0.0
        %3423 = vmatmul.mubr.f32.gmra.mrb[0].mxu0 %v3125
        %v3424 = vpop.f32.mrb[0].mxu0
        %v3425 = vadd.f32 %v3320, %v3424
        %v3426 = vpop.f32.mrb[0].mxu0
        %3427 = vmatprep.mubr.f32.mxu0 0.0
        %3428 = vmatmul.mubr.f32.gmra.mrb[0].mxu0 %v3128
        %v3429 = vpop.f32.mrb[0].mxu0
        %v3430 = vadd.f32 %v3325, %v3429
        %v3431 = vpop.f32.mrb[0].mxu0
        %3432 = vmatprep.mubr.f32.mxu0 0.0
        %3433 = vmatmul.mubr.f32.gmra.mrb[0].mxu0 %v3131
        %v3434 = vpop.f32.mrb[0].mxu0
        %v3435 = vadd.f32 %v3330, %v3434
        %v3436 = vpop.f32.mrb[0].mxu0
        %3437 = vmatprep.mubr.f32.mxu0 0.0
        %3438 = vmatmul.mubr.f32.gmra.mrb[0].mxu0 %v3134
        %v3439 = vpop.f32.mrb[0].mxu0
        %v3440 = vadd.f32 %v3335, %v3439
        %v3441 = vpop.f32.mrb[0].mxu0
        %3442 = vmatprep.mubr.f32.mxu0 0.0
        %3443 = vmatmul.mubr.f32.gmra.mrb[0].mxu0 %v3137
        %v3444 = vpop.f32.mrb[0].mxu0
        %v3445 = vadd.f32 %v3340, %v3444
        %v3446 = vpop.f32.mrb[0].mxu0
        %3447 = vmatprep.mubr.f32.mxu0 0.0
        %3448 = vmatmul.mubr.f32.gmra.mrb[0].mxu0 %v3140
        %v3449 = vpop.f32.mrb[0].mxu0
        %v3450 = vadd.f32 %v3345, %v3449
        %v3451 = vpop.f32.mrb[0].mxu0
        %3452 = vmatprep.mubr.f32.mxu0 0.0
        %3453 = vmatmul.mubr.f32.gmra.mrb[0].mxu0 %v3143
        %v3454 = vpop.f32.mrb[0].mxu0
        %v3455 = vadd.f32 %v3350, %v3454
        %v3456 = vpop.f32.mrb[0].mxu0
        %3457 = vmatprep.mubr.f32.mxu0 0.0
        %3458 = vmatmul.mubr.f32.gmra.mrb[0].mxu0 %v3146
        %v3459 = vpop.f32.mrb[0].mxu0
        %v3460 = vadd.f32 %v3355, %v3459
        %v3461 = vpop.f32.mrb[0].mxu0
        %3462 = vdwg.mxu0
        %v3463 = vmul.f32 %v3425, %v584
        %v3464 = vmul.f32 %v3430, %v585
        %v3465 = vmul.f32 %v3435, %v586
        %v3466 = vmul.f32 %v3440, %v587
        %v3467 = vmul.f32 %v3445, %v588
        %v3468 = vmul.f32 %v3450, %v589
        %v3469 = vmul.f32 %v3455, %v590
        %v3470 = vmul.f32 %v3460, %v591
        %3471 = vmatprep.subr.mxu0 0.0
        %3472 = vmatpush1.msra.mxu0 %v3463
        %3473 = vmatprep.subr.mxu0 0.0
        %3474 = vmatpush1.msra.mxu0 %v3464
        %3475 = vmatprep.subr.mxu0 0.0
        %3476 = vmatpush1.msra.mxu0 %v3465
        %3477 = vmatprep.subr.mxu0 0.0
        %3478 = vmatpush1.msra.mxu0 %v3466
        %3479 = vmatprep.subr.mxu0 0.0
        %3480 = vmatpush1.msra.mxu0 %v3467
        %3481 = vmatprep.subr.mxu0 0.0
        %3482 = vmatpush1.msra.mxu0 %v3468
        %3483 = vmatprep.subr.mxu0 0.0
        %3484 = vmatpush1.msra.mxu0 %v3469
        %3485 = vmatprep.subr.mxu0 0.0
        %3486 = vmatpush1.msra.mxu0 %v3470
        %3487 = vmatprep.subr.mxu0 0.0
        %3488 = vmatpush1.msra.mxu0 0.0
        %3489 = vmatprep.subr.mxu0 0.0
        %3490 = vmatpush1.msra.mxu0 0.0
        %3491 = vmatprep.subr.mxu0 0.0
        %3492 = vmatpush1.msra.mxu0 0.0
        %3493 = vmatprep.subr.mxu0 0.0
        %3494 = vmatpush1.msra.mxu0 0.0
        %3495 = vmatprep.subr.mxu0 0.0
        %3496 = vmatpush1.msra.mxu0 0.0
        %3497 = vmatprep.subr.mxu0 0.0
        %3498 = vmatpush1.msra.mxu0 0.0
        %3499 = vmatprep.subr.mxu0 0.0
        %3500 = vmatpush1.msra.mxu0 0.0
        %3501 = vmatprep.subr.mxu0 0.0
        %3502 = vmatpush1.msra.mxu0 0.0
        %3503 = vmatprep.subr.mxu0 0.0
        %3504 = vmatpush1.msra.mxu0 0.0
        %3505 = vmatprep.subr.mxu0 0.0
        %3506 = vmatpush1.msra.mxu0 0.0
        %3507 = vmatprep.subr.mxu0 0.0
        %3508 = vmatpush1.msra.mxu0 0.0
        %3509 = vmatprep.subr.mxu0 0.0
        %3510 = vmatpush1.msra.mxu0 0.0
        %3511 = vmatprep.subr.mxu0 0.0
        %3512 = vmatpush1.msra.mxu0 0.0
        %3513 = vmatprep.subr.mxu0 0.0
        %3514 = vmatpush1.msra.mxu0 0.0
        %3515 = vmatprep.subr.mxu0 0.0
        %3516 = vmatpush1.msra.mxu0 0.0
        %3517 = vmatprep.subr.mxu0 0.0
        %3518 = vmatpush1.msra.mxu0 0.0
        %3519 = vmatprep.subr.mxu0 0.0
        %3520 = vmatpush1.msra.mxu0 0.0
        %3521 = vmatprep.subr.mxu0 0.0
        %3522 = vmatpush1.msra.mxu0 0.0
        %3523 = vmatprep.subr.mxu0 0.0
        %3524 = vmatpush1.msra.mxu0 0.0
        %3525 = vmatprep.subr.mxu0 0.0
        %3526 = vmatpush1.msra.mxu0 0.0
        %3527 = vmatprep.subr.mxu0 0.0
        %3528 = vmatpush1.msra.mxu0 0.0
        %3529 = vmatprep.subr.mxu0 0.0
        %3530 = vmatpush1.msra.mxu0 0.0
        %3531 = vmatprep.subr.mxu0 0.0
        %3532 = vmatpush1.msra.mxu0 0.0
        %3533 = vmatprep.subr.mxu0 0.0
        %3534 = vmatpush1.msra.mxu0 0.0
        %3535 = vmatprep.mubr.f32.mxu0 0.0
        %3536 = vmatmul.mubr.f32.gmra.mrb[0].mxu0 %v2893
        %v3537 = vpop.f32.mrb[0].mxu0
        %v3538 = vadd.f32 0.0, %v3537
        %v3539 = vpop.f32.mrb[0].mxu0
        %3540 = vdwg.mxu0
        %v3541 = vld [vmem:[%s8] sm:$0xff]
        %v3542 = vld [vmem:[%s8 + $0x8] sm:$0xff]
        %v3543 = vld [vmem:[%s8 + $0x10] sm:$0xff]
        %v3544 = vld [vmem:[%s8 + $0x18] sm:$0xff]
        %v3545 = vld [vmem:[%s8 + $0x20] sm:$0xff]
        %v3546 = vld [vmem:[%s8 + $0x28] sm:$0xff]
        %v3547 = vld [vmem:[%s8 + $0x30] sm:$0xff]
        %v3548 = vld [vmem:[%s8 + $0x38] sm:$0xff]
        %v3549 = vld [vmem:[%s9] sm:$0x1]
        %v3551 = vlaneseq
        %v3552 = vshrl.u32 %v3551, 7
        %v3553 = vsub.s32 0, %v3552
        %v3554 = vrot.slane %v3549, %v3553
        %v3557 = vsel %vm617, %v3538, 0
        %3559 = vmatprep.subr.mxu0 0.0
        %3560 = vmatpush1.msra.mxu0 %v3541
        %3561 = vmatprep.subr.mxu0 0.0
        %3562 = vmatpush1.msra.mxu0 %v3542
        %3563 = vmatprep.subr.mxu0 0.0
        %3564 = vmatpush1.msra.mxu0 %v3543
        %3565 = vmatprep.subr.mxu0 0.0
        %3566 = vmatpush1.msra.mxu0 %v3544
        %3567 = vmatprep.subr.mxu0 0.0
        %3568 = vmatpush1.msra.mxu0 %v3545
        %3569 = vmatprep.subr.mxu0 0.0
        %3570 = vmatpush1.msra.mxu0 %v3546
        %3571 = vmatprep.subr.mxu0 0.0
        %3572 = vmatpush1.msra.mxu0 %v3547
        %3573 = vmatprep.subr.mxu0 0.0
        %3574 = vmatpush1.msra.mxu0 %v3548
        %3575 = vmatprep.subr.mxu0 0.0
        %3576 = vmatpush1.msra.mxu0 0.0
        %3577 = vmatprep.subr.mxu0 0.0
        %3578 = vmatpush1.msra.mxu0 0.0
        %3579 = vmatprep.subr.mxu0 0.0
        %3580 = vmatpush1.msra.mxu0 0.0
        %3581 = vmatprep.subr.mxu0 0.0
        %3582 = vmatpush1.msra.mxu0 0.0
        %3583 = vmatprep.subr.mxu0 0.0
        %3584 = vmatpush1.msra.mxu0 0.0
        %3585 = vmatprep.subr.mxu0 0.0
        %3586 = vmatpush1.msra.mxu0 0.0
        %3587 = vmatprep.subr.mxu0 0.0
        %3588 = vmatpush1.msra.mxu0 0.0
        %3589 = vmatprep.subr.mxu0 0.0
        %3590 = vmatpush1.msra.mxu0 0.0
        %3591 = vmatprep.subr.mxu0 0.0
        %3592 = vmatpush1.msra.mxu0 0.0
        %3593 = vmatprep.subr.mxu0 0.0
        %3594 = vmatpush1.msra.mxu0 0.0
        %3595 = vmatprep.subr.mxu0 0.0
        %3596 = vmatpush1.msra.mxu0 0.0
        %3597 = vmatprep.subr.mxu0 0.0
        %3598 = vmatpush1.msra.mxu0 0.0
        %3599 = vmatprep.subr.mxu0 0.0
        %3600 = vmatpush1.msra.mxu0 0.0
        %3601 = vmatprep.subr.mxu0 0.0
        %3602 = vmatpush1.msra.mxu0 0.0
        %3603 = vmatprep.subr.mxu0 0.0
        %3604 = vmatpush1.msra.mxu0 0.0
        %3605 = vmatprep.subr.mxu0 0.0
        %3606 = vmatpush1.msra.mxu0 0.0
        %3607 = vmatprep.subr.mxu0 0.0
        %3608 = vmatpush1.msra.mxu0 0.0
        %3609 = vmatprep.subr.mxu0 0.0
        %3610 = vmatpush1.msra.mxu0 0.0
        %3611 = vmatprep.subr.mxu0 0.0
        %3612 = vmatpush1.msra.mxu0 0.0
        %3613 = vmatprep.subr.mxu0 0.0
        %3614 = vmatpush1.msra.mxu0 0.0
        %3615 = vmatprep.subr.mxu0 0.0
        %3616 = vmatpush1.msra.mxu0 0.0
        %3617 = vmatprep.subr.mxu0 0.0
        %3618 = vmatpush1.msra.mxu0 0.0
        %3619 = vmatprep.subr.mxu0 0.0
        %3620 = vmatpush1.msra.mxu0 0.0
        %3621 = vmatprep.subr.mxu0 0.0
        %3622 = vmatpush1.msra.mxu0 0.0
        %3623 = vmatprep.mubr.f32.mxu0 0.0
        %3624 = vmatmul.mubr.f32.gmra.mrb[0].mxu0 %v3557
        %v3625 = vpop.f32.mrb[0].mxu0
        %v3626 = vadd.f32 %v3554, %v3625
        %v3627 = vpop.f32.mrb[0].mxu0
        %3628 = vdwg.mxu0
        %3629 = vst.msk [vmem:[%s583] sm:$0xf] %vm3122, %v3626
        %v3630 = vsel %vm3122, %v3626, 0.0
        %v3631 = vrot.slane %v3630, 4
        %v3632 = vadd.f32 %v3630, %v3631
        %v3633 = vrot.slane %v3632, 2
        %v3634 = vadd.f32 %v3632, %v3633
        %v3635 = vrot.slane %v3634, 1
        %v3636 = vadd.f32 %v3634, %v3635
        %v3637 = vrcp.pop 4.0
        %v3638 = vmul.f32 %v3636, %v3637
        %v3639 = vld [vmem:[%s10] sm:$0xff]
        %v3640 = vld [vmem:[%s10 + $0x8] sm:$0xff]
        %v3641 = vld [vmem:[%s10 + $0x10] sm:$0xff]
        %v3642 = vld [vmem:[%s10 + $0x18] sm:$0xff]
        %v3643 = vld [vmem:[%s10 + $0x20] sm:$0xff]
        %v3644 = vld [vmem:[%s10 + $0x28] sm:$0xff]
        %v3645 = vld [vmem:[%s10 + $0x30] sm:$0xff]
        %v3646 = vld [vmem:[%s10 + $0x38] sm:$0xff]
        %v3647 = vld [vmem:[%s11] sm:$0x1]
        %v3649 = vsel %vm617, %v3638, 0
        %3651 = vmatprep.subr.mxu0 0.0
        %3652 = vmatpush1.msra.mxu0 %v3639
        %3653 = vmatprep.subr.mxu0 0.0
        %3654 = vmatpush1.msra.mxu0 %v3640
        %3655 = vmatprep.subr.mxu0 0.0
        %3656 = vmatpush1.msra.mxu0 %v3641
        %3657 = vmatprep.subr.mxu0 0.0
        %3658 = vmatpush1.msra.mxu0 %v3642
        %3659 = vmatprep.subr.mxu0 0.0
        %3660 = vmatpush1.msra.mxu0 %v3643
        %3661 = vmatprep.subr.mxu0 0.0
        %3662 = vmatpush1.msra.mxu0 %v3644
        %3663 = vmatprep.subr.mxu0 0.0
        %3664 = vmatpush1.msra.mxu0 %v3645
        %3665 = vmatprep.subr.mxu0 0.0
        %3666 = vmatpush1.msra.mxu0 %v3646
        %3667 = vmatprep.subr.mxu0 0.0
        %3668 = vmatpush1.msra.mxu0 0.0
        %3669 = vmatprep.subr.mxu0 0.0
        %3670 = vmatpush1.msra.mxu0 0.0
        %3671 = vmatprep.subr.mxu0 0.0
        %3672 = vmatpush1.msra.mxu0 0.0
        %3673 = vmatprep.subr.mxu0 0.0
        %3674 = vmatpush1.msra.mxu0 0.0
        %3675 = vmatprep.subr.mxu0 0.0
        %3676 = vmatpush1.msra.mxu0 0.0
        %3677 = vmatprep.subr.mxu0 0.0
        %3678 = vmatpush1.msra.mxu0 0.0
        %3679 = vmatprep.subr.mxu0 0.0
        %3680 = vmatpush1.msra.mxu0 0.0
        %3681 = vmatprep.subr.mxu0 0.0
        %3682 = vmatpush1.msra.mxu0 0.0
        %3683 = vmatprep.subr.mxu0 0.0
        %3684 = vmatpush1.msra.mxu0 0.0
        %3685 = vmatprep.subr.mxu0 0.0
        %3686 = vmatpush1.msra.mxu0 0.0
        %3687 = vmatprep.subr.mxu0 0.0
        %3688 = vmatpush1.msra.mxu0 0.0
        %3689 = vmatprep.subr.mxu0 0.0
        %3690 = vmatpush1.msra.mxu0 0.0
        %3691 = vmatprep.subr.mxu0 0.0
        %3692 = vmatpush1.msra.mxu0 0.0
        %3693 = vmatprep.subr.mxu0 0.0
        %3694 = vmatpush1.msra.mxu0 0.0
        %3695 = vmatprep.subr.mxu0 0.0
        %3696 = vmatpush1.msra.mxu0 0.0
        %3697 = vmatprep.subr.mxu0 0.0
        %3698 = vmatpush1.msra.mxu0 0.0
        %3699 = vmatprep.subr.mxu0 0.0
        %3700 = vmatpush1.msra.mxu0 0.0
        %3701 = vmatprep.subr.mxu0 0.0
        %3702 = vmatpush1.msra.mxu0 0.0
        %3703 = vmatprep.subr.mxu0 0.0
        %3704 = vmatpush1.msra.mxu0 0.0
        %3705 = vmatprep.subr.mxu0 0.0
        %3706 = vmatpush1.msra.mxu0 0.0
        %3707 = vmatprep.subr.mxu0 0.0
        %3708 = vmatpush1.msra.mxu0 0.0
        %3709 = vmatprep.subr.mxu0 0.0
        %3710 = vmatpush1.msra.mxu0 0.0
        %3711 = vmatprep.subr.mxu0 0.0
        %3712 = vmatpush1.msra.mxu0 0.0
        %3713 = vmatprep.subr.mxu0 0.0
        %3714 = vmatpush1.msra.mxu0 0.0
        %3715 = vmatprep.mubr.f32.mxu0 0.0
        %3716 = vmatmul.mubr.f32.gmra.mrb[0].mxu0 %v3649
        %v3717 = vpop.f32.mrb[0].mxu0
        %v3718 = vadd.f32 %v3647, %v3717
        %v3719 = vpop.f32.mrb[0].mxu0
        %3720 = vdwg.mxu0
        %vm3721 = vcmask 385024
        %3722 = vst.msk [vmem:[%s557] sm:$0x1] %vm3721, %v3718
        %s3723 = sand.u32 %s368, 1
        %s3724 = scalar_lea.sflag [#allocation3], %s3723
        %s3725 = sand.u32 %s368, 1
        %s3726 = scalar_lea.vmem [#allocation2], %s3725
        %p3727 = scmp.lt.s32.totalorder %s35, 1
        %s3728 = scalar_select %p3727, %s35, 1
        %s3729 = smul.addr %s3728, 4
        %s3730 = scalar_lea.vmem %s16, %s3729
        %s3731 = sand.u32 %s420, 1
        %s3732 = scalar_lea.sflag [#allocation5], %s3731
        %s3733 = sand.u32 %s420, 1
        %s3734 = smul.addr %s3733, 20
        %s3735 = scalar_lea.vmem [#allocation4], %s3734
        // Predicated region
        $region81: #{mustafa_forward.19} parent=79 // pred_check
          %p3736 = pneg %p378
        $region82: #{mustafa_forward.19} parent=79 // pred_check_branch
          %3738 = sbr.rel (%p3736) target = $region84
        $region83: #{mustafa_forward.19} parent=79 // pred_region
          %s3740 = ssub.s32 16, 16
          %3741 = vsyncadd %s3724, %s3740
          %s3742 = smul.addr %s35, 16
          %s3743 = scalar_lea.hbm %s15, %s3742
          %s3745 = sshll.u32 %s3726, 4
          %s3746 = int_to_ptr.vmem [resolvable:$true] %s3745
          %3748 = dma.vmem_to_hbm [thread:$0]  %s3746, 16, %s3743, %s3724
        $region84: #{mustafa_forward.19} parent=79 // pred_fallthru
          _
        // Predicated region
        $region85: #{mustafa_forward.19} parent=79 // pred_check
          %p3749 = pneg %p404
        $region86: #{mustafa_forward.19} parent=79 // pred_check_branch
          %3751 = sbr.rel (%p3749) target = $region88
        $region87: #{mustafa_forward.19} parent=79 // pred_region
          _
        $region88: #{mustafa_forward.19} parent=79 // pred_fallthru
          _
        // Predicated region
        $region89: #{mustafa_forward.19} parent=79 // pred_check
          %p3752 = pneg %p430
        $region90: #{mustafa_forward.19} parent=79 // pred_check_branch
          %3754 = sbr.rel (%p3752) target = $region92
        $region91: #{mustafa_forward.19} parent=79 // pred_region
          %s3756 = ssub.s32 320, 320
          %3757 = vsyncadd %s3732, %s3756
          %s3758 = smul.addr %s35, 5
          %s3759 = smul.addr %s3758, 64
          %s3760 = scalar_lea.hbm %s17, %s3759
          %s3762 = sshll.u32 %s3735, 4
          %s3763 = int_to_ptr.vmem [resolvable:$true] %s3762
          %3765 = dma.vmem_to_hbm [thread:$0]  %s3763, 320, %s3760, %s3732
        $region92: #{mustafa_forward.19} parent=79 // pred_fallthru
          _
      $region80: #{mustafa_forward.19} parent=5 // pred_fallthru
        _
      %p3766 = scmp.le.s32.totalorder 2, %s30
      // Predicated region
      $region93: #{mustafa_forward.19} parent=5 // pred_check
        %p3767 = pneg %p3766
      $region94: #{mustafa_forward.19} parent=5 // pred_check_branch
        %3769 = sbr.rel (%p3767) target = $region96
      $region95: #{mustafa_forward.19} parent=5 // pred_region
        %s3770 = ssub.s32 %s30, 2
        // Predicated region
        $region97: #{mustafa_forward.19} parent=95 // pred_check
          %p3771 = pneg %p384
        $region98: #{mustafa_forward.19} parent=95 // pred_check_branch
          %3773 = sbr.rel (%p3771) target = $region100
        $region99: #{mustafa_forward.19} parent=95 // pred_region
          %s3774 = sand.u32 %s369, 1
          %s3775 = scalar_lea.sflag [#allocation3], %s3774
          %s3776 = sand.u32 %s369, 1
          %s3777 = scalar_lea.vmem [#allocation2], %s3776
          %3778 = dma.done %s3775, 16
        $region100: #{mustafa_forward.19} parent=95 // pred_fallthru
          _
        // Predicated region
        $region101: #{mustafa_forward.19} parent=95 // pred_check
          %p3779 = pneg %p410
        $region102: #{mustafa_forward.19} parent=95 // pred_check_branch
          %3781 = sbr.rel (%p3779) target = $region104
        $region103: #{mustafa_forward.19} parent=95 // pred_region
          %p3782 = scmp.lt.s32.totalorder %s36, 1
          %s3783 = scalar_select %p3782, %s36, 1
          %s3784 = smul.addr %s3783, 4
          %s3785 = scalar_lea.vmem %s16, %s3784
        $region104: #{mustafa_forward.19} parent=95 // pred_fallthru
          _
        // Predicated region
        $region105: #{mustafa_forward.19} parent=95 // pred_check
          %p3786 = pneg %p436
        $region106: #{mustafa_forward.19} parent=95 // pred_check_branch
          %3788 = sbr.rel (%p3786) target = $region108
        $region107: #{mustafa_forward.19} parent=95 // pred_region
          %s3789 = sand.u32 %s421, 1
          %s3790 = scalar_lea.sflag [#allocation5], %s3789
          %s3791 = sand.u32 %s421, 1
          %s3792 = smul.addr %s3791, 20
          %s3793 = scalar_lea.vmem [#allocation4], %s3792
          %3794 = dma.done %s3790, 320
        $region108: #{mustafa_forward.19} parent=95 // pred_fallthru
          _
      $region96: #{mustafa_forward.19} parent=5 // pred_fallthru
        _
    $region6: #{mustafa_forward.19} parent=1 // loop_footer
      %s34 = sadd.s32 1, %s30
    $region7: #{mustafa_forward.19} parent=1 // loop_footer_branch
      %29 = sbr.rel target = $region3
    $region8: #{mustafa_forward.19} parent=1 // loop_exit
      _
    %3795 = vsyncpa [#allocation3], 1
    %s3796 = scalar_lea.sflag [#allocation3], 1
    %3797 = vsyncpa %s3796, 1
    %3798 = vsyncpa [#allocation5], 1
    %s3799 = scalar_lea.sflag [#allocation5], 1
    %3800 = vsyncpa %s3799, 1

</llo_original>
